<compile_context>
chip_gen: v7x
topology: tpu7x:2x2x1
jax: 0.10.0
libtpu: 0.0.40
codegen_flags: <defaults>
</compile_context>

<pallas_src>
import jax
import jax.numpy as jnp
from jax.experimental import pallas as pl
from jax.experimental.pallas import tpu as pltpu

K_FC = 30 * 30 * 16          # 14400 flattened features
K_PAD = 512 * 30             # 15360 = 120*128 -> lane-aligned K for the fc kernel


# ---------------------------------------------------------------------------
# Kernel 1: fused conv1 -> maxpool -> conv2 -> maxpool (one image / grid step)
# ---------------------------------------------------------------------------
def fused_conv_kernel(x_ref, w1_ref, b1_ref, w2_ref, b2_ref,
                      pt1s_ref, pt2_ref, o_ref,
                      xsh1, acc1, cm1, xsh2, acc2, cm2):
    # x_ref   : (1, 1, 126, 126) VMEM
    # w1_ref  : (36,)  SMEM   conv1 weight, flat [co, ci=1, kh, kw]
    # b1_ref  : (4,)   SMEM
    # w2_ref  : (576,) SMEM   conv2 weight, flat [co, ci, kh, kw]
    # b2_ref  : (16,)  SMEM
    # pt1s_ref: (3, 123, 60) VMEM  pool1 even-column selectors, pre-shifted by kw
    # pt2_ref : (59, 30)     VMEM  pool2 even-column selector
    # o_ref   : (1, 512, 30) VMEM  rows c*30+r = pooled2[c, r, :]; rows 480.. = 0

    # ---- stage the 3 kw (lane) shifted copies of the image once ----
    x = x_ref[0, 0]                                        # (126, 126)
    for kw in range(3):
        xsh1[kw] = x[:, kw:kw + 124]                       # (126, 124)

    # ---- conv1 (1->4, k3, valid) + 2x2/2 pool (rows now, columns later) ----
    for co in range(4):
        acc = jnp.zeros((124, 124), jnp.float32)
        for kh in range(3):
            for kw in range(3):
                w = w1_ref[co * 9 + kh * 3 + kw]
                acc = acc + w * xsh1[kw, kh:kh + 124, :]   # sublane-offset load
        acc = acc + b1_ref[co]
        acc1[...] = acc
        ev = acc1[pl.ds(0, 62, stride=2), :]               # rows 0,2,...,122
        od = acc1[pl.ds(1, 62, stride=2), :]               # rows 1,3,...,123
        rm = jnp.maximum(ev, od)                           # (62, 124)
        cm = jnp.maximum(rm[:, 0:123], rm[:, 1:124])       # (62, 123)
        cm1[co * 62:(co + 1) * 62, :] = cm                 # stack channels on rows

    # ---- finish pool1 (even-column pick) and, in the same MXU op, produce the
    #      three kw-shifted conv2 input slabs:
    #      xsh2[kw][ci*62 + r, q] = pool1(conv1)[ci, r, q + kw] ----
    for kw in range(3):
        xsh2[kw] = jnp.dot(cm1[...], pt1s_ref[kw],
                           preferred_element_type=jnp.float32)   # (248, 60)

    # ---- conv2 (4->16, k3, valid) + row-pool, fori_loop over output channel ----
    cm2[480:512, :] = jnp.zeros((32, 59), jnp.float32)     # zero the fc K-pad rows

    def conv2_body(co, carry):
        acc = jnp.zeros((60, 60), jnp.float32)
        for ci in range(4):
            base = ci * 62
            for kh in range(3):
                for kw in range(3):
                    w = w2_ref[co * 36 + ci * 9 + kh * 3 + kw]
                    acc = acc + w * xsh2[kw, base + kh:base + kh + 60, :]
        acc = acc + b2_ref[co]
        acc2[...] = acc
        ev = acc2[pl.ds(0, 30, stride=2), :]
        od = acc2[pl.ds(1, 30, stride=2), :]
        rm = jnp.maximum(ev, od)                           # (30, 60)
        cm = jnp.maximum(rm[:, 0:59], rm[:, 1:60])         # (30, 59)
        cm2[pl.ds(co * 30, 30), :] = cm
        return carry

    jax.lax.fori_loop(0, 16, conv2_body, 0)

    # ---- pool2 even-column pick for all 16 channels in ONE matmul; the result
    #      rows are already in C,H (flatten) order, written in one store ----
    o_ref[0] = jnp.dot(cm2[...], pt2_ref[...],
                       preferred_element_type=jnp.float32)  # (512, 30)


def fused_conv_forward(x, w1, b1, w2, b2, pt1s, pt2):
    B = x.shape[0]
    return pl.pallas_call(
        fused_conv_kernel,
        out_shape=jax.ShapeDtypeStruct((B, 512, 30), jnp.float32),
        grid=(B,),
        in_specs=[
            pl.BlockSpec((1, 1, 126, 126), lambda b: (b, 0, 0, 0)),
            pl.BlockSpec(memory_space=pltpu.MemorySpace.SMEM),
            pl.BlockSpec(memory_space=pltpu.MemorySpace.SMEM),
            pl.BlockSpec(memory_space=pltpu.MemorySpace.SMEM),
            pl.BlockSpec(memory_space=pltpu.MemorySpace.SMEM),
            pl.BlockSpec((3, 123, 60), lambda b: (0, 0, 0)),
            pl.BlockSpec((59, 30), lambda b: (0, 0)),
        ],
        out_specs=pl.BlockSpec((1, 512, 30), lambda b: (b, 0, 0)),
        scratch_shapes=[
            pltpu.VMEM((3, 126, 124), jnp.float32),   # xsh1: kw-shifted image
            pltpu.VMEM((124, 124), jnp.float32),      # acc1: conv1 pre-pool
            pltpu.VMEM((248, 123), jnp.float32),      # cm1 : conv1 column-max (4ch)
            pltpu.VMEM((3, 248, 60), jnp.float32),    # xsh2: kw-shifted conv2 input
            pltpu.VMEM((60, 60), jnp.float32),        # acc2: conv2 pre-pool
            pltpu.VMEM((512, 59), jnp.float32),       # cm2 : conv2 column-max (16ch)
        ],
        compiler_params=pltpu.CompilerParams(
            dimension_semantics=("parallel",)),       # batch axis -> both v7x cores
    )(x, w1, b1, w2, b2, pt1s, pt2)


# ---------------------------------------------------------------------------
# Kernel 2: fc1 (14400->128) + fc2 (128->C), K-tiled with VMEM accumulator.
# ---------------------------------------------------------------------------
def fc_kernel(x_ref, w1_ref, b1_ref, w2_ref, b2_ref, o_ref, acc_ref):
    @pl.when(pl.program_id(0) == 0)
    def _():
        acc_ref[...] = jnp.zeros_like(acc_ref)

    acc_ref[...] += jnp.dot(x_ref[...], w1_ref[...],
                            preferred_element_type=jnp.float32)

    @pl.when(pl.program_id(0) == pl.num_programs(0) - 1)
    def _():
        h = acc_ref[...] + b1_ref[...]                       # (B, 128)
        o_ref[...] = jnp.dot(h, w2_ref[...],
                             preferred_element_type=jnp.float32) + b2_ref[...]


def fc_forward(x, w1, b1, w2, b2, *, tk=1920):
    B, K = x.shape
    hidden = w1.shape[1]
    num_classes = w2.shape[1]
    assert K % tk == 0 and tk % 128 == 0
    return pl.pallas_call(
        fc_kernel,
        out_shape=jax.ShapeDtypeStruct((B, num_classes), jnp.float32),
        grid=(K // tk,),
        in_specs=[
            pl.BlockSpec((B, tk), lambda k: (0, k)),
            pl.BlockSpec((tk, hidden), lambda k: (k, 0)),
            pl.BlockSpec((1, hidden), lambda k: (0, 0)),
            pl.BlockSpec((hidden, num_classes), lambda k: (0, 0)),
            pl.BlockSpec((1, num_classes), lambda k: (0, 0)),
        ],
        out_specs=pl.BlockSpec((B, num_classes), lambda k: (0, 0)),
        scratch_shapes=[pltpu.VMEM((B, hidden), jnp.float32)],
        compiler_params=pltpu.CompilerParams(
            dimension_semantics=("arbitrary",)),   # K reduction; default VMEM limit
    )(x, w1, b1, w2, b2)


# ---------------------------------------------------------------------------
# Host-side glue.
# ---------------------------------------------------------------------------
def _pool_selector(n_out):
    """(2*n_out-1, n_out) 0/1 matrix S with S[2i, i] = 1 (even-column picker)."""
    n_in = 2 * n_out - 1
    rows = jnp.arange(n_in)[:, None]
    cols = jnp.arange(n_out)[None, :]
    return (rows == 2 * cols).astype(jnp.float32)


def cnn_forward(x, params):
    """CNNModel.forward for NCHW float32 input of shape (B, 1, 126, 126)."""
    pt1 = _pool_selector(62)                                          # (123, 62)
    pt1s = jnp.stack([pt1[:, kw:kw + 60] for kw in range(3)])         # (3, 123, 60)
    pt2 = _pool_selector(30)                                          # (59, 30)
    conv = fused_conv_forward(x, params["conv1_w"], params["conv1_b"],
                              params["conv2_w"], params["conv2_b"],
                              pt1s, pt2)                              # (B, 512, 30)
    # Contiguous (free) reshape: first 14400 entries are exactly torch's
    # out.view(B, -1) order; the trailing 960 entries are zeros that pair with
    # zero rows of the padded fc1 weight.
    flat = conv.reshape(conv.shape[0], K_PAD)                         # (B, 15360)
    return fc_forward(flat, params["fc1_w"], params["fc1_b"],
                      params["fc2_w"], params["fc2_b"])               # (B, C)


def init_params(key, num_classes=10):
    ks = jax.random.split(key, 8)
    # conv weights stored flattened [co, ci, kh, kw] (== torch .weight.reshape(-1)).
    fc1_w = jax.random.normal(ks[4], (K_FC, 128), jnp.float32) * 0.01
    fc1_w = jnp.pad(fc1_w, ((0, K_PAD - K_FC), (0, 0)))   # zero K-pad: same math
    return {
        "conv1_w": jax.random.normal(ks[0], (4 * 1 * 3 * 3,), jnp.float32) * 0.1,
        "conv1_b": jax.random.normal(ks[1], (4,), jnp.float32) * 0.1,
        "conv2_w": jax.random.normal(ks[2], (16 * 4 * 3 * 3,), jnp.float32) * 0.1,
        "conv2_b": jax.random.normal(ks[3], (16,), jnp.float32) * 0.1,
        # linear weights stored transposed (torch fc.weight.T): y = x @ W + b
        "fc1_w": fc1_w,
        "fc1_b": jax.random.normal(ks[5], (1, 128), jnp.float32) * 0.1,
        "fc2_w": jax.random.normal(ks[6], (128, num_classes), jnp.float32) * 0.1,
        "fc2_b": jax.random.normal(ks[7], (1, num_classes), jnp.float32) * 0.1,
    }
    # TODO(synk): ImageClassificationBase.cross_entropy_loss is a training helper
    # and is not part of forward(); not implemented here.


if __name__ == "__main__":
    key = jax.random.PRNGKey(0)
    k_x, k_p = jax.random.split(key)
    batch, num_classes = 2, 10
    # img_size is pinned to 126 by fc1 (30*30*16 flattened features).
    x = jax.random.normal(k_x, (batch, 1, 126, 126), jnp.float32)
    params = init_params(k_p, num_classes=num_classes)

    fwd = jax.jit(cnn_forward)
    out = jax.block_until_ready(fwd(x, params))

    assert out.shape == (batch, num_classes), out.shape
    assert bool(jnp.all(jnp.isfinite(out)))
    print("KERNEL_OK")
</pallas_src>

<mosaic_0001>
module attributes {stable_mosaic.version = 11 : i64} {
  func.func @fc_kernel(%arg0: i32, %arg1: memref<2x1920xf32, #tpu.memory_space<vmem>>, %arg2: memref<1920x128xf32, #tpu.memory_space<vmem>>, %arg3: memref<1x128xf32, #tpu.memory_space<vmem>>, %arg4: memref<128x10xf32, #tpu.memory_space<vmem>>, %arg5: memref<1x10xf32, #tpu.memory_space<vmem>>, %arg6: memref<2x10xf32, #tpu.memory_space<vmem>>, %arg7: memref<2x128xf32, #tpu.memory_space<vmem>>) attributes {dimension_semantics = [#tpu.dimension_semantics<arbitrary>], iteration_bounds = array<i64: 8>, scalar_prefetch = 0 : i64, scratch_operands = 1 : i64, tpu.core_type = #tpu.core_type<tc>, window_params = [{transform_indices = @transform_0, window_bounds = array<i64: 2, 1920>}, {transform_indices = @transform_1, window_bounds = array<i64: 1920, 128>}, {pipeline_mode = #tpu.pipeline_mode<synchronous>, transform_indices = @transform_2, window_bounds = array<i64: 1, 128>}, {pipeline_mode = #tpu.pipeline_mode<synchronous>, transform_indices = @transform_3, window_bounds = array<i64: 128, 10>}, {pipeline_mode = #tpu.pipeline_mode<synchronous>, transform_indices = @transform_4, window_bounds = array<i64: 1, 10>}, {pipeline_mode = #tpu.pipeline_mode<synchronous>, transform_indices = @transform_5, window_bounds = array<i64: 2, 10>}]} {
    %c0_i32 = arith.constant 0 : i32
    %0 = arith.cmpi eq, %arg0, %c0_i32 : i32
    %1 = arith.extui %0 : i1 to i32
    %c0_i32_0 = arith.constant 0 : i32
    %2 = arith.cmpi ne, %1, %c0_i32_0 : i32
    scf.if %2 {
      %cst_9 = arith.constant 0.000000e+00 : f32
      %12 = vector.broadcast %cst_9 : f32 to vector<2x128xf32>
      %c0_10 = arith.constant 0 : index
      %c0_11 = arith.constant 0 : index
      %13 = vector.load %arg7[%c0_10, %c0_11] : memref<2x128xf32, #tpu.memory_space<vmem>>, vector<2x128xf32>
      tpu.vector_store %arg7[%c0_10, %c0_11], %12 {strides = array<i32>} : memref<2x128xf32, #tpu.memory_space<vmem>>, vector<2x128xf32>,
    } else {
    }
    %c0 = arith.constant 0 : index
    %c0_1 = arith.constant 0 : index
    %3 = vector.load %arg7[%c0, %c0_1] : memref<2x128xf32, #tpu.memory_space<vmem>>, vector<2x128xf32>
    %c0_2 = arith.constant 0 : index
    %c0_3 = arith.constant 0 : index
    %4 = vector.load %arg1[%c0_2, %c0_3] : memref<2x1920xf32, #tpu.memory_space<vmem>>, vector<2x1920xf32>
    %c0_4 = arith.constant 0 : index
    %c0_5 = arith.constant 0 : index
    %5 = vector.load %arg2[%c0_4, %c0_5] : memref<1920x128xf32, #tpu.memory_space<vmem>>, vector<1920x128xf32>
    %cst = arith.constant dense<0.000000e+00> : vector<2x128xf32>
    %6 = tpu.matmul %4, %5, %cst {dimension_numbers = #tpu.dot_dimension_numbers<[1], [0], [0], [1], [0, 0, 1, 1], [], []>} : vector<2x1920xf32>, vector<1920x128xf32>, vector<2x128xf32> -> vector<2x128xf32>
    %7 = arith.addf %3, %6 : vector<2x128xf32>
    %c0_6 = arith.constant 0 : index
    %c0_7 = arith.constant 0 : index
    %8 = vector.load %arg7[%c0_6, %c0_7] : memref<2x128xf32, #tpu.memory_space<vmem>>, vector<2x128xf32>
    tpu.vector_store %arg7[%c0_6, %c0_7], %7 {strides = array<i32>} : memref<2x128xf32, #tpu.memory_space<vmem>>, vector<2x128xf32>,
    %c7_i32 = arith.constant 7 : i32
    %9 = arith.cmpi eq, %arg0, %c7_i32 : i32
    %10 = arith.extui %9 : i1 to i32
    %c0_i32_8 = arith.constant 0 : i32
    %11 = arith.cmpi ne, %10, %c0_i32_8 : i32
    scf.if %11 {
      %c0_9 = arith.constant 0 : index
      %c0_10 = arith.constant 0 : index
      %12 = vector.load %arg7[%c0_9, %c0_10] : memref<2x128xf32, #tpu.memory_space<vmem>>, vector<2x128xf32>
      %c0_11 = arith.constant 0 : index
      %c0_12 = arith.constant 0 : index
      %13 = vector.load %arg3[%c0_11, %c0_12] : memref<1x128xf32, #tpu.memory_space<vmem>>, vector<1x128xf32>
      %14 = vector.broadcast %13 : vector<1x128xf32> to vector<2x128xf32>
      %15 = arith.addf %12, %14 : vector<2x128xf32>
      %c0_13 = arith.constant 0 : index
      %c0_14 = arith.constant 0 : index
      %16 = vector.load %arg4[%c0_13, %c0_14] : memref<128x10xf32, #tpu.memory_space<vmem>>, vector<128x10xf32>
      %cst_15 = arith.constant dense<0.000000e+00> : vector<2x10xf32>
      %17 = tpu.matmul %15, %16, %cst_15 {dimension_numbers = #tpu.dot_dimension_numbers<[1], [0], [0], [1], [0, 0, 1, 1], [], []>} : vector<2x128xf32>, vector<128x10xf32>, vector<2x10xf32> -> vector<2x10xf32>
      %c0_16 = arith.constant 0 : index
      %c0_17 = arith.constant 0 : index
      %18 = vector.load %arg5[%c0_16, %c0_17] : memref<1x10xf32, #tpu.memory_space<vmem>>, vector<1x10xf32>
      %19 = vector.broadcast %18 : vector<1x10xf32> to vector<2x10xf32>
      %20 = arith.addf %17, %19 : vector<2x10xf32>
      %c0_18 = arith.constant 0 : index
      %c0_19 = arith.constant 0 : index
      %21 = vector.load %arg6[%c0_18, %c0_19] : memref<2x10xf32, #tpu.memory_space<vmem>>, vector<2x10xf32>
      tpu.vector_store %arg6[%c0_18, %c0_19], %20 {strides = array<i32>} : memref<2x10xf32, #tpu.memory_space<vmem>>, vector<2x10xf32>,
    } else {
    }
    return
  }
  func.func @transform_0(%arg0: i32) -> (i32, i32) {
    %c0_i32 = arith.constant 0 : i32
    %c0_i32_0 = arith.constant 0 : i32
    return %c0_i32, %arg0 : i32, i32
  }
  func.func @transform_1(%arg0: i32) -> (i32, i32) {
    %c0_i32 = arith.constant 0 : i32
    %c0_i32_0 = arith.constant 0 : i32
    return %arg0, %c0_i32 : i32, i32
  }
  func.func @transform_2(%arg0: i32) -> (i32, i32) {
    %c0_i32 = arith.constant 0 : i32
    %c0_i32_0 = arith.constant 0 : i32
    %c0_i32_1 = arith.constant 0 : i32
    return %c0_i32, %c0_i32_0 : i32, i32
  }
  func.func @transform_3(%arg0: i32) -> (i32, i32) {
    %c0_i32 = arith.constant 0 : i32
    %c0_i32_0 = arith.constant 0 : i32
    %c0_i32_1 = arith.constant 0 : i32
    return %c0_i32, %c0_i32_0 : i32, i32
  }
  func.func @transform_4(%arg0: i32) -> (i32, i32) {
    %c0_i32 = arith.constant 0 : i32
    %c0_i32_0 = arith.constant 0 : i32
    %c0_i32_1 = arith.constant 0 : i32
    return %c0_i32, %c0_i32_0 : i32, i32
  }
  func.func @transform_5(%arg0: i32) -> (i32, i32) {
    %c0_i32 = arith.constant 0 : i32
    %c0_i32_0 = arith.constant 0 : i32
    %c0_i32_1 = arith.constant 0 : i32
    return %c0_i32, %c0_i32_0 : i32, i32
  }
}

module attributes {stable_mosaic.version = 11 : i64} {
  func.func @fused_conv_kernel(%arg0: i32, %arg1: memref<1x1x126x126xf32, #tpu.memory_space<vmem>>, %arg2: memref<36xf32, #tpu.memory_space<smem>>, %arg3: memref<4xf32, #tpu.memory_space<smem>>, %arg4: memref<576xf32, #tpu.memory_space<smem>>, %arg5: memref<16xf32, #tpu.memory_space<smem>>, %arg6: memref<3x123x60xf32, #tpu.memory_space<vmem>>, %arg7: memref<59x30xf32, #tpu.memory_space<vmem>>, %arg8: memref<1x512x30xf32, #tpu.memory_space<vmem>>, %arg9: memref<3x126x124xf32, #tpu.memory_space<vmem>>, %arg10: memref<124x124xf32, #tpu.memory_space<vmem>>, %arg11: memref<248x123xf32, #tpu.memory_space<vmem>>, %arg12: memref<3x248x60xf32, #tpu.memory_space<vmem>>, %arg13: memref<60x60xf32, #tpu.memory_space<vmem>>, %arg14: memref<512x59xf32, #tpu.memory_space<vmem>>) attributes {dimension_semantics = [#tpu.dimension_semantics<parallel>], iteration_bounds = array<i64: 2>, scalar_prefetch = 0 : i64, scratch_operands = 6 : i64, tpu.core_type = #tpu.core_type<tc>, window_params = [{transform_indices = @transform_0, window_bounds = array<i64: 1, 1, 126, 126>}, {transform_indices = @transform_1, window_bounds = array<i64: 36>}, {transform_indices = @transform_2, window_bounds = array<i64: 4>}, {transform_indices = @transform_3, window_bounds = array<i64: 576>}, {transform_indices = @transform_4, window_bounds = array<i64: 16>}, {pipeline_mode = #tpu.pipeline_mode<synchronous>, transform_indices = @transform_5, window_bounds = array<i64: 3, 123, 60>}, {pipeline_mode = #tpu.pipeline_mode<synchronous>, transform_indices = @transform_6, window_bounds = array<i64: 59, 30>}, {transform_indices = @transform_7, window_bounds = array<i64: 1, 512, 30>}]} {
    %c0 = arith.constant 0 : index
    %c0_0 = arith.constant 0 : index
    %c0_1 = arith.constant 0 : index
    %c0_2 = arith.constant 0 : index
    %0 = vector.load %arg1[%c0, %c0_0, %c0_1, %c0_2] : memref<1x1x126x126xf32, #tpu.memory_space<vmem>>, vector<1x1x126x126xf32>
    %1 = vector.shape_cast %0 : vector<1x1x126x126xf32> to vector<126x126xf32>
    %2 = vector.extract_strided_slice %1 {offsets = [0, 0], sizes = [126, 124], strides = [1, 1]} : vector<126x126xf32> to vector<126x124xf32>
    %c0_3 = arith.constant 0 : index
    %c0_4 = arith.constant 0 : index
    %c0_5 = arith.constant 0 : index
    %3 = vector.load %arg9[%c0_3, %c0_4, %c0_5] : memref<3x126x124xf32, #tpu.memory_space<vmem>>, vector<1x126x124xf32>
    %4 = vector.shape_cast %3 : vector<1x126x124xf32> to vector<126x124xf32>
    %5 = vector.shape_cast %2 : vector<126x124xf32> to vector<1x126x124xf32>
    tpu.vector_store %arg9[%c0_3, %c0_4, %c0_5], %5 {strides = array<i32>} : memref<3x126x124xf32, #tpu.memory_space<vmem>>, vector<1x126x124xf32>,
    %6 = vector.extract_strided_slice %1 {offsets = [0, 1], sizes = [126, 124], strides = [1, 1]} : vector<126x126xf32> to vector<126x124xf32>
    %c1 = arith.constant 1 : index
    %c0_6 = arith.constant 0 : index
    %c0_7 = arith.constant 0 : index
    %7 = vector.load %arg9[%c1, %c0_6, %c0_7] : memref<3x126x124xf32, #tpu.memory_space<vmem>>, vector<1x126x124xf32>
    %8 = vector.shape_cast %7 : vector<1x126x124xf32> to vector<126x124xf32>
    %9 = vector.shape_cast %6 : vector<126x124xf32> to vector<1x126x124xf32>
    tpu.vector_store %arg9[%c1, %c0_6, %c0_7], %9 {strides = array<i32>} : memref<3x126x124xf32, #tpu.memory_space<vmem>>, vector<1x126x124xf32>,
    %10 = vector.extract_strided_slice %1 {offsets = [0, 2], sizes = [126, 124], strides = [1, 1]} : vector<126x126xf32> to vector<126x124xf32>
    %c2 = arith.constant 2 : index
    %c0_8 = arith.constant 0 : index
    %c0_9 = arith.constant 0 : index
    %11 = vector.load %arg9[%c2, %c0_8, %c0_9] : memref<3x126x124xf32, #tpu.memory_space<vmem>>, vector<1x126x124xf32>
    %12 = vector.shape_cast %11 : vector<1x126x124xf32> to vector<126x124xf32>
    %13 = vector.shape_cast %10 : vector<126x124xf32> to vector<1x126x124xf32>
    tpu.vector_store %arg9[%c2, %c0_8, %c0_9], %13 {strides = array<i32>} : memref<3x126x124xf32, #tpu.memory_space<vmem>>, vector<1x126x124xf32>,
    %cst = arith.constant 0.000000e+00 : f32
    %14 = vector.broadcast %cst : f32 to vector<124x124xf32>
    %c0_10 = arith.constant 0 : index
    %15 = memref.load %arg2[%c0_10] : memref<36xf32, #tpu.memory_space<smem>>
    %c0_11 = arith.constant 0 : index
    %c0_12 = arith.constant 0 : index
    %c0_13 = arith.constant 0 : index
    %16 = vector.load %arg9[%c0_11, %c0_12, %c0_13] : memref<3x126x124xf32, #tpu.memory_space<vmem>>, vector<1x124x124xf32>
    %17 = vector.shape_cast %16 : vector<1x124x124xf32> to vector<124x124xf32>
    %18 = vector.broadcast %15 : f32 to vector<124x124xf32>
    %19 = arith.mulf %18, %17 : vector<124x124xf32>
    %20 = arith.addf %14, %19 : vector<124x124xf32>
    %c1_14 = arith.constant 1 : index
    %21 = memref.load %arg2[%c1_14] : memref<36xf32, #tpu.memory_space<smem>>
    %c1_15 = arith.constant 1 : index
    %c0_16 = arith.constant 0 : index
    %c0_17 = arith.constant 0 : index
    %22 = vector.load %arg9[%c1_15, %c0_16, %c0_17] : memref<3x126x124xf32, #tpu.memory_space<vmem>>, vector<1x124x124xf32>
    %23 = vector.shape_cast %22 : vector<1x124x124xf32> to vector<124x124xf32>
    %24 = vector.broadcast %21 : f32 to vector<124x124xf32>
    %25 = arith.mulf %24, %23 : vector<124x124xf32>
    %26 = arith.addf %20, %25 : vector<124x124xf32>
    %c2_18 = arith.constant 2 : index
    %27 = memref.load %arg2[%c2_18] : memref<36xf32, #tpu.memory_space<smem>>
    %c2_19 = arith.constant 2 : index
    %c0_20 = arith.constant 0 : index
    %c0_21 = arith.constant 0 : index
    %28 = vector.load %arg9[%c2_19, %c0_20, %c0_21] : memref<3x126x124xf32, #tpu.memory_space<vmem>>, vector<1x124x124xf32>
    %29 = vector.shape_cast %28 : vector<1x124x124xf32> to vector<124x124xf32>
    %30 = vector.broadcast %27 : f32 to vector<124x124xf32>
    %31 = arith.mulf %30, %29 : vector<124x124xf32>
    %32 = arith.addf %26, %31 : vector<124x124xf32>
    %c3 = arith.constant 3 : index
    %33 = memref.load %arg2[%c3] : memref<36xf32, #tpu.memory_space<smem>>
    %c0_22 = arith.constant 0 : index
    %c1_23 = arith.constant 1 : index
    %c0_24 = arith.constant 0 : index
    %34 = vector.load %arg9[%c0_22, %c1_23, %c0_24] : memref<3x126x124xf32, #tpu.memory_space<vmem>>, vector<1x124x124xf32>
    %35 = vector.shape_cast %34 : vector<1x124x124xf32> to vector<124x124xf32>
    %36 = vector.broadcast %33 : f32 to vector<124x124xf32>
    %37 = arith.mulf %36, %35 : vector<124x124xf32>
    %38 = arith.addf %32, %37 : vector<124x124xf32>
    %c4 = arith.constant 4 : index
    %39 = memref.load %arg2[%c4] : memref<36xf32, #tpu.memory_space<smem>>
    %c1_25 = arith.constant 1 : index
    %c1_26 = arith.constant 1 : index
    %c0_27 = arith.constant 0 : index
    %40 = vector.load %arg9[%c1_25, %c1_26, %c0_27] : memref<3x126x124xf32, #tpu.memory_space<vmem>>, vector<1x124x124xf32>
    %41 = vector.shape_cast %40 : vector<1x124x124xf32> to vector<124x124xf32>
    %42 = vector.broadcast %39 : f32 to vector<124x124xf32>
    %43 = arith.mulf %42, %41 : vector<124x124xf32>
    %44 = arith.addf %38, %43 : vector<124x124xf32>
    %c5 = arith.constant 5 : index
    %45 = memref.load %arg2[%c5] : memref<36xf32, #tpu.memory_space<smem>>
    %c2_28 = arith.constant 2 : index
    %c1_29 = arith.constant 1 : index
    %c0_30 = arith.constant 0 : index
    %46 = vector.load %arg9[%c2_28, %c1_29, %c0_30] : memref<3x126x124xf32, #tpu.memory_space<vmem>>, vector<1x124x124xf32>
    %47 = vector.shape_cast %46 : vector<1x124x124xf32> to vector<124x124xf32>
    %48 = vector.broadcast %45 : f32 to vector<124x124xf32>
    %49 = arith.mulf %48, %47 : vector<124x124xf32>
    %50 = arith.addf %44, %49 : vector<124x124xf32>
    %c6 = arith.constant 6 : index
    %51 = memref.load %arg2[%c6] : memref<36xf32, #tpu.memory_space<smem>>
    %c0_31 = arith.constant 0 : index
    %c2_32 = arith.constant 2 : index
    %c0_33 = arith.constant 0 : index
    %52 = vector.load %arg9[%c0_31, %c2_32, %c0_33] : memref<3x126x124xf32, #tpu.memory_space<vmem>>, vector<1x124x124xf32>
    %53 = vector.shape_cast %52 : vector<1x124x124xf32> to vector<124x124xf32>
    %54 = vector.broadcast %51 : f32 to vector<124x124xf32>
    %55 = arith.mulf %54, %53 : vector<124x124xf32>
    %56 = arith.addf %50, %55 : vector<124x124xf32>
    %c7 = arith.constant 7 : index
    %57 = memref.load %arg2[%c7] : memref<36xf32, #tpu.memory_space<smem>>
    %c1_34 = arith.constant 1 : index
    %c2_35 = arith.constant 2 : index
    %c0_36 = arith.constant 0 : index
    %58 = vector.load %arg9[%c1_34, %c2_35, %c0_36] : memref<3x126x124xf32, #tpu.memory_space<vmem>>, vector<1x124x124xf32>
    %59 = vector.shape_cast %58 : vector<1x124x124xf32> to vector<124x124xf32>
    %60 = vector.broadcast %57 : f32 to vector<124x124xf32>
    %61 = arith.mulf %60, %59 : vector<124x124xf32>
    %62 = arith.addf %56, %61 : vector<124x124xf32>
    %c8 = arith.constant 8 : index
    %63 = memref.load %arg2[%c8] : memref<36xf32, #tpu.memory_space<smem>>
    %c2_37 = arith.constant 2 : index
    %c2_38 = arith.constant 2 : index
    %c0_39 = arith.constant 0 : index
    %64 = vector.load %arg9[%c2_37, %c2_38, %c0_39] : memref<3x126x124xf32, #tpu.memory_space<vmem>>, vector<1x124x124xf32>
    %65 = vector.shape_cast %64 : vector<1x124x124xf32> to vector<124x124xf32>
    %66 = vector.broadcast %63 : f32 to vector<124x124xf32>
    %67 = arith.mulf %66, %65 : vector<124x124xf32>
    %68 = arith.addf %62, %67 : vector<124x124xf32>
    %c0_40 = arith.constant 0 : index
    %69 = memref.load %arg3[%c0_40] : memref<4xf32, #tpu.memory_space<smem>>
    %70 = vector.broadcast %69 : f32 to vector<124x124xf32>
    %71 = arith.addf %68, %70 : vector<124x124xf32>
    %c0_41 = arith.constant 0 : index
    %c0_42 = arith.constant 0 : index
    %72 = vector.load %arg10[%c0_41, %c0_42] : memref<124x124xf32, #tpu.memory_space<vmem>>, vector<124x124xf32>
    tpu.vector_store %arg10[%c0_41, %c0_42], %71 {strides = array<i32>} : memref<124x124xf32, #tpu.memory_space<vmem>>, vector<124x124xf32>,
    %c0_43 = arith.constant 0 : index
    %c0_44 = arith.constant 0 : index
    %73 = tpu.strided_load %arg10[%c0_43, %c0_44] {strides = array<i32: 2, 1>} : memref<124x124xf32, #tpu.memory_space<vmem>>, vector<62x124xf32>
    %c1_45 = arith.constant 1 : index
    %c0_46 = arith.constant 0 : index
    %74 = tpu.strided_load %arg10[%c1_45, %c0_46] {strides = array<i32: 2, 1>} : memref<124x124xf32, #tpu.memory_space<vmem>>, vector<62x124xf32>
    %75 = arith.maximumf %73, %74 : vector<62x124xf32>
    %76 = vector.extract_strided_slice %75 {offsets = [0, 0], sizes = [62, 123], strides = [1, 1]} : vector<62x124xf32> to vector<62x123xf32>
    %77 = vector.extract_strided_slice %75 {offsets = [0, 1], sizes = [62, 123], strides = [1, 1]} : vector<62x124xf32> to vector<62x123xf32>
    %78 = arith.maximumf %76, %77 : vector<62x123xf32>
    %c0_47 = arith.constant 0 : index
    %c0_48 = arith.constant 0 : index
    %79 = vector.load %arg11[%c0_47, %c0_48] : memref<248x123xf32, #tpu.memory_space<vmem>>, vector<62x123xf32>
    tpu.vector_store %arg11[%c0_47, %c0_48], %78 {strides = array<i32>} : memref<248x123xf32, #tpu.memory_space<vmem>>, vector<62x123xf32>,
    %cst_49 = arith.constant 0.000000e+00 : f32
    %80 = vector.broadcast %cst_49 : f32 to vector<124x124xf32>
    %c9 = arith.constant 9 : index
    %81 = memref.load %arg2[%c9] : memref<36xf32, #tpu.memory_space<smem>>
    %c0_50 = arith.constant 0 : index
    %c0_51 = arith.constant 0 : index
    %c0_52 = arith.constant 0 : index
    %82 = vector.load %arg9[%c0_50, %c0_51, %c0_52] : memref<3x126x124xf32, #tpu.memory_space<vmem>>, vector<1x124x124xf32>
    %83 = vector.shape_cast %82 : vector<1x124x124xf32> to vector<124x124xf32>
    %84 = vector.broadcast %81 : f32 to vector<124x124xf32>
    %85 = arith.mulf %84, %83 : vector<124x124xf32>
    %86 = arith.addf %80, %85 : vector<124x124xf32>
    %c10 = arith.constant 10 : index
    %87 = memref.load %arg2[%c10] : memref<36xf32, #tpu.memory_space<smem>>
    %c1_53 = arith.constant 1 : index
    %c0_54 = arith.constant 0 : index
    %c0_55 = arith.constant 0 : index
    %88 = vector.load %arg9[%c1_53, %c0_54, %c0_55] : memref<3x126x124xf32, #tpu.memory_space<vmem>>, vector<1x124x124xf32>
    %89 = vector.shape_cast %88 : vector<1x124x124xf32> to vector<124x124xf32>
    %90 = vector.broadcast %87 : f32 to vector<124x124xf32>
    %91 = arith.mulf %90, %89 : vector<124x124xf32>
    %92 = arith.addf %86, %91 : vector<124x124xf32>
    %c11 = arith.constant 11 : index
    %93 = memref.load %arg2[%c11] : memref<36xf32, #tpu.memory_space<smem>>
    %c2_56 = arith.constant 2 : index
    %c0_57 = arith.constant 0 : index
    %c0_58 = arith.constant 0 : index
    %94 = vector.load %arg9[%c2_56, %c0_57, %c0_58] : memref<3x126x124xf32, #tpu.memory_space<vmem>>, vector<1x124x124xf32>
    %95 = vector.shape_cast %94 : vector<1x124x124xf32> to vector<124x124xf32>
    %96 = vector.broadcast %93 : f32 to vector<124x124xf32>
    %97 = arith.mulf %96, %95 : vector<124x124xf32>
    %98 = arith.addf %92, %97 : vector<124x124xf32>
    %c12 = arith.constant 12 : index
    %99 = memref.load %arg2[%c12] : memref<36xf32, #tpu.memory_space<smem>>
    %c0_59 = arith.constant 0 : index
    %c1_60 = arith.constant 1 : index
    %c0_61 = arith.constant 0 : index
    %100 = vector.load %arg9[%c0_59, %c1_60, %c0_61] : memref<3x126x124xf32, #tpu.memory_space<vmem>>, vector<1x124x124xf32>
    %101 = vector.shape_cast %100 : vector<1x124x124xf32> to vector<124x124xf32>
    %102 = vector.broadcast %99 : f32 to vector<124x124xf32>
    %103 = arith.mulf %102, %101 : vector<124x124xf32>
    %104 = arith.addf %98, %103 : vector<124x124xf32>
    %c13 = arith.constant 13 : index
    %105 = memref.load %arg2[%c13] : memref<36xf32, #tpu.memory_space<smem>>
    %c1_62 = arith.constant 1 : index
    %c1_63 = arith.constant 1 : index
    %c0_64 = arith.constant 0 : index
    %106 = vector.load %arg9[%c1_62, %c1_63, %c0_64] : memref<3x126x124xf32, #tpu.memory_space<vmem>>, vector<1x124x124xf32>
    %107 = vector.shape_cast %106 : vector<1x124x124xf32> to vector<124x124xf32>
    %108 = vector.broadcast %105 : f32 to vector<124x124xf32>
    %109 = arith.mulf %108, %107 : vector<124x124xf32>
    %110 = arith.addf %104, %109 : vector<124x124xf32>
    %c14 = arith.constant 14 : index
    %111 = memref.load %arg2[%c14] : memref<36xf32, #tpu.memory_space<smem>>
    %c2_65 = arith.constant 2 : index
    %c1_66 = arith.constant 1 : index
    %c0_67 = arith.constant 0 : index
    %112 = vector.load %arg9[%c2_65, %c1_66, %c0_67] : memref<3x126x124xf32, #tpu.memory_space<vmem>>, vector<1x124x124xf32>
    %113 = vector.shape_cast %112 : vector<1x124x124xf32> to vector<124x124xf32>
    %114 = vector.broadcast %111 : f32 to vector<124x124xf32>
    %115 = arith.mulf %114, %113 : vector<124x124xf32>
    %116 = arith.addf %110, %115 : vector<124x124xf32>
    %c15 = arith.constant 15 : index
    %117 = memref.load %arg2[%c15] : memref<36xf32, #tpu.memory_space<smem>>
    %c0_68 = arith.constant 0 : index
    %c2_69 = arith.constant 2 : index
    %c0_70 = arith.constant 0 : index
    %118 = vector.load %arg9[%c0_68, %c2_69, %c0_70] : memref<3x126x124xf32, #tpu.memory_space<vmem>>, vector<1x124x124xf32>
    %119 = vector.shape_cast %118 : vector<1x124x124xf32> to vector<124x124xf32>
    %120 = vector.broadcast %117 : f32 to vector<124x124xf32>
    %121 = arith.mulf %120, %119 : vector<124x124xf32>
    %122 = arith.addf %116, %121 : vector<124x124xf32>
    %c16 = arith.constant 16 : index
    %123 = memref.load %arg2[%c16] : memref<36xf32, #tpu.memory_space<smem>>
    %c1_71 = arith.constant 1 : index
    %c2_72 = arith.constant 2 : index
    %c0_73 = arith.constant 0 : index
    %124 = vector.load %arg9[%c1_71, %c2_72, %c0_73] : memref<3x126x124xf32, #tpu.memory_space<vmem>>, vector<1x124x124xf32>
    %125 = vector.shape_cast %124 : vector<1x124x124xf32> to vector<124x124xf32>
    %126 = vector.broadcast %123 : f32 to vector<124x124xf32>
    %127 = arith.mulf %126, %125 : vector<124x124xf32>
    %128 = arith.addf %122, %127 : vector<124x124xf32>
    %c17 = arith.constant 17 : index
    %129 = memref.load %arg2[%c17] : memref<36xf32, #tpu.memory_space<smem>>
    %c2_74 = arith.constant 2 : index
    %c2_75 = arith.constant 2 : index
    %c0_76 = arith.constant 0 : index
    %130 = vector.load %arg9[%c2_74, %c2_75, %c0_76] : memref<3x126x124xf32, #tpu.memory_space<vmem>>, vector<1x124x124xf32>
    %131 = vector.shape_cast %130 : vector<1x124x124xf32> to vector<124x124xf32>
    %132 = vector.broadcast %129 : f32 to vector<124x124xf32>
    %133 = arith.mulf %132, %131 : vector<124x124xf32>
    %134 = arith.addf %128, %133 : vector<124x124xf32>
    %c1_77 = arith.constant 1 : index
    %135 = memref.load %arg3[%c1_77] : memref<4xf32, #tpu.memory_space<smem>>
    %136 = vector.broadcast %135 : f32 to vector<124x124xf32>
    %137 = arith.addf %134, %136 : vector<124x124xf32>
    %c0_78 = arith.constant 0 : index
    %c0_79 = arith.constant 0 : index
    %138 = vector.load %arg10[%c0_78, %c0_79] : memref<124x124xf32, #tpu.memory_space<vmem>>, vector<124x124xf32>
    tpu.vector_store %arg10[%c0_78, %c0_79], %137 {strides = array<i32>} : memref<124x124xf32, #tpu.memory_space<vmem>>, vector<124x124xf32>,
    %c0_80 = arith.constant 0 : index
    %c0_81 = arith.constant 0 : index
    %139 = tpu.strided_load %arg10[%c0_80, %c0_81] {strides = array<i32: 2, 1>} : memref<124x124xf32, #tpu.memory_space<vmem>>, vector<62x124xf32>
    %c1_82 = arith.constant 1 : index
    %c0_83 = arith.constant 0 : index
    %140 = tpu.strided_load %arg10[%c1_82, %c0_83] {strides = array<i32: 2, 1>} : memref<124x124xf32, #tpu.memory_space<vmem>>, vector<62x124xf32>
    %141 = arith.maximumf %139, %140 : vector<62x124xf32>
    %142 = vector.extract_strided_slice %141 {offsets = [0, 0], sizes = [62, 123], strides = [1, 1]} : vector<62x124xf32> to vector<62x123xf32>
    %143 = vector.extract_strided_slice %141 {offsets = [0, 1], sizes = [62, 123], strides = [1, 1]} : vector<62x124xf32> to vector<62x123xf32>
    %144 = arith.maximumf %142, %143 : vector<62x123xf32>
    %c62 = arith.constant 62 : index
    %c0_84 = arith.constant 0 : index
    %145 = vector.load %arg11[%c62, %c0_84] : memref<248x123xf32, #tpu.memory_space<vmem>>, vector<62x123xf32>
    tpu.vector_store %arg11[%c62, %c0_84], %144 {strides = array<i32>} : memref<248x123xf32, #tpu.memory_space<vmem>>, vector<62x123xf32>,
    %cst_85 = arith.constant 0.000000e+00 : f32
    %146 = vector.broadcast %cst_85 : f32 to vector<124x124xf32>
    %c18 = arith.constant 18 : index
    %147 = memref.load %arg2[%c18] : memref<36xf32, #tpu.memory_space<smem>>
    %c0_86 = arith.constant 0 : index
    %c0_87 = arith.constant 0 : index
    %c0_88 = arith.constant 0 : index
    %148 = vector.load %arg9[%c0_86, %c0_87, %c0_88] : memref<3x126x124xf32, #tpu.memory_space<vmem>>, vector<1x124x124xf32>
    %149 = vector.shape_cast %148 : vector<1x124x124xf32> to vector<124x124xf32>
    %150 = vector.broadcast %147 : f32 to vector<124x124xf32>
    %151 = arith.mulf %150, %149 : vector<124x124xf32>
    %152 = arith.addf %146, %151 : vector<124x124xf32>
    %c19 = arith.constant 19 : index
    %153 = memref.load %arg2[%c19] : memref<36xf32, #tpu.memory_space<smem>>
    %c1_89 = arith.constant 1 : index
    %c0_90 = arith.constant 0 : index
    %c0_91 = arith.constant 0 : index
    %154 = vector.load %arg9[%c1_89, %c0_90, %c0_91] : memref<3x126x124xf32, #tpu.memory_space<vmem>>, vector<1x124x124xf32>
    %155 = vector.shape_cast %154 : vector<1x124x124xf32> to vector<124x124xf32>
    %156 = vector.broadcast %153 : f32 to vector<124x124xf32>
    %157 = arith.mulf %156, %155 : vector<124x124xf32>
    %158 = arith.addf %152, %157 : vector<124x124xf32>
    %c20 = arith.constant 20 : index
    %159 = memref.load %arg2[%c20] : memref<36xf32, #tpu.memory_space<smem>>
    %c2_92 = arith.constant 2 : index
    %c0_93 = arith.constant 0 : index
    %c0_94 = arith.constant 0 : index
    %160 = vector.load %arg9[%c2_92, %c0_93, %c0_94] : memref<3x126x124xf32, #tpu.memory_space<vmem>>, vector<1x124x124xf32>
    %161 = vector.shape_cast %160 : vector<1x124x124xf32> to vector<124x124xf32>
    %162 = vector.broadcast %159 : f32 to vector<124x124xf32>
    %163 = arith.mulf %162, %161 : vector<124x124xf32>
    %164 = arith.addf %158, %163 : vector<124x124xf32>
    %c21 = arith.constant 21 : index
    %165 = memref.load %arg2[%c21] : memref<36xf32, #tpu.memory_space<smem>>
    %c0_95 = arith.constant 0 : index
    %c1_96 = arith.constant 1 : index
    %c0_97 = arith.constant 0 : index
    %166 = vector.load %arg9[%c0_95, %c1_96, %c0_97] : memref<3x126x124xf32, #tpu.memory_space<vmem>>, vector<1x124x124xf32>
    %167 = vector.shape_cast %166 : vector<1x124x124xf32> to vector<124x124xf32>
    %168 = vector.broadcast %165 : f32 to vector<124x124xf32>
    %169 = arith.mulf %168, %167 : vector<124x124xf32>
    %170 = arith.addf %164, %169 : vector<124x124xf32>
    %c22 = arith.constant 22 : index
    %171 = memref.load %arg2[%c22] : memref<36xf32, #tpu.memory_space<smem>>
    %c1_98 = arith.constant 1 : index
    %c1_99 = arith.constant 1 : index
    %c0_100 = arith.constant 0 : index
    %172 = vector.load %arg9[%c1_98, %c1_99, %c0_100] : memref<3x126x124xf32, #tpu.memory_space<vmem>>, vector<1x124x124xf32>
    %173 = vector.shape_cast %172 : vector<1x124x124xf32> to vector<124x124xf32>
    %174 = vector.broadcast %171 : f32 to vector<124x124xf32>
    %175 = arith.mulf %174, %173 : vector<124x124xf32>
    %176 = arith.addf %170, %175 : vector<124x124xf32>
    %c23 = arith.constant 23 : index
    %177 = memref.load %arg2[%c23] : memref<36xf32, #tpu.memory_space<smem>>
    %c2_101 = arith.constant 2 : index
    %c1_102 = arith.constant 1 : index
    %c0_103 = arith.constant 0 : index
    %178 = vector.load %arg9[%c2_101, %c1_102, %c0_103] : memref<3x126x124xf32, #tpu.memory_space<vmem>>, vector<1x124x124xf32>
    %179 = vector.shape_cast %178 : vector<1x124x124xf32> to vector<124x124xf32>
    %180 = vector.broadcast %177 : f32 to vector<124x124xf32>
    %181 = arith.mulf %180, %179 : vector<124x124xf32>
    %182 = arith.addf %176, %181 : vector<124x124xf32>
    %c24 = arith.constant 24 : index
    %183 = memref.load %arg2[%c24] : memref<36xf32, #tpu.memory_space<smem>>
    %c0_104 = arith.constant 0 : index
    %c2_105 = arith.constant 2 : index
    %c0_106 = arith.constant 0 : index
    %184 = vector.load %arg9[%c0_104, %c2_105, %c0_106] : memref<3x126x124xf32, #tpu.memory_space<vmem>>, vector<1x124x124xf32>
    %185 = vector.shape_cast %184 : vector<1x124x124xf32> to vector<124x124xf32>
    %186 = vector.broadcast %183 : f32 to vector<124x124xf32>
    %187 = arith.mulf %186, %185 : vector<124x124xf32>
    %188 = arith.addf %182, %187 : vector<124x124xf32>
    %c25 = arith.constant 25 : index
    %189 = memref.load %arg2[%c25] : memref<36xf32, #tpu.memory_space<smem>>
    %c1_107 = arith.constant 1 : index
    %c2_108 = arith.constant 2 : index
    %c0_109 = arith.constant 0 : index
    %190 = vector.load %arg9[%c1_107, %c2_108, %c0_109] : memref<3x126x124xf32, #tpu.memory_space<vmem>>, vector<1x124x124xf32>
    %191 = vector.shape_cast %190 : vector<1x124x124xf32> to vector<124x124xf32>
    %192 = vector.broadcast %189 : f32 to vector<124x124xf32>
    %193 = arith.mulf %192, %191 : vector<124x124xf32>
    %194 = arith.addf %188, %193 : vector<124x124xf32>
    %c26 = arith.constant 26 : index
    %195 = memref.load %arg2[%c26] : memref<36xf32, #tpu.memory_space<smem>>
    %c2_110 = arith.constant 2 : index
    %c2_111 = arith.constant 2 : index
    %c0_112 = arith.constant 0 : index
    %196 = vector.load %arg9[%c2_110, %c2_111, %c0_112] : memref<3x126x124xf32, #tpu.memory_space<vmem>>, vector<1x124x124xf32>
    %197 = vector.shape_cast %196 : vector<1x124x124xf32> to vector<124x124xf32>
    %198 = vector.broadcast %195 : f32 to vector<124x124xf32>
    %199 = arith.mulf %198, %197 : vector<124x124xf32>
    %200 = arith.addf %194, %199 : vector<124x124xf32>
    %c2_113 = arith.constant 2 : index
    %201 = memref.load %arg3[%c2_113] : memref<4xf32, #tpu.memory_space<smem>>
    %202 = vector.broadcast %201 : f32 to vector<124x124xf32>
    %203 = arith.addf %200, %202 : vector<124x124xf32>
    %c0_114 = arith.constant 0 : index
    %c0_115 = arith.constant 0 : index
    %204 = vector.load %arg10[%c0_114, %c0_115] : memref<124x124xf32, #tpu.memory_space<vmem>>, vector<124x124xf32>
    tpu.vector_store %arg10[%c0_114, %c0_115], %203 {strides = array<i32>} : memref<124x124xf32, #tpu.memory_space<vmem>>, vector<124x124xf32>,
    %c0_116 = arith.constant 0 : index
    %c0_117 = arith.constant 0 : index
    %205 = tpu.strided_load %arg10[%c0_116, %c0_117] {strides = array<i32: 2, 1>} : memref<124x124xf32, #tpu.memory_space<vmem>>, vector<62x124xf32>
    %c1_118 = arith.constant 1 : index
    %c0_119 = arith.constant 0 : index
    %206 = tpu.strided_load %arg10[%c1_118, %c0_119] {strides = array<i32: 2, 1>} : memref<124x124xf32, #tpu.memory_space<vmem>>, vector<62x124xf32>
    %207 = arith.maximumf %205, %206 : vector<62x124xf32>
    %208 = vector.extract_strided_slice %207 {offsets = [0, 0], sizes = [62, 123], strides = [1, 1]} : vector<62x124xf32> to vector<62x123xf32>
    %209 = vector.extract_strided_slice %207 {offsets = [0, 1], sizes = [62, 123], strides = [1, 1]} : vector<62x124xf32> to vector<62x123xf32>
    %210 = arith.maximumf %208, %209 : vector<62x123xf32>
    %c124 = arith.constant 124 : index
    %c0_120 = arith.constant 0 : index
    %211 = vector.load %arg11[%c124, %c0_120] : memref<248x123xf32, #tpu.memory_space<vmem>>, vector<62x123xf32>
    tpu.vector_store %arg11[%c124, %c0_120], %210 {strides = array<i32>} : memref<248x123xf32, #tpu.memory_space<vmem>>, vector<62x123xf32>,
    %cst_121 = arith.constant 0.000000e+00 : f32
    %212 = vector.broadcast %cst_121 : f32 to vector<124x124xf32>
    %c27 = arith.constant 27 : index
    %213 = memref.load %arg2[%c27] : memref<36xf32, #tpu.memory_space<smem>>
    %c0_122 = arith.constant 0 : index
    %c0_123 = arith.constant 0 : index
    %c0_124 = arith.constant 0 : index
    %214 = vector.load %arg9[%c0_122, %c0_123, %c0_124] : memref<3x126x124xf32, #tpu.memory_space<vmem>>, vector<1x124x124xf32>
    %215 = vector.shape_cast %214 : vector<1x124x124xf32> to vector<124x124xf32>
    %216 = vector.broadcast %213 : f32 to vector<124x124xf32>
    %217 = arith.mulf %216, %215 : vector<124x124xf32>
    %218 = arith.addf %212, %217 : vector<124x124xf32>
    %c28 = arith.constant 28 : index
    %219 = memref.load %arg2[%c28] : memref<36xf32, #tpu.memory_space<smem>>
    %c1_125 = arith.constant 1 : index
    %c0_126 = arith.constant 0 : index
    %c0_127 = arith.constant 0 : index
    %220 = vector.load %arg9[%c1_125, %c0_126, %c0_127] : memref<3x126x124xf32, #tpu.memory_space<vmem>>, vector<1x124x124xf32>
    %221 = vector.shape_cast %220 : vector<1x124x124xf32> to vector<124x124xf32>
    %222 = vector.broadcast %219 : f32 to vector<124x124xf32>
    %223 = arith.mulf %222, %221 : vector<124x124xf32>
    %224 = arith.addf %218, %223 : vector<124x124xf32>
    %c29 = arith.constant 29 : index
    %225 = memref.load %arg2[%c29] : memref<36xf32, #tpu.memory_space<smem>>
    %c2_128 = arith.constant 2 : index
    %c0_129 = arith.constant 0 : index
    %c0_130 = arith.constant 0 : index
    %226 = vector.load %arg9[%c2_128, %c0_129, %c0_130] : memref<3x126x124xf32, #tpu.memory_space<vmem>>, vector<1x124x124xf32>
    %227 = vector.shape_cast %226 : vector<1x124x124xf32> to vector<124x124xf32>
    %228 = vector.broadcast %225 : f32 to vector<124x124xf32>
    %229 = arith.mulf %228, %227 : vector<124x124xf32>
    %230 = arith.addf %224, %229 : vector<124x124xf32>
    %c30 = arith.constant 30 : index
    %231 = memref.load %arg2[%c30] : memref<36xf32, #tpu.memory_space<smem>>
    %c0_131 = arith.constant 0 : index
    %c1_132 = arith.constant 1 : index
    %c0_133 = arith.constant 0 : index
    %232 = vector.load %arg9[%c0_131, %c1_132, %c0_133] : memref<3x126x124xf32, #tpu.memory_space<vmem>>, vector<1x124x124xf32>
    %233 = vector.shape_cast %232 : vector<1x124x124xf32> to vector<124x124xf32>
    %234 = vector.broadcast %231 : f32 to vector<124x124xf32>
    %235 = arith.mulf %234, %233 : vector<124x124xf32>
    %236 = arith.addf %230, %235 : vector<124x124xf32>
    %c31 = arith.constant 31 : index
    %237 = memref.load %arg2[%c31] : memref<36xf32, #tpu.memory_space<smem>>
    %c1_134 = arith.constant 1 : index
    %c1_135 = arith.constant 1 : index
    %c0_136 = arith.constant 0 : index
    %238 = vector.load %arg9[%c1_134, %c1_135, %c0_136] : memref<3x126x124xf32, #tpu.memory_space<vmem>>, vector<1x124x124xf32>
    %239 = vector.shape_cast %238 : vector<1x124x124xf32> to vector<124x124xf32>
    %240 = vector.broadcast %237 : f32 to vector<124x124xf32>
    %241 = arith.mulf %240, %239 : vector<124x124xf32>
    %242 = arith.addf %236, %241 : vector<124x124xf32>
    %c32 = arith.constant 32 : index
    %243 = memref.load %arg2[%c32] : memref<36xf32, #tpu.memory_space<smem>>
    %c2_137 = arith.constant 2 : index
    %c1_138 = arith.constant 1 : index
    %c0_139 = arith.constant 0 : index
    %244 = vector.load %arg9[%c2_137, %c1_138, %c0_139] : memref<3x126x124xf32, #tpu.memory_space<vmem>>, vector<1x124x124xf32>
    %245 = vector.shape_cast %244 : vector<1x124x124xf32> to vector<124x124xf32>
    %246 = vector.broadcast %243 : f32 to vector<124x124xf32>
    %247 = arith.mulf %246, %245 : vector<124x124xf32>
    %248 = arith.addf %242, %247 : vector<124x124xf32>
    %c33 = arith.constant 33 : index
    %249 = memref.load %arg2[%c33] : memref<36xf32, #tpu.memory_space<smem>>
    %c0_140 = arith.constant 0 : index
    %c2_141 = arith.constant 2 : index
    %c0_142 = arith.constant 0 : index
    %250 = vector.load %arg9[%c0_140, %c2_141, %c0_142] : memref<3x126x124xf32, #tpu.memory_space<vmem>>, vector<1x124x124xf32>
    %251 = vector.shape_cast %250 : vector<1x124x124xf32> to vector<124x124xf32>
    %252 = vector.broadcast %249 : f32 to vector<124x124xf32>
    %253 = arith.mulf %252, %251 : vector<124x124xf32>
    %254 = arith.addf %248, %253 : vector<124x124xf32>
    %c34 = arith.constant 34 : index
    %255 = memref.load %arg2[%c34] : memref<36xf32, #tpu.memory_space<smem>>
    %c1_143 = arith.constant 1 : index
    %c2_144 = arith.constant 2 : index
    %c0_145 = arith.constant 0 : index
    %256 = vector.load %arg9[%c1_143, %c2_144, %c0_145] : memref<3x126x124xf32, #tpu.memory_space<vmem>>, vector<1x124x124xf32>
    %257 = vector.shape_cast %256 : vector<1x124x124xf32> to vector<124x124xf32>
    %258 = vector.broadcast %255 : f32 to vector<124x124xf32>
    %259 = arith.mulf %258, %257 : vector<124x124xf32>
    %260 = arith.addf %254, %259 : vector<124x124xf32>
    %c35 = arith.constant 35 : index
    %261 = memref.load %arg2[%c35] : memref<36xf32, #tpu.memory_space<smem>>
    %c2_146 = arith.constant 2 : index
    %c2_147 = arith.constant 2 : index
    %c0_148 = arith.constant 0 : index
    %262 = vector.load %arg9[%c2_146, %c2_147, %c0_148] : memref<3x126x124xf32, #tpu.memory_space<vmem>>, vector<1x124x124xf32>
    %263 = vector.shape_cast %262 : vector<1x124x124xf32> to vector<124x124xf32>
    %264 = vector.broadcast %261 : f32 to vector<124x124xf32>
    %265 = arith.mulf %264, %263 : vector<124x124xf32>
    %266 = arith.addf %260, %265 : vector<124x124xf32>
    %c3_149 = arith.constant 3 : index
    %267 = memref.load %arg3[%c3_149] : memref<4xf32, #tpu.memory_space<smem>>
    %268 = vector.broadcast %267 : f32 to vector<124x124xf32>
    %269 = arith.addf %266, %268 : vector<124x124xf32>
    %c0_150 = arith.constant 0 : index
    %c0_151 = arith.constant 0 : index
    %270 = vector.load %arg10[%c0_150, %c0_151] : memref<124x124xf32, #tpu.memory_space<vmem>>, vector<124x124xf32>
    tpu.vector_store %arg10[%c0_150, %c0_151], %269 {strides = array<i32>} : memref<124x124xf32, #tpu.memory_space<vmem>>, vector<124x124xf32>,
    %c0_152 = arith.constant 0 : index
    %c0_153 = arith.constant 0 : index
    %271 = tpu.strided_load %arg10[%c0_152, %c0_153] {strides = array<i32: 2, 1>} : memref<124x124xf32, #tpu.memory_space<vmem>>, vector<62x124xf32>
    %c1_154 = arith.constant 1 : index
    %c0_155 = arith.constant 0 : index
    %272 = tpu.strided_load %arg10[%c1_154, %c0_155] {strides = array<i32: 2, 1>} : memref<124x124xf32, #tpu.memory_space<vmem>>, vector<62x124xf32>
    %273 = arith.maximumf %271, %272 : vector<62x124xf32>
    %274 = vector.extract_strided_slice %273 {offsets = [0, 0], sizes = [62, 123], strides = [1, 1]} : vector<62x124xf32> to vector<62x123xf32>
    %275 = vector.extract_strided_slice %273 {offsets = [0, 1], sizes = [62, 123], strides = [1, 1]} : vector<62x124xf32> to vector<62x123xf32>
    %276 = arith.maximumf %274, %275 : vector<62x123xf32>
    %c186 = arith.constant 186 : index
    %c0_156 = arith.constant 0 : index
    %277 = vector.load %arg11[%c186, %c0_156] : memref<248x123xf32, #tpu.memory_space<vmem>>, vector<62x123xf32>
    tpu.vector_store %arg11[%c186, %c0_156], %276 {strides = array<i32>} : memref<248x123xf32, #tpu.memory_space<vmem>>, vector<62x123xf32>,
    %c0_157 = arith.constant 0 : index
    %c0_158 = arith.constant 0 : index
    %278 = vector.load %arg11[%c0_157, %c0_158] : memref<248x123xf32, #tpu.memory_space<vmem>>, vector<248x123xf32>
    %c0_159 = arith.constant 0 : index
    %c0_160 = arith.constant 0 : index
    %c0_161 = arith.constant 0 : index
    %279 = vector.load %arg6[%c0_159, %c0_160, %c0_161] : memref<3x123x60xf32, #tpu.memory_space<vmem>>, vector<1x123x60xf32>
    %280 = vector.shape_cast %279 : vector<1x123x60xf32> to vector<123x60xf32>
    %cst_162 = arith.constant dense<0.000000e+00> : vector<248x60xf32>
    %281 = tpu.matmul %278, %280, %cst_162 {dimension_numbers = #tpu.dot_dimension_numbers<[1], [0], [0], [1], [0, 0, 1, 1], [], []>} : vector<248x123xf32>, vector<123x60xf32>, vector<248x60xf32> -> vector<248x60xf32>
    %c0_163 = arith.constant 0 : index
    %c0_164 = arith.constant 0 : index
    %c0_165 = arith.constant 0 : index
    %282 = vector.load %arg12[%c0_163, %c0_164, %c0_165] : memref<3x248x60xf32, #tpu.memory_space<vmem>>, vector<1x248x60xf32>
    %283 = vector.shape_cast %282 : vector<1x248x60xf32> to vector<248x60xf32>
    %284 = vector.shape_cast %281 : vector<248x60xf32> to vector<1x248x60xf32>
    tpu.vector_store %arg12[%c0_163, %c0_164, %c0_165], %284 {strides = array<i32>} : memref<3x248x60xf32, #tpu.memory_space<vmem>>, vector<1x248x60xf32>,
    %c0_166 = arith.constant 0 : index
    %c0_167 = arith.constant 0 : index
    %285 = vector.load %arg11[%c0_166, %c0_167] : memref<248x123xf32, #tpu.memory_space<vmem>>, vector<248x123xf32>
    %c1_168 = arith.constant 1 : index
    %c0_169 = arith.constant 0 : index
    %c0_170 = arith.constant 0 : index
    %286 = vector.load %arg6[%c1_168, %c0_169, %c0_170] : memref<3x123x60xf32, #tpu.memory_space<vmem>>, vector<1x123x60xf32>
    %287 = vector.shape_cast %286 : vector<1x123x60xf32> to vector<123x60xf32>
    %cst_171 = arith.constant dense<0.000000e+00> : vector<248x60xf32>
    %288 = tpu.matmul %285, %287, %cst_171 {dimension_numbers = #tpu.dot_dimension_numbers<[1], [0], [0], [1], [0, 0, 1, 1], [], []>} : vector<248x123xf32>, vector<123x60xf32>, vector<248x60xf32> -> vector<248x60xf32>
    %c1_172 = arith.constant 1 : index
    %c0_173 = arith.constant 0 : index
    %c0_174 = arith.constant 0 : index
    %289 = vector.load %arg12[%c1_172, %c0_173, %c0_174] : memref<3x248x60xf32, #tpu.memory_space<vmem>>, vector<1x248x60xf32>
    %290 = vector.shape_cast %289 : vector<1x248x60xf32> to vector<248x60xf32>
    %291 = vector.shape_cast %288 : vector<248x60xf32> to vector<1x248x60xf32>
    tpu.vector_store %arg12[%c1_172, %c0_173, %c0_174], %291 {strides = array<i32>} : memref<3x248x60xf32, #tpu.memory_space<vmem>>, vector<1x248x60xf32>,
    %c0_175 = arith.constant 0 : index
    %c0_176 = arith.constant 0 : index
    %292 = vector.load %arg11[%c0_175, %c0_176] : memref<248x123xf32, #tpu.memory_space<vmem>>, vector<248x123xf32>
    %c2_177 = arith.constant 2 : index
    %c0_178 = arith.constant 0 : index
    %c0_179 = arith.constant 0 : index
    %293 = vector.load %arg6[%c2_177, %c0_178, %c0_179] : memref<3x123x60xf32, #tpu.memory_space<vmem>>, vector<1x123x60xf32>
    %294 = vector.shape_cast %293 : vector<1x123x60xf32> to vector<123x60xf32>
    %cst_180 = arith.constant dense<0.000000e+00> : vector<248x60xf32>
    %295 = tpu.matmul %292, %294, %cst_180 {dimension_numbers = #tpu.dot_dimension_numbers<[1], [0], [0], [1], [0, 0, 1, 1], [], []>} : vector<248x123xf32>, vector<123x60xf32>, vector<248x60xf32> -> vector<248x60xf32>
    %c2_181 = arith.constant 2 : index
    %c0_182 = arith.constant 0 : index
    %c0_183 = arith.constant 0 : index
    %296 = vector.load %arg12[%c2_181, %c0_182, %c0_183] : memref<3x248x60xf32, #tpu.memory_space<vmem>>, vector<1x248x60xf32>
    %297 = vector.shape_cast %296 : vector<1x248x60xf32> to vector<248x60xf32>
    %298 = vector.shape_cast %295 : vector<248x60xf32> to vector<1x248x60xf32>
    tpu.vector_store %arg12[%c2_181, %c0_182, %c0_183], %298 {strides = array<i32>} : memref<3x248x60xf32, #tpu.memory_space<vmem>>, vector<1x248x60xf32>,
    %cst_184 = arith.constant 0.000000e+00 : f32
    %299 = vector.broadcast %cst_184 : f32 to vector<32x59xf32>
    %c480 = arith.constant 480 : index
    %c0_185 = arith.constant 0 : index
    %300 = vector.load %arg14[%c480, %c0_185] : memref<512x59xf32, #tpu.memory_space<vmem>>, vector<32x59xf32>
    tpu.vector_store %arg14[%c480, %c0_185], %299 {strides = array<i32>} : memref<512x59xf32, #tpu.memory_space<vmem>>, vector<32x59xf32>,
    %c0_i32 = arith.constant 0 : i32
    %c16_i32 = arith.constant 16 : i32
    %301 = arith.addi %c0_i32, %c16_i32 : i32
    %c1_i32 = arith.constant 1 : i32
    scf.for %arg15 = %c0_i32 to %301 step %c1_i32  : i32 {
      %cst_195 = arith.constant 0.000000e+00 : f32
      %308 = vector.broadcast %cst_195 : f32 to vector<60x60xf32>
      %c36_i32 = arith.constant 36 : i32
      %309 = arith.muli %arg15, %c36_i32 : i32
      %c0_i32_196 = arith.constant 0 : i32
      %310 = arith.addi %309, %c0_i32_196 : i32
      %c0_i32_197 = arith.constant 0 : i32
      %311 = arith.addi %310, %c0_i32_197 : i32
      %c0_i32_198 = arith.constant 0 : i32
      %312 = arith.addi %311, %c0_i32_198 : i32
      %313 = arith.index_cast %312 : i32 to index
      %314 = memref.load %arg4[%313] : memref<576xf32, #tpu.memory_space<smem>>
      %c0_199 = arith.constant 0 : index
      %c0_200 = arith.constant 0 : index
      %c0_201 = arith.constant 0 : index
      %315 = vector.load %arg12[%c0_199, %c0_200, %c0_201] : memref<3x248x60xf32, #tpu.memory_space<vmem>>, vector<1x60x60xf32>
      %316 = vector.shape_cast %315 : vector<1x60x60xf32> to vector<60x60xf32>
      %317 = vector.broadcast %314 : f32 to vector<60x60xf32>
      %318 = arith.mulf %317, %316 : vector<60x60xf32>
      %319 = arith.addf %308, %318 : vector<60x60xf32>
      %c36_i32_202 = arith.constant 36 : i32
      %320 = arith.muli %arg15, %c36_i32_202 : i32
      %c0_i32_203 = arith.constant 0 : i32
      %321 = arith.addi %320, %c0_i32_203 : i32
      %c0_i32_204 = arith.constant 0 : i32
      %322 = arith.addi %321, %c0_i32_204 : i32
      %c1_i32_205 = arith.constant 1 : i32
      %323 = arith.addi %322, %c1_i32_205 : i32
      %324 = arith.index_cast %323 : i32 to index
      %325 = memref.load %arg4[%324] : memref<576xf32, #tpu.memory_space<smem>>
      %c1_206 = arith.constant 1 : index
      %c0_207 = arith.constant 0 : index
      %c0_208 = arith.constant 0 : index
      %326 = vector.load %arg12[%c1_206, %c0_207, %c0_208] : memref<3x248x60xf32, #tpu.memory_space<vmem>>, vector<1x60x60xf32>
      %327 = vector.shape_cast %326 : vector<1x60x60xf32> to vector<60x60xf32>
      %328 = vector.broadcast %325 : f32 to vector<60x60xf32>
      %329 = arith.mulf %328, %327 : vector<60x60xf32>
      %330 = arith.addf %319, %329 : vector<60x60xf32>
      %c36_i32_209 = arith.constant 36 : i32
      %331 = arith.muli %arg15, %c36_i32_209 : i32
      %c0_i32_210 = arith.constant 0 : i32
      %332 = arith.addi %331, %c0_i32_210 : i32
      %c0_i32_211 = arith.constant 0 : i32
      %333 = arith.addi %332, %c0_i32_211 : i32
      %c2_i32 = arith.constant 2 : i32
      %334 = arith.addi %333, %c2_i32 : i32
      %335 = arith.index_cast %334 : i32 to index
      %336 = memref.load %arg4[%335] : memref<576xf32, #tpu.memory_space<smem>>
      %c2_212 = arith.constant 2 : index
      %c0_213 = arith.constant 0 : index
      %c0_214 = arith.constant 0 : index
      %337 = vector.load %arg12[%c2_212, %c0_213, %c0_214] : memref<3x248x60xf32, #tpu.memory_space<vmem>>, vector<1x60x60xf32>
      %338 = vector.shape_cast %337 : vector<1x60x60xf32> to vector<60x60xf32>
      %339 = vector.broadcast %336 : f32 to vector<60x60xf32>
      %340 = arith.mulf %339, %338 : vector<60x60xf32>
      %341 = arith.addf %330, %340 : vector<60x60xf32>
      %c36_i32_215 = arith.constant 36 : i32
      %342 = arith.muli %arg15, %c36_i32_215 : i32
      %c0_i32_216 = arith.constant 0 : i32
      %343 = arith.addi %342, %c0_i32_216 : i32
      %c3_i32 = arith.constant 3 : i32
      %344 = arith.addi %343, %c3_i32 : i32
      %c0_i32_217 = arith.constant 0 : i32
      %345 = arith.addi %344, %c0_i32_217 : i32
      %346 = arith.index_cast %345 : i32 to index
      %347 = memref.load %arg4[%346] : memref<576xf32, #tpu.memory_space<smem>>
      %c0_218 = arith.constant 0 : index
      %c1_219 = arith.constant 1 : index
      %c0_220 = arith.constant 0 : index
      %348 = vector.load %arg12[%c0_218, %c1_219, %c0_220] : memref<3x248x60xf32, #tpu.memory_space<vmem>>, vector<1x60x60xf32>
      %349 = vector.shape_cast %348 : vector<1x60x60xf32> to vector<60x60xf32>
      %350 = vector.broadcast %347 : f32 to vector<60x60xf32>
      %351 = arith.mulf %350, %349 : vector<60x60xf32>
      %352 = arith.addf %341, %351 : vector<60x60xf32>
      %c36_i32_221 = arith.constant 36 : i32
      %353 = arith.muli %arg15, %c36_i32_221 : i32
      %c0_i32_222 = arith.constant 0 : i32
      %354 = arith.addi %353, %c0_i32_222 : i32
      %c3_i32_223 = arith.constant 3 : i32
      %355 = arith.addi %354, %c3_i32_223 : i32
      %c1_i32_224 = arith.constant 1 : i32
      %356 = arith.addi %355, %c1_i32_224 : i32
      %357 = arith.index_cast %356 : i32 to index
      %358 = memref.load %arg4[%357] : memref<576xf32, #tpu.memory_space<smem>>
      %c1_225 = arith.constant 1 : index
      %c1_226 = arith.constant 1 : index
      %c0_227 = arith.constant 0 : index
      %359 = vector.load %arg12[%c1_225, %c1_226, %c0_227] : memref<3x248x60xf32, #tpu.memory_space<vmem>>, vector<1x60x60xf32>
      %360 = vector.shape_cast %359 : vector<1x60x60xf32> to vector<60x60xf32>
      %361 = vector.broadcast %358 : f32 to vector<60x60xf32>
      %362 = arith.mulf %361, %360 : vector<60x60xf32>
      %363 = arith.addf %352, %362 : vector<60x60xf32>
      %c36_i32_228 = arith.constant 36 : i32
      %364 = arith.muli %arg15, %c36_i32_228 : i32
      %c0_i32_229 = arith.constant 0 : i32
      %365 = arith.addi %364, %c0_i32_229 : i32
      %c3_i32_230 = arith.constant 3 : i32
      %366 = arith.addi %365, %c3_i32_230 : i32
      %c2_i32_231 = arith.constant 2 : i32
      %367 = arith.addi %366, %c2_i32_231 : i32
      %368 = arith.index_cast %367 : i32 to index
      %369 = memref.load %arg4[%368] : memref<576xf32, #tpu.memory_space<smem>>
      %c2_232 = arith.constant 2 : index
      %c1_233 = arith.constant 1 : index
      %c0_234 = arith.constant 0 : index
      %370 = vector.load %arg12[%c2_232, %c1_233, %c0_234] : memref<3x248x60xf32, #tpu.memory_space<vmem>>, vector<1x60x60xf32>
      %371 = vector.shape_cast %370 : vector<1x60x60xf32> to vector<60x60xf32>
      %372 = vector.broadcast %369 : f32 to vector<60x60xf32>
      %373 = arith.mulf %372, %371 : vector<60x60xf32>
      %374 = arith.addf %363, %373 : vector<60x60xf32>
      %c36_i32_235 = arith.constant 36 : i32
      %375 = arith.muli %arg15, %c36_i32_235 : i32
      %c0_i32_236 = arith.constant 0 : i32
      %376 = arith.addi %375, %c0_i32_236 : i32
      %c6_i32 = arith.constant 6 : i32
      %377 = arith.addi %376, %c6_i32 : i32
      %c0_i32_237 = arith.constant 0 : i32
      %378 = arith.addi %377, %c0_i32_237 : i32
      %379 = arith.index_cast %378 : i32 to index
      %380 = memref.load %arg4[%379] : memref<576xf32, #tpu.memory_space<smem>>
      %c0_238 = arith.constant 0 : index
      %c2_239 = arith.constant 2 : index
      %c0_240 = arith.constant 0 : index
      %381 = vector.load %arg12[%c0_238, %c2_239, %c0_240] : memref<3x248x60xf32, #tpu.memory_space<vmem>>, vector<1x60x60xf32>
      %382 = vector.shape_cast %381 : vector<1x60x60xf32> to vector<60x60xf32>
      %383 = vector.broadcast %380 : f32 to vector<60x60xf32>
      %384 = arith.mulf %383, %382 : vector<60x60xf32>
      %385 = arith.addf %374, %384 : vector<60x60xf32>
      %c36_i32_241 = arith.constant 36 : i32
      %386 = arith.muli %arg15, %c36_i32_241 : i32
      %c0_i32_242 = arith.constant 0 : i32
      %387 = arith.addi %386, %c0_i32_242 : i32
      %c6_i32_243 = arith.constant 6 : i32
      %388 = arith.addi %387, %c6_i32_243 : i32
      %c1_i32_244 = arith.constant 1 : i32
      %389 = arith.addi %388, %c1_i32_244 : i32
      %390 = arith.index_cast %389 : i32 to index
      %391 = memref.load %arg4[%390] : memref<576xf32, #tpu.memory_space<smem>>
      %c1_245 = arith.constant 1 : index
      %c2_246 = arith.constant 2 : index
      %c0_247 = arith.constant 0 : index
      %392 = vector.load %arg12[%c1_245, %c2_246, %c0_247] : memref<3x248x60xf32, #tpu.memory_space<vmem>>, vector<1x60x60xf32>
      %393 = vector.shape_cast %392 : vector<1x60x60xf32> to vector<60x60xf32>
      %394 = vector.broadcast %391 : f32 to vector<60x60xf32>
      %395 = arith.mulf %394, %393 : vector<60x60xf32>
      %396 = arith.addf %385, %395 : vector<60x60xf32>
      %c36_i32_248 = arith.constant 36 : i32
      %397 = arith.muli %arg15, %c36_i32_248 : i32
      %c0_i32_249 = arith.constant 0 : i32
      %398 = arith.addi %397, %c0_i32_249 : i32
      %c6_i32_250 = arith.constant 6 : i32
      %399 = arith.addi %398, %c6_i32_250 : i32
      %c2_i32_251 = arith.constant 2 : i32
      %400 = arith.addi %399, %c2_i32_251 : i32
      %401 = arith.index_cast %400 : i32 to index
      %402 = memref.load %arg4[%401] : memref<576xf32, #tpu.memory_space<smem>>
      %c2_252 = arith.constant 2 : index
      %c2_253 = arith.constant 2 : index
      %c0_254 = arith.constant 0 : index
      %403 = vector.load %arg12[%c2_252, %c2_253, %c0_254] : memref<3x248x60xf32, #tpu.memory_space<vmem>>, vector<1x60x60xf32>
      %404 = vector.shape_cast %403 : vector<1x60x60xf32> to vector<60x60xf32>
      %405 = vector.broadcast %402 : f32 to vector<60x60xf32>
      %406 = arith.mulf %405, %404 : vector<60x60xf32>
      %407 = arith.addf %396, %406 : vector<60x60xf32>
      %c36_i32_255 = arith.constant 36 : i32
      %408 = arith.muli %arg15, %c36_i32_255 : i32
      %c9_i32 = arith.constant 9 : i32
      %409 = arith.addi %408, %c9_i32 : i32
      %c0_i32_256 = arith.constant 0 : i32
      %410 = arith.addi %409, %c0_i32_256 : i32
      %c0_i32_257 = arith.constant 0 : i32
      %411 = arith.addi %410, %c0_i32_257 : i32
      %412 = arith.index_cast %411 : i32 to index
      %413 = memref.load %arg4[%412] : memref<576xf32, #tpu.memory_space<smem>>
      %c0_258 = arith.constant 0 : index
      %c62_259 = arith.constant 62 : index
      %c0_260 = arith.constant 0 : index
      %414 = vector.load %arg12[%c0_258, %c62_259, %c0_260] : memref<3x248x60xf32, #tpu.memory_space<vmem>>, vector<1x60x60xf32>
      %415 = vector.shape_cast %414 : vector<1x60x60xf32> to vector<60x60xf32>
      %416 = vector.broadcast %413 : f32 to vector<60x60xf32>
      %417 = arith.mulf %416, %415 : vector<60x60xf32>
      %418 = arith.addf %407, %417 : vector<60x60xf32>
      %c36_i32_261 = arith.constant 36 : i32
      %419 = arith.muli %arg15, %c36_i32_261 : i32
      %c9_i32_262 = arith.constant 9 : i32
      %420 = arith.addi %419, %c9_i32_262 : i32
      %c0_i32_263 = arith.constant 0 : i32
      %421 = arith.addi %420, %c0_i32_263 : i32
      %c1_i32_264 = arith.constant 1 : i32
      %422 = arith.addi %421, %c1_i32_264 : i32
      %423 = arith.index_cast %422 : i32 to index
      %424 = memref.load %arg4[%423] : memref<576xf32, #tpu.memory_space<smem>>
      %c1_265 = arith.constant 1 : index
      %c62_266 = arith.constant 62 : index
      %c0_267 = arith.constant 0 : index
      %425 = vector.load %arg12[%c1_265, %c62_266, %c0_267] : memref<3x248x60xf32, #tpu.memory_space<vmem>>, vector<1x60x60xf32>
      %426 = vector.shape_cast %425 : vector<1x60x60xf32> to vector<60x60xf32>
      %427 = vector.broadcast %424 : f32 to vector<60x60xf32>
      %428 = arith.mulf %427, %426 : vector<60x60xf32>
      %429 = arith.addf %418, %428 : vector<60x60xf32>
      %c36_i32_268 = arith.constant 36 : i32
      %430 = arith.muli %arg15, %c36_i32_268 : i32
      %c9_i32_269 = arith.constant 9 : i32
      %431 = arith.addi %430, %c9_i32_269 : i32
      %c0_i32_270 = arith.constant 0 : i32
      %432 = arith.addi %431, %c0_i32_270 : i32
      %c2_i32_271 = arith.constant 2 : i32
      %433 = arith.addi %432, %c2_i32_271 : i32
      %434 = arith.index_cast %433 : i32 to index
      %435 = memref.load %arg4[%434] : memref<576xf32, #tpu.memory_space<smem>>
      %c2_272 = arith.constant 2 : index
      %c62_273 = arith.constant 62 : index
      %c0_274 = arith.constant 0 : index
      %436 = vector.load %arg12[%c2_272, %c62_273, %c0_274] : memref<3x248x60xf32, #tpu.memory_space<vmem>>, vector<1x60x60xf32>
      %437 = vector.shape_cast %436 : vector<1x60x60xf32> to vector<60x60xf32>
      %438 = vector.broadcast %435 : f32 to vector<60x60xf32>
      %439 = arith.mulf %438, %437 : vector<60x60xf32>
      %440 = arith.addf %429, %439 : vector<60x60xf32>
      %c36_i32_275 = arith.constant 36 : i32
      %441 = arith.muli %arg15, %c36_i32_275 : i32
      %c9_i32_276 = arith.constant 9 : i32
      %442 = arith.addi %441, %c9_i32_276 : i32
      %c3_i32_277 = arith.constant 3 : i32
      %443 = arith.addi %442, %c3_i32_277 : i32
      %c0_i32_278 = arith.constant 0 : i32
      %444 = arith.addi %443, %c0_i32_278 : i32
      %445 = arith.index_cast %444 : i32 to index
      %446 = memref.load %arg4[%445] : memref<576xf32, #tpu.memory_space<smem>>
      %c0_279 = arith.constant 0 : index
      %c63 = arith.constant 63 : index
      %c0_280 = arith.constant 0 : index
      %447 = vector.load %arg12[%c0_279, %c63, %c0_280] : memref<3x248x60xf32, #tpu.memory_space<vmem>>, vector<1x60x60xf32>
      %448 = vector.shape_cast %447 : vector<1x60x60xf32> to vector<60x60xf32>
      %449 = vector.broadcast %446 : f32 to vector<60x60xf32>
      %450 = arith.mulf %449, %448 : vector<60x60xf32>
      %451 = arith.addf %440, %450 : vector<60x60xf32>
      %c36_i32_281 = arith.constant 36 : i32
      %452 = arith.muli %arg15, %c36_i32_281 : i32
      %c9_i32_282 = arith.constant 9 : i32
      %453 = arith.addi %452, %c9_i32_282 : i32
      %c3_i32_283 = arith.constant 3 : i32
      %454 = arith.addi %453, %c3_i32_283 : i32
      %c1_i32_284 = arith.constant 1 : i32
      %455 = arith.addi %454, %c1_i32_284 : i32
      %456 = arith.index_cast %455 : i32 to index
      %457 = memref.load %arg4[%456] : memref<576xf32, #tpu.memory_space<smem>>
      %c1_285 = arith.constant 1 : index
      %c63_286 = arith.constant 63 : index
      %c0_287 = arith.constant 0 : index
      %458 = vector.load %arg12[%c1_285, %c63_286, %c0_287] : memref<3x248x60xf32, #tpu.memory_space<vmem>>, vector<1x60x60xf32>
      %459 = vector.shape_cast %458 : vector<1x60x60xf32> to vector<60x60xf32>
      %460 = vector.broadcast %457 : f32 to vector<60x60xf32>
      %461 = arith.mulf %460, %459 : vector<60x60xf32>
      %462 = arith.addf %451, %461 : vector<60x60xf32>
      %c36_i32_288 = arith.constant 36 : i32
      %463 = arith.muli %arg15, %c36_i32_288 : i32
      %c9_i32_289 = arith.constant 9 : i32
      %464 = arith.addi %463, %c9_i32_289 : i32
      %c3_i32_290 = arith.constant 3 : i32
      %465 = arith.addi %464, %c3_i32_290 : i32
      %c2_i32_291 = arith.constant 2 : i32
      %466 = arith.addi %465, %c2_i32_291 : i32
      %467 = arith.index_cast %466 : i32 to index
      %468 = memref.load %arg4[%467] : memref<576xf32, #tpu.memory_space<smem>>
      %c2_292 = arith.constant 2 : index
      %c63_293 = arith.constant 63 : index
      %c0_294 = arith.constant 0 : index
      %469 = vector.load %arg12[%c2_292, %c63_293, %c0_294] : memref<3x248x60xf32, #tpu.memory_space<vmem>>, vector<1x60x60xf32>
      %470 = vector.shape_cast %469 : vector<1x60x60xf32> to vector<60x60xf32>
      %471 = vector.broadcast %468 : f32 to vector<60x60xf32>
      %472 = arith.mulf %471, %470 : vector<60x60xf32>
      %473 = arith.addf %462, %472 : vector<60x60xf32>
      %c36_i32_295 = arith.constant 36 : i32
      %474 = arith.muli %arg15, %c36_i32_295 : i32
      %c9_i32_296 = arith.constant 9 : i32
      %475 = arith.addi %474, %c9_i32_296 : i32
      %c6_i32_297 = arith.constant 6 : i32
      %476 = arith.addi %475, %c6_i32_297 : i32
      %c0_i32_298 = arith.constant 0 : i32
      %477 = arith.addi %476, %c0_i32_298 : i32
      %478 = arith.index_cast %477 : i32 to index
      %479 = memref.load %arg4[%478] : memref<576xf32, #tpu.memory_space<smem>>
      %c0_299 = arith.constant 0 : index
      %c64 = arith.constant 64 : index
      %c0_300 = arith.constant 0 : index
      %480 = vector.load %arg12[%c0_299, %c64, %c0_300] : memref<3x248x60xf32, #tpu.memory_space<vmem>>, vector<1x60x60xf32>
      %481 = vector.shape_cast %480 : vector<1x60x60xf32> to vector<60x60xf32>
      %482 = vector.broadcast %479 : f32 to vector<60x60xf32>
      %483 = arith.mulf %482, %481 : vector<60x60xf32>
      %484 = arith.addf %473, %483 : vector<60x60xf32>
      %c36_i32_301 = arith.constant 36 : i32
      %485 = arith.muli %arg15, %c36_i32_301 : i32
      %c9_i32_302 = arith.constant 9 : i32
      %486 = arith.addi %485, %c9_i32_302 : i32
      %c6_i32_303 = arith.constant 6 : i32
      %487 = arith.addi %486, %c6_i32_303 : i32
      %c1_i32_304 = arith.constant 1 : i32
      %488 = arith.addi %487, %c1_i32_304 : i32
      %489 = arith.index_cast %488 : i32 to index
      %490 = memref.load %arg4[%489] : memref<576xf32, #tpu.memory_space<smem>>
      %c1_305 = arith.constant 1 : index
      %c64_306 = arith.constant 64 : index
      %c0_307 = arith.constant 0 : index
      %491 = vector.load %arg12[%c1_305, %c64_306, %c0_307] : memref<3x248x60xf32, #tpu.memory_space<vmem>>, vector<1x60x60xf32>
      %492 = vector.shape_cast %491 : vector<1x60x60xf32> to vector<60x60xf32>
      %493 = vector.broadcast %490 : f32 to vector<60x60xf32>
      %494 = arith.mulf %493, %492 : vector<60x60xf32>
      %495 = arith.addf %484, %494 : vector<60x60xf32>
      %c36_i32_308 = arith.constant 36 : i32
      %496 = arith.muli %arg15, %c36_i32_308 : i32
      %c9_i32_309 = arith.constant 9 : i32
      %497 = arith.addi %496, %c9_i32_309 : i32
      %c6_i32_310 = arith.constant 6 : i32
      %498 = arith.addi %497, %c6_i32_310 : i32
      %c2_i32_311 = arith.constant 2 : i32
      %499 = arith.addi %498, %c2_i32_311 : i32
      %500 = arith.index_cast %499 : i32 to index
      %501 = memref.load %arg4[%500] : memref<576xf32, #tpu.memory_space<smem>>
      %c2_312 = arith.constant 2 : index
      %c64_313 = arith.constant 64 : index
      %c0_314 = arith.constant 0 : index
      %502 = vector.load %arg12[%c2_312, %c64_313, %c0_314] : memref<3x248x60xf32, #tpu.memory_space<vmem>>, vector<1x60x60xf32>
      %503 = vector.shape_cast %502 : vector<1x60x60xf32> to vector<60x60xf32>
      %504 = vector.broadcast %501 : f32 to vector<60x60xf32>
      %505 = arith.mulf %504, %503 : vector<60x60xf32>
      %506 = arith.addf %495, %505 : vector<60x60xf32>
      %c36_i32_315 = arith.constant 36 : i32
      %507 = arith.muli %arg15, %c36_i32_315 : i32
      %c18_i32 = arith.constant 18 : i32
      %508 = arith.addi %507, %c18_i32 : i32
      %c0_i32_316 = arith.constant 0 : i32
      %509 = arith.addi %508, %c0_i32_316 : i32
      %c0_i32_317 = arith.constant 0 : i32
      %510 = arith.addi %509, %c0_i32_317 : i32
      %511 = arith.index_cast %510 : i32 to index
      %512 = memref.load %arg4[%511] : memref<576xf32, #tpu.memory_space<smem>>
      %c0_318 = arith.constant 0 : index
      %c124_319 = arith.constant 124 : index
      %c0_320 = arith.constant 0 : index
      %513 = vector.load %arg12[%c0_318, %c124_319, %c0_320] : memref<3x248x60xf32, #tpu.memory_space<vmem>>, vector<1x60x60xf32>
      %514 = vector.shape_cast %513 : vector<1x60x60xf32> to vector<60x60xf32>
      %515 = vector.broadcast %512 : f32 to vector<60x60xf32>
      %516 = arith.mulf %515, %514 : vector<60x60xf32>
      %517 = arith.addf %506, %516 : vector<60x60xf32>
      %c36_i32_321 = arith.constant 36 : i32
      %518 = arith.muli %arg15, %c36_i32_321 : i32
      %c18_i32_322 = arith.constant 18 : i32
      %519 = arith.addi %518, %c18_i32_322 : i32
      %c0_i32_323 = arith.constant 0 : i32
      %520 = arith.addi %519, %c0_i32_323 : i32
      %c1_i32_324 = arith.constant 1 : i32
      %521 = arith.addi %520, %c1_i32_324 : i32
      %522 = arith.index_cast %521 : i32 to index
      %523 = memref.load %arg4[%522] : memref<576xf32, #tpu.memory_space<smem>>
      %c1_325 = arith.constant 1 : index
      %c124_326 = arith.constant 124 : index
      %c0_327 = arith.constant 0 : index
      %524 = vector.load %arg12[%c1_325, %c124_326, %c0_327] : memref<3x248x60xf32, #tpu.memory_space<vmem>>, vector<1x60x60xf32>
      %525 = vector.shape_cast %524 : vector<1x60x60xf32> to vector<60x60xf32>
      %526 = vector.broadcast %523 : f32 to vector<60x60xf32>
      %527 = arith.mulf %526, %525 : vector<60x60xf32>
      %528 = arith.addf %517, %527 : vector<60x60xf32>
      %c36_i32_328 = arith.constant 36 : i32
      %529 = arith.muli %arg15, %c36_i32_328 : i32
      %c18_i32_329 = arith.constant 18 : i32
      %530 = arith.addi %529, %c18_i32_329 : i32
      %c0_i32_330 = arith.constant 0 : i32
      %531 = arith.addi %530, %c0_i32_330 : i32
      %c2_i32_331 = arith.constant 2 : i32
      %532 = arith.addi %531, %c2_i32_331 : i32
      %533 = arith.index_cast %532 : i32 to index
      %534 = memref.load %arg4[%533] : memref<576xf32, #tpu.memory_space<smem>>
      %c2_332 = arith.constant 2 : index
      %c124_333 = arith.constant 124 : index
      %c0_334 = arith.constant 0 : index
      %535 = vector.load %arg12[%c2_332, %c124_333, %c0_334] : memref<3x248x60xf32, #tpu.memory_space<vmem>>, vector<1x60x60xf32>
      %536 = vector.shape_cast %535 : vector<1x60x60xf32> to vector<60x60xf32>
      %537 = vector.broadcast %534 : f32 to vector<60x60xf32>
      %538 = arith.mulf %537, %536 : vector<60x60xf32>
      %539 = arith.addf %528, %538 : vector<60x60xf32>
      %c36_i32_335 = arith.constant 36 : i32
      %540 = arith.muli %arg15, %c36_i32_335 : i32
      %c18_i32_336 = arith.constant 18 : i32
      %541 = arith.addi %540, %c18_i32_336 : i32
      %c3_i32_337 = arith.constant 3 : i32
      %542 = arith.addi %541, %c3_i32_337 : i32
      %c0_i32_338 = arith.constant 0 : i32
      %543 = arith.addi %542, %c0_i32_338 : i32
      %544 = arith.index_cast %543 : i32 to index
      %545 = memref.load %arg4[%544] : memref<576xf32, #tpu.memory_space<smem>>
      %c0_339 = arith.constant 0 : index
      %c125 = arith.constant 125 : index
      %c0_340 = arith.constant 0 : index
      %546 = vector.load %arg12[%c0_339, %c125, %c0_340] : memref<3x248x60xf32, #tpu.memory_space<vmem>>, vector<1x60x60xf32>
      %547 = vector.shape_cast %546 : vector<1x60x60xf32> to vector<60x60xf32>
      %548 = vector.broadcast %545 : f32 to vector<60x60xf32>
      %549 = arith.mulf %548, %547 : vector<60x60xf32>
      %550 = arith.addf %539, %549 : vector<60x60xf32>
      %c36_i32_341 = arith.constant 36 : i32
      %551 = arith.muli %arg15, %c36_i32_341 : i32
      %c18_i32_342 = arith.constant 18 : i32
      %552 = arith.addi %551, %c18_i32_342 : i32
      %c3_i32_343 = arith.constant 3 : i32
      %553 = arith.addi %552, %c3_i32_343 : i32
      %c1_i32_344 = arith.constant 1 : i32
      %554 = arith.addi %553, %c1_i32_344 : i32
      %555 = arith.index_cast %554 : i32 to index
      %556 = memref.load %arg4[%555] : memref<576xf32, #tpu.memory_space<smem>>
      %c1_345 = arith.constant 1 : index
      %c125_346 = arith.constant 125 : index
      %c0_347 = arith.constant 0 : index
      %557 = vector.load %arg12[%c1_345, %c125_346, %c0_347] : memref<3x248x60xf32, #tpu.memory_space<vmem>>, vector<1x60x60xf32>
      %558 = vector.shape_cast %557 : vector<1x60x60xf32> to vector<60x60xf32>
      %559 = vector.broadcast %556 : f32 to vector<60x60xf32>
      %560 = arith.mulf %559, %558 : vector<60x60xf32>
      %561 = arith.addf %550, %560 : vector<60x60xf32>
      %c36_i32_348 = arith.constant 36 : i32
      %562 = arith.muli %arg15, %c36_i32_348 : i32
      %c18_i32_349 = arith.constant 18 : i32
      %563 = arith.addi %562, %c18_i32_349 : i32
      %c3_i32_350 = arith.constant 3 : i32
      %564 = arith.addi %563, %c3_i32_350 : i32
      %c2_i32_351 = arith.constant 2 : i32
      %565 = arith.addi %564, %c2_i32_351 : i32
      %566 = arith.index_cast %565 : i32 to index
      %567 = memref.load %arg4[%566] : memref<576xf32, #tpu.memory_space<smem>>
      %c2_352 = arith.constant 2 : index
      %c125_353 = arith.constant 125 : index
      %c0_354 = arith.constant 0 : index
      %568 = vector.load %arg12[%c2_352, %c125_353, %c0_354] : memref<3x248x60xf32, #tpu.memory_space<vmem>>, vector<1x60x60xf32>
      %569 = vector.shape_cast %568 : vector<1x60x60xf32> to vector<60x60xf32>
      %570 = vector.broadcast %567 : f32 to vector<60x60xf32>
      %571 = arith.mulf %570, %569 : vector<60x60xf32>
      %572 = arith.addf %561, %571 : vector<60x60xf32>
      %c36_i32_355 = arith.constant 36 : i32
      %573 = arith.muli %arg15, %c36_i32_355 : i32
      %c18_i32_356 = arith.constant 18 : i32
      %574 = arith.addi %573, %c18_i32_356 : i32
      %c6_i32_357 = arith.constant 6 : i32
      %575 = arith.addi %574, %c6_i32_357 : i32
      %c0_i32_358 = arith.constant 0 : i32
      %576 = arith.addi %575, %c0_i32_358 : i32
      %577 = arith.index_cast %576 : i32 to index
      %578 = memref.load %arg4[%577] : memref<576xf32, #tpu.memory_space<smem>>
      %c0_359 = arith.constant 0 : index
      %c126 = arith.constant 126 : index
      %c0_360 = arith.constant 0 : index
      %579 = vector.load %arg12[%c0_359, %c126, %c0_360] : memref<3x248x60xf32, #tpu.memory_space<vmem>>, vector<1x60x60xf32>
      %580 = vector.shape_cast %579 : vector<1x60x60xf32> to vector<60x60xf32>
      %581 = vector.broadcast %578 : f32 to vector<60x60xf32>
      %582 = arith.mulf %581, %580 : vector<60x60xf32>
      %583 = arith.addf %572, %582 : vector<60x60xf32>
      %c36_i32_361 = arith.constant 36 : i32
      %584 = arith.muli %arg15, %c36_i32_361 : i32
      %c18_i32_362 = arith.constant 18 : i32
      %585 = arith.addi %584, %c18_i32_362 : i32
      %c6_i32_363 = arith.constant 6 : i32
      %586 = arith.addi %585, %c6_i32_363 : i32
      %c1_i32_364 = arith.constant 1 : i32
      %587 = arith.addi %586, %c1_i32_364 : i32
      %588 = arith.index_cast %587 : i32 to index
      %589 = memref.load %arg4[%588] : memref<576xf32, #tpu.memory_space<smem>>
      %c1_365 = arith.constant 1 : index
      %c126_366 = arith.constant 126 : index
      %c0_367 = arith.constant 0 : index
      %590 = vector.load %arg12[%c1_365, %c126_366, %c0_367] : memref<3x248x60xf32, #tpu.memory_space<vmem>>, vector<1x60x60xf32>
      %591 = vector.shape_cast %590 : vector<1x60x60xf32> to vector<60x60xf32>
      %592 = vector.broadcast %589 : f32 to vector<60x60xf32>
      %593 = arith.mulf %592, %591 : vector<60x60xf32>
      %594 = arith.addf %583, %593 : vector<60x60xf32>
      %c36_i32_368 = arith.constant 36 : i32
      %595 = arith.muli %arg15, %c36_i32_368 : i32
      %c18_i32_369 = arith.constant 18 : i32
      %596 = arith.addi %595, %c18_i32_369 : i32
      %c6_i32_370 = arith.constant 6 : i32
      %597 = arith.addi %596, %c6_i32_370 : i32
      %c2_i32_371 = arith.constant 2 : i32
      %598 = arith.addi %597, %c2_i32_371 : i32
      %599 = arith.index_cast %598 : i32 to index
      %600 = memref.load %arg4[%599] : memref<576xf32, #tpu.memory_space<smem>>
      %c2_372 = arith.constant 2 : index
      %c126_373 = arith.constant 126 : index
      %c0_374 = arith.constant 0 : index
      %601 = vector.load %arg12[%c2_372, %c126_373, %c0_374] : memref<3x248x60xf32, #tpu.memory_space<vmem>>, vector<1x60x60xf32>
      %602 = vector.shape_cast %601 : vector<1x60x60xf32> to vector<60x60xf32>
      %603 = vector.broadcast %600 : f32 to vector<60x60xf32>
      %604 = arith.mulf %603, %602 : vector<60x60xf32>
      %605 = arith.addf %594, %604 : vector<60x60xf32>
      %c36_i32_375 = arith.constant 36 : i32
      %606 = arith.muli %arg15, %c36_i32_375 : i32
      %c27_i32 = arith.constant 27 : i32
      %607 = arith.addi %606, %c27_i32 : i32
      %c0_i32_376 = arith.constant 0 : i32
      %608 = arith.addi %607, %c0_i32_376 : i32
      %c0_i32_377 = arith.constant 0 : i32
      %609 = arith.addi %608, %c0_i32_377 : i32
      %610 = arith.index_cast %609 : i32 to index
      %611 = memref.load %arg4[%610] : memref<576xf32, #tpu.memory_space<smem>>
      %c0_378 = arith.constant 0 : index
      %c186_379 = arith.constant 186 : index
      %c0_380 = arith.constant 0 : index
      %612 = vector.load %arg12[%c0_378, %c186_379, %c0_380] : memref<3x248x60xf32, #tpu.memory_space<vmem>>, vector<1x60x60xf32>
      %613 = vector.shape_cast %612 : vector<1x60x60xf32> to vector<60x60xf32>
      %614 = vector.broadcast %611 : f32 to vector<60x60xf32>
      %615 = arith.mulf %614, %613 : vector<60x60xf32>
      %616 = arith.addf %605, %615 : vector<60x60xf32>
      %c36_i32_381 = arith.constant 36 : i32
      %617 = arith.muli %arg15, %c36_i32_381 : i32
      %c27_i32_382 = arith.constant 27 : i32
      %618 = arith.addi %617, %c27_i32_382 : i32
      %c0_i32_383 = arith.constant 0 : i32
      %619 = arith.addi %618, %c0_i32_383 : i32
      %c1_i32_384 = arith.constant 1 : i32
      %620 = arith.addi %619, %c1_i32_384 : i32
      %621 = arith.index_cast %620 : i32 to index
      %622 = memref.load %arg4[%621] : memref<576xf32, #tpu.memory_space<smem>>
      %c1_385 = arith.constant 1 : index
      %c186_386 = arith.constant 186 : index
      %c0_387 = arith.constant 0 : index
      %623 = vector.load %arg12[%c1_385, %c186_386, %c0_387] : memref<3x248x60xf32, #tpu.memory_space<vmem>>, vector<1x60x60xf32>
      %624 = vector.shape_cast %623 : vector<1x60x60xf32> to vector<60x60xf32>
      %625 = vector.broadcast %622 : f32 to vector<60x60xf32>
      %626 = arith.mulf %625, %624 : vector<60x60xf32>
      %627 = arith.addf %616, %626 : vector<60x60xf32>
      %c36_i32_388 = arith.constant 36 : i32
      %628 = arith.muli %arg15, %c36_i32_388 : i32
      %c27_i32_389 = arith.constant 27 : i32
      %629 = arith.addi %628, %c27_i32_389 : i32
      %c0_i32_390 = arith.constant 0 : i32
      %630 = arith.addi %629, %c0_i32_390 : i32
      %c2_i32_391 = arith.constant 2 : i32
      %631 = arith.addi %630, %c2_i32_391 : i32
      %632 = arith.index_cast %631 : i32 to index
      %633 = memref.load %arg4[%632] : memref<576xf32, #tpu.memory_space<smem>>
      %c2_392 = arith.constant 2 : index
      %c186_393 = arith.constant 186 : index
      %c0_394 = arith.constant 0 : index
      %634 = vector.load %arg12[%c2_392, %c186_393, %c0_394] : memref<3x248x60xf32, #tpu.memory_space<vmem>>, vector<1x60x60xf32>
      %635 = vector.shape_cast %634 : vector<1x60x60xf32> to vector<60x60xf32>
      %636 = vector.broadcast %633 : f32 to vector<60x60xf32>
      %637 = arith.mulf %636, %635 : vector<60x60xf32>
      %638 = arith.addf %627, %637 : vector<60x60xf32>
      %c36_i32_395 = arith.constant 36 : i32
      %639 = arith.muli %arg15, %c36_i32_395 : i32
      %c27_i32_396 = arith.constant 27 : i32
      %640 = arith.addi %639, %c27_i32_396 : i32
      %c3_i32_397 = arith.constant 3 : i32
      %641 = arith.addi %640, %c3_i32_397 : i32
      %c0_i32_398 = arith.constant 0 : i32
      %642 = arith.addi %641, %c0_i32_398 : i32
      %643 = arith.index_cast %642 : i32 to index
      %644 = memref.load %arg4[%643] : memref<576xf32, #tpu.memory_space<smem>>
      %c0_399 = arith.constant 0 : index
      %c187 = arith.constant 187 : index
      %c0_400 = arith.constant 0 : index
      %645 = vector.load %arg12[%c0_399, %c187, %c0_400] : memref<3x248x60xf32, #tpu.memory_space<vmem>>, vector<1x60x60xf32>
      %646 = vector.shape_cast %645 : vector<1x60x60xf32> to vector<60x60xf32>
      %647 = vector.broadcast %644 : f32 to vector<60x60xf32>
      %648 = arith.mulf %647, %646 : vector<60x60xf32>
      %649 = arith.addf %638, %648 : vector<60x60xf32>
      %c36_i32_401 = arith.constant 36 : i32
      %650 = arith.muli %arg15, %c36_i32_401 : i32
      %c27_i32_402 = arith.constant 27 : i32
      %651 = arith.addi %650, %c27_i32_402 : i32
      %c3_i32_403 = arith.constant 3 : i32
      %652 = arith.addi %651, %c3_i32_403 : i32
      %c1_i32_404 = arith.constant 1 : i32
      %653 = arith.addi %652, %c1_i32_404 : i32
      %654 = arith.index_cast %653 : i32 to index
      %655 = memref.load %arg4[%654] : memref<576xf32, #tpu.memory_space<smem>>
      %c1_405 = arith.constant 1 : index
      %c187_406 = arith.constant 187 : index
      %c0_407 = arith.constant 0 : index
      %656 = vector.load %arg12[%c1_405, %c187_406, %c0_407] : memref<3x248x60xf32, #tpu.memory_space<vmem>>, vector<1x60x60xf32>
      %657 = vector.shape_cast %656 : vector<1x60x60xf32> to vector<60x60xf32>
      %658 = vector.broadcast %655 : f32 to vector<60x60xf32>
      %659 = arith.mulf %658, %657 : vector<60x60xf32>
      %660 = arith.addf %649, %659 : vector<60x60xf32>
      %c36_i32_408 = arith.constant 36 : i32
      %661 = arith.muli %arg15, %c36_i32_408 : i32
      %c27_i32_409 = arith.constant 27 : i32
      %662 = arith.addi %661, %c27_i32_409 : i32
      %c3_i32_410 = arith.constant 3 : i32
      %663 = arith.addi %662, %c3_i32_410 : i32
      %c2_i32_411 = arith.constant 2 : i32
      %664 = arith.addi %663, %c2_i32_411 : i32
      %665 = arith.index_cast %664 : i32 to index
      %666 = memref.load %arg4[%665] : memref<576xf32, #tpu.memory_space<smem>>
      %c2_412 = arith.constant 2 : index
      %c187_413 = arith.constant 187 : index
      %c0_414 = arith.constant 0 : index
      %667 = vector.load %arg12[%c2_412, %c187_413, %c0_414] : memref<3x248x60xf32, #tpu.memory_space<vmem>>, vector<1x60x60xf32>
      %668 = vector.shape_cast %667 : vector<1x60x60xf32> to vector<60x60xf32>
      %669 = vector.broadcast %666 : f32 to vector<60x60xf32>
      %670 = arith.mulf %669, %668 : vector<60x60xf32>
      %671 = arith.addf %660, %670 : vector<60x60xf32>
      %c36_i32_415 = arith.constant 36 : i32
      %672 = arith.muli %arg15, %c36_i32_415 : i32
      %c27_i32_416 = arith.constant 27 : i32
      %673 = arith.addi %672, %c27_i32_416 : i32
      %c6_i32_417 = arith.constant 6 : i32
      %674 = arith.addi %673, %c6_i32_417 : i32
      %c0_i32_418 = arith.constant 0 : i32
      %675 = arith.addi %674, %c0_i32_418 : i32
      %676 = arith.index_cast %675 : i32 to index
      %677 = memref.load %arg4[%676] : memref<576xf32, #tpu.memory_space<smem>>
      %c0_419 = arith.constant 0 : index
      %c188 = arith.constant 188 : index
      %c0_420 = arith.constant 0 : index
      %678 = vector.load %arg12[%c0_419, %c188, %c0_420] : memref<3x248x60xf32, #tpu.memory_space<vmem>>, vector<1x60x60xf32>
      %679 = vector.shape_cast %678 : vector<1x60x60xf32> to vector<60x60xf32>
      %680 = vector.broadcast %677 : f32 to vector<60x60xf32>
      %681 = arith.mulf %680, %679 : vector<60x60xf32>
      %682 = arith.addf %671, %681 : vector<60x60xf32>
      %c36_i32_421 = arith.constant 36 : i32
      %683 = arith.muli %arg15, %c36_i32_421 : i32
      %c27_i32_422 = arith.constant 27 : i32
      %684 = arith.addi %683, %c27_i32_422 : i32
      %c6_i32_423 = arith.constant 6 : i32
      %685 = arith.addi %684, %c6_i32_423 : i32
      %c1_i32_424 = arith.constant 1 : i32
      %686 = arith.addi %685, %c1_i32_424 : i32
      %687 = arith.index_cast %686 : i32 to index
      %688 = memref.load %arg4[%687] : memref<576xf32, #tpu.memory_space<smem>>
      %c1_425 = arith.constant 1 : index
      %c188_426 = arith.constant 188 : index
      %c0_427 = arith.constant 0 : index
      %689 = vector.load %arg12[%c1_425, %c188_426, %c0_427] : memref<3x248x60xf32, #tpu.memory_space<vmem>>, vector<1x60x60xf32>
      %690 = vector.shape_cast %689 : vector<1x60x60xf32> to vector<60x60xf32>
      %691 = vector.broadcast %688 : f32 to vector<60x60xf32>
      %692 = arith.mulf %691, %690 : vector<60x60xf32>
      %693 = arith.addf %682, %692 : vector<60x60xf32>
      %c36_i32_428 = arith.constant 36 : i32
      %694 = arith.muli %arg15, %c36_i32_428 : i32
      %c27_i32_429 = arith.constant 27 : i32
      %695 = arith.addi %694, %c27_i32_429 : i32
      %c6_i32_430 = arith.constant 6 : i32
      %696 = arith.addi %695, %c6_i32_430 : i32
      %c2_i32_431 = arith.constant 2 : i32
      %697 = arith.addi %696, %c2_i32_431 : i32
      %698 = arith.index_cast %697 : i32 to index
      %699 = memref.load %arg4[%698] : memref<576xf32, #tpu.memory_space<smem>>
      %c2_432 = arith.constant 2 : index
      %c188_433 = arith.constant 188 : index
      %c0_434 = arith.constant 0 : index
      %700 = vector.load %arg12[%c2_432, %c188_433, %c0_434] : memref<3x248x60xf32, #tpu.memory_space<vmem>>, vector<1x60x60xf32>
      %701 = vector.shape_cast %700 : vector<1x60x60xf32> to vector<60x60xf32>
      %702 = vector.broadcast %699 : f32 to vector<60x60xf32>
      %703 = arith.mulf %702, %701 : vector<60x60xf32>
      %704 = arith.addf %693, %703 : vector<60x60xf32>
      %705 = arith.index_cast %arg15 : i32 to index
      %706 = memref.load %arg5[%705] : memref<16xf32, #tpu.memory_space<smem>>
      %707 = vector.broadcast %706 : f32 to vector<60x60xf32>
      %708 = arith.addf %704, %707 : vector<60x60xf32>
      %c0_435 = arith.constant 0 : index
      %c0_436 = arith.constant 0 : index
      %709 = vector.load %arg13[%c0_435, %c0_436] : memref<60x60xf32, #tpu.memory_space<vmem>>, vector<60x60xf32>
      tpu.vector_store %arg13[%c0_435, %c0_436], %708 {strides = array<i32>} : memref<60x60xf32, #tpu.memory_space<vmem>>, vector<60x60xf32>,
      %c0_437 = arith.constant 0 : index
      %c0_438 = arith.constant 0 : index
      %710 = tpu.strided_load %arg13[%c0_437, %c0_438] {strides = array<i32: 2, 1>} : memref<60x60xf32, #tpu.memory_space<vmem>>, vector<30x60xf32>
      %c1_439 = arith.constant 1 : index
      %c0_440 = arith.constant 0 : index
      %711 = tpu.strided_load %arg13[%c1_439, %c0_440] {strides = array<i32: 2, 1>} : memref<60x60xf32, #tpu.memory_space<vmem>>, vector<30x60xf32>
      %712 = arith.maximumf %710, %711 : vector<30x60xf32>
      %713 = vector.extract_strided_slice %712 {offsets = [0, 0], sizes = [30, 59], strides = [1, 1]} : vector<30x60xf32> to vector<30x59xf32>
      %714 = vector.extract_strided_slice %712 {offsets = [0, 1], sizes = [30, 59], strides = [1, 1]} : vector<30x60xf32> to vector<30x59xf32>
      %715 = arith.maximumf %713, %714 : vector<30x59xf32>
      %c30_i32 = arith.constant 30 : i32
      %716 = arith.muli %arg15, %c30_i32 : i32
      %717 = arith.index_cast %716 : i32 to index
      %c0_441 = arith.constant 0 : index
      %718 = vector.load %arg14[%717, %c0_441] : memref<512x59xf32, #tpu.memory_space<vmem>>, vector<30x59xf32>
      tpu.vector_store %arg14[%717, %c0_441], %715 {strides = array<i32>} : memref<512x59xf32, #tpu.memory_space<vmem>>, vector<30x59xf32>,
    }
    %c16_i32_186 = arith.constant 16 : i32
    %c0_187 = arith.constant 0 : index
    %c0_188 = arith.constant 0 : index
    %302 = vector.load %arg14[%c0_187, %c0_188] : memref<512x59xf32, #tpu.memory_space<vmem>>, vector<512x59xf32>
    %c0_189 = arith.constant 0 : index
    %c0_190 = arith.constant 0 : index
    %303 = vector.load %arg7[%c0_189, %c0_190] : memref<59x30xf32, #tpu.memory_space<vmem>>, vector<59x30xf32>
    %cst_191 = arith.constant dense<0.000000e+00> : vector<512x30xf32>
    %304 = tpu.matmul %302, %303, %cst_191 {dimension_numbers = #tpu.dot_dimension_numbers<[1], [0], [0], [1], [0, 0, 1, 1], [], []>} : vector<512x59xf32>, vector<59x30xf32>, vector<512x30xf32> -> vector<512x30xf32>
    %c0_192 = arith.constant 0 : index
    %c0_193 = arith.constant 0 : index
    %c0_194 = arith.constant 0 : index
    %305 = vector.load %arg8[%c0_192, %c0_193, %c0_194] : memref<1x512x30xf32, #tpu.memory_space<vmem>>, vector<1x512x30xf32>
    %306 = vector.shape_cast %305 : vector<1x512x30xf32> to vector<512x30xf32>
    %307 = vector.shape_cast %304 : vector<512x30xf32> to vector<1x512x30xf32>
    tpu.vector_store %arg8[%c0_192, %c0_193, %c0_194], %307 {strides = array<i32>} : memref<1x512x30xf32, #tpu.memory_space<vmem>>, vector<1x512x30xf32>,
    return
  }
  func.func @transform_0(%arg0: i32) -> (i32, i32, i32, i32) {
    %c0_i32 = arith.constant 0 : i32
    %c0_i32_0 = arith.constant 0 : i32
    %c0_i32_1 = arith.constant 0 : i32
    %c0_i32_2 = arith.constant 0 : i32
    return %arg0, %c0_i32, %c0_i32_0, %c0_i32_1 : i32, i32, i32, i32
  }
  func.func @transform_1(%arg0: i32) -> i32 {
    %c0_i32 = arith.constant 0 : i32
    %c0_i32_0 = arith.constant 0 : i32
    return %c0_i32 : i32
  }
  func.func @transform_2(%arg0: i32) -> i32 {
    %c0_i32 = arith.constant 0 : i32
    %c0_i32_0 = arith.constant 0 : i32
    return %c0_i32 : i32
  }
  func.func @transform_3(%arg0: i32) -> i32 {
    %c0_i32 = arith.constant 0 : i32
    %c0_i32_0 = arith.constant 0 : i32
    return %c0_i32 : i32
  }
  func.func @transform_4(%arg0: i32) -> i32 {
    %c0_i32 = arith.constant 0 : i32
    %c0_i32_0 = arith.constant 0 : i32
    return %c0_i32 : i32
  }
  func.func @transform_5(%arg0: i32) -> (i32, i32, i32) {
    %c0_i32 = arith.constant 0 : i32
    %c0_i32_0 = arith.constant 0 : i32
    %c0_i32_1 = arith.constant 0 : i32
    %c0_i32_2 = arith.constant 0 : i32
    return %c0_i32, %c0_i32_0, %c0_i32_1 : i32, i32, i32
  }
  func.func @transform_6(%arg0: i32) -> (i32, i32) {
    %c0_i32 = arith.constant 0 : i32
    %c0_i32_0 = arith.constant 0 : i32
    %c0_i32_1 = arith.constant 0 : i32
    return %c0_i32, %c0_i32_0 : i32, i32
  }
  func.func @transform_7(%arg0: i32) -> (i32, i32, i32) {
    %c0_i32 = arith.constant 0 : i32
    %c0_i32_0 = arith.constant 0 : i32
    %c0_i32_1 = arith.constant 0 : i32
    return %arg0, %c0_i32, %c0_i32_0 : i32, i32, i32
  }
}

</mosaic_0001>

<llo_original>
// kernel: cnn_forward.3
$region0: #{cnn_forward.3}
  #allocation0 [shape = 'u32[]', space=smem, size = 0x4, offset = 0x4, fixed_abs, tag = 'smem constant byte address 0x4 - core index']
  #allocation1 [shape = 'u32[144,128]{1,0:T(1,128)}', space=vmem, size = 0x12000, scoped, tag = 'internal scratch']
  #allocation2 [shape = 'f32[2,128]{1,0:T(2,128)}', space=vmem, size = 0x400, scoped, tag = 'scratch operand']
  %s0 = inlined_call_operand.vmem [shape: f32[2,15360], index: 0, kind: input, shape index: {}]
  %s1 = inlined_call_operand.hbm [shape: f32[15360,128], index: 1, kind: input, shape index: {}]
  %s2 = inlined_call_operand.hbm [shape: f32[1,128], index: 2, kind: input, shape index: {}]
  %s3 = inlined_call_operand.vmem [shape: f32[128,10], index: 3, kind: input, shape index: {}]
  %s4 = inlined_call_operand.hbm [shape: f32[1,10], index: 4, kind: input, shape index: {}]
  %s5 = inlined_call_operand.hbm [shape: f32[2,10], index: 5, kind: output, shape index: {}]
  %s6 = sld [smem:[#allocation0]]
  $region73: #{cnn_forward.3} parent=0
    _
  %s8 = ssub.s32 1, %s6
  %s9 = scalar_select 0, %s8, %s6
  $region1: #{cnn_forward.3} parent=0
    #allocation3 [shape = 'u8[1966080]{0}', space=vmem, size = 0x1e0000, scoped, tag = 'input window, operand 1']
    #allocation4 [shape = 's32[2]{0}', space=sflag, size = 0x8, scoped, tag = 'scoped memory for cnn_forward.3']
    #allocation5 [shape = 's32[2]{0}', space=sflag, size = 0x8, scoped, tag = 'scoped memory for cnn_forward.3']
    #allocation6 [shape = 'u8[512]{0}', space=vmem, size = 0x400, scoped, tag = 'input window, operand 2, single buffered']
    #allocation7 [shape = 's32[1]{0}', space=sflag, size = 0x4, scoped, tag = 'scoped memory for cnn_forward.3']
    #allocation8 [shape = 'u8[512]{0}', space=vmem, size = 0x400, scoped, tag = 'input window, operand 4, single buffered']
    #allocation9 [shape = 'u8[1024]{0}', space=vmem, size = 0x400, scoped, tag = 'output window, operand 0, single buffered']
    %10 = vsyncpa [#allocation4], 0
    %s11 = scalar_lea.sflag [#allocation4], 1
    %12 = vsyncpa %s11, 0
    %13 = vsyncpa [#allocation7], 0
    %14 = vsyncpa [#allocation5], 0
    loop: start=0, step=1, limit=10
    $region2: #{cnn_forward.3} parent=1 // loop_pre_header
      _
    $region3: #{cnn_forward.3} parent=1 // loop_header
      %s16 = sphi 0, %s20
      %p17 = scmp.ge.s32.totalorder %s16, 10
      %s26 = sphi 0, %s28
      %s29 = sphi 0, %s26
      %s30 = sphi 0, %s29
      %s46 = sphi 0, %s30
      %s52 = sphi 0, %s54
      %s55 = sphi 0, %s52
      %s56 = sphi 0, %s55
      %s72 = sphi 0, %s56
      %s76 = sphi 0, %s76
      %s78 = sphi 0, %s76
      %s79 = sphi 0, %s78
      %s93 = sphi 0, %s79
      %s97 = sphi 0, %s97
      %s99 = sphi 0, %s97
      %s100 = sphi 0, %s99
      %s114 = sphi 0, %s100
      %s118 = sphi 0, %s118
      %s120 = sphi 0, %s118
      %s121 = sphi 0, %s120
      %s135 = sphi 0, %s121
      %s139 = sphi 0, %s139
      %s141 = sphi 0, %s139
      %s142 = sphi 0, %s141
      %s156 = sphi 0, %s142
    $region4: #{cnn_forward.3} parent=1 // loop_header_branch
      %19 = sbr.rel (%p17) target = $region8
    $region5: #{cnn_forward.3} parent=1 // loop_body
      %s21 = ssub.s32 %s16, 1
      %s22 = ssub.s32 %s16, 2
      %s23 = sadd.s32 %s16, 1
      %s24 = ssub.s32 %s16, %s23
      %p25 = scmp.eq.s32.totalorder %s24, 0
      %s27 = sadd.s32 %s26, 1
      %s28 = scalar_select %p25, %s26, %s27
      %p31 = pneg %p25
      %p32 = scmp.eq.s32.totalorder %s16, 7
      %p33 = por %p31, %p32
      %p34 = scmp.ne.s32.totalorder %s26, %s29
      %p35 = scmp.eq.s32.totalorder %s16, 0
      %p36 = por %p34, %p35
      %p37 = scmp.ne.s32.totalorder %s26, %s29
      %p38 = scmp.eq.s32.totalorder %s21, 7
      %p39 = por %p37, %p38
      %p40 = scmp.ne.s32.totalorder %s29, %s30
      %p41 = scmp.eq.s32.totalorder %s21, 0
      %p42 = por %p40, %p41
      %p43 = scmp.ne.s32.totalorder %s29, %s30
      %p44 = scmp.eq.s32.totalorder %s22, 7
      %p45 = por %p43, %p44
      %p47 = scmp.ne.s32.totalorder %s30, %s46
      %p48 = scmp.eq.s32.totalorder %s22, 0
      %p49 = por %p47, %p48
      %s50 = ssub.s32 %s16, %s23
      %p51 = scmp.eq.s32.totalorder %s50, 0
      %s53 = sadd.s32 %s52, 1
      %s54 = scalar_select %p51, %s52, %s53
      %p57 = pneg %p51
      %p58 = scmp.eq.s32.totalorder %s16, 7
      %p59 = por %p57, %p58
      %p60 = scmp.ne.s32.totalorder %s52, %s55
      %p61 = scmp.eq.s32.totalorder %s16, 0
      %p62 = por %p60, %p61
      %p63 = scmp.ne.s32.totalorder %s52, %s55
      %p64 = scmp.eq.s32.totalorder %s21, 7
      %p65 = por %p63, %p64
      %p66 = scmp.ne.s32.totalorder %s55, %s56
      %p67 = scmp.eq.s32.totalorder %s21, 0
      %p68 = por %p66, %p67
      %p69 = scmp.ne.s32.totalorder %s55, %s56
      %p70 = scmp.eq.s32.totalorder %s22, 7
      %p71 = por %p69, %p70
      %p73 = scmp.ne.s32.totalorder %s56, %s72
      %p74 = scmp.eq.s32.totalorder %s22, 0
      %p75 = por %p73, %p74
      %s77 = sadd.s32 %s76, 1
      %p80 = scmp.eq.s32.totalorder %s16, 7
      %p81 = scmp.ne.s32.totalorder %s76, %s78
      %p82 = scmp.eq.s32.totalorder %s16, 0
      %p83 = por %p81, %p82
      %p84 = scmp.ne.s32.totalorder %s76, %s78
      %p85 = scmp.eq.s32.totalorder %s21, 7
      %p86 = por %p84, %p85
      %p87 = scmp.ne.s32.totalorder %s78, %s79
      %p88 = scmp.eq.s32.totalorder %s21, 0
      %p89 = por %p87, %p88
      %p90 = scmp.ne.s32.totalorder %s78, %s79
      %p91 = scmp.eq.s32.totalorder %s22, 7
      %p92 = por %p90, %p91
      %p94 = scmp.ne.s32.totalorder %s79, %s93
      %p95 = scmp.eq.s32.totalorder %s22, 0
      %p96 = por %p94, %p95
      %s98 = sadd.s32 %s97, 1
      %p101 = scmp.eq.s32.totalorder %s16, 7
      %p102 = scmp.ne.s32.totalorder %s97, %s99
      %p103 = scmp.eq.s32.totalorder %s16, 0
      %p104 = por %p102, %p103
      %p105 = scmp.ne.s32.totalorder %s97, %s99
      %p106 = scmp.eq.s32.totalorder %s21, 7
      %p107 = por %p105, %p106
      %p108 = scmp.ne.s32.totalorder %s99, %s100
      %p109 = scmp.eq.s32.totalorder %s21, 0
      %p110 = por %p108, %p109
      %p111 = scmp.ne.s32.totalorder %s99, %s100
      %p112 = scmp.eq.s32.totalorder %s22, 7
      %p113 = por %p111, %p112
      %p115 = scmp.ne.s32.totalorder %s100, %s114
      %p116 = scmp.eq.s32.totalorder %s22, 0
      %p117 = por %p115, %p116
      %s119 = sadd.s32 %s118, 1
      %p122 = scmp.eq.s32.totalorder %s16, 7
      %p123 = scmp.ne.s32.totalorder %s118, %s120
      %p124 = scmp.eq.s32.totalorder %s16, 0
      %p125 = por %p123, %p124
      %p126 = scmp.ne.s32.totalorder %s118, %s120
      %p127 = scmp.eq.s32.totalorder %s21, 7
      %p128 = por %p126, %p127
      %p129 = scmp.ne.s32.totalorder %s120, %s121
      %p130 = scmp.eq.s32.totalorder %s21, 0
      %p131 = por %p129, %p130
      %p132 = scmp.ne.s32.totalorder %s120, %s121
      %p133 = scmp.eq.s32.totalorder %s22, 7
      %p134 = por %p132, %p133
      %p136 = scmp.ne.s32.totalorder %s121, %s135
      %p137 = scmp.eq.s32.totalorder %s22, 0
      %p138 = por %p136, %p137
      %s140 = sadd.s32 %s139, 1
      %p143 = scmp.eq.s32.totalorder %s16, 7
      %p144 = scmp.ne.s32.totalorder %s139, %s141
      %p145 = scmp.eq.s32.totalorder %s16, 0
      %p146 = por %p144, %p145
      %p147 = scmp.ne.s32.totalorder %s139, %s141
      %p148 = scmp.eq.s32.totalorder %s21, 7
      %p149 = por %p147, %p148
      %p150 = scmp.ne.s32.totalorder %s141, %s142
      %p151 = scmp.eq.s32.totalorder %s21, 0
      %p152 = por %p150, %p151
      %p153 = scmp.ne.s32.totalorder %s141, %s142
      %p154 = scmp.eq.s32.totalorder %s22, 7
      %p155 = por %p153, %p154
      %p157 = scmp.ne.s32.totalorder %s142, %s156
      %p158 = scmp.eq.s32.totalorder %s22, 0
      %p159 = por %p157, %p158
      %p160 = scmp.le.s32.totalorder 1, %s16
      %p161 = scmp.lt.s32.totalorder %s16, 9
      %p162 = pnand %p160, %p161
      %p163 = pneg %p162
      // Predicated region
      $region9: #{cnn_forward.3} parent=5 // pred_check
        _
      $region10: #{cnn_forward.3} parent=5 // pred_check_branch
        %165 = sbr.rel (%p162) target = $region12
      $region11: #{cnn_forward.3} parent=5 // pred_region
        %s166 = ssub.s32 %s16, 1
        // Predicated region
        $region13: #{cnn_forward.3} parent=11 // pred_check
          %p167 = pneg %p89
        $region14: #{cnn_forward.3} parent=11 // pred_check_branch
          %169 = sbr.rel (%p167) target = $region16
        $region15: #{cnn_forward.3} parent=11 // pred_region
          %s171 = ssub.s32 16, 16
          %172 = vsyncadd [#allocation7], %s171
          %s174 = sshll.u32 [#allocation6], 4
          %s175 = int_to_ptr.vmem [resolvable:$true] %s174
          %177 = dma.hbm_to_vmem [thread:$0]  %s2, 16, %s175, [#allocation7]
        $region16: #{cnn_forward.3} parent=11 // pred_fallthru
          _
        // Predicated region
        $region17: #{cnn_forward.3} parent=11 // pred_check
          %p178 = pneg %p110
        $region18: #{cnn_forward.3} parent=11 // pred_check_branch
          %180 = sbr.rel (%p178) target = $region20
        $region19: #{cnn_forward.3} parent=11 // pred_region
          _
        $region20: #{cnn_forward.3} parent=11 // pred_fallthru
          _
        // Predicated region
        $region21: #{cnn_forward.3} parent=11 // pred_check
          %p181 = pneg %p131
        $region22: #{cnn_forward.3} parent=11 // pred_check_branch
          %183 = sbr.rel (%p181) target = $region24
        $region23: #{cnn_forward.3} parent=11 // pred_region
          %s185 = ssub.s32 16, 16
          %186 = vsyncadd [#allocation7], %s185
          %s188 = sshll.u32 [#allocation8], 4
          %s189 = int_to_ptr.vmem [resolvable:$true] %s188
          %191 = dma.hbm_to_vmem [thread:$0]  %s4, 16, %s189, [#allocation7]
        $region24: #{cnn_forward.3} parent=11 // pred_fallthru
          _
      $region12: #{cnn_forward.3} parent=5 // pred_fallthru
        _
      %p192 = scmp.lt.s32.totalorder %s16, 8
      // Predicated region
      $region25: #{cnn_forward.3} parent=5 // pred_check
        %p193 = pneg %p192
      $region26: #{cnn_forward.3} parent=5 // pred_check_branch
        %195 = sbr.rel (%p193) target = $region28
      $region27: #{cnn_forward.3} parent=5 // pred_region
        // Predicated region
        $region29: #{cnn_forward.3} parent=27 // pred_check
          %p196 = pneg %p36
        $region30: #{cnn_forward.3} parent=27 // pred_check_branch
          %198 = sbr.rel (%p196) target = $region32
        $region31: #{cnn_forward.3} parent=27 // pred_region
          %s199 = smul.u32 15, %s16
          %p200 = scmp.lt.s32.totalorder %s199, 119
          %s201 = scalar_select %p200, %s199, 119
          %s202 = smul.addr %s201, 2
          %s203 = scalar_lea.vmem %s0, %s202
          %s204 = smul.u32 15, %s16
        $region32: #{cnn_forward.3} parent=27 // pred_fallthru
          _
        // Predicated region
        $region33: #{cnn_forward.3} parent=27 // pred_check
          %p205 = pneg %p62
        $region34: #{cnn_forward.3} parent=27 // pred_check_branch
          %207 = sbr.rel (%p205) target = $region36
        $region35: #{cnn_forward.3} parent=27 // pred_region
          %s208 = sand.u32 %s52, 1
          %s209 = scalar_lea.sflag [#allocation4], %s208
          %s210 = sand.u32 %s52, 1
          %s211 = smul.addr %s210, 1920
          %s212 = scalar_lea.vmem [#allocation3], %s211
          %s213 = smul.u32 240, %s16
          %s215 = ssub.s32 30720, 30720
          %216 = vsyncadd %s209, %s215
          %s217 = smul.addr %s213, 128
          %s218 = scalar_lea.hbm %s1, %s217
          %s219 = sshll.u32 %s212, 4
          %s220 = int_to_ptr.vmem [resolvable:$true] %s219
          %225 = dma.hbm_to_vmem [thread:$0]  %s218, 30720, %s220, %s209, 128, 128, 8
        $region36: #{cnn_forward.3} parent=27 // pred_fallthru
          _
      $region28: #{cnn_forward.3} parent=5 // pred_fallthru
        _
      %p226 = scmp.le.s32.totalorder 1, %s16
      %p227 = scmp.lt.s32.totalorder %s16, 9
      %p228 = pnand %p226, %p227
      %p229 = pneg %p228
      // Predicated region
      $region37: #{cnn_forward.3} parent=5 // pred_check
        _
      $region38: #{cnn_forward.3} parent=5 // pred_check_branch
        %231 = sbr.rel (%p228) target = $region40
      $region39: #{cnn_forward.3} parent=5 // pred_region
        %s232 = ssub.s32 %s16, 1
        %s233 = sand.u32 %s55, 1
        %s234 = scalar_lea.sflag [#allocation4], %s233
        %s235 = sand.u32 %s55, 1
        %s236 = smul.addr %s235, 1920
        %s237 = scalar_lea.vmem [#allocation3], %s236
        // Predicated region
        $region41: #{cnn_forward.3} parent=39 // pred_check
          %p238 = pneg %p68
        $region42: #{cnn_forward.3} parent=39 // pred_check_branch
          %240 = sbr.rel (%p238) target = $region44
        $region43: #{cnn_forward.3} parent=39 // pred_region
          %241 = dma.done %s234, 30720
        $region44: #{cnn_forward.3} parent=39 // pred_fallthru
          _
        // Predicated region
        $region45: #{cnn_forward.3} parent=39 // pred_check
          %p242 = pneg %p89
        $region46: #{cnn_forward.3} parent=39 // pred_check_branch
          %244 = sbr.rel (%p242) target = $region48
        $region47: #{cnn_forward.3} parent=39 // pred_region
          %245 = dma.done [#allocation7], 16
        $region48: #{cnn_forward.3} parent=39 // pred_fallthru
          _
        // Predicated region
        $region49: #{cnn_forward.3} parent=39 // pred_check
          %p246 = pneg %p131
        $region50: #{cnn_forward.3} parent=39 // pred_check_branch
          %248 = sbr.rel (%p246) target = $region52
        $region51: #{cnn_forward.3} parent=39 // pred_region
          %249 = dma.done [#allocation7], 16
        $region52: #{cnn_forward.3} parent=39 // pred_fallthru
          _
        %s250 = smul.u32 15, %s21
        %p251 = scmp.lt.s32.totalorder %s250, 119
        %s252 = scalar_select %p251, %s250, 119
        %s253 = smul.addr %s252, 2
        %s254 = scalar_lea.vmem %s0, %s253
        %p255 = pneg %p42
        %p256 = pneg %p39
        %s257 = sand.u32 %s55, 1
        %s258 = scalar_lea.sflag [#allocation4], %s257
        %s259 = sand.u32 %s55, 1
        %s260 = smul.addr %s259, 1920
        %s261 = scalar_lea.vmem [#allocation3], %s260
        %p262 = pneg %p68
        %p263 = pneg %p65
        %p264 = pneg %p89
        %p265 = pneg %p86
        %p266 = pneg %p110
        %p267 = pneg %p107
        %p268 = pneg %p131
        %p269 = pneg %p128
        %p270 = pneg %p152
        %p271 = pneg %p149
        %s272 = smul.u32 15, %s21
        %p273 = scmp.lt.s32.totalorder %s272, 119
        %s274 = scalar_select %p273, %s272, 119
        %s275 = smul.addr %s274, 2
        %s276 = scalar_lea.vmem %s0, %s275
        %s277 = smul.u32 15, %s21
        %s278 = smul.u32 240, %s21
        %p279 = scmp.eq.s32.totalorder %s21, 0
        // Predicated region
        $region53: #{cnn_forward.3} parent=39 // pred_check
          %p280 = pneg %p279
        $region54: #{cnn_forward.3} parent=39 // pred_check_branch
          %282 = sbr.rel (%p280) target = $region56
        $region55: #{cnn_forward.3} parent=39 // pred_region
          %283 = vst [vmem:[#allocation2] sm:$0x3] 0.0
        $region56: #{cnn_forward.3} parent=39 // pred_fallthru
          _
        %v284 = vld [vmem:[#allocation2] sm:$0x3]
        %v285 = vld [vmem:[%s276] sm:$0xff]
        %v286 = vld [vmem:[%s276 + $0x8] sm:$0xff]
        %v287 = vld [vmem:[%s276 + $0x10] sm:$0xff]
        %v288 = vld [vmem:[%s276 + $0x18] sm:$0x3f]
        %v289 = vld [vmem:[%s237] sm:$0xff]
        %v290 = vld [vmem:[%s237 + $0x8] sm:$0xff]
        %v291 = vld [vmem:[%s237 + $0x10] sm:$0xff]
        %v292 = vld [vmem:[%s237 + $0x18] sm:$0xff]
        %v293 = vld [vmem:[%s237 + $0x20] sm:$0xff]
        %v294 = vld [vmem:[%s237 + $0x28] sm:$0xff]
        %v295 = vld [vmem:[%s237 + $0x30] sm:$0xff]
        %v296 = vld [vmem:[%s237 + $0x38] sm:$0xff]
        %v297 = vld [vmem:[%s237 + $0x40] sm:$0xff]
        %v298 = vld [vmem:[%s237 + $0x48] sm:$0xff]
        %v299 = vld [vmem:[%s237 + $0x50] sm:$0xff]
        %v300 = vld [vmem:[%s237 + $0x58] sm:$0xff]
        %v301 = vld [vmem:[%s237 + $0x60] sm:$0xff]
        %v302 = vld [vmem:[%s237 + $0x68] sm:$0xff]
        %v303 = vld [vmem:[%s237 + $0x70] sm:$0xff]
        %v304 = vld [vmem:[%s237 + $0x78] sm:$0xff]
        %v305 = vld [vmem:[%s237 + $0x80] sm:$0xff]
        %v306 = vld [vmem:[%s237 + $0x88] sm:$0xff]
        %v307 = vld [vmem:[%s237 + $0x90] sm:$0xff]
        %v308 = vld [vmem:[%s237 + $0x98] sm:$0xff]
        %v309 = vld [vmem:[%s237 + $0xa0] sm:$0xff]
        %v310 = vld [vmem:[%s237 + $0xa8] sm:$0xff]
        %v311 = vld [vmem:[%s237 + $0xb0] sm:$0xff]
        %v312 = vld [vmem:[%s237 + $0xb8] sm:$0xff]
        %v313 = vld [vmem:[%s237 + $0xc0] sm:$0xff]
        %v314 = vld [vmem:[%s237 + $0xc8] sm:$0xff]
        %v315 = vld [vmem:[%s237 + $0xd0] sm:$0xff]
        %v316 = vld [vmem:[%s237 + $0xd8] sm:$0xff]
        %v317 = vld [vmem:[%s237 + $0xe0] sm:$0xff]
        %v318 = vld [vmem:[%s237 + $0xe8] sm:$0xff]
        %v319 = vld [vmem:[%s237 + $0xf0] sm:$0xff]
        %v320 = vld [vmem:[%s237 + $0xf8] sm:$0xff]
        %v321 = vld [vmem:[%s237 + $0x100] sm:$0xff]
        %v322 = vld [vmem:[%s237 + $0x108] sm:$0xff]
        %v323 = vld [vmem:[%s237 + $0x110] sm:$0xff]
        %v324 = vld [vmem:[%s237 + $0x118] sm:$0xff]
        %v325 = vld [vmem:[%s237 + $0x120] sm:$0xff]
        %v326 = vld [vmem:[%s237 + $0x128] sm:$0xff]
        %v327 = vld [vmem:[%s237 + $0x130] sm:$0xff]
        %v328 = vld [vmem:[%s237 + $0x138] sm:$0xff]
        %v329 = vld [vmem:[%s237 + $0x140] sm:$0xff]
        %v330 = vld [vmem:[%s237 + $0x148] sm:$0xff]
        %v331 = vld [vmem:[%s237 + $0x150] sm:$0xff]
        %v332 = vld [vmem:[%s237 + $0x158] sm:$0xff]
        %v333 = vld [vmem:[%s237 + $0x160] sm:$0xff]
        %v334 = vld [vmem:[%s237 + $0x168] sm:$0xff]
        %v335 = vld [vmem:[%s237 + $0x170] sm:$0xff]
        %v336 = vld [vmem:[%s237 + $0x178] sm:$0xff]
        %v337 = vld [vmem:[%s237 + $0x180] sm:$0xff]
        %v338 = vld [vmem:[%s237 + $0x188] sm:$0xff]
        %v339 = vld [vmem:[%s237 + $0x190] sm:$0xff]
        %v340 = vld [vmem:[%s237 + $0x198] sm:$0xff]
        %v341 = vld [vmem:[%s237 + $0x1a0] sm:$0xff]
        %v342 = vld [vmem:[%s237 + $0x1a8] sm:$0xff]
        %v343 = vld [vmem:[%s237 + $0x1b0] sm:$0xff]
        %v344 = vld [vmem:[%s237 + $0x1b8] sm:$0xff]
        %v345 = vld [vmem:[%s237 + $0x1c0] sm:$0xff]
        %v346 = vld [vmem:[%s237 + $0x1c8] sm:$0xff]
        %v347 = vld [vmem:[%s237 + $0x1d0] sm:$0xff]
        %v348 = vld [vmem:[%s237 + $0x1d8] sm:$0xff]
        %v349 = vld [vmem:[%s237 + $0x1e0] sm:$0xff]
        %v350 = vld [vmem:[%s237 + $0x1e8] sm:$0xff]
        %v351 = vld [vmem:[%s237 + $0x1f0] sm:$0xff]
        %v352 = vld [vmem:[%s237 + $0x1f8] sm:$0xff]
        %v353 = vld [vmem:[%s237 + $0x200] sm:$0xff]
        %v354 = vld [vmem:[%s237 + $0x208] sm:$0xff]
        %v355 = vld [vmem:[%s237 + $0x210] sm:$0xff]
        %v356 = vld [vmem:[%s237 + $0x218] sm:$0xff]
        %v357 = vld [vmem:[%s237 + $0x220] sm:$0xff]
        %v358 = vld [vmem:[%s237 + $0x228] sm:$0xff]
        %v359 = vld [vmem:[%s237 + $0x230] sm:$0xff]
        %v360 = vld [vmem:[%s237 + $0x238] sm:$0xff]
        %v361 = vld [vmem:[%s237 + $0x240] sm:$0xff]
        %v362 = vld [vmem:[%s237 + $0x248] sm:$0xff]
        %v363 = vld [vmem:[%s237 + $0x250] sm:$0xff]
        %v364 = vld [vmem:[%s237 + $0x258] sm:$0xff]
        %v365 = vld [vmem:[%s237 + $0x260] sm:$0xff]
        %v366 = vld [vmem:[%s237 + $0x268] sm:$0xff]
        %v367 = vld [vmem:[%s237 + $0x270] sm:$0xff]
        %v368 = vld [vmem:[%s237 + $0x278] sm:$0xff]
        %v369 = vld [vmem:[%s237 + $0x280] sm:$0xff]
        %v370 = vld [vmem:[%s237 + $0x288] sm:$0xff]
        %v371 = vld [vmem:[%s237 + $0x290] sm:$0xff]
        %v372 = vld [vmem:[%s237 + $0x298] sm:$0xff]
        %v373 = vld [vmem:[%s237 + $0x2a0] sm:$0xff]
        %v374 = vld [vmem:[%s237 + $0x2a8] sm:$0xff]
        %v375 = vld [vmem:[%s237 + $0x2b0] sm:$0xff]
        %v376 = vld [vmem:[%s237 + $0x2b8] sm:$0xff]
        %v377 = vld [vmem:[%s237 + $0x2c0] sm:$0xff]
        %v378 = vld [vmem:[%s237 + $0x2c8] sm:$0xff]
        %v379 = vld [vmem:[%s237 + $0x2d0] sm:$0xff]
        %v380 = vld [vmem:[%s237 + $0x2d8] sm:$0xff]
        %v381 = vld [vmem:[%s237 + $0x2e0] sm:$0xff]
        %v382 = vld [vmem:[%s237 + $0x2e8] sm:$0xff]
        %v383 = vld [vmem:[%s237 + $0x2f0] sm:$0xff]
        %v384 = vld [vmem:[%s237 + $0x2f8] sm:$0xff]
        %v385 = vld [vmem:[%s237 + $0x300] sm:$0xff]
        %v386 = vld [vmem:[%s237 + $0x308] sm:$0xff]
        %v387 = vld [vmem:[%s237 + $0x310] sm:$0xff]
        %v388 = vld [vmem:[%s237 + $0x318] sm:$0xff]
        %v389 = vld [vmem:[%s237 + $0x320] sm:$0xff]
        %v390 = vld [vmem:[%s237 + $0x328] sm:$0xff]
        %v391 = vld [vmem:[%s237 + $0x330] sm:$0xff]
        %v392 = vld [vmem:[%s237 + $0x338] sm:$0xff]
        %v393 = vld [vmem:[%s237 + $0x340] sm:$0xff]
        %v394 = vld [vmem:[%s237 + $0x348] sm:$0xff]
        %v395 = vld [vmem:[%s237 + $0x350] sm:$0xff]
        %v396 = vld [vmem:[%s237 + $0x358] sm:$0xff]
        %v397 = vld [vmem:[%s237 + $0x360] sm:$0xff]
        %v398 = vld [vmem:[%s237 + $0x368] sm:$0xff]
        %v399 = vld [vmem:[%s237 + $0x370] sm:$0xff]
        %v400 = vld [vmem:[%s237 + $0x378] sm:$0xff]
        %v401 = vld [vmem:[%s237 + $0x380] sm:$0xff]
        %v402 = vld [vmem:[%s237 + $0x388] sm:$0xff]
        %v403 = vld [vmem:[%s237 + $0x390] sm:$0xff]
        %v404 = vld [vmem:[%s237 + $0x398] sm:$0xff]
        %v405 = vld [vmem:[%s237 + $0x3a0] sm:$0xff]
        %v406 = vld [vmem:[%s237 + $0x3a8] sm:$0xff]
        %v407 = vld [vmem:[%s237 + $0x3b0] sm:$0xff]
        %v408 = vld [vmem:[%s237 + $0x3b8] sm:$0xff]
        %v409 = vld [vmem:[%s237 + $0x3c0] sm:$0xff]
        %v410 = vld [vmem:[%s237 + $0x3c8] sm:$0xff]
        %v411 = vld [vmem:[%s237 + $0x3d0] sm:$0xff]
        %v412 = vld [vmem:[%s237 + $0x3d8] sm:$0xff]
        %v413 = vld [vmem:[%s237 + $0x3e0] sm:$0xff]
        %v414 = vld [vmem:[%s237 + $0x3e8] sm:$0xff]
        %v415 = vld [vmem:[%s237 + $0x3f0] sm:$0xff]
        %v416 = vld [vmem:[%s237 + $0x3f8] sm:$0xff]
        %v417 = vld [vmem:[%s237 + $0x400] sm:$0xff]
        %v418 = vld [vmem:[%s237 + $0x408] sm:$0xff]
        %v419 = vld [vmem:[%s237 + $0x410] sm:$0xff]
        %v420 = vld [vmem:[%s237 + $0x418] sm:$0xff]
        %v421 = vld [vmem:[%s237 + $0x420] sm:$0xff]
        %v422 = vld [vmem:[%s237 + $0x428] sm:$0xff]
        %v423 = vld [vmem:[%s237 + $0x430] sm:$0xff]
        %v424 = vld [vmem:[%s237 + $0x438] sm:$0xff]
        %v425 = vld [vmem:[%s237 + $0x440] sm:$0xff]
        %v426 = vld [vmem:[%s237 + $0x448] sm:$0xff]
        %v427 = vld [vmem:[%s237 + $0x450] sm:$0xff]
        %v428 = vld [vmem:[%s237 + $0x458] sm:$0xff]
        %v429 = vld [vmem:[%s237 + $0x460] sm:$0xff]
        %v430 = vld [vmem:[%s237 + $0x468] sm:$0xff]
        %v431 = vld [vmem:[%s237 + $0x470] sm:$0xff]
        %v432 = vld [vmem:[%s237 + $0x478] sm:$0xff]
        %v433 = vld [vmem:[%s237 + $0x480] sm:$0xff]
        %v434 = vld [vmem:[%s237 + $0x488] sm:$0xff]
        %v435 = vld [vmem:[%s237 + $0x490] sm:$0xff]
        %v436 = vld [vmem:[%s237 + $0x498] sm:$0xff]
        %v437 = vld [vmem:[%s237 + $0x4a0] sm:$0xff]
        %v438 = vld [vmem:[%s237 + $0x4a8] sm:$0xff]
        %v439 = vld [vmem:[%s237 + $0x4b0] sm:$0xff]
        %v440 = vld [vmem:[%s237 + $0x4b8] sm:$0xff]
        %v441 = vld [vmem:[%s237 + $0x4c0] sm:$0xff]
        %v442 = vld [vmem:[%s237 + $0x4c8] sm:$0xff]
        %v443 = vld [vmem:[%s237 + $0x4d0] sm:$0xff]
        %v444 = vld [vmem:[%s237 + $0x4d8] sm:$0xff]
        %v445 = vld [vmem:[%s237 + $0x4e0] sm:$0xff]
        %v446 = vld [vmem:[%s237 + $0x4e8] sm:$0xff]
        %v447 = vld [vmem:[%s237 + $0x4f0] sm:$0xff]
        %v448 = vld [vmem:[%s237 + $0x4f8] sm:$0xff]
        %v449 = vld [vmem:[%s237 + $0x500] sm:$0xff]
        %v450 = vld [vmem:[%s237 + $0x508] sm:$0xff]
        %v451 = vld [vmem:[%s237 + $0x510] sm:$0xff]
        %v452 = vld [vmem:[%s237 + $0x518] sm:$0xff]
        %v453 = vld [vmem:[%s237 + $0x520] sm:$0xff]
        %v454 = vld [vmem:[%s237 + $0x528] sm:$0xff]
        %v455 = vld [vmem:[%s237 + $0x530] sm:$0xff]
        %v456 = vld [vmem:[%s237 + $0x538] sm:$0xff]
        %v457 = vld [vmem:[%s237 + $0x540] sm:$0xff]
        %v458 = vld [vmem:[%s237 + $0x548] sm:$0xff]
        %v459 = vld [vmem:[%s237 + $0x550] sm:$0xff]
        %v460 = vld [vmem:[%s237 + $0x558] sm:$0xff]
        %v461 = vld [vmem:[%s237 + $0x560] sm:$0xff]
        %v462 = vld [vmem:[%s237 + $0x568] sm:$0xff]
        %v463 = vld [vmem:[%s237 + $0x570] sm:$0xff]
        %v464 = vld [vmem:[%s237 + $0x578] sm:$0xff]
        %v465 = vld [vmem:[%s237 + $0x580] sm:$0xff]
        %v466 = vld [vmem:[%s237 + $0x588] sm:$0xff]
        %v467 = vld [vmem:[%s237 + $0x590] sm:$0xff]
        %v468 = vld [vmem:[%s237 + $0x598] sm:$0xff]
        %v469 = vld [vmem:[%s237 + $0x5a0] sm:$0xff]
        %v470 = vld [vmem:[%s237 + $0x5a8] sm:$0xff]
        %v471 = vld [vmem:[%s237 + $0x5b0] sm:$0xff]
        %v472 = vld [vmem:[%s237 + $0x5b8] sm:$0xff]
        %v473 = vld [vmem:[%s237 + $0x5c0] sm:$0xff]
        %v474 = vld [vmem:[%s237 + $0x5c8] sm:$0xff]
        %v475 = vld [vmem:[%s237 + $0x5d0] sm:$0xff]
        %v476 = vld [vmem:[%s237 + $0x5d8] sm:$0xff]
        %v477 = vld [vmem:[%s237 + $0x5e0] sm:$0xff]
        %v478 = vld [vmem:[%s237 + $0x5e8] sm:$0xff]
        %v479 = vld [vmem:[%s237 + $0x5f0] sm:$0xff]
        %v480 = vld [vmem:[%s237 + $0x5f8] sm:$0xff]
        %v481 = vld [vmem:[%s237 + $0x600] sm:$0xff]
        %v482 = vld [vmem:[%s237 + $0x608] sm:$0xff]
        %v483 = vld [vmem:[%s237 + $0x610] sm:$0xff]
        %v484 = vld [vmem:[%s237 + $0x618] sm:$0xff]
        %v485 = vld [vmem:[%s237 + $0x620] sm:$0xff]
        %v486 = vld [vmem:[%s237 + $0x628] sm:$0xff]
        %v487 = vld [vmem:[%s237 + $0x630] sm:$0xff]
        %v488 = vld [vmem:[%s237 + $0x638] sm:$0xff]
        %v489 = vld [vmem:[%s237 + $0x640] sm:$0xff]
        %v490 = vld [vmem:[%s237 + $0x648] sm:$0xff]
        %v491 = vld [vmem:[%s237 + $0x650] sm:$0xff]
        %v492 = vld [vmem:[%s237 + $0x658] sm:$0xff]
        %v493 = vld [vmem:[%s237 + $0x660] sm:$0xff]
        %v494 = vld [vmem:[%s237 + $0x668] sm:$0xff]
        %v495 = vld [vmem:[%s237 + $0x670] sm:$0xff]
        %v496 = vld [vmem:[%s237 + $0x678] sm:$0xff]
        %v497 = vld [vmem:[%s237 + $0x680] sm:$0xff]
        %v498 = vld [vmem:[%s237 + $0x688] sm:$0xff]
        %v499 = vld [vmem:[%s237 + $0x690] sm:$0xff]
        %v500 = vld [vmem:[%s237 + $0x698] sm:$0xff]
        %v501 = vld [vmem:[%s237 + $0x6a0] sm:$0xff]
        %v502 = vld [vmem:[%s237 + $0x6a8] sm:$0xff]
        %v503 = vld [vmem:[%s237 + $0x6b0] sm:$0xff]
        %v504 = vld [vmem:[%s237 + $0x6b8] sm:$0xff]
        %v505 = vld [vmem:[%s237 + $0x6c0] sm:$0xff]
        %v506 = vld [vmem:[%s237 + $0x6c8] sm:$0xff]
        %v507 = vld [vmem:[%s237 + $0x6d0] sm:$0xff]
        %v508 = vld [vmem:[%s237 + $0x6d8] sm:$0xff]
        %v509 = vld [vmem:[%s237 + $0x6e0] sm:$0xff]
        %v510 = vld [vmem:[%s237 + $0x6e8] sm:$0xff]
        %v511 = vld [vmem:[%s237 + $0x6f0] sm:$0xff]
        %v512 = vld [vmem:[%s237 + $0x6f8] sm:$0xff]
        %v513 = vld [vmem:[%s237 + $0x700] sm:$0xff]
        %v514 = vld [vmem:[%s237 + $0x708] sm:$0xff]
        %v515 = vld [vmem:[%s237 + $0x710] sm:$0xff]
        %v516 = vld [vmem:[%s237 + $0x718] sm:$0xff]
        %v517 = vld [vmem:[%s237 + $0x720] sm:$0xff]
        %v518 = vld [vmem:[%s237 + $0x728] sm:$0xff]
        %v519 = vld [vmem:[%s237 + $0x730] sm:$0xff]
        %v520 = vld [vmem:[%s237 + $0x738] sm:$0xff]
        %v521 = vld [vmem:[%s237 + $0x740] sm:$0xff]
        %v522 = vld [vmem:[%s237 + $0x748] sm:$0xff]
        %v523 = vld [vmem:[%s237 + $0x750] sm:$0xff]
        %v524 = vld [vmem:[%s237 + $0x758] sm:$0xff]
        %v525 = vld [vmem:[%s237 + $0x760] sm:$0xff]
        %v526 = vld [vmem:[%s237 + $0x768] sm:$0xff]
        %v527 = vld [vmem:[%s237 + $0x770] sm:$0xff]
        %v528 = vld [vmem:[%s237 + $0x778] sm:$0xff]
        %v533 = vcombine.high %v285, %v285
        %v535 = vunpack.c.l.s4 1983009808
        %v536 = vunpack.c.0.s8 %v535
        %v537 = vlaneseq
        %v538 = vshrl.u32 %v537, 7
        %v539 = vsub.s32 %v536, %v538
        %v540 = vrot.slane %v285, %v539
        %v542 = vunpack.c.l.s4 1983009808
        %v543 = vunpack.c.0.s8 %v542
        %v544 = vlaneseq
        %v545 = vshrl.u32 %v544, 7
        %v546 = vsub.s32 %v543, %v545
        %v547 = vrot.slane %v533, %v546
        %v548 = vcombine.high %v540, %v540
        %v549 = vcombine.high %v547, %v547
        %v550 = vcombine.high %v286, %v286
        %v552 = vunpack.c.l.s4 1983009808
        %v553 = vunpack.c.0.s8 %v552
        %v554 = vlaneseq
        %v555 = vshrl.u32 %v554, 7
        %v556 = vsub.s32 %v553, %v555
        %v557 = vrot.slane %v286, %v556
        %v559 = vunpack.c.l.s4 1983009808
        %v560 = vunpack.c.0.s8 %v559
        %v561 = vlaneseq
        %v562 = vshrl.u32 %v561, 7
        %v563 = vsub.s32 %v560, %v562
        %v564 = vrot.slane %v550, %v563
        %v565 = vcombine.high %v557, %v557
        %v566 = vcombine.high %v564, %v564
        %v567 = vcombine.high %v287, %v287
        %v569 = vunpack.c.l.s4 1983009808
        %v570 = vunpack.c.0.s8 %v569
        %v571 = vlaneseq
        %v572 = vshrl.u32 %v571, 7
        %v573 = vsub.s32 %v570, %v572
        %v574 = vrot.slane %v287, %v573
        %v576 = vunpack.c.l.s4 1983009808
        %v577 = vunpack.c.0.s8 %v576
        %v578 = vlaneseq
        %v579 = vshrl.u32 %v578, 7
        %v580 = vsub.s32 %v577, %v579
        %v581 = vrot.slane %v567, %v580
        %v582 = vcombine.high %v574, %v574
        %v583 = vcombine.high %v581, %v581
        %v584 = vcombine.high %v288, %v288
        %v586 = vunpack.c.l.s4 1983009808
        %v587 = vunpack.c.0.s8 %v586
        %v588 = vlaneseq
        %v589 = vshrl.u32 %v588, 7
        %v590 = vsub.s32 %v587, %v589
        %v591 = vrot.slane %v288, %v590
        %v593 = vunpack.c.l.s4 1983009808
        %v594 = vunpack.c.0.s8 %v593
        %v595 = vlaneseq
        %v596 = vshrl.u32 %v595, 7
        %v597 = vsub.s32 %v594, %v596
        %v598 = vrot.slane %v584, %v597
        %v599 = vcombine.high %v591, %v591
        %615 = vmatprep.subr.mxu0 0.0
        %616 = vmatpush1.msra.mxu0 %v289
        %617 = vmatprep.subr.mxu0 0.0
        %618 = vmatpush1.msra.mxu0 %v290
        %619 = vmatprep.subr.mxu0 0.0
        %620 = vmatpush1.msra.mxu0 %v291
        %621 = vmatprep.subr.mxu0 0.0
        %622 = vmatpush1.msra.mxu0 %v292
        %623 = vmatprep.subr.mxu0 0.0
        %624 = vmatpush1.msra.mxu0 %v293
        %625 = vmatprep.subr.mxu0 0.0
        %626 = vmatpush1.msra.mxu0 %v294
        %627 = vmatprep.subr.mxu0 0.0
        %628 = vmatpush1.msra.mxu0 %v295
        %629 = vmatprep.subr.mxu0 0.0
        %630 = vmatpush1.msra.mxu0 %v296
        %631 = vmatprep.subr.mxu0 0.0
        %632 = vmatpush1.msra.mxu0 %v297
        %633 = vmatprep.subr.mxu0 0.0
        %634 = vmatpush1.msra.mxu0 %v298
        %635 = vmatprep.subr.mxu0 0.0
        %636 = vmatpush1.msra.mxu0 %v299
        %637 = vmatprep.subr.mxu0 0.0
        %638 = vmatpush1.msra.mxu0 %v300
        %639 = vmatprep.subr.mxu0 0.0
        %640 = vmatpush1.msra.mxu0 %v301
        %641 = vmatprep.subr.mxu0 0.0
        %642 = vmatpush1.msra.mxu0 %v302
        %643 = vmatprep.subr.mxu0 0.0
        %644 = vmatpush1.msra.mxu0 %v303
        %645 = vmatprep.subr.mxu0 0.0
        %646 = vmatpush1.msra.mxu0 %v304
        %647 = vmatprep.subr.mxu0 0.0
        %648 = vmatpush1.msra.mxu0 %v305
        %649 = vmatprep.subr.mxu0 0.0
        %650 = vmatpush1.msra.mxu0 %v306
        %651 = vmatprep.subr.mxu0 0.0
        %652 = vmatpush1.msra.mxu0 %v307
        %653 = vmatprep.subr.mxu0 0.0
        %654 = vmatpush1.msra.mxu0 %v308
        %655 = vmatprep.subr.mxu0 0.0
        %656 = vmatpush1.msra.mxu0 %v309
        %657 = vmatprep.subr.mxu0 0.0
        %658 = vmatpush1.msra.mxu0 %v310
        %659 = vmatprep.subr.mxu0 0.0
        %660 = vmatpush1.msra.mxu0 %v311
        %661 = vmatprep.subr.mxu0 0.0
        %662 = vmatpush1.msra.mxu0 %v312
        %663 = vmatprep.subr.mxu0 0.0
        %664 = vmatpush1.msra.mxu0 %v313
        %665 = vmatprep.subr.mxu0 0.0
        %666 = vmatpush1.msra.mxu0 %v314
        %667 = vmatprep.subr.mxu0 0.0
        %668 = vmatpush1.msra.mxu0 %v315
        %669 = vmatprep.subr.mxu0 0.0
        %670 = vmatpush1.msra.mxu0 %v316
        %671 = vmatprep.subr.mxu0 0.0
        %672 = vmatpush1.msra.mxu0 %v317
        %673 = vmatprep.subr.mxu0 0.0
        %674 = vmatpush1.msra.mxu0 %v318
        %675 = vmatprep.subr.mxu0 0.0
        %676 = vmatpush1.msra.mxu0 %v319
        %677 = vmatprep.subr.mxu0 0.0
        %678 = vmatpush1.msra.mxu0 %v320
        %679 = vmatprep.mubr.f32.mxu0 %v548
        %680 = vmatmul.mubr.f32.gmra.mrb[0].mxu0 %v540
        %v681 = vpop.f32.mrb[0].mxu0
        %v682 = vadd.f32 0.0, %v681
        %v683 = vpop.f32.mrb[0].mxu0
        %684 = vdwg.mxu0
        %685 = vmatprep.subr.mxu0 0.0
        %686 = vmatpush1.msra.mxu0 %v321
        %687 = vmatprep.subr.mxu0 0.0
        %688 = vmatpush1.msra.mxu0 %v322
        %689 = vmatprep.subr.mxu0 0.0
        %690 = vmatpush1.msra.mxu0 %v323
        %691 = vmatprep.subr.mxu0 0.0
        %692 = vmatpush1.msra.mxu0 %v324
        %693 = vmatprep.subr.mxu0 0.0
        %694 = vmatpush1.msra.mxu0 %v325
        %695 = vmatprep.subr.mxu0 0.0
        %696 = vmatpush1.msra.mxu0 %v326
        %697 = vmatprep.subr.mxu0 0.0
        %698 = vmatpush1.msra.mxu0 %v327
        %699 = vmatprep.subr.mxu0 0.0
        %700 = vmatpush1.msra.mxu0 %v328
        %701 = vmatprep.subr.mxu0 0.0
        %702 = vmatpush1.msra.mxu0 %v329
        %703 = vmatprep.subr.mxu0 0.0
        %704 = vmatpush1.msra.mxu0 %v330
        %705 = vmatprep.subr.mxu0 0.0
        %706 = vmatpush1.msra.mxu0 %v331
        %707 = vmatprep.subr.mxu0 0.0
        %708 = vmatpush1.msra.mxu0 %v332
        %709 = vmatprep.subr.mxu0 0.0
        %710 = vmatpush1.msra.mxu0 %v333
        %711 = vmatprep.subr.mxu0 0.0
        %712 = vmatpush1.msra.mxu0 %v334
        %713 = vmatprep.subr.mxu0 0.0
        %714 = vmatpush1.msra.mxu0 %v335
        %715 = vmatprep.subr.mxu0 0.0
        %716 = vmatpush1.msra.mxu0 %v336
        %717 = vmatprep.subr.mxu0 0.0
        %718 = vmatpush1.msra.mxu0 %v337
        %719 = vmatprep.subr.mxu0 0.0
        %720 = vmatpush1.msra.mxu0 %v338
        %721 = vmatprep.subr.mxu0 0.0
        %722 = vmatpush1.msra.mxu0 %v339
        %723 = vmatprep.subr.mxu0 0.0
        %724 = vmatpush1.msra.mxu0 %v340
        %725 = vmatprep.subr.mxu0 0.0
        %726 = vmatpush1.msra.mxu0 %v341
        %727 = vmatprep.subr.mxu0 0.0
        %728 = vmatpush1.msra.mxu0 %v342
        %729 = vmatprep.subr.mxu0 0.0
        %730 = vmatpush1.msra.mxu0 %v343
        %731 = vmatprep.subr.mxu0 0.0
        %732 = vmatpush1.msra.mxu0 %v344
        %733 = vmatprep.subr.mxu0 0.0
        %734 = vmatpush1.msra.mxu0 %v345
        %735 = vmatprep.subr.mxu0 0.0
        %736 = vmatpush1.msra.mxu0 %v346
        %737 = vmatprep.subr.mxu0 0.0
        %738 = vmatpush1.msra.mxu0 %v347
        %739 = vmatprep.subr.mxu0 0.0
        %740 = vmatpush1.msra.mxu0 %v348
        %741 = vmatprep.subr.mxu0 0.0
        %742 = vmatpush1.msra.mxu0 %v349
        %743 = vmatprep.subr.mxu0 0.0
        %744 = vmatpush1.msra.mxu0 %v350
        %745 = vmatprep.subr.mxu0 0.0
        %746 = vmatpush1.msra.mxu0 %v351
        %747 = vmatprep.subr.mxu0 0.0
        %748 = vmatpush1.msra.mxu0 %v352
        %749 = vmatprep.mubr.f32.mxu0 %v549
        %750 = vmatmul.mubr.f32.gmra.mrb[0].mxu0 %v547
        %v751 = vpop.f32.mrb[0].mxu0
        %v752 = vadd.f32 %v682, %v751
        %v753 = vpop.f32.mrb[0].mxu0
        %754 = vdwg.mxu0
        %755 = vmatprep.subr.mxu0 0.0
        %756 = vmatpush1.msra.mxu0 %v353
        %757 = vmatprep.subr.mxu0 0.0
        %758 = vmatpush1.msra.mxu0 %v354
        %759 = vmatprep.subr.mxu0 0.0
        %760 = vmatpush1.msra.mxu0 %v355
        %761 = vmatprep.subr.mxu0 0.0
        %762 = vmatpush1.msra.mxu0 %v356
        %763 = vmatprep.subr.mxu0 0.0
        %764 = vmatpush1.msra.mxu0 %v357
        %765 = vmatprep.subr.mxu0 0.0
        %766 = vmatpush1.msra.mxu0 %v358
        %767 = vmatprep.subr.mxu0 0.0
        %768 = vmatpush1.msra.mxu0 %v359
        %769 = vmatprep.subr.mxu0 0.0
        %770 = vmatpush1.msra.mxu0 %v360
        %771 = vmatprep.subr.mxu0 0.0
        %772 = vmatpush1.msra.mxu0 %v361
        %773 = vmatprep.subr.mxu0 0.0
        %774 = vmatpush1.msra.mxu0 %v362
        %775 = vmatprep.subr.mxu0 0.0
        %776 = vmatpush1.msra.mxu0 %v363
        %777 = vmatprep.subr.mxu0 0.0
        %778 = vmatpush1.msra.mxu0 %v364
        %779 = vmatprep.subr.mxu0 0.0
        %780 = vmatpush1.msra.mxu0 %v365
        %781 = vmatprep.subr.mxu0 0.0
        %782 = vmatpush1.msra.mxu0 %v366
        %783 = vmatprep.subr.mxu0 0.0
        %784 = vmatpush1.msra.mxu0 %v367
        %785 = vmatprep.subr.mxu0 0.0
        %786 = vmatpush1.msra.mxu0 %v368
        %787 = vmatprep.subr.mxu0 0.0
        %788 = vmatpush1.msra.mxu0 %v369
        %789 = vmatprep.subr.mxu0 0.0
        %790 = vmatpush1.msra.mxu0 %v370
        %791 = vmatprep.subr.mxu0 0.0
        %792 = vmatpush1.msra.mxu0 %v371
        %793 = vmatprep.subr.mxu0 0.0
        %794 = vmatpush1.msra.mxu0 %v372
        %795 = vmatprep.subr.mxu0 0.0
        %796 = vmatpush1.msra.mxu0 %v373
        %797 = vmatprep.subr.mxu0 0.0
        %798 = vmatpush1.msra.mxu0 %v374
        %799 = vmatprep.subr.mxu0 0.0
        %800 = vmatpush1.msra.mxu0 %v375
        %801 = vmatprep.subr.mxu0 0.0
        %802 = vmatpush1.msra.mxu0 %v376
        %803 = vmatprep.subr.mxu0 0.0
        %804 = vmatpush1.msra.mxu0 %v377
        %805 = vmatprep.subr.mxu0 0.0
        %806 = vmatpush1.msra.mxu0 %v378
        %807 = vmatprep.subr.mxu0 0.0
        %808 = vmatpush1.msra.mxu0 %v379
        %809 = vmatprep.subr.mxu0 0.0
        %810 = vmatpush1.msra.mxu0 %v380
        %811 = vmatprep.subr.mxu0 0.0
        %812 = vmatpush1.msra.mxu0 %v381
        %813 = vmatprep.subr.mxu0 0.0
        %814 = vmatpush1.msra.mxu0 %v382
        %815 = vmatprep.subr.mxu0 0.0
        %816 = vmatpush1.msra.mxu0 %v383
        %817 = vmatprep.subr.mxu0 0.0
        %818 = vmatpush1.msra.mxu0 %v384
        %819 = vmatprep.mubr.f32.mxu0 %v565
        %820 = vmatmul.mubr.f32.gmra.mrb[0].mxu0 %v557
        %v821 = vpop.f32.mrb[0].mxu0
        %v822 = vadd.f32 %v752, %v821
        %v823 = vpop.f32.mrb[0].mxu0
        %824 = vdwg.mxu0
        %825 = vmatprep.subr.mxu0 0.0
        %826 = vmatpush1.msra.mxu0 %v385
        %827 = vmatprep.subr.mxu0 0.0
        %828 = vmatpush1.msra.mxu0 %v386
        %829 = vmatprep.subr.mxu0 0.0
        %830 = vmatpush1.msra.mxu0 %v387
        %831 = vmatprep.subr.mxu0 0.0
        %832 = vmatpush1.msra.mxu0 %v388
        %833 = vmatprep.subr.mxu0 0.0
        %834 = vmatpush1.msra.mxu0 %v389
        %835 = vmatprep.subr.mxu0 0.0
        %836 = vmatpush1.msra.mxu0 %v390
        %837 = vmatprep.subr.mxu0 0.0
        %838 = vmatpush1.msra.mxu0 %v391
        %839 = vmatprep.subr.mxu0 0.0
        %840 = vmatpush1.msra.mxu0 %v392
        %841 = vmatprep.subr.mxu0 0.0
        %842 = vmatpush1.msra.mxu0 %v393
        %843 = vmatprep.subr.mxu0 0.0
        %844 = vmatpush1.msra.mxu0 %v394
        %845 = vmatprep.subr.mxu0 0.0
        %846 = vmatpush1.msra.mxu0 %v395
        %847 = vmatprep.subr.mxu0 0.0
        %848 = vmatpush1.msra.mxu0 %v396
        %849 = vmatprep.subr.mxu0 0.0
        %850 = vmatpush1.msra.mxu0 %v397
        %851 = vmatprep.subr.mxu0 0.0
        %852 = vmatpush1.msra.mxu0 %v398
        %853 = vmatprep.subr.mxu0 0.0
        %854 = vmatpush1.msra.mxu0 %v399
        %855 = vmatprep.subr.mxu0 0.0
        %856 = vmatpush1.msra.mxu0 %v400
        %857 = vmatprep.subr.mxu0 0.0
        %858 = vmatpush1.msra.mxu0 %v401
        %859 = vmatprep.subr.mxu0 0.0
        %860 = vmatpush1.msra.mxu0 %v402
        %861 = vmatprep.subr.mxu0 0.0
        %862 = vmatpush1.msra.mxu0 %v403
        %863 = vmatprep.subr.mxu0 0.0
        %864 = vmatpush1.msra.mxu0 %v404
        %865 = vmatprep.subr.mxu0 0.0
        %866 = vmatpush1.msra.mxu0 %v405
        %867 = vmatprep.subr.mxu0 0.0
        %868 = vmatpush1.msra.mxu0 %v406
        %869 = vmatprep.subr.mxu0 0.0
        %870 = vmatpush1.msra.mxu0 %v407
        %871 = vmatprep.subr.mxu0 0.0
        %872 = vmatpush1.msra.mxu0 %v408
        %873 = vmatprep.subr.mxu0 0.0
        %874 = vmatpush1.msra.mxu0 %v409
        %875 = vmatprep.subr.mxu0 0.0
        %876 = vmatpush1.msra.mxu0 %v410
        %877 = vmatprep.subr.mxu0 0.0
        %878 = vmatpush1.msra.mxu0 %v411
        %879 = vmatprep.subr.mxu0 0.0
        %880 = vmatpush1.msra.mxu0 %v412
        %881 = vmatprep.subr.mxu0 0.0
        %882 = vmatpush1.msra.mxu0 %v413
        %883 = vmatprep.subr.mxu0 0.0
        %884 = vmatpush1.msra.mxu0 %v414
        %885 = vmatprep.subr.mxu0 0.0
        %886 = vmatpush1.msra.mxu0 %v415
        %887 = vmatprep.subr.mxu0 0.0
        %888 = vmatpush1.msra.mxu0 %v416
        %889 = vmatprep.mubr.f32.mxu0 %v566
        %890 = vmatmul.mubr.f32.gmra.mrb[0].mxu0 %v564
        %v891 = vpop.f32.mrb[0].mxu0
        %v892 = vadd.f32 %v822, %v891
        %v893 = vpop.f32.mrb[0].mxu0
        %894 = vdwg.mxu0
        %895 = vmatprep.subr.mxu0 0.0
        %896 = vmatpush1.msra.mxu0 %v417
        %897 = vmatprep.subr.mxu0 0.0
        %898 = vmatpush1.msra.mxu0 %v418
        %899 = vmatprep.subr.mxu0 0.0
        %900 = vmatpush1.msra.mxu0 %v419
        %901 = vmatprep.subr.mxu0 0.0
        %902 = vmatpush1.msra.mxu0 %v420
        %903 = vmatprep.subr.mxu0 0.0
        %904 = vmatpush1.msra.mxu0 %v421
        %905 = vmatprep.subr.mxu0 0.0
        %906 = vmatpush1.msra.mxu0 %v422
        %907 = vmatprep.subr.mxu0 0.0
        %908 = vmatpush1.msra.mxu0 %v423
        %909 = vmatprep.subr.mxu0 0.0
        %910 = vmatpush1.msra.mxu0 %v424
        %911 = vmatprep.subr.mxu0 0.0
        %912 = vmatpush1.msra.mxu0 %v425
        %913 = vmatprep.subr.mxu0 0.0
        %914 = vmatpush1.msra.mxu0 %v426
        %915 = vmatprep.subr.mxu0 0.0
        %916 = vmatpush1.msra.mxu0 %v427
        %917 = vmatprep.subr.mxu0 0.0
        %918 = vmatpush1.msra.mxu0 %v428
        %919 = vmatprep.subr.mxu0 0.0
        %920 = vmatpush1.msra.mxu0 %v429
        %921 = vmatprep.subr.mxu0 0.0
        %922 = vmatpush1.msra.mxu0 %v430
        %923 = vmatprep.subr.mxu0 0.0
        %924 = vmatpush1.msra.mxu0 %v431
        %925 = vmatprep.subr.mxu0 0.0
        %926 = vmatpush1.msra.mxu0 %v432
        %927 = vmatprep.subr.mxu0 0.0
        %928 = vmatpush1.msra.mxu0 %v433
        %929 = vmatprep.subr.mxu0 0.0
        %930 = vmatpush1.msra.mxu0 %v434
        %931 = vmatprep.subr.mxu0 0.0
        %932 = vmatpush1.msra.mxu0 %v435
        %933 = vmatprep.subr.mxu0 0.0
        %934 = vmatpush1.msra.mxu0 %v436
        %935 = vmatprep.subr.mxu0 0.0
        %936 = vmatpush1.msra.mxu0 %v437
        %937 = vmatprep.subr.mxu0 0.0
        %938 = vmatpush1.msra.mxu0 %v438
        %939 = vmatprep.subr.mxu0 0.0
        %940 = vmatpush1.msra.mxu0 %v439
        %941 = vmatprep.subr.mxu0 0.0
        %942 = vmatpush1.msra.mxu0 %v440
        %943 = vmatprep.subr.mxu0 0.0
        %944 = vmatpush1.msra.mxu0 %v441
        %945 = vmatprep.subr.mxu0 0.0
        %946 = vmatpush1.msra.mxu0 %v442
        %947 = vmatprep.subr.mxu0 0.0
        %948 = vmatpush1.msra.mxu0 %v443
        %949 = vmatprep.subr.mxu0 0.0
        %950 = vmatpush1.msra.mxu0 %v444
        %951 = vmatprep.subr.mxu0 0.0
        %952 = vmatpush1.msra.mxu0 %v445
        %953 = vmatprep.subr.mxu0 0.0
        %954 = vmatpush1.msra.mxu0 %v446
        %955 = vmatprep.subr.mxu0 0.0
        %956 = vmatpush1.msra.mxu0 %v447
        %957 = vmatprep.subr.mxu0 0.0
        %958 = vmatpush1.msra.mxu0 %v448
        %959 = vmatprep.mubr.f32.mxu0 %v582
        %960 = vmatmul.mubr.f32.gmra.mrb[0].mxu0 %v574
        %v961 = vpop.f32.mrb[0].mxu0
        %v962 = vadd.f32 %v892, %v961
        %v963 = vpop.f32.mrb[0].mxu0
        %964 = vdwg.mxu0
        %965 = vmatprep.subr.mxu0 0.0
        %966 = vmatpush1.msra.mxu0 %v449
        %967 = vmatprep.subr.mxu0 0.0
        %968 = vmatpush1.msra.mxu0 %v450
        %969 = vmatprep.subr.mxu0 0.0
        %970 = vmatpush1.msra.mxu0 %v451
        %971 = vmatprep.subr.mxu0 0.0
        %972 = vmatpush1.msra.mxu0 %v452
        %973 = vmatprep.subr.mxu0 0.0
        %974 = vmatpush1.msra.mxu0 %v453
        %975 = vmatprep.subr.mxu0 0.0
        %976 = vmatpush1.msra.mxu0 %v454
        %977 = vmatprep.subr.mxu0 0.0
        %978 = vmatpush1.msra.mxu0 %v455
        %979 = vmatprep.subr.mxu0 0.0
        %980 = vmatpush1.msra.mxu0 %v456
        %981 = vmatprep.subr.mxu0 0.0
        %982 = vmatpush1.msra.mxu0 %v457
        %983 = vmatprep.subr.mxu0 0.0
        %984 = vmatpush1.msra.mxu0 %v458
        %985 = vmatprep.subr.mxu0 0.0
        %986 = vmatpush1.msra.mxu0 %v459
        %987 = vmatprep.subr.mxu0 0.0
        %988 = vmatpush1.msra.mxu0 %v460
        %989 = vmatprep.subr.mxu0 0.0
        %990 = vmatpush1.msra.mxu0 %v461
        %991 = vmatprep.subr.mxu0 0.0
        %992 = vmatpush1.msra.mxu0 %v462
        %993 = vmatprep.subr.mxu0 0.0
        %994 = vmatpush1.msra.mxu0 %v463
        %995 = vmatprep.subr.mxu0 0.0
        %996 = vmatpush1.msra.mxu0 %v464
        %997 = vmatprep.subr.mxu0 0.0
        %998 = vmatpush1.msra.mxu0 %v465
        %999 = vmatprep.subr.mxu0 0.0
        %1000 = vmatpush1.msra.mxu0 %v466
        %1001 = vmatprep.subr.mxu0 0.0
        %1002 = vmatpush1.msra.mxu0 %v467
        %1003 = vmatprep.subr.mxu0 0.0
        %1004 = vmatpush1.msra.mxu0 %v468
        %1005 = vmatprep.subr.mxu0 0.0
        %1006 = vmatpush1.msra.mxu0 %v469
        %1007 = vmatprep.subr.mxu0 0.0
        %1008 = vmatpush1.msra.mxu0 %v470
        %1009 = vmatprep.subr.mxu0 0.0
        %1010 = vmatpush1.msra.mxu0 %v471
        %1011 = vmatprep.subr.mxu0 0.0
        %1012 = vmatpush1.msra.mxu0 %v472
        %1013 = vmatprep.subr.mxu0 0.0
        %1014 = vmatpush1.msra.mxu0 %v473
        %1015 = vmatprep.subr.mxu0 0.0
        %1016 = vmatpush1.msra.mxu0 %v474
        %1017 = vmatprep.subr.mxu0 0.0
        %1018 = vmatpush1.msra.mxu0 %v475
        %1019 = vmatprep.subr.mxu0 0.0
        %1020 = vmatpush1.msra.mxu0 %v476
        %1021 = vmatprep.subr.mxu0 0.0
        %1022 = vmatpush1.msra.mxu0 %v477
        %1023 = vmatprep.subr.mxu0 0.0
        %1024 = vmatpush1.msra.mxu0 %v478
        %1025 = vmatprep.subr.mxu0 0.0
        %1026 = vmatpush1.msra.mxu0 %v479
        %1027 = vmatprep.subr.mxu0 0.0
        %1028 = vmatpush1.msra.mxu0 %v480
        %1029 = vmatprep.mubr.f32.mxu0 %v583
        %1030 = vmatmul.mubr.f32.gmra.mrb[0].mxu0 %v581
        %v1031 = vpop.f32.mrb[0].mxu0
        %v1032 = vadd.f32 %v962, %v1031
        %v1033 = vpop.f32.mrb[0].mxu0
        %1034 = vdwg.mxu0
        %1035 = vmatprep.subr.mxu0 0.0
        %1036 = vmatpush1.msra.mxu0 %v481
        %1037 = vmatprep.subr.mxu0 0.0
        %1038 = vmatpush1.msra.mxu0 %v482
        %1039 = vmatprep.subr.mxu0 0.0
        %1040 = vmatpush1.msra.mxu0 %v483
        %1041 = vmatprep.subr.mxu0 0.0
        %1042 = vmatpush1.msra.mxu0 %v484
        %1043 = vmatprep.subr.mxu0 0.0
        %1044 = vmatpush1.msra.mxu0 %v485
        %1045 = vmatprep.subr.mxu0 0.0
        %1046 = vmatpush1.msra.mxu0 %v486
        %1047 = vmatprep.subr.mxu0 0.0
        %1048 = vmatpush1.msra.mxu0 %v487
        %1049 = vmatprep.subr.mxu0 0.0
        %1050 = vmatpush1.msra.mxu0 %v488
        %1051 = vmatprep.subr.mxu0 0.0
        %1052 = vmatpush1.msra.mxu0 %v489
        %1053 = vmatprep.subr.mxu0 0.0
        %1054 = vmatpush1.msra.mxu0 %v490
        %1055 = vmatprep.subr.mxu0 0.0
        %1056 = vmatpush1.msra.mxu0 %v491
        %1057 = vmatprep.subr.mxu0 0.0
        %1058 = vmatpush1.msra.mxu0 %v492
        %1059 = vmatprep.subr.mxu0 0.0
        %1060 = vmatpush1.msra.mxu0 %v493
        %1061 = vmatprep.subr.mxu0 0.0
        %1062 = vmatpush1.msra.mxu0 %v494
        %1063 = vmatprep.subr.mxu0 0.0
        %1064 = vmatpush1.msra.mxu0 %v495
        %1065 = vmatprep.subr.mxu0 0.0
        %1066 = vmatpush1.msra.mxu0 %v496
        %1067 = vmatprep.subr.mxu0 0.0
        %1068 = vmatpush1.msra.mxu0 %v497
        %1069 = vmatprep.subr.mxu0 0.0
        %1070 = vmatpush1.msra.mxu0 %v498
        %1071 = vmatprep.subr.mxu0 0.0
        %1072 = vmatpush1.msra.mxu0 %v499
        %1073 = vmatprep.subr.mxu0 0.0
        %1074 = vmatpush1.msra.mxu0 %v500
        %1075 = vmatprep.subr.mxu0 0.0
        %1076 = vmatpush1.msra.mxu0 %v501
        %1077 = vmatprep.subr.mxu0 0.0
        %1078 = vmatpush1.msra.mxu0 %v502
        %1079 = vmatprep.subr.mxu0 0.0
        %1080 = vmatpush1.msra.mxu0 %v503
        %1081 = vmatprep.subr.mxu0 0.0
        %1082 = vmatpush1.msra.mxu0 %v504
        %1083 = vmatprep.subr.mxu0 0.0
        %1084 = vmatpush1.msra.mxu0 %v505
        %1085 = vmatprep.subr.mxu0 0.0
        %1086 = vmatpush1.msra.mxu0 %v506
        %1087 = vmatprep.subr.mxu0 0.0
        %1088 = vmatpush1.msra.mxu0 %v507
        %1089 = vmatprep.subr.mxu0 0.0
        %1090 = vmatpush1.msra.mxu0 %v508
        %1091 = vmatprep.subr.mxu0 0.0
        %1092 = vmatpush1.msra.mxu0 %v509
        %1093 = vmatprep.subr.mxu0 0.0
        %1094 = vmatpush1.msra.mxu0 %v510
        %1095 = vmatprep.subr.mxu0 0.0
        %1096 = vmatpush1.msra.mxu0 %v511
        %1097 = vmatprep.subr.mxu0 0.0
        %1098 = vmatpush1.msra.mxu0 %v512
        %1099 = vmatprep.mubr.f32.mxu0 %v599
        %1100 = vmatmul.mubr.f32.gmra.mrb[0].mxu0 %v591
        %v1101 = vpop.f32.mrb[0].mxu0
        %v1102 = vadd.f32 %v1032, %v1101
        %v1103 = vpop.f32.mrb[0].mxu0
        %1104 = vdwg.mxu0
        %1105 = vmatprep.subr.mxu0 0.0
        %1106 = vmatpush1.msra.mxu0 %v513
        %1107 = vmatprep.subr.mxu0 0.0
        %1108 = vmatpush1.msra.mxu0 %v514
        %1109 = vmatprep.subr.mxu0 0.0
        %1110 = vmatpush1.msra.mxu0 %v515
        %1111 = vmatprep.subr.mxu0 0.0
        %1112 = vmatpush1.msra.mxu0 %v516
        %1113 = vmatprep.subr.mxu0 0.0
        %1114 = vmatpush1.msra.mxu0 %v517
        %1115 = vmatprep.subr.mxu0 0.0
        %1116 = vmatpush1.msra.mxu0 %v518
        %1117 = vmatprep.subr.mxu0 0.0
        %1118 = vmatpush1.msra.mxu0 %v519
        %1119 = vmatprep.subr.mxu0 0.0
        %1120 = vmatpush1.msra.mxu0 %v520
        %1121 = vmatprep.subr.mxu0 0.0
        %1122 = vmatpush1.msra.mxu0 %v521
        %1123 = vmatprep.subr.mxu0 0.0
        %1124 = vmatpush1.msra.mxu0 %v522
        %1125 = vmatprep.subr.mxu0 0.0
        %1126 = vmatpush1.msra.mxu0 %v523
        %1127 = vmatprep.subr.mxu0 0.0
        %1128 = vmatpush1.msra.mxu0 %v524
        %1129 = vmatprep.subr.mxu0 0.0
        %1130 = vmatpush1.msra.mxu0 %v525
        %1131 = vmatprep.subr.mxu0 0.0
        %1132 = vmatpush1.msra.mxu0 %v526
        %1133 = vmatprep.subr.mxu0 0.0
        %1134 = vmatpush1.msra.mxu0 %v527
        %1135 = vmatprep.subr.mxu0 0.0
        %1136 = vmatpush1.msra.mxu0 %v528
        %1137 = vmatprep.subr.mxu0 0.0
        %1138 = vmatpush1.msra.mxu0 0.0
        %1139 = vmatprep.subr.mxu0 0.0
        %1140 = vmatpush1.msra.mxu0 0.0
        %1141 = vmatprep.subr.mxu0 0.0
        %1142 = vmatpush1.msra.mxu0 0.0
        %1143 = vmatprep.subr.mxu0 0.0
        %1144 = vmatpush1.msra.mxu0 0.0
        %1145 = vmatprep.subr.mxu0 0.0
        %1146 = vmatpush1.msra.mxu0 0.0
        %1147 = vmatprep.subr.mxu0 0.0
        %1148 = vmatpush1.msra.mxu0 0.0
        %1149 = vmatprep.subr.mxu0 0.0
        %1150 = vmatpush1.msra.mxu0 0.0
        %1151 = vmatprep.subr.mxu0 0.0
        %1152 = vmatpush1.msra.mxu0 0.0
        %1153 = vmatprep.subr.mxu0 0.0
        %1154 = vmatpush1.msra.mxu0 0.0
        %1155 = vmatprep.subr.mxu0 0.0
        %1156 = vmatpush1.msra.mxu0 0.0
        %1157 = vmatprep.subr.mxu0 0.0
        %1158 = vmatpush1.msra.mxu0 0.0
        %1159 = vmatprep.subr.mxu0 0.0
        %1160 = vmatpush1.msra.mxu0 0.0
        %1161 = vmatprep.subr.mxu0 0.0
        %1162 = vmatpush1.msra.mxu0 0.0
        %1163 = vmatprep.subr.mxu0 0.0
        %1164 = vmatpush1.msra.mxu0 0.0
        %1165 = vmatprep.subr.mxu0 0.0
        %1166 = vmatpush1.msra.mxu0 0.0
        %1167 = vmatprep.subr.mxu0 0.0
        %1168 = vmatpush1.msra.mxu0 0.0
        %1169 = vmatprep.mubr.f32.mxu0 0.0
        %1170 = vmatmul.mubr.f32.gmra.mrb[0].mxu0 %v598
        %v1171 = vpop.f32.mrb[0].mxu0
        %v1172 = vadd.f32 %v1102, %v1171
        %v1173 = vpop.f32.mrb[0].mxu0
        %1174 = vdwg.mxu0
        %v1175 = vadd.f32 %v284, %v1172
        %1176 = vst [vmem:[#allocation2] sm:$0x3] %v1175
        %p1177 = scmp.eq.s32.totalorder %s21, 7
        // Predicated region
        $region57: #{cnn_forward.3} parent=39 // pred_check
          %p1178 = pneg %p1177
        $region58: #{cnn_forward.3} parent=39 // pred_check_branch
          %1180 = sbr.rel (%p1178) target = $region60
        $region59: #{cnn_forward.3} parent=39 // pred_region
          %v1181 = vld [vmem:[#allocation2] sm:$0x3]
          %v1182 = vld [vmem:[#allocation6] sm:$0x1]
          %v1184 = vlaneseq
          %v1185 = vshrl.u32 %v1184, 7
          %v1186 = vsub.s32 0, %v1185
          %v1187 = vrot.slane %v1182, %v1186
          %v1189 = vadd.f32 %v1181, %v1187
          %v1190 = vld [vmem:[%s3] sm:$0xff]
          %v1191 = vld [vmem:[%s3 + $0x8] sm:$0xff]
          %v1192 = vld [vmem:[%s3 + $0x10] sm:$0xff]
          %v1193 = vld [vmem:[%s3 + $0x18] sm:$0xff]
          %v1194 = vld [vmem:[%s3 + $0x20] sm:$0xff]
          %v1195 = vld [vmem:[%s3 + $0x28] sm:$0xff]
          %v1196 = vld [vmem:[%s3 + $0x30] sm:$0xff]
          %v1197 = vld [vmem:[%s3 + $0x38] sm:$0xff]
          %v1198 = vld [vmem:[%s3 + $0x40] sm:$0xff]
          %v1199 = vld [vmem:[%s3 + $0x48] sm:$0xff]
          %v1200 = vld [vmem:[%s3 + $0x50] sm:$0xff]
          %v1201 = vld [vmem:[%s3 + $0x58] sm:$0xff]
          %v1202 = vld [vmem:[%s3 + $0x60] sm:$0xff]
          %v1203 = vld [vmem:[%s3 + $0x68] sm:$0xff]
          %v1204 = vld [vmem:[%s3 + $0x70] sm:$0xff]
          %v1205 = vld [vmem:[%s3 + $0x78] sm:$0xff]
          %v1206 = vld [vmem:[#allocation8] sm:$0x1]
          %v1208 = vlaneseq
          %v1209 = vshrl.u32 %v1208, 7
          %v1210 = vsub.s32 0, %v1209
          %v1211 = vrot.slane %v1206, %v1210
          %1213 = vmatprep.subr.mxu0 0.0
          %1214 = vmatpush1.msra.mxu0 %v1190
          %1215 = vmatprep.subr.mxu0 0.0
          %1216 = vmatpush1.msra.mxu0 %v1191
          %1217 = vmatprep.subr.mxu0 0.0
          %1218 = vmatpush1.msra.mxu0 %v1192
          %1219 = vmatprep.subr.mxu0 0.0
          %1220 = vmatpush1.msra.mxu0 %v1193
          %1221 = vmatprep.subr.mxu0 0.0
          %1222 = vmatpush1.msra.mxu0 %v1194
          %1223 = vmatprep.subr.mxu0 0.0
          %1224 = vmatpush1.msra.mxu0 %v1195
          %1225 = vmatprep.subr.mxu0 0.0
          %1226 = vmatpush1.msra.mxu0 %v1196
          %1227 = vmatprep.subr.mxu0 0.0
          %1228 = vmatpush1.msra.mxu0 %v1197
          %1229 = vmatprep.subr.mxu0 0.0
          %1230 = vmatpush1.msra.mxu0 %v1198
          %1231 = vmatprep.subr.mxu0 0.0
          %1232 = vmatpush1.msra.mxu0 %v1199
          %1233 = vmatprep.subr.mxu0 0.0
          %1234 = vmatpush1.msra.mxu0 %v1200
          %1235 = vmatprep.subr.mxu0 0.0
          %1236 = vmatpush1.msra.mxu0 %v1201
          %1237 = vmatprep.subr.mxu0 0.0
          %1238 = vmatpush1.msra.mxu0 %v1202
          %1239 = vmatprep.subr.mxu0 0.0
          %1240 = vmatpush1.msra.mxu0 %v1203
          %1241 = vmatprep.subr.mxu0 0.0
          %1242 = vmatpush1.msra.mxu0 %v1204
          %1243 = vmatprep.subr.mxu0 0.0
          %1244 = vmatpush1.msra.mxu0 %v1205
          %1245 = vmatprep.subr.mxu0 0.0
          %1246 = vmatpush1.msra.mxu0 0.0
          %1247 = vmatprep.subr.mxu0 0.0
          %1248 = vmatpush1.msra.mxu0 0.0
          %1249 = vmatprep.subr.mxu0 0.0
          %1250 = vmatpush1.msra.mxu0 0.0
          %1251 = vmatprep.subr.mxu0 0.0
          %1252 = vmatpush1.msra.mxu0 0.0
          %1253 = vmatprep.subr.mxu0 0.0
          %1254 = vmatpush1.msra.mxu0 0.0
          %1255 = vmatprep.subr.mxu0 0.0
          %1256 = vmatpush1.msra.mxu0 0.0
          %1257 = vmatprep.subr.mxu0 0.0
          %1258 = vmatpush1.msra.mxu0 0.0
          %1259 = vmatprep.subr.mxu0 0.0
          %1260 = vmatpush1.msra.mxu0 0.0
          %1261 = vmatprep.subr.mxu0 0.0
          %1262 = vmatpush1.msra.mxu0 0.0
          %1263 = vmatprep.subr.mxu0 0.0
          %1264 = vmatpush1.msra.mxu0 0.0
          %1265 = vmatprep.subr.mxu0 0.0
          %1266 = vmatpush1.msra.mxu0 0.0
          %1267 = vmatprep.subr.mxu0 0.0
          %1268 = vmatpush1.msra.mxu0 0.0
          %1269 = vmatprep.subr.mxu0 0.0
          %1270 = vmatpush1.msra.mxu0 0.0
          %1271 = vmatprep.subr.mxu0 0.0
          %1272 = vmatpush1.msra.mxu0 0.0
          %1273 = vmatprep.subr.mxu0 0.0
          %1274 = vmatpush1.msra.mxu0 0.0
          %1275 = vmatprep.subr.mxu0 0.0
          %1276 = vmatpush1.msra.mxu0 0.0
          %1277 = vmatprep.mubr.f32.mxu0 0.0
          %1278 = vmatmul.mubr.f32.gmra.mrb[0].mxu0 %v1189
          %v1279 = vpop.f32.mrb[0].mxu0
          %v1280 = vadd.f32 %v1211, %v1279
          %v1281 = vpop.f32.mrb[0].mxu0
          %1282 = vdwg.mxu0
          %vm1283 = vcmask 74752
          %1284 = vst.msk [vmem:[#allocation9] sm:$0x3] %vm1283, %v1280
        $region60: #{cnn_forward.3} parent=39 // pred_fallthru
          _
        // Predicated region
        $region61: #{cnn_forward.3} parent=39 // pred_check
          %p1285 = pneg %p149
        $region62: #{cnn_forward.3} parent=39 // pred_check_branch
          %1287 = sbr.rel (%p1285) target = $region64
        $region63: #{cnn_forward.3} parent=39 // pred_region
          %s1289 = ssub.s32 32, 32
          %1290 = vsyncadd [#allocation5], %s1289
          %s1292 = sshll.u32 [#allocation9], 4
          %s1293 = int_to_ptr.vmem [resolvable:$true] %s1292
          %1295 = dma.vmem_to_hbm [thread:$0]  %s1293, 32, %s5, [#allocation5]
        $region64: #{cnn_forward.3} parent=39 // pred_fallthru
          _
        // Predicated region
        $region65: #{cnn_forward.3} parent=39 // pred_check
          %p1296 = pneg %p149
        $region66: #{cnn_forward.3} parent=39 // pred_check_branch
          %1298 = sbr.rel (%p1296) target = $region68
        $region67: #{cnn_forward.3} parent=39 // pred_region
          %1299 = dma.done [#allocation5], 32
        $region68: #{cnn_forward.3} parent=39 // pred_fallthru
          _
      $region40: #{cnn_forward.3} parent=5 // pred_fallthru
        _
      %p1300 = scmp.le.s32.totalorder 2, %s16
      // Predicated region
      $region69: #{cnn_forward.3} parent=5 // pred_check
        %p1301 = pneg %p1300
      $region70: #{cnn_forward.3} parent=5 // pred_check_branch
        %1303 = sbr.rel (%p1301) target = $region72
      $region71: #{cnn_forward.3} parent=5 // pred_region
        %s1304 = ssub.s32 %s16, 2
      $region72: #{cnn_forward.3} parent=5 // pred_fallthru
        _
    $region6: #{cnn_forward.3} parent=1 // loop_footer
      %s20 = sadd.s32 1, %s16
    $region7: #{cnn_forward.3} parent=1 // loop_footer_branch
      %15 = sbr.rel target = $region3
    $region8: #{cnn_forward.3} parent=1 // loop_exit
      _
    %1305 = vsyncpa [#allocation4], 1
    %s1306 = scalar_lea.sflag [#allocation4], 1
    %1307 = vsyncpa %s1306, 1
    %1308 = vsyncpa [#allocation7], 1
    %1309 = vsyncpa [#allocation5], 1
    %s1310 = scalar_lea.sflag [#allocation5], 1
    %1311 = vsyncpa %s1310, 1

// kernel: cnn_forward.2
$region0: #{cnn_forward.2}
  #allocation0 [shape = 'u32[]', space=smem, size = 0x4, offset = 0x4, fixed_abs, tag = 'smem constant byte address 0x4 - core index']
  #allocation1 [shape = 'u32[144,128]{1,0:T(1,128)}', space=vmem, size = 0x12000, scoped, tag = 'internal scratch']
  #allocation2 [shape = 'f32[3,126,124]{2,1,0:T(8,128)}', space=vmem, size = 0x30000, scoped, tag = 'scratch operand']
  #allocation3 [shape = 'f32[124,124]{1,0:T(8,128)}', space=vmem, size = 0x10000, scoped, tag = 'scratch operand']
  #allocation4 [shape = 'f32[248,123]{1,0:T(8,128)}', space=vmem, size = 0x1f000, scoped, tag = 'scratch operand']
  #allocation5 [shape = 'f32[3,248,60]{2,1,0:T(8,128)}', space=vmem, size = 0x5d000, scoped, tag = 'scratch operand']
  #allocation6 [shape = 'f32[60,60]{1,0:T(8,128)}', space=vmem, size = 0x8000, scoped, tag = 'scratch operand']
  #allocation7 [shape = 'f32[512,59]{1,0:T(8,128)}', space=vmem, size = 0x40000, scoped, tag = 'scratch operand']
  %s0 = inlined_call_operand.vmem [shape: f32[2,1,126,126], index: 0, kind: input, shape index: {}]
  %s1 = inlined_call_operand.hbm [shape: f32[36], index: 1, kind: input, shape index: {}]
  %s2 = inlined_call_operand.hbm [shape: f32[4], index: 2, kind: input, shape index: {}]
  %s3 = inlined_call_operand.hbm [shape: f32[576], index: 3, kind: input, shape index: {}]
  %s4 = inlined_call_operand.hbm [shape: f32[16], index: 4, kind: input, shape index: {}]
  %s5 = inlined_call_operand.vmem [shape: f32[3,123,60], index: 5, kind: input, shape index: {}]
  %s6 = inlined_call_operand.vmem [shape: f32[59,30], index: 6, kind: input, shape index: {}]
  %s7 = inlined_call_operand.vmem [shape: f32[2,512,30], index: 7, kind: output, shape index: {}]
  %s8 = sld [smem:[#allocation0]]
  $region84: #{cnn_forward.2} parent=0
    _
  %s10 = ssub.s32 1, %s8
  %s11 = scalar_select 0, %s10, %s8
  $region1: #{cnn_forward.2} parent=0
    #allocation8 [shape = 'u8[512]{0}', space=smem, size = 0x200, scoped, tag = 'input window, operand 1, single buffered']
    #allocation9 [shape = 's32[2]{0}', space=sflag, size = 0x8, scoped, tag = 'scoped memory for cnn_forward.2']
    #allocation10 [shape = 'u8[512]{0}', space=smem, size = 0x200, scoped, tag = 'input window, operand 2, single buffered']
    #allocation11 [shape = 's32[1]{0}', space=sflag, size = 0x4, scoped, tag = 'scoped memory for cnn_forward.2']
    #allocation12 [shape = 'u8[2560]{0}', space=smem, size = 0xa00, scoped, tag = 'input window, operand 3, single buffered']
    #allocation13 [shape = 'u8[512]{0}', space=smem, size = 0x200, scoped, tag = 'input window, operand 4, single buffered']
    #allocation14 [shape = 's32[1]{0}', space=sflag, size = 0x4, scoped, tag = 'scoped memory for cnn_forward.2']
    %12 = vsyncpa [#allocation9], 0
    %13 = vsyncpa [#allocation11], 0
    %14 = vsyncpa [#allocation14], 0
    loop: start=0, step=1, limit=4
    $region2: #{cnn_forward.2} parent=1 // loop_pre_header
      _
    $region3: #{cnn_forward.2} parent=1 // loop_header
      %s16 = sphi 0, %s20
      %p17 = scmp.ge.s32.totalorder %s16, 4
      %s26 = sphi 0, %s28
      %s29 = sphi 0, %s26
      %s30 = sphi 0, %s29
      %s46 = sphi 0, %s30
      %s50 = sphi 0, %s50
      %s52 = sphi 0, %s50
      %s53 = sphi 0, %s52
      %s67 = sphi 0, %s53
      %s71 = sphi 0, %s71
      %s73 = sphi 0, %s71
      %s74 = sphi 0, %s73
      %s88 = sphi 0, %s74
      %s92 = sphi 0, %s92
      %s94 = sphi 0, %s92
      %s95 = sphi 0, %s94
      %s109 = sphi 0, %s95
      %s113 = sphi 0, %s113
      %s115 = sphi 0, %s113
      %s116 = sphi 0, %s115
      %s130 = sphi 0, %s116
      %s134 = sphi 0, %s134
      %s136 = sphi 0, %s134
      %s137 = sphi 0, %s136
      %s151 = sphi 0, %s137
      %s155 = sphi 0, %s155
      %s157 = sphi 0, %s155
      %s158 = sphi 0, %s157
      %s172 = sphi 0, %s158
      %s178 = sphi 0, %s180
      %s181 = sphi 0, %s178
      %s182 = sphi 0, %s181
      %s198 = sphi 0, %s182
    $region4: #{cnn_forward.2} parent=1 // loop_header_branch
      %19 = sbr.rel (%p17) target = $region8
    $region5: #{cnn_forward.2} parent=1 // loop_body
      %s21 = ssub.s32 %s16, 1
      %s22 = ssub.s32 %s16, 2
      %s23 = sadd.s32 %s16, 1
      %s24 = ssub.s32 %s16, %s23
      %p25 = scmp.eq.s32.totalorder %s24, 0
      %s27 = sadd.s32 %s26, 1
      %s28 = scalar_select %p25, %s26, %s27
      %p31 = pneg %p25
      %p32 = scmp.eq.s32.totalorder %s16, 1
      %p33 = por %p31, %p32
      %p34 = scmp.ne.s32.totalorder %s26, %s29
      %p35 = scmp.eq.s32.totalorder %s16, 0
      %p36 = por %p34, %p35
      %p37 = scmp.ne.s32.totalorder %s26, %s29
      %p38 = scmp.eq.s32.totalorder %s21, 1
      %p39 = por %p37, %p38
      %p40 = scmp.ne.s32.totalorder %s29, %s30
      %p41 = scmp.eq.s32.totalorder %s21, 0
      %p42 = por %p40, %p41
      %p43 = scmp.ne.s32.totalorder %s29, %s30
      %p44 = scmp.eq.s32.totalorder %s22, 1
      %p45 = por %p43, %p44
      %p47 = scmp.ne.s32.totalorder %s30, %s46
      %p48 = scmp.eq.s32.totalorder %s22, 0
      %p49 = por %p47, %p48
      %s51 = sadd.s32 %s50, 1
      %p54 = scmp.eq.s32.totalorder %s16, 1
      %p55 = scmp.ne.s32.totalorder %s50, %s52
      %p56 = scmp.eq.s32.totalorder %s16, 0
      %p57 = por %p55, %p56
      %p58 = scmp.ne.s32.totalorder %s50, %s52
      %p59 = scmp.eq.s32.totalorder %s21, 1
      %p60 = por %p58, %p59
      %p61 = scmp.ne.s32.totalorder %s52, %s53
      %p62 = scmp.eq.s32.totalorder %s21, 0
      %p63 = por %p61, %p62
      %p64 = scmp.ne.s32.totalorder %s52, %s53
      %p65 = scmp.eq.s32.totalorder %s22, 1
      %p66 = por %p64, %p65
      %p68 = scmp.ne.s32.totalorder %s53, %s67
      %p69 = scmp.eq.s32.totalorder %s22, 0
      %p70 = por %p68, %p69
      %s72 = sadd.s32 %s71, 1
      %p75 = scmp.eq.s32.totalorder %s16, 1
      %p76 = scmp.ne.s32.totalorder %s71, %s73
      %p77 = scmp.eq.s32.totalorder %s16, 0
      %p78 = por %p76, %p77
      %p79 = scmp.ne.s32.totalorder %s71, %s73
      %p80 = scmp.eq.s32.totalorder %s21, 1
      %p81 = por %p79, %p80
      %p82 = scmp.ne.s32.totalorder %s73, %s74
      %p83 = scmp.eq.s32.totalorder %s21, 0
      %p84 = por %p82, %p83
      %p85 = scmp.ne.s32.totalorder %s73, %s74
      %p86 = scmp.eq.s32.totalorder %s22, 1
      %p87 = por %p85, %p86
      %p89 = scmp.ne.s32.totalorder %s74, %s88
      %p90 = scmp.eq.s32.totalorder %s22, 0
      %p91 = por %p89, %p90
      %s93 = sadd.s32 %s92, 1
      %p96 = scmp.eq.s32.totalorder %s16, 1
      %p97 = scmp.ne.s32.totalorder %s92, %s94
      %p98 = scmp.eq.s32.totalorder %s16, 0
      %p99 = por %p97, %p98
      %p100 = scmp.ne.s32.totalorder %s92, %s94
      %p101 = scmp.eq.s32.totalorder %s21, 1
      %p102 = por %p100, %p101
      %p103 = scmp.ne.s32.totalorder %s94, %s95
      %p104 = scmp.eq.s32.totalorder %s21, 0
      %p105 = por %p103, %p104
      %p106 = scmp.ne.s32.totalorder %s94, %s95
      %p107 = scmp.eq.s32.totalorder %s22, 1
      %p108 = por %p106, %p107
      %p110 = scmp.ne.s32.totalorder %s95, %s109
      %p111 = scmp.eq.s32.totalorder %s22, 0
      %p112 = por %p110, %p111
      %s114 = sadd.s32 %s113, 1
      %p117 = scmp.eq.s32.totalorder %s16, 1
      %p118 = scmp.ne.s32.totalorder %s113, %s115
      %p119 = scmp.eq.s32.totalorder %s16, 0
      %p120 = por %p118, %p119
      %p121 = scmp.ne.s32.totalorder %s113, %s115
      %p122 = scmp.eq.s32.totalorder %s21, 1
      %p123 = por %p121, %p122
      %p124 = scmp.ne.s32.totalorder %s115, %s116
      %p125 = scmp.eq.s32.totalorder %s21, 0
      %p126 = por %p124, %p125
      %p127 = scmp.ne.s32.totalorder %s115, %s116
      %p128 = scmp.eq.s32.totalorder %s22, 1
      %p129 = por %p127, %p128
      %p131 = scmp.ne.s32.totalorder %s116, %s130
      %p132 = scmp.eq.s32.totalorder %s22, 0
      %p133 = por %p131, %p132
      %s135 = sadd.s32 %s134, 1
      %p138 = scmp.eq.s32.totalorder %s16, 1
      %p139 = scmp.ne.s32.totalorder %s134, %s136
      %p140 = scmp.eq.s32.totalorder %s16, 0
      %p141 = por %p139, %p140
      %p142 = scmp.ne.s32.totalorder %s134, %s136
      %p143 = scmp.eq.s32.totalorder %s21, 1
      %p144 = por %p142, %p143
      %p145 = scmp.ne.s32.totalorder %s136, %s137
      %p146 = scmp.eq.s32.totalorder %s21, 0
      %p147 = por %p145, %p146
      %p148 = scmp.ne.s32.totalorder %s136, %s137
      %p149 = scmp.eq.s32.totalorder %s22, 1
      %p150 = por %p148, %p149
      %p152 = scmp.ne.s32.totalorder %s137, %s151
      %p153 = scmp.eq.s32.totalorder %s22, 0
      %p154 = por %p152, %p153
      %s156 = sadd.s32 %s155, 1
      %p159 = scmp.eq.s32.totalorder %s16, 1
      %p160 = scmp.ne.s32.totalorder %s155, %s157
      %p161 = scmp.eq.s32.totalorder %s16, 0
      %p162 = por %p160, %p161
      %p163 = scmp.ne.s32.totalorder %s155, %s157
      %p164 = scmp.eq.s32.totalorder %s21, 1
      %p165 = por %p163, %p164
      %p166 = scmp.ne.s32.totalorder %s157, %s158
      %p167 = scmp.eq.s32.totalorder %s21, 0
      %p168 = por %p166, %p167
      %p169 = scmp.ne.s32.totalorder %s157, %s158
      %p170 = scmp.eq.s32.totalorder %s22, 1
      %p171 = por %p169, %p170
      %p173 = scmp.ne.s32.totalorder %s158, %s172
      %p174 = scmp.eq.s32.totalorder %s22, 0
      %p175 = por %p173, %p174
      %s176 = ssub.s32 %s16, %s23
      %p177 = scmp.eq.s32.totalorder %s176, 0
      %s179 = sadd.s32 %s178, 1
      %s180 = scalar_select %p177, %s178, %s179
      %p183 = pneg %p177
      %p184 = scmp.eq.s32.totalorder %s16, 1
      %p185 = por %p183, %p184
      %p186 = scmp.ne.s32.totalorder %s178, %s181
      %p187 = scmp.eq.s32.totalorder %s16, 0
      %p188 = por %p186, %p187
      %p189 = scmp.ne.s32.totalorder %s178, %s181
      %p190 = scmp.eq.s32.totalorder %s21, 1
      %p191 = por %p189, %p190
      %p192 = scmp.ne.s32.totalorder %s181, %s182
      %p193 = scmp.eq.s32.totalorder %s21, 0
      %p194 = por %p192, %p193
      %p195 = scmp.ne.s32.totalorder %s181, %s182
      %p196 = scmp.eq.s32.totalorder %s22, 1
      %p197 = por %p195, %p196
      %p199 = scmp.ne.s32.totalorder %s182, %s198
      %p200 = scmp.eq.s32.totalorder %s22, 0
      %p201 = por %p199, %p200
      %p202 = scmp.le.s32.totalorder 1, %s16
      %p203 = scmp.lt.s32.totalorder %s16, 3
      %p204 = pnand %p202, %p203
      %p205 = pneg %p204
      // Predicated region
      $region9: #{cnn_forward.2} parent=5 // pred_check
        _
      $region10: #{cnn_forward.2} parent=5 // pred_check_branch
        %207 = sbr.rel (%p204) target = $region12
      $region11: #{cnn_forward.2} parent=5 // pred_region
        %s208 = ssub.s32 %s16, 1
        // Predicated region
        $region13: #{cnn_forward.2} parent=11 // pred_check
          %p209 = pneg %p63
        $region14: #{cnn_forward.2} parent=11 // pred_check_branch
          %211 = sbr.rel (%p209) target = $region16
        $region15: #{cnn_forward.2} parent=11 // pred_region
          %s213 = ssub.s32 16, 16
          %214 = vsyncadd [#allocation9], %s213
          %217 = dma.hbm_to_smem %s1, 16, [#allocation8], [#allocation9]
        $region16: #{cnn_forward.2} parent=11 // pred_fallthru
          _
        // Predicated region
        $region17: #{cnn_forward.2} parent=11 // pred_check
          %p218 = pneg %p84
        $region18: #{cnn_forward.2} parent=11 // pred_check_branch
          %220 = sbr.rel (%p218) target = $region20
        $region19: #{cnn_forward.2} parent=11 // pred_region
          %s222 = ssub.s32 16, 16
          %223 = vsyncadd [#allocation11], %s222
          %226 = dma.hbm_to_smem %s2, 16, [#allocation10], [#allocation11]
        $region20: #{cnn_forward.2} parent=11 // pred_fallthru
          _
        // Predicated region
        $region21: #{cnn_forward.2} parent=11 // pred_check
          %p227 = pneg %p105
        $region22: #{cnn_forward.2} parent=11 // pred_check_branch
          %229 = sbr.rel (%p227) target = $region24
        $region23: #{cnn_forward.2} parent=11 // pred_region
          %s231 = ssub.s32 80, 80
          %232 = vsyncadd [#allocation11], %s231
          %235 = dma.hbm_to_smem %s3, 80, [#allocation12], [#allocation11]
        $region24: #{cnn_forward.2} parent=11 // pred_fallthru
          _
        // Predicated region
        $region25: #{cnn_forward.2} parent=11 // pred_check
          %p236 = pneg %p126
        $region26: #{cnn_forward.2} parent=11 // pred_check_branch
          %238 = sbr.rel (%p236) target = $region28
        $region27: #{cnn_forward.2} parent=11 // pred_region
          %s240 = ssub.s32 16, 16
          %241 = vsyncadd [#allocation14], %s240
          %244 = dma.hbm_to_smem %s4, 16, [#allocation13], [#allocation14]
        $region28: #{cnn_forward.2} parent=11 // pred_fallthru
          _
        // Predicated region
        $region29: #{cnn_forward.2} parent=11 // pred_check
          %p245 = pneg %p147
        $region30: #{cnn_forward.2} parent=11 // pred_check_branch
          %247 = sbr.rel (%p245) target = $region32
        $region31: #{cnn_forward.2} parent=11 // pred_region
          _
        $region32: #{cnn_forward.2} parent=11 // pred_fallthru
          _
        // Predicated region
        $region33: #{cnn_forward.2} parent=11 // pred_check
          %p248 = pneg %p168
        $region34: #{cnn_forward.2} parent=11 // pred_check_branch
          %250 = sbr.rel (%p248) target = $region36
        $region35: #{cnn_forward.2} parent=11 // pred_region
          _
        $region36: #{cnn_forward.2} parent=11 // pred_fallthru
          _
      $region12: #{cnn_forward.2} parent=5 // pred_fallthru
        _
      %p251 = scmp.lt.s32.totalorder %s16, 2
      // Predicated region
      $region37: #{cnn_forward.2} parent=5 // pred_check
        %p252 = pneg %p251
      $region38: #{cnn_forward.2} parent=5 // pred_check_branch
        %254 = sbr.rel (%p252) target = $region40
      $region39: #{cnn_forward.2} parent=5 // pred_region
        // Predicated region
        $region41: #{cnn_forward.2} parent=39 // pred_check
          %p255 = pneg %p36
        $region42: #{cnn_forward.2} parent=39 // pred_check_branch
          %257 = sbr.rel (%p255) target = $region44
        $region43: #{cnn_forward.2} parent=39 // pred_region
          %p258 = scmp.lt.s32.totalorder %s16, 1
          %s259 = scalar_select %p258, %s16, 1
          %s260 = smul.addr %s259, 16
          %s261 = smul.addr %s260, 8
          %s262 = scalar_lea.vmem %s0, %s261
        $region44: #{cnn_forward.2} parent=39 // pred_fallthru
          _
      $region40: #{cnn_forward.2} parent=5 // pred_fallthru
        _
      %p263 = scmp.le.s32.totalorder 1, %s16
      %p264 = scmp.lt.s32.totalorder %s16, 3
      %p265 = pnand %p263, %p264
      %p266 = pneg %p265
      // Predicated region
      $region45: #{cnn_forward.2} parent=5 // pred_check
        _
      $region46: #{cnn_forward.2} parent=5 // pred_check_branch
        %268 = sbr.rel (%p265) target = $region48
      $region47: #{cnn_forward.2} parent=5 // pred_region
        %s269 = ssub.s32 %s16, 1
        // Predicated region
        $region49: #{cnn_forward.2} parent=47 // pred_check
          %p270 = pneg %p63
        $region50: #{cnn_forward.2} parent=47 // pred_check_branch
          %272 = sbr.rel (%p270) target = $region52
        $region51: #{cnn_forward.2} parent=47 // pred_region
          %273 = dma.done [#allocation9], 16
        $region52: #{cnn_forward.2} parent=47 // pred_fallthru
          _
        // Predicated region
        $region53: #{cnn_forward.2} parent=47 // pred_check
          %p274 = pneg %p84
        $region54: #{cnn_forward.2} parent=47 // pred_check_branch
          %276 = sbr.rel (%p274) target = $region56
        $region55: #{cnn_forward.2} parent=47 // pred_region
          %277 = dma.done [#allocation11], 16
        $region56: #{cnn_forward.2} parent=47 // pred_fallthru
          _
        // Predicated region
        $region57: #{cnn_forward.2} parent=47 // pred_check
          %p278 = pneg %p105
        $region58: #{cnn_forward.2} parent=47 // pred_check_branch
          %280 = sbr.rel (%p278) target = $region60
        $region59: #{cnn_forward.2} parent=47 // pred_region
          %281 = dma.done [#allocation11], 80
        $region60: #{cnn_forward.2} parent=47 // pred_fallthru
          _
        // Predicated region
        $region61: #{cnn_forward.2} parent=47 // pred_check
          %p282 = pneg %p126
        $region62: #{cnn_forward.2} parent=47 // pred_check_branch
          %284 = sbr.rel (%p282) target = $region64
        $region63: #{cnn_forward.2} parent=47 // pred_region
          %285 = dma.done [#allocation14], 16
        $region64: #{cnn_forward.2} parent=47 // pred_fallthru
          _
        %286 = sfence
        %p287 = scmp.lt.s32.totalorder %s21, 1
        %s288 = scalar_select %p287, %s21, 1
        %s289 = smul.addr %s288, 16
        %s290 = smul.addr %s289, 8
        %s291 = scalar_lea.vmem %s0, %s290
        %p292 = pneg %p42
        %p293 = pneg %p39
        %p294 = pneg %p63
        %p295 = pneg %p60
        %p296 = pneg %p84
        %p297 = pneg %p81
        %p298 = pneg %p105
        %p299 = pneg %p102
        %p300 = pneg %p126
        %p301 = pneg %p123
        %p302 = pneg %p147
        %p303 = pneg %p144
        %p304 = pneg %p168
        %p305 = pneg %p165
        %p306 = pneg %p194
        %p307 = pneg %p191
        %p308 = scmp.lt.s32.totalorder %s21, 1
        %s309 = scalar_select %p308, %s21, 1
        %s310 = smul.addr %s309, 64
        %s311 = smul.addr %s310, 8
        %s312 = scalar_lea.vmem %s7, %s311
        %p313 = scmp.lt.s32.totalorder %s21, 1
        %s314 = scalar_select %p313, %s21, 1
        %s315 = smul.addr %s314, 16
        %s316 = smul.addr %s315, 8
        %s317 = scalar_lea.vmem %s0, %s316
        %p318 = scmp.lt.s32.totalorder %s21, 1
        %s319 = scalar_select %p318, %s21, 1
        %s320 = smul.addr %s319, 64
        %s321 = smul.addr %s320, 8
        %s322 = scalar_lea.vmem %s7, %s321
        %v323 = vld [vmem:[%s317] sm:$0xff]
        %v324 = vld [vmem:[%s317 + $0x8] sm:$0xff]
        %v325 = vld [vmem:[%s317 + $0x10] sm:$0xff]
        %v326 = vld [vmem:[%s317 + $0x18] sm:$0xff]
        %v327 = vld [vmem:[%s317 + $0x20] sm:$0xff]
        %v328 = vld [vmem:[%s317 + $0x28] sm:$0xff]
        %v329 = vld [vmem:[%s317 + $0x30] sm:$0xff]
        %v330 = vld [vmem:[%s317 + $0x38] sm:$0xff]
        %v331 = vld [vmem:[%s317 + $0x40] sm:$0xff]
        %v332 = vld [vmem:[%s317 + $0x48] sm:$0xff]
        %v333 = vld [vmem:[%s317 + $0x50] sm:$0xff]
        %v334 = vld [vmem:[%s317 + $0x58] sm:$0xff]
        %v335 = vld [vmem:[%s317 + $0x60] sm:$0xff]
        %v336 = vld [vmem:[%s317 + $0x68] sm:$0xff]
        %v337 = vld [vmem:[%s317 + $0x70] sm:$0xff]
        %v338 = vld [vmem:[%s317 + $0x78] sm:$0x3f]
        %vm339 = vcmask 1014784
        %340 = vst.msk [vmem:[#allocation2] sm:$0xff] %vm339, %v323
        %341 = vst.msk [vmem:[#allocation2 + $0x8] sm:$0xff] %vm339, %v324
        %342 = vst.msk [vmem:[#allocation2 + $0x10] sm:$0xff] %vm339, %v325
        %343 = vst.msk [vmem:[#allocation2 + $0x18] sm:$0xff] %vm339, %v326
        %344 = vst.msk [vmem:[#allocation2 + $0x20] sm:$0xff] %vm339, %v327
        %345 = vst.msk [vmem:[#allocation2 + $0x28] sm:$0xff] %vm339, %v328
        %346 = vst.msk [vmem:[#allocation2 + $0x30] sm:$0xff] %vm339, %v329
        %347 = vst.msk [vmem:[#allocation2 + $0x38] sm:$0xff] %vm339, %v330
        %348 = vst.msk [vmem:[#allocation2 + $0x40] sm:$0xff] %vm339, %v331
        %349 = vst.msk [vmem:[#allocation2 + $0x48] sm:$0xff] %vm339, %v332
        %350 = vst.msk [vmem:[#allocation2 + $0x50] sm:$0xff] %vm339, %v333
        %351 = vst.msk [vmem:[#allocation2 + $0x58] sm:$0xff] %vm339, %v334
        %352 = vst.msk [vmem:[#allocation2 + $0x60] sm:$0xff] %vm339, %v335
        %353 = vst.msk [vmem:[#allocation2 + $0x68] sm:$0xff] %vm339, %v336
        %354 = vst.msk [vmem:[#allocation2 + $0x70] sm:$0xff] %vm339, %v337
        %vm355 = vcmask 1012736
        %356 = vst.msk [vmem:[#allocation2 + $0x78] sm:$0x3f] %vm355, %v338
        %373 = vrot.lane.b32.xlu0 %v323, 127
        %v374 = vpop.permute.xlu0 %373
        %375 = vrot.lane.b32.xlu0 %v324, 127
        %v376 = vpop.permute.xlu0 %375
        %377 = vrot.lane.b32.xlu0 %v325, 127
        %v378 = vpop.permute.xlu0 %377
        %379 = vrot.lane.b32.xlu0 %v326, 127
        %v380 = vpop.permute.xlu0 %379
        %381 = vrot.lane.b32.xlu0 %v327, 127
        %v382 = vpop.permute.xlu0 %381
        %383 = vrot.lane.b32.xlu0 %v328, 127
        %v384 = vpop.permute.xlu0 %383
        %385 = vrot.lane.b32.xlu0 %v329, 127
        %v386 = vpop.permute.xlu0 %385
        %387 = vrot.lane.b32.xlu0 %v330, 127
        %v388 = vpop.permute.xlu0 %387
        %389 = vrot.lane.b32.xlu0 %v331, 127
        %v390 = vpop.permute.xlu0 %389
        %391 = vrot.lane.b32.xlu0 %v332, 127
        %v392 = vpop.permute.xlu0 %391
        %393 = vrot.lane.b32.xlu0 %v333, 127
        %v394 = vpop.permute.xlu0 %393
        %395 = vrot.lane.b32.xlu0 %v334, 127
        %v396 = vpop.permute.xlu0 %395
        %397 = vrot.lane.b32.xlu0 %v335, 127
        %v398 = vpop.permute.xlu0 %397
        %399 = vrot.lane.b32.xlu0 %v336, 127
        %v400 = vpop.permute.xlu0 %399
        %401 = vrot.lane.b32.xlu0 %v337, 127
        %v402 = vpop.permute.xlu0 %401
        %403 = vrot.lane.b32.xlu0 %v338, 127
        %v404 = vpop.permute.xlu0 %403
        %s421 = scalar_lea.vmem [#allocation2], 128
        %422 = vst.msk [vmem:[%s421] sm:$0xff] %vm339, %v374
        %423 = vst.msk [vmem:[%s421 + $0x8] sm:$0xff] %vm339, %v376
        %424 = vst.msk [vmem:[%s421 + $0x10] sm:$0xff] %vm339, %v378
        %425 = vst.msk [vmem:[%s421 + $0x18] sm:$0xff] %vm339, %v380
        %426 = vst.msk [vmem:[%s421 + $0x20] sm:$0xff] %vm339, %v382
        %427 = vst.msk [vmem:[%s421 + $0x28] sm:$0xff] %vm339, %v384
        %428 = vst.msk [vmem:[%s421 + $0x30] sm:$0xff] %vm339, %v386
        %429 = vst.msk [vmem:[%s421 + $0x38] sm:$0xff] %vm339, %v388
        %430 = vst.msk [vmem:[%s421 + $0x40] sm:$0xff] %vm339, %v390
        %431 = vst.msk [vmem:[%s421 + $0x48] sm:$0xff] %vm339, %v392
        %432 = vst.msk [vmem:[%s421 + $0x50] sm:$0xff] %vm339, %v394
        %433 = vst.msk [vmem:[%s421 + $0x58] sm:$0xff] %vm339, %v396
        %434 = vst.msk [vmem:[%s421 + $0x60] sm:$0xff] %vm339, %v398
        %435 = vst.msk [vmem:[%s421 + $0x68] sm:$0xff] %vm339, %v400
        %436 = vst.msk [vmem:[%s421 + $0x70] sm:$0xff] %vm339, %v402
        %437 = vst.msk [vmem:[%s421 + $0x78] sm:$0x3f] %vm355, %v404
        %438 = vrot.lane.b32.xlu0 %v323, 126
        %v439 = vpop.permute.xlu0 %438
        %440 = vrot.lane.b32.xlu0 %v324, 126
        %v441 = vpop.permute.xlu0 %440
        %442 = vrot.lane.b32.xlu0 %v325, 126
        %v443 = vpop.permute.xlu0 %442
        %444 = vrot.lane.b32.xlu0 %v326, 126
        %v445 = vpop.permute.xlu0 %444
        %446 = vrot.lane.b32.xlu0 %v327, 126
        %v447 = vpop.permute.xlu0 %446
        %448 = vrot.lane.b32.xlu0 %v328, 126
        %v449 = vpop.permute.xlu0 %448
        %450 = vrot.lane.b32.xlu0 %v329, 126
        %v451 = vpop.permute.xlu0 %450
        %452 = vrot.lane.b32.xlu0 %v330, 126
        %v453 = vpop.permute.xlu0 %452
        %454 = vrot.lane.b32.xlu0 %v331, 126
        %v455 = vpop.permute.xlu0 %454
        %456 = vrot.lane.b32.xlu0 %v332, 126
        %v457 = vpop.permute.xlu0 %456
        %458 = vrot.lane.b32.xlu0 %v333, 126
        %v459 = vpop.permute.xlu0 %458
        %460 = vrot.lane.b32.xlu0 %v334, 126
        %v461 = vpop.permute.xlu0 %460
        %462 = vrot.lane.b32.xlu0 %v335, 126
        %v463 = vpop.permute.xlu0 %462
        %464 = vrot.lane.b32.xlu0 %v336, 126
        %v465 = vpop.permute.xlu0 %464
        %466 = vrot.lane.b32.xlu0 %v337, 126
        %v467 = vpop.permute.xlu0 %466
        %468 = vrot.lane.b32.xlu0 %v338, 126
        %v469 = vpop.permute.xlu0 %468
        %s486 = scalar_lea.vmem [#allocation2], 256
        %487 = vst.msk [vmem:[%s486] sm:$0xff] %vm339, %v439
        %488 = vst.msk [vmem:[%s486 + $0x8] sm:$0xff] %vm339, %v441
        %489 = vst.msk [vmem:[%s486 + $0x10] sm:$0xff] %vm339, %v443
        %490 = vst.msk [vmem:[%s486 + $0x18] sm:$0xff] %vm339, %v445
        %491 = vst.msk [vmem:[%s486 + $0x20] sm:$0xff] %vm339, %v447
        %492 = vst.msk [vmem:[%s486 + $0x28] sm:$0xff] %vm339, %v449
        %493 = vst.msk [vmem:[%s486 + $0x30] sm:$0xff] %vm339, %v451
        %494 = vst.msk [vmem:[%s486 + $0x38] sm:$0xff] %vm339, %v453
        %495 = vst.msk [vmem:[%s486 + $0x40] sm:$0xff] %vm339, %v455
        %496 = vst.msk [vmem:[%s486 + $0x48] sm:$0xff] %vm339, %v457
        %497 = vst.msk [vmem:[%s486 + $0x50] sm:$0xff] %vm339, %v459
        %498 = vst.msk [vmem:[%s486 + $0x58] sm:$0xff] %vm339, %v461
        %499 = vst.msk [vmem:[%s486 + $0x60] sm:$0xff] %vm339, %v463
        %500 = vst.msk [vmem:[%s486 + $0x68] sm:$0xff] %vm339, %v465
        %501 = vst.msk [vmem:[%s486 + $0x70] sm:$0xff] %vm339, %v467
        %502 = vst.msk [vmem:[%s486 + $0x78] sm:$0x3f] %vm355, %v469
        %s503 = sld [smem:[#allocation8]]
        %v504 = vld [vmem:[#allocation2] sm:$0xff]
        %v505 = vld [vmem:[#allocation2 + $0x8] sm:$0xff]
        %v506 = vld [vmem:[#allocation2 + $0x10] sm:$0xff]
        %v507 = vld [vmem:[#allocation2 + $0x18] sm:$0xff]
        %v508 = vld [vmem:[#allocation2 + $0x20] sm:$0xff]
        %v509 = vld [vmem:[#allocation2 + $0x28] sm:$0xff]
        %v510 = vld [vmem:[#allocation2 + $0x30] sm:$0xff]
        %v511 = vld [vmem:[#allocation2 + $0x38] sm:$0xff]
        %v512 = vld [vmem:[#allocation2 + $0x40] sm:$0xff]
        %v513 = vld [vmem:[#allocation2 + $0x48] sm:$0xff]
        %v514 = vld [vmem:[#allocation2 + $0x50] sm:$0xff]
        %v515 = vld [vmem:[#allocation2 + $0x58] sm:$0xff]
        %v516 = vld [vmem:[#allocation2 + $0x60] sm:$0xff]
        %v517 = vld [vmem:[#allocation2 + $0x68] sm:$0xff]
        %v518 = vld [vmem:[#allocation2 + $0x70] sm:$0xff]
        %v519 = vld [vmem:[#allocation2 + $0x78] sm:$0xf]
        %v520 = vstv %s503
        %v521 = vmul.f32 %v520, %v504
        %v522 = vmul.f32 %v520, %v505
        %v523 = vmul.f32 %v520, %v506
        %v524 = vmul.f32 %v520, %v507
        %v525 = vmul.f32 %v520, %v508
        %v526 = vmul.f32 %v520, %v509
        %v527 = vmul.f32 %v520, %v510
        %v528 = vmul.f32 %v520, %v511
        %v529 = vmul.f32 %v520, %v512
        %v530 = vmul.f32 %v520, %v513
        %v531 = vmul.f32 %v520, %v514
        %v532 = vmul.f32 %v520, %v515
        %v533 = vmul.f32 %v520, %v516
        %v534 = vmul.f32 %v520, %v517
        %v535 = vmul.f32 %v520, %v518
        %v536 = vmul.f32 %v520, %v519
        %v537 = vadd.f32 %v521, 0.0
        %v538 = vadd.f32 %v522, 0.0
        %v539 = vadd.f32 %v523, 0.0
        %v540 = vadd.f32 %v524, 0.0
        %v541 = vadd.f32 %v525, 0.0
        %v542 = vadd.f32 %v526, 0.0
        %v543 = vadd.f32 %v527, 0.0
        %v544 = vadd.f32 %v528, 0.0
        %v545 = vadd.f32 %v529, 0.0
        %v546 = vadd.f32 %v530, 0.0
        %v547 = vadd.f32 %v531, 0.0
        %v548 = vadd.f32 %v532, 0.0
        %v549 = vadd.f32 %v533, 0.0
        %v550 = vadd.f32 %v534, 0.0
        %v551 = vadd.f32 %v535, 0.0
        %v552 = vadd.f32 %v536, 0.0
        %s553 = sld [smem:[#allocation8 + $0x1]]
        %v554 = vld [vmem:[%s421] sm:$0xff]
        %v555 = vld [vmem:[%s421 + $0x8] sm:$0xff]
        %v556 = vld [vmem:[%s421 + $0x10] sm:$0xff]
        %v557 = vld [vmem:[%s421 + $0x18] sm:$0xff]
        %v558 = vld [vmem:[%s421 + $0x20] sm:$0xff]
        %v559 = vld [vmem:[%s421 + $0x28] sm:$0xff]
        %v560 = vld [vmem:[%s421 + $0x30] sm:$0xff]
        %v561 = vld [vmem:[%s421 + $0x38] sm:$0xff]
        %v562 = vld [vmem:[%s421 + $0x40] sm:$0xff]
        %v563 = vld [vmem:[%s421 + $0x48] sm:$0xff]
        %v564 = vld [vmem:[%s421 + $0x50] sm:$0xff]
        %v565 = vld [vmem:[%s421 + $0x58] sm:$0xff]
        %v566 = vld [vmem:[%s421 + $0x60] sm:$0xff]
        %v567 = vld [vmem:[%s421 + $0x68] sm:$0xff]
        %v568 = vld [vmem:[%s421 + $0x70] sm:$0xff]
        %v569 = vld [vmem:[%s421 + $0x78] sm:$0xf]
        %v570 = vstv %s553
        %v571 = vmul.f32 %v570, %v554
        %v572 = vmul.f32 %v570, %v555
        %v573 = vmul.f32 %v570, %v556
        %v574 = vmul.f32 %v570, %v557
        %v575 = vmul.f32 %v570, %v558
        %v576 = vmul.f32 %v570, %v559
        %v577 = vmul.f32 %v570, %v560
        %v578 = vmul.f32 %v570, %v561
        %v579 = vmul.f32 %v570, %v562
        %v580 = vmul.f32 %v570, %v563
        %v581 = vmul.f32 %v570, %v564
        %v582 = vmul.f32 %v570, %v565
        %v583 = vmul.f32 %v570, %v566
        %v584 = vmul.f32 %v570, %v567
        %v585 = vmul.f32 %v570, %v568
        %v586 = vmul.f32 %v570, %v569
        %v587 = vadd.f32 %v537, %v571
        %v588 = vadd.f32 %v538, %v572
        %v589 = vadd.f32 %v539, %v573
        %v590 = vadd.f32 %v540, %v574
        %v591 = vadd.f32 %v541, %v575
        %v592 = vadd.f32 %v542, %v576
        %v593 = vadd.f32 %v543, %v577
        %v594 = vadd.f32 %v544, %v578
        %v595 = vadd.f32 %v545, %v579
        %v596 = vadd.f32 %v546, %v580
        %v597 = vadd.f32 %v547, %v581
        %v598 = vadd.f32 %v548, %v582
        %v599 = vadd.f32 %v549, %v583
        %v600 = vadd.f32 %v550, %v584
        %v601 = vadd.f32 %v551, %v585
        %v602 = vadd.f32 %v552, %v586
        %s603 = sld [smem:[#allocation8 + $0x2]]
        %v604 = vld [vmem:[%s486] sm:$0xff]
        %v605 = vld [vmem:[%s486 + $0x8] sm:$0xff]
        %v606 = vld [vmem:[%s486 + $0x10] sm:$0xff]
        %v607 = vld [vmem:[%s486 + $0x18] sm:$0xff]
        %v608 = vld [vmem:[%s486 + $0x20] sm:$0xff]
        %v609 = vld [vmem:[%s486 + $0x28] sm:$0xff]
        %v610 = vld [vmem:[%s486 + $0x30] sm:$0xff]
        %v611 = vld [vmem:[%s486 + $0x38] sm:$0xff]
        %v612 = vld [vmem:[%s486 + $0x40] sm:$0xff]
        %v613 = vld [vmem:[%s486 + $0x48] sm:$0xff]
        %v614 = vld [vmem:[%s486 + $0x50] sm:$0xff]
        %v615 = vld [vmem:[%s486 + $0x58] sm:$0xff]
        %v616 = vld [vmem:[%s486 + $0x60] sm:$0xff]
        %v617 = vld [vmem:[%s486 + $0x68] sm:$0xff]
        %v618 = vld [vmem:[%s486 + $0x70] sm:$0xff]
        %v619 = vld [vmem:[%s486 + $0x78] sm:$0xf]
        %v620 = vstv %s603
        %v621 = vmul.f32 %v620, %v604
        %v622 = vmul.f32 %v620, %v605
        %v623 = vmul.f32 %v620, %v606
        %v624 = vmul.f32 %v620, %v607
        %v625 = vmul.f32 %v620, %v608
        %v626 = vmul.f32 %v620, %v609
        %v627 = vmul.f32 %v620, %v610
        %v628 = vmul.f32 %v620, %v611
        %v629 = vmul.f32 %v620, %v612
        %v630 = vmul.f32 %v620, %v613
        %v631 = vmul.f32 %v620, %v614
        %v632 = vmul.f32 %v620, %v615
        %v633 = vmul.f32 %v620, %v616
        %v634 = vmul.f32 %v620, %v617
        %v635 = vmul.f32 %v620, %v618
        %v636 = vmul.f32 %v620, %v619
        %v637 = vadd.f32 %v587, %v621
        %v638 = vadd.f32 %v588, %v622
        %v639 = vadd.f32 %v589, %v623
        %v640 = vadd.f32 %v590, %v624
        %v641 = vadd.f32 %v591, %v625
        %v642 = vadd.f32 %v592, %v626
        %v643 = vadd.f32 %v593, %v627
        %v644 = vadd.f32 %v594, %v628
        %v645 = vadd.f32 %v595, %v629
        %v646 = vadd.f32 %v596, %v630
        %v647 = vadd.f32 %v597, %v631
        %v648 = vadd.f32 %v598, %v632
        %v649 = vadd.f32 %v599, %v633
        %v650 = vadd.f32 %v600, %v634
        %v651 = vadd.f32 %v601, %v635
        %v652 = vadd.f32 %v602, %v636
        %s653 = sld [smem:[#allocation8 + $0x3]]
        %v654 = vld [vmem:[#allocation2 + $0x1] sm:$0xff]
        %v655 = vld [vmem:[#allocation2 + $0x9] sm:$0xff]
        %v656 = vld [vmem:[#allocation2 + $0x11] sm:$0xff]
        %v657 = vld [vmem:[#allocation2 + $0x19] sm:$0xff]
        %v658 = vld [vmem:[#allocation2 + $0x21] sm:$0xff]
        %v659 = vld [vmem:[#allocation2 + $0x29] sm:$0xff]
        %v660 = vld [vmem:[#allocation2 + $0x31] sm:$0xff]
        %v661 = vld [vmem:[#allocation2 + $0x39] sm:$0xff]
        %v662 = vld [vmem:[#allocation2 + $0x41] sm:$0xff]
        %v663 = vld [vmem:[#allocation2 + $0x49] sm:$0xff]
        %v664 = vld [vmem:[#allocation2 + $0x51] sm:$0xff]
        %v665 = vld [vmem:[#allocation2 + $0x59] sm:$0xff]
        %v666 = vld [vmem:[#allocation2 + $0x61] sm:$0xff]
        %v667 = vld [vmem:[#allocation2 + $0x69] sm:$0xff]
        %v668 = vld [vmem:[#allocation2 + $0x71] sm:$0xff]
        %v669 = vld [vmem:[#allocation2 + $0x79] sm:$0xf]
        %v670 = vstv %s653
        %v671 = vmul.f32 %v670, %v654
        %v672 = vmul.f32 %v670, %v655
        %v673 = vmul.f32 %v670, %v656
        %v674 = vmul.f32 %v670, %v657
        %v675 = vmul.f32 %v670, %v658
        %v676 = vmul.f32 %v670, %v659
        %v677 = vmul.f32 %v670, %v660
        %v678 = vmul.f32 %v670, %v661
        %v679 = vmul.f32 %v670, %v662
        %v680 = vmul.f32 %v670, %v663
        %v681 = vmul.f32 %v670, %v664
        %v682 = vmul.f32 %v670, %v665
        %v683 = vmul.f32 %v670, %v666
        %v684 = vmul.f32 %v670, %v667
        %v685 = vmul.f32 %v670, %v668
        %v686 = vmul.f32 %v670, %v669
        %v687 = vadd.f32 %v637, %v671
        %v688 = vadd.f32 %v638, %v672
        %v689 = vadd.f32 %v639, %v673
        %v690 = vadd.f32 %v640, %v674
        %v691 = vadd.f32 %v641, %v675
        %v692 = vadd.f32 %v642, %v676
        %v693 = vadd.f32 %v643, %v677
        %v694 = vadd.f32 %v644, %v678
        %v695 = vadd.f32 %v645, %v679
        %v696 = vadd.f32 %v646, %v680
        %v697 = vadd.f32 %v647, %v681
        %v698 = vadd.f32 %v648, %v682
        %v699 = vadd.f32 %v649, %v683
        %v700 = vadd.f32 %v650, %v684
        %v701 = vadd.f32 %v651, %v685
        %v702 = vadd.f32 %v652, %v686
        %s703 = sld [smem:[#allocation8 + $0x4]]
        %v704 = vld [vmem:[%s421 + $0x1] sm:$0xff]
        %v705 = vld [vmem:[%s421 + $0x9] sm:$0xff]
        %v706 = vld [vmem:[%s421 + $0x11] sm:$0xff]
        %v707 = vld [vmem:[%s421 + $0x19] sm:$0xff]
        %v708 = vld [vmem:[%s421 + $0x21] sm:$0xff]
        %v709 = vld [vmem:[%s421 + $0x29] sm:$0xff]
        %v710 = vld [vmem:[%s421 + $0x31] sm:$0xff]
        %v711 = vld [vmem:[%s421 + $0x39] sm:$0xff]
        %v712 = vld [vmem:[%s421 + $0x41] sm:$0xff]
        %v713 = vld [vmem:[%s421 + $0x49] sm:$0xff]
        %v714 = vld [vmem:[%s421 + $0x51] sm:$0xff]
        %v715 = vld [vmem:[%s421 + $0x59] sm:$0xff]
        %v716 = vld [vmem:[%s421 + $0x61] sm:$0xff]
        %v717 = vld [vmem:[%s421 + $0x69] sm:$0xff]
        %v718 = vld [vmem:[%s421 + $0x71] sm:$0xff]
        %v719 = vld [vmem:[%s421 + $0x79] sm:$0xf]
        %v720 = vstv %s703
        %v721 = vmul.f32 %v720, %v704
        %v722 = vmul.f32 %v720, %v705
        %v723 = vmul.f32 %v720, %v706
        %v724 = vmul.f32 %v720, %v707
        %v725 = vmul.f32 %v720, %v708
        %v726 = vmul.f32 %v720, %v709
        %v727 = vmul.f32 %v720, %v710
        %v728 = vmul.f32 %v720, %v711
        %v729 = vmul.f32 %v720, %v712
        %v730 = vmul.f32 %v720, %v713
        %v731 = vmul.f32 %v720, %v714
        %v732 = vmul.f32 %v720, %v715
        %v733 = vmul.f32 %v720, %v716
        %v734 = vmul.f32 %v720, %v717
        %v735 = vmul.f32 %v720, %v718
        %v736 = vmul.f32 %v720, %v719
        %v737 = vadd.f32 %v687, %v721
        %v738 = vadd.f32 %v688, %v722
        %v739 = vadd.f32 %v689, %v723
        %v740 = vadd.f32 %v690, %v724
        %v741 = vadd.f32 %v691, %v725
        %v742 = vadd.f32 %v692, %v726
        %v743 = vadd.f32 %v693, %v727
        %v744 = vadd.f32 %v694, %v728
        %v745 = vadd.f32 %v695, %v729
        %v746 = vadd.f32 %v696, %v730
        %v747 = vadd.f32 %v697, %v731
        %v748 = vadd.f32 %v698, %v732
        %v749 = vadd.f32 %v699, %v733
        %v750 = vadd.f32 %v700, %v734
        %v751 = vadd.f32 %v701, %v735
        %v752 = vadd.f32 %v702, %v736
        %s753 = sld [smem:[#allocation8 + $0x5]]
        %v754 = vld [vmem:[%s486 + $0x1] sm:$0xff]
        %v755 = vld [vmem:[%s486 + $0x9] sm:$0xff]
        %v756 = vld [vmem:[%s486 + $0x11] sm:$0xff]
        %v757 = vld [vmem:[%s486 + $0x19] sm:$0xff]
        %v758 = vld [vmem:[%s486 + $0x21] sm:$0xff]
        %v759 = vld [vmem:[%s486 + $0x29] sm:$0xff]
        %v760 = vld [vmem:[%s486 + $0x31] sm:$0xff]
        %v761 = vld [vmem:[%s486 + $0x39] sm:$0xff]
        %v762 = vld [vmem:[%s486 + $0x41] sm:$0xff]
        %v763 = vld [vmem:[%s486 + $0x49] sm:$0xff]
        %v764 = vld [vmem:[%s486 + $0x51] sm:$0xff]
        %v765 = vld [vmem:[%s486 + $0x59] sm:$0xff]
        %v766 = vld [vmem:[%s486 + $0x61] sm:$0xff]
        %v767 = vld [vmem:[%s486 + $0x69] sm:$0xff]
        %v768 = vld [vmem:[%s486 + $0x71] sm:$0xff]
        %v769 = vld [vmem:[%s486 + $0x79] sm:$0xf]
        %v770 = vstv %s753
        %v771 = vmul.f32 %v770, %v754
        %v772 = vmul.f32 %v770, %v755
        %v773 = vmul.f32 %v770, %v756
        %v774 = vmul.f32 %v770, %v757
        %v775 = vmul.f32 %v770, %v758
        %v776 = vmul.f32 %v770, %v759
        %v777 = vmul.f32 %v770, %v760
        %v778 = vmul.f32 %v770, %v761
        %v779 = vmul.f32 %v770, %v762
        %v780 = vmul.f32 %v770, %v763
        %v781 = vmul.f32 %v770, %v764
        %v782 = vmul.f32 %v770, %v765
        %v783 = vmul.f32 %v770, %v766
        %v784 = vmul.f32 %v770, %v767
        %v785 = vmul.f32 %v770, %v768
        %v786 = vmul.f32 %v770, %v769
        %v787 = vadd.f32 %v737, %v771
        %v788 = vadd.f32 %v738, %v772
        %v789 = vadd.f32 %v739, %v773
        %v790 = vadd.f32 %v740, %v774
        %v791 = vadd.f32 %v741, %v775
        %v792 = vadd.f32 %v742, %v776
        %v793 = vadd.f32 %v743, %v777
        %v794 = vadd.f32 %v744, %v778
        %v795 = vadd.f32 %v745, %v779
        %v796 = vadd.f32 %v746, %v780
        %v797 = vadd.f32 %v747, %v781
        %v798 = vadd.f32 %v748, %v782
        %v799 = vadd.f32 %v749, %v783
        %v800 = vadd.f32 %v750, %v784
        %v801 = vadd.f32 %v751, %v785
        %v802 = vadd.f32 %v752, %v786
        %s803 = sld [smem:[#allocation8 + $0x6]]
        %v804 = vld [vmem:[#allocation2 + $0x2] sm:$0xff]
        %v805 = vld [vmem:[#allocation2 + $0xa] sm:$0xff]
        %v806 = vld [vmem:[#allocation2 + $0x12] sm:$0xff]
        %v807 = vld [vmem:[#allocation2 + $0x1a] sm:$0xff]
        %v808 = vld [vmem:[#allocation2 + $0x22] sm:$0xff]
        %v809 = vld [vmem:[#allocation2 + $0x2a] sm:$0xff]
        %v810 = vld [vmem:[#allocation2 + $0x32] sm:$0xff]
        %v811 = vld [vmem:[#allocation2 + $0x3a] sm:$0xff]
        %v812 = vld [vmem:[#allocation2 + $0x42] sm:$0xff]
        %v813 = vld [vmem:[#allocation2 + $0x4a] sm:$0xff]
        %v814 = vld [vmem:[#allocation2 + $0x52] sm:$0xff]
        %v815 = vld [vmem:[#allocation2 + $0x5a] sm:$0xff]
        %v816 = vld [vmem:[#allocation2 + $0x62] sm:$0xff]
        %v817 = vld [vmem:[#allocation2 + $0x6a] sm:$0xff]
        %v818 = vld [vmem:[#allocation2 + $0x72] sm:$0xff]
        %v819 = vld [vmem:[#allocation2 + $0x7a] sm:$0xf]
        %v820 = vstv %s803
        %v821 = vmul.f32 %v820, %v804
        %v822 = vmul.f32 %v820, %v805
        %v823 = vmul.f32 %v820, %v806
        %v824 = vmul.f32 %v820, %v807
        %v825 = vmul.f32 %v820, %v808
        %v826 = vmul.f32 %v820, %v809
        %v827 = vmul.f32 %v820, %v810
        %v828 = vmul.f32 %v820, %v811
        %v829 = vmul.f32 %v820, %v812
        %v830 = vmul.f32 %v820, %v813
        %v831 = vmul.f32 %v820, %v814
        %v832 = vmul.f32 %v820, %v815
        %v833 = vmul.f32 %v820, %v816
        %v834 = vmul.f32 %v820, %v817
        %v835 = vmul.f32 %v820, %v818
        %v836 = vmul.f32 %v820, %v819
        %v837 = vadd.f32 %v787, %v821
        %v838 = vadd.f32 %v788, %v822
        %v839 = vadd.f32 %v789, %v823
        %v840 = vadd.f32 %v790, %v824
        %v841 = vadd.f32 %v791, %v825
        %v842 = vadd.f32 %v792, %v826
        %v843 = vadd.f32 %v793, %v827
        %v844 = vadd.f32 %v794, %v828
        %v845 = vadd.f32 %v795, %v829
        %v846 = vadd.f32 %v796, %v830
        %v847 = vadd.f32 %v797, %v831
        %v848 = vadd.f32 %v798, %v832
        %v849 = vadd.f32 %v799, %v833
        %v850 = vadd.f32 %v800, %v834
        %v851 = vadd.f32 %v801, %v835
        %v852 = vadd.f32 %v802, %v836
        %s853 = sld [smem:[#allocation8 + $0x7]]
        %v854 = vld [vmem:[%s421 + $0x2] sm:$0xff]
        %v855 = vld [vmem:[%s421 + $0xa] sm:$0xff]
        %v856 = vld [vmem:[%s421 + $0x12] sm:$0xff]
        %v857 = vld [vmem:[%s421 + $0x1a] sm:$0xff]
        %v858 = vld [vmem:[%s421 + $0x22] sm:$0xff]
        %v859 = vld [vmem:[%s421 + $0x2a] sm:$0xff]
        %v860 = vld [vmem:[%s421 + $0x32] sm:$0xff]
        %v861 = vld [vmem:[%s421 + $0x3a] sm:$0xff]
        %v862 = vld [vmem:[%s421 + $0x42] sm:$0xff]
        %v863 = vld [vmem:[%s421 + $0x4a] sm:$0xff]
        %v864 = vld [vmem:[%s421 + $0x52] sm:$0xff]
        %v865 = vld [vmem:[%s421 + $0x5a] sm:$0xff]
        %v866 = vld [vmem:[%s421 + $0x62] sm:$0xff]
        %v867 = vld [vmem:[%s421 + $0x6a] sm:$0xff]
        %v868 = vld [vmem:[%s421 + $0x72] sm:$0xff]
        %v869 = vld [vmem:[%s421 + $0x7a] sm:$0xf]
        %v870 = vstv %s853
        %v871 = vmul.f32 %v870, %v854
        %v872 = vmul.f32 %v870, %v855
        %v873 = vmul.f32 %v870, %v856
        %v874 = vmul.f32 %v870, %v857
        %v875 = vmul.f32 %v870, %v858
        %v876 = vmul.f32 %v870, %v859
        %v877 = vmul.f32 %v870, %v860
        %v878 = vmul.f32 %v870, %v861
        %v879 = vmul.f32 %v870, %v862
        %v880 = vmul.f32 %v870, %v863
        %v881 = vmul.f32 %v870, %v864
        %v882 = vmul.f32 %v870, %v865
        %v883 = vmul.f32 %v870, %v866
        %v884 = vmul.f32 %v870, %v867
        %v885 = vmul.f32 %v870, %v868
        %v886 = vmul.f32 %v870, %v869
        %v887 = vadd.f32 %v837, %v871
        %v888 = vadd.f32 %v838, %v872
        %v889 = vadd.f32 %v839, %v873
        %v890 = vadd.f32 %v840, %v874
        %v891 = vadd.f32 %v841, %v875
        %v892 = vadd.f32 %v842, %v876
        %v893 = vadd.f32 %v843, %v877
        %v894 = vadd.f32 %v844, %v878
        %v895 = vadd.f32 %v845, %v879
        %v896 = vadd.f32 %v846, %v880
        %v897 = vadd.f32 %v847, %v881
        %v898 = vadd.f32 %v848, %v882
        %v899 = vadd.f32 %v849, %v883
        %v900 = vadd.f32 %v850, %v884
        %v901 = vadd.f32 %v851, %v885
        %v902 = vadd.f32 %v852, %v886
        %s903 = sld [smem:[#allocation8 + $0x8]]
        %v904 = vld [vmem:[%s486 + $0x2] sm:$0xff]
        %v905 = vld [vmem:[%s486 + $0xa] sm:$0xff]
        %v906 = vld [vmem:[%s486 + $0x12] sm:$0xff]
        %v907 = vld [vmem:[%s486 + $0x1a] sm:$0xff]
        %v908 = vld [vmem:[%s486 + $0x22] sm:$0xff]
        %v909 = vld [vmem:[%s486 + $0x2a] sm:$0xff]
        %v910 = vld [vmem:[%s486 + $0x32] sm:$0xff]
        %v911 = vld [vmem:[%s486 + $0x3a] sm:$0xff]
        %v912 = vld [vmem:[%s486 + $0x42] sm:$0xff]
        %v913 = vld [vmem:[%s486 + $0x4a] sm:$0xff]
        %v914 = vld [vmem:[%s486 + $0x52] sm:$0xff]
        %v915 = vld [vmem:[%s486 + $0x5a] sm:$0xff]
        %v916 = vld [vmem:[%s486 + $0x62] sm:$0xff]
        %v917 = vld [vmem:[%s486 + $0x6a] sm:$0xff]
        %v918 = vld [vmem:[%s486 + $0x72] sm:$0xff]
        %v919 = vld [vmem:[%s486 + $0x7a] sm:$0xf]
        %v920 = vstv %s903
        %v921 = vmul.f32 %v920, %v904
        %v922 = vmul.f32 %v920, %v905
        %v923 = vmul.f32 %v920, %v906
        %v924 = vmul.f32 %v920, %v907
        %v925 = vmul.f32 %v920, %v908
        %v926 = vmul.f32 %v920, %v909
        %v927 = vmul.f32 %v920, %v910
        %v928 = vmul.f32 %v920, %v911
        %v929 = vmul.f32 %v920, %v912
        %v930 = vmul.f32 %v920, %v913
        %v931 = vmul.f32 %v920, %v914
        %v932 = vmul.f32 %v920, %v915
        %v933 = vmul.f32 %v920, %v916
        %v934 = vmul.f32 %v920, %v917
        %v935 = vmul.f32 %v920, %v918
        %v936 = vmul.f32 %v920, %v919
        %v937 = vadd.f32 %v887, %v921
        %v938 = vadd.f32 %v888, %v922
        %v939 = vadd.f32 %v889, %v923
        %v940 = vadd.f32 %v890, %v924
        %v941 = vadd.f32 %v891, %v925
        %v942 = vadd.f32 %v892, %v926
        %v943 = vadd.f32 %v893, %v927
        %v944 = vadd.f32 %v894, %v928
        %v945 = vadd.f32 %v895, %v929
        %v946 = vadd.f32 %v896, %v930
        %v947 = vadd.f32 %v897, %v931
        %v948 = vadd.f32 %v898, %v932
        %v949 = vadd.f32 %v899, %v933
        %v950 = vadd.f32 %v900, %v934
        %v951 = vadd.f32 %v901, %v935
        %v952 = vadd.f32 %v902, %v936
        %s953 = sld [smem:[#allocation10]]
        %v954 = vstv %s953
        %v955 = vadd.f32 %v937, %v954
        %v956 = vadd.f32 %v938, %v954
        %v957 = vadd.f32 %v939, %v954
        %v958 = vadd.f32 %v940, %v954
        %v959 = vadd.f32 %v941, %v954
        %v960 = vadd.f32 %v942, %v954
        %v961 = vadd.f32 %v943, %v954
        %v962 = vadd.f32 %v944, %v954
        %v963 = vadd.f32 %v945, %v954
        %v964 = vadd.f32 %v946, %v954
        %v965 = vadd.f32 %v947, %v954
        %v966 = vadd.f32 %v948, %v954
        %v967 = vadd.f32 %v949, %v954
        %v968 = vadd.f32 %v950, %v954
        %v969 = vadd.f32 %v951, %v954
        %v970 = vadd.f32 %v952, %v954
        %971 = vst.msk [vmem:[#allocation3] sm:$0xff] %vm339, %v955
        %972 = vst.msk [vmem:[#allocation3 + $0x8] sm:$0xff] %vm339, %v956
        %973 = vst.msk [vmem:[#allocation3 + $0x10] sm:$0xff] %vm339, %v957
        %974 = vst.msk [vmem:[#allocation3 + $0x18] sm:$0xff] %vm339, %v958
        %975 = vst.msk [vmem:[#allocation3 + $0x20] sm:$0xff] %vm339, %v959
        %976 = vst.msk [vmem:[#allocation3 + $0x28] sm:$0xff] %vm339, %v960
        %977 = vst.msk [vmem:[#allocation3 + $0x30] sm:$0xff] %vm339, %v961
        %978 = vst.msk [vmem:[#allocation3 + $0x38] sm:$0xff] %vm339, %v962
        %979 = vst.msk [vmem:[#allocation3 + $0x40] sm:$0xff] %vm339, %v963
        %980 = vst.msk [vmem:[#allocation3 + $0x48] sm:$0xff] %vm339, %v964
        %981 = vst.msk [vmem:[#allocation3 + $0x50] sm:$0xff] %vm339, %v965
        %982 = vst.msk [vmem:[#allocation3 + $0x58] sm:$0xff] %vm339, %v966
        %983 = vst.msk [vmem:[#allocation3 + $0x60] sm:$0xff] %vm339, %v967
        %984 = vst.msk [vmem:[#allocation3 + $0x68] sm:$0xff] %vm339, %v968
        %985 = vst.msk [vmem:[#allocation3 + $0x70] sm:$0xff] %vm339, %v969
        %vm986 = vcmask 1010688
        %987 = vst.msk [vmem:[#allocation3 + $0x78] sm:$0xf] %vm986, %v970
        %v988 = vld [vmem:[#allocation3] ss:$2 sm:$0xff]
        %s989 = scalar_lea.vmem [#allocation3], 16
        %v990 = vld [vmem:[%s989] ss:$2 sm:$0xff]
        %s991 = scalar_lea.vmem [#allocation3], 32
        %v992 = vld [vmem:[%s991] ss:$2 sm:$0xff]
        %s993 = scalar_lea.vmem [#allocation3], 48
        %v994 = vld [vmem:[%s993] ss:$2 sm:$0xff]
        %s995 = scalar_lea.vmem [#allocation3], 64
        %v996 = vld [vmem:[%s995] ss:$2 sm:$0xff]
        %s997 = scalar_lea.vmem [#allocation3], 80
        %v998 = vld [vmem:[%s997] ss:$2 sm:$0xff]
        %s999 = scalar_lea.vmem [#allocation3], 96
        %v1000 = vld [vmem:[%s999] ss:$2 sm:$0xff]
        %s1001 = scalar_lea.vmem [#allocation3], 112
        %v1002 = vld [vmem:[%s1001] ss:$2 sm:$0x3f]
        %s1003 = scalar_lea.vmem [#allocation3], 1
        %v1004 = vld [vmem:[%s1003] ss:$2 sm:$0xff]
        %s1005 = scalar_lea.vmem [#allocation3], 17
        %v1006 = vld [vmem:[%s1005] ss:$2 sm:$0xff]
        %s1007 = scalar_lea.vmem [#allocation3], 33
        %v1008 = vld [vmem:[%s1007] ss:$2 sm:$0xff]
        %s1009 = scalar_lea.vmem [#allocation3], 49
        %v1010 = vld [vmem:[%s1009] ss:$2 sm:$0xff]
        %s1011 = scalar_lea.vmem [#allocation3], 65
        %v1012 = vld [vmem:[%s1011] ss:$2 sm:$0xff]
        %s1013 = scalar_lea.vmem [#allocation3], 81
        %v1014 = vld [vmem:[%s1013] ss:$2 sm:$0xff]
        %s1015 = scalar_lea.vmem [#allocation3], 97
        %v1016 = vld [vmem:[%s1015] ss:$2 sm:$0xff]
        %s1017 = scalar_lea.vmem [#allocation3], 113
        %v1018 = vld [vmem:[%s1017] ss:$2 sm:$0x3f]
        %v1019 = vmax.f32 %v988, %v1004
        %v1020 = vmax.f32 %v990, %v1006
        %v1021 = vmax.f32 %v992, %v1008
        %v1022 = vmax.f32 %v994, %v1010
        %v1023 = vmax.f32 %v996, %v1012
        %v1024 = vmax.f32 %v998, %v1014
        %v1025 = vmax.f32 %v1000, %v1016
        %v1026 = vmax.f32 %v1002, %v1018
        %1035 = vrot.lane.b32.xlu0 %v1019, 127
        %v1036 = vpop.permute.xlu0 %1035
        %1037 = vrot.lane.b32.xlu0 %v1020, 127
        %v1038 = vpop.permute.xlu0 %1037
        %1039 = vrot.lane.b32.xlu0 %v1021, 127
        %v1040 = vpop.permute.xlu0 %1039
        %1041 = vrot.lane.b32.xlu0 %v1022, 127
        %v1042 = vpop.permute.xlu0 %1041
        %1043 = vrot.lane.b32.xlu0 %v1023, 127
        %v1044 = vpop.permute.xlu0 %1043
        %1045 = vrot.lane.b32.xlu0 %v1024, 127
        %v1046 = vpop.permute.xlu0 %1045
        %1047 = vrot.lane.b32.xlu0 %v1025, 127
        %v1048 = vpop.permute.xlu0 %1047
        %1049 = vrot.lane.b32.xlu0 %v1026, 127
        %v1050 = vpop.permute.xlu0 %1049
        %v1059 = vmax.f32 %v1019, %v1036
        %v1060 = vmax.f32 %v1020, %v1038
        %v1061 = vmax.f32 %v1021, %v1040
        %v1062 = vmax.f32 %v1022, %v1042
        %v1063 = vmax.f32 %v1023, %v1044
        %v1064 = vmax.f32 %v1024, %v1046
        %v1065 = vmax.f32 %v1025, %v1048
        %v1066 = vmax.f32 %v1026, %v1050
        %vm1067 = vcmask 1006592
        %1068 = vst.msk [vmem:[#allocation4] sm:$0xff] %vm1067, %v1059
        %1069 = vst.msk [vmem:[#allocation4 + $0x8] sm:$0xff] %vm1067, %v1060
        %1070 = vst.msk [vmem:[#allocation4 + $0x10] sm:$0xff] %vm1067, %v1061
        %1071 = vst.msk [vmem:[#allocation4 + $0x18] sm:$0xff] %vm1067, %v1062
        %1072 = vst.msk [vmem:[#allocation4 + $0x20] sm:$0xff] %vm1067, %v1063
        %1073 = vst.msk [vmem:[#allocation4 + $0x28] sm:$0xff] %vm1067, %v1064
        %1074 = vst.msk [vmem:[#allocation4 + $0x30] sm:$0xff] %vm1067, %v1065
        %vm1075 = vcmask 1004544
        %1076 = vst.msk [vmem:[#allocation4 + $0x38] sm:$0x3f] %vm1075, %v1066
        %s1077 = sld [smem:[#allocation8 + $0x9]]
        %v1078 = vld [vmem:[#allocation2] sm:$0xff]
        %v1079 = vld [vmem:[#allocation2 + $0x8] sm:$0xff]
        %v1080 = vld [vmem:[#allocation2 + $0x10] sm:$0xff]
        %v1081 = vld [vmem:[#allocation2 + $0x18] sm:$0xff]
        %v1082 = vld [vmem:[#allocation2 + $0x20] sm:$0xff]
        %v1083 = vld [vmem:[#allocation2 + $0x28] sm:$0xff]
        %v1084 = vld [vmem:[#allocation2 + $0x30] sm:$0xff]
        %v1085 = vld [vmem:[#allocation2 + $0x38] sm:$0xff]
        %v1086 = vld [vmem:[#allocation2 + $0x40] sm:$0xff]
        %v1087 = vld [vmem:[#allocation2 + $0x48] sm:$0xff]
        %v1088 = vld [vmem:[#allocation2 + $0x50] sm:$0xff]
        %v1089 = vld [vmem:[#allocation2 + $0x58] sm:$0xff]
        %v1090 = vld [vmem:[#allocation2 + $0x60] sm:$0xff]
        %v1091 = vld [vmem:[#allocation2 + $0x68] sm:$0xff]
        %v1092 = vld [vmem:[#allocation2 + $0x70] sm:$0xff]
        %v1093 = vld [vmem:[#allocation2 + $0x78] sm:$0xf]
        %v1094 = vstv %s1077
        %v1095 = vmul.f32 %v1094, %v1078
        %v1096 = vmul.f32 %v1094, %v1079
        %v1097 = vmul.f32 %v1094, %v1080
        %v1098 = vmul.f32 %v1094, %v1081
        %v1099 = vmul.f32 %v1094, %v1082
        %v1100 = vmul.f32 %v1094, %v1083
        %v1101 = vmul.f32 %v1094, %v1084
        %v1102 = vmul.f32 %v1094, %v1085
        %v1103 = vmul.f32 %v1094, %v1086
        %v1104 = vmul.f32 %v1094, %v1087
        %v1105 = vmul.f32 %v1094, %v1088
        %v1106 = vmul.f32 %v1094, %v1089
        %v1107 = vmul.f32 %v1094, %v1090
        %v1108 = vmul.f32 %v1094, %v1091
        %v1109 = vmul.f32 %v1094, %v1092
        %v1110 = vmul.f32 %v1094, %v1093
        %v1111 = vadd.f32 %v1095, 0.0
        %v1112 = vadd.f32 %v1096, 0.0
        %v1113 = vadd.f32 %v1097, 0.0
        %v1114 = vadd.f32 %v1098, 0.0
        %v1115 = vadd.f32 %v1099, 0.0
        %v1116 = vadd.f32 %v1100, 0.0
        %v1117 = vadd.f32 %v1101, 0.0
        %v1118 = vadd.f32 %v1102, 0.0
        %v1119 = vadd.f32 %v1103, 0.0
        %v1120 = vadd.f32 %v1104, 0.0
        %v1121 = vadd.f32 %v1105, 0.0
        %v1122 = vadd.f32 %v1106, 0.0
        %v1123 = vadd.f32 %v1107, 0.0
        %v1124 = vadd.f32 %v1108, 0.0
        %v1125 = vadd.f32 %v1109, 0.0
        %v1126 = vadd.f32 %v1110, 0.0
        %s1127 = sld [smem:[#allocation8 + $0xa]]
        %v1128 = vld [vmem:[%s421] sm:$0xff]
        %v1129 = vld [vmem:[%s421 + $0x8] sm:$0xff]
        %v1130 = vld [vmem:[%s421 + $0x10] sm:$0xff]
        %v1131 = vld [vmem:[%s421 + $0x18] sm:$0xff]
        %v1132 = vld [vmem:[%s421 + $0x20] sm:$0xff]
        %v1133 = vld [vmem:[%s421 + $0x28] sm:$0xff]
        %v1134 = vld [vmem:[%s421 + $0x30] sm:$0xff]
        %v1135 = vld [vmem:[%s421 + $0x38] sm:$0xff]
        %v1136 = vld [vmem:[%s421 + $0x40] sm:$0xff]
        %v1137 = vld [vmem:[%s421 + $0x48] sm:$0xff]
        %v1138 = vld [vmem:[%s421 + $0x50] sm:$0xff]
        %v1139 = vld [vmem:[%s421 + $0x58] sm:$0xff]
        %v1140 = vld [vmem:[%s421 + $0x60] sm:$0xff]
        %v1141 = vld [vmem:[%s421 + $0x68] sm:$0xff]
        %v1142 = vld [vmem:[%s421 + $0x70] sm:$0xff]
        %v1143 = vld [vmem:[%s421 + $0x78] sm:$0xf]
        %v1144 = vstv %s1127
        %v1145 = vmul.f32 %v1144, %v1128
        %v1146 = vmul.f32 %v1144, %v1129
        %v1147 = vmul.f32 %v1144, %v1130
        %v1148 = vmul.f32 %v1144, %v1131
        %v1149 = vmul.f32 %v1144, %v1132
        %v1150 = vmul.f32 %v1144, %v1133
        %v1151 = vmul.f32 %v1144, %v1134
        %v1152 = vmul.f32 %v1144, %v1135
        %v1153 = vmul.f32 %v1144, %v1136
        %v1154 = vmul.f32 %v1144, %v1137
        %v1155 = vmul.f32 %v1144, %v1138
        %v1156 = vmul.f32 %v1144, %v1139
        %v1157 = vmul.f32 %v1144, %v1140
        %v1158 = vmul.f32 %v1144, %v1141
        %v1159 = vmul.f32 %v1144, %v1142
        %v1160 = vmul.f32 %v1144, %v1143
        %v1161 = vadd.f32 %v1111, %v1145
        %v1162 = vadd.f32 %v1112, %v1146
        %v1163 = vadd.f32 %v1113, %v1147
        %v1164 = vadd.f32 %v1114, %v1148
        %v1165 = vadd.f32 %v1115, %v1149
        %v1166 = vadd.f32 %v1116, %v1150
        %v1167 = vadd.f32 %v1117, %v1151
        %v1168 = vadd.f32 %v1118, %v1152
        %v1169 = vadd.f32 %v1119, %v1153
        %v1170 = vadd.f32 %v1120, %v1154
        %v1171 = vadd.f32 %v1121, %v1155
        %v1172 = vadd.f32 %v1122, %v1156
        %v1173 = vadd.f32 %v1123, %v1157
        %v1174 = vadd.f32 %v1124, %v1158
        %v1175 = vadd.f32 %v1125, %v1159
        %v1176 = vadd.f32 %v1126, %v1160
        %s1177 = sld [smem:[#allocation8 + $0xb]]
        %v1178 = vld [vmem:[%s486] sm:$0xff]
        %v1179 = vld [vmem:[%s486 + $0x8] sm:$0xff]
        %v1180 = vld [vmem:[%s486 + $0x10] sm:$0xff]
        %v1181 = vld [vmem:[%s486 + $0x18] sm:$0xff]
        %v1182 = vld [vmem:[%s486 + $0x20] sm:$0xff]
        %v1183 = vld [vmem:[%s486 + $0x28] sm:$0xff]
        %v1184 = vld [vmem:[%s486 + $0x30] sm:$0xff]
        %v1185 = vld [vmem:[%s486 + $0x38] sm:$0xff]
        %v1186 = vld [vmem:[%s486 + $0x40] sm:$0xff]
        %v1187 = vld [vmem:[%s486 + $0x48] sm:$0xff]
        %v1188 = vld [vmem:[%s486 + $0x50] sm:$0xff]
        %v1189 = vld [vmem:[%s486 + $0x58] sm:$0xff]
        %v1190 = vld [vmem:[%s486 + $0x60] sm:$0xff]
        %v1191 = vld [vmem:[%s486 + $0x68] sm:$0xff]
        %v1192 = vld [vmem:[%s486 + $0x70] sm:$0xff]
        %v1193 = vld [vmem:[%s486 + $0x78] sm:$0xf]
        %v1194 = vstv %s1177
        %v1195 = vmul.f32 %v1194, %v1178
        %v1196 = vmul.f32 %v1194, %v1179
        %v1197 = vmul.f32 %v1194, %v1180
        %v1198 = vmul.f32 %v1194, %v1181
        %v1199 = vmul.f32 %v1194, %v1182
        %v1200 = vmul.f32 %v1194, %v1183
        %v1201 = vmul.f32 %v1194, %v1184
        %v1202 = vmul.f32 %v1194, %v1185
        %v1203 = vmul.f32 %v1194, %v1186
        %v1204 = vmul.f32 %v1194, %v1187
        %v1205 = vmul.f32 %v1194, %v1188
        %v1206 = vmul.f32 %v1194, %v1189
        %v1207 = vmul.f32 %v1194, %v1190
        %v1208 = vmul.f32 %v1194, %v1191
        %v1209 = vmul.f32 %v1194, %v1192
        %v1210 = vmul.f32 %v1194, %v1193
        %v1211 = vadd.f32 %v1161, %v1195
        %v1212 = vadd.f32 %v1162, %v1196
        %v1213 = vadd.f32 %v1163, %v1197
        %v1214 = vadd.f32 %v1164, %v1198
        %v1215 = vadd.f32 %v1165, %v1199
        %v1216 = vadd.f32 %v1166, %v1200
        %v1217 = vadd.f32 %v1167, %v1201
        %v1218 = vadd.f32 %v1168, %v1202
        %v1219 = vadd.f32 %v1169, %v1203
        %v1220 = vadd.f32 %v1170, %v1204
        %v1221 = vadd.f32 %v1171, %v1205
        %v1222 = vadd.f32 %v1172, %v1206
        %v1223 = vadd.f32 %v1173, %v1207
        %v1224 = vadd.f32 %v1174, %v1208
        %v1225 = vadd.f32 %v1175, %v1209
        %v1226 = vadd.f32 %v1176, %v1210
        %s1227 = sld [smem:[#allocation8 + $0xc]]
        %v1228 = vld [vmem:[#allocation2 + $0x1] sm:$0xff]
        %v1229 = vld [vmem:[#allocation2 + $0x9] sm:$0xff]
        %v1230 = vld [vmem:[#allocation2 + $0x11] sm:$0xff]
        %v1231 = vld [vmem:[#allocation2 + $0x19] sm:$0xff]
        %v1232 = vld [vmem:[#allocation2 + $0x21] sm:$0xff]
        %v1233 = vld [vmem:[#allocation2 + $0x29] sm:$0xff]
        %v1234 = vld [vmem:[#allocation2 + $0x31] sm:$0xff]
        %v1235 = vld [vmem:[#allocation2 + $0x39] sm:$0xff]
        %v1236 = vld [vmem:[#allocation2 + $0x41] sm:$0xff]
        %v1237 = vld [vmem:[#allocation2 + $0x49] sm:$0xff]
        %v1238 = vld [vmem:[#allocation2 + $0x51] sm:$0xff]
        %v1239 = vld [vmem:[#allocation2 + $0x59] sm:$0xff]
        %v1240 = vld [vmem:[#allocation2 + $0x61] sm:$0xff]
        %v1241 = vld [vmem:[#allocation2 + $0x69] sm:$0xff]
        %v1242 = vld [vmem:[#allocation2 + $0x71] sm:$0xff]
        %v1243 = vld [vmem:[#allocation2 + $0x79] sm:$0xf]
        %v1244 = vstv %s1227
        %v1245 = vmul.f32 %v1244, %v1228
        %v1246 = vmul.f32 %v1244, %v1229
        %v1247 = vmul.f32 %v1244, %v1230
        %v1248 = vmul.f32 %v1244, %v1231
        %v1249 = vmul.f32 %v1244, %v1232
        %v1250 = vmul.f32 %v1244, %v1233
        %v1251 = vmul.f32 %v1244, %v1234
        %v1252 = vmul.f32 %v1244, %v1235
        %v1253 = vmul.f32 %v1244, %v1236
        %v1254 = vmul.f32 %v1244, %v1237
        %v1255 = vmul.f32 %v1244, %v1238
        %v1256 = vmul.f32 %v1244, %v1239
        %v1257 = vmul.f32 %v1244, %v1240
        %v1258 = vmul.f32 %v1244, %v1241
        %v1259 = vmul.f32 %v1244, %v1242
        %v1260 = vmul.f32 %v1244, %v1243
        %v1261 = vadd.f32 %v1211, %v1245
        %v1262 = vadd.f32 %v1212, %v1246
        %v1263 = vadd.f32 %v1213, %v1247
        %v1264 = vadd.f32 %v1214, %v1248
        %v1265 = vadd.f32 %v1215, %v1249
        %v1266 = vadd.f32 %v1216, %v1250
        %v1267 = vadd.f32 %v1217, %v1251
        %v1268 = vadd.f32 %v1218, %v1252
        %v1269 = vadd.f32 %v1219, %v1253
        %v1270 = vadd.f32 %v1220, %v1254
        %v1271 = vadd.f32 %v1221, %v1255
        %v1272 = vadd.f32 %v1222, %v1256
        %v1273 = vadd.f32 %v1223, %v1257
        %v1274 = vadd.f32 %v1224, %v1258
        %v1275 = vadd.f32 %v1225, %v1259
        %v1276 = vadd.f32 %v1226, %v1260
        %s1277 = sld [smem:[#allocation8 + $0xd]]
        %v1278 = vld [vmem:[%s421 + $0x1] sm:$0xff]
        %v1279 = vld [vmem:[%s421 + $0x9] sm:$0xff]
        %v1280 = vld [vmem:[%s421 + $0x11] sm:$0xff]
        %v1281 = vld [vmem:[%s421 + $0x19] sm:$0xff]
        %v1282 = vld [vmem:[%s421 + $0x21] sm:$0xff]
        %v1283 = vld [vmem:[%s421 + $0x29] sm:$0xff]
        %v1284 = vld [vmem:[%s421 + $0x31] sm:$0xff]
        %v1285 = vld [vmem:[%s421 + $0x39] sm:$0xff]
        %v1286 = vld [vmem:[%s421 + $0x41] sm:$0xff]
        %v1287 = vld [vmem:[%s421 + $0x49] sm:$0xff]
        %v1288 = vld [vmem:[%s421 + $0x51] sm:$0xff]
        %v1289 = vld [vmem:[%s421 + $0x59] sm:$0xff]
        %v1290 = vld [vmem:[%s421 + $0x61] sm:$0xff]
        %v1291 = vld [vmem:[%s421 + $0x69] sm:$0xff]
        %v1292 = vld [vmem:[%s421 + $0x71] sm:$0xff]
        %v1293 = vld [vmem:[%s421 + $0x79] sm:$0xf]
        %v1294 = vstv %s1277
        %v1295 = vmul.f32 %v1294, %v1278
        %v1296 = vmul.f32 %v1294, %v1279
        %v1297 = vmul.f32 %v1294, %v1280
        %v1298 = vmul.f32 %v1294, %v1281
        %v1299 = vmul.f32 %v1294, %v1282
        %v1300 = vmul.f32 %v1294, %v1283
        %v1301 = vmul.f32 %v1294, %v1284
        %v1302 = vmul.f32 %v1294, %v1285
        %v1303 = vmul.f32 %v1294, %v1286
        %v1304 = vmul.f32 %v1294, %v1287
        %v1305 = vmul.f32 %v1294, %v1288
        %v1306 = vmul.f32 %v1294, %v1289
        %v1307 = vmul.f32 %v1294, %v1290
        %v1308 = vmul.f32 %v1294, %v1291
        %v1309 = vmul.f32 %v1294, %v1292
        %v1310 = vmul.f32 %v1294, %v1293
        %v1311 = vadd.f32 %v1261, %v1295
        %v1312 = vadd.f32 %v1262, %v1296
        %v1313 = vadd.f32 %v1263, %v1297
        %v1314 = vadd.f32 %v1264, %v1298
        %v1315 = vadd.f32 %v1265, %v1299
        %v1316 = vadd.f32 %v1266, %v1300
        %v1317 = vadd.f32 %v1267, %v1301
        %v1318 = vadd.f32 %v1268, %v1302
        %v1319 = vadd.f32 %v1269, %v1303
        %v1320 = vadd.f32 %v1270, %v1304
        %v1321 = vadd.f32 %v1271, %v1305
        %v1322 = vadd.f32 %v1272, %v1306
        %v1323 = vadd.f32 %v1273, %v1307
        %v1324 = vadd.f32 %v1274, %v1308
        %v1325 = vadd.f32 %v1275, %v1309
        %v1326 = vadd.f32 %v1276, %v1310
        %s1327 = sld [smem:[#allocation8 + $0xe]]
        %v1328 = vld [vmem:[%s486 + $0x1] sm:$0xff]
        %v1329 = vld [vmem:[%s486 + $0x9] sm:$0xff]
        %v1330 = vld [vmem:[%s486 + $0x11] sm:$0xff]
        %v1331 = vld [vmem:[%s486 + $0x19] sm:$0xff]
        %v1332 = vld [vmem:[%s486 + $0x21] sm:$0xff]
        %v1333 = vld [vmem:[%s486 + $0x29] sm:$0xff]
        %v1334 = vld [vmem:[%s486 + $0x31] sm:$0xff]
        %v1335 = vld [vmem:[%s486 + $0x39] sm:$0xff]
        %v1336 = vld [vmem:[%s486 + $0x41] sm:$0xff]
        %v1337 = vld [vmem:[%s486 + $0x49] sm:$0xff]
        %v1338 = vld [vmem:[%s486 + $0x51] sm:$0xff]
        %v1339 = vld [vmem:[%s486 + $0x59] sm:$0xff]
        %v1340 = vld [vmem:[%s486 + $0x61] sm:$0xff]
        %v1341 = vld [vmem:[%s486 + $0x69] sm:$0xff]
        %v1342 = vld [vmem:[%s486 + $0x71] sm:$0xff]
        %v1343 = vld [vmem:[%s486 + $0x79] sm:$0xf]
        %v1344 = vstv %s1327
        %v1345 = vmul.f32 %v1344, %v1328
        %v1346 = vmul.f32 %v1344, %v1329
        %v1347 = vmul.f32 %v1344, %v1330
        %v1348 = vmul.f32 %v1344, %v1331
        %v1349 = vmul.f32 %v1344, %v1332
        %v1350 = vmul.f32 %v1344, %v1333
        %v1351 = vmul.f32 %v1344, %v1334
        %v1352 = vmul.f32 %v1344, %v1335
        %v1353 = vmul.f32 %v1344, %v1336
        %v1354 = vmul.f32 %v1344, %v1337
        %v1355 = vmul.f32 %v1344, %v1338
        %v1356 = vmul.f32 %v1344, %v1339
        %v1357 = vmul.f32 %v1344, %v1340
        %v1358 = vmul.f32 %v1344, %v1341
        %v1359 = vmul.f32 %v1344, %v1342
        %v1360 = vmul.f32 %v1344, %v1343
        %v1361 = vadd.f32 %v1311, %v1345
        %v1362 = vadd.f32 %v1312, %v1346
        %v1363 = vadd.f32 %v1313, %v1347
        %v1364 = vadd.f32 %v1314, %v1348
        %v1365 = vadd.f32 %v1315, %v1349
        %v1366 = vadd.f32 %v1316, %v1350
        %v1367 = vadd.f32 %v1317, %v1351
        %v1368 = vadd.f32 %v1318, %v1352
        %v1369 = vadd.f32 %v1319, %v1353
        %v1370 = vadd.f32 %v1320, %v1354
        %v1371 = vadd.f32 %v1321, %v1355
        %v1372 = vadd.f32 %v1322, %v1356
        %v1373 = vadd.f32 %v1323, %v1357
        %v1374 = vadd.f32 %v1324, %v1358
        %v1375 = vadd.f32 %v1325, %v1359
        %v1376 = vadd.f32 %v1326, %v1360
        %s1377 = sld [smem:[#allocation8 + $0xf]]
        %v1378 = vld [vmem:[#allocation2 + $0x2] sm:$0xff]
        %v1379 = vld [vmem:[#allocation2 + $0xa] sm:$0xff]
        %v1380 = vld [vmem:[#allocation2 + $0x12] sm:$0xff]
        %v1381 = vld [vmem:[#allocation2 + $0x1a] sm:$0xff]
        %v1382 = vld [vmem:[#allocation2 + $0x22] sm:$0xff]
        %v1383 = vld [vmem:[#allocation2 + $0x2a] sm:$0xff]
        %v1384 = vld [vmem:[#allocation2 + $0x32] sm:$0xff]
        %v1385 = vld [vmem:[#allocation2 + $0x3a] sm:$0xff]
        %v1386 = vld [vmem:[#allocation2 + $0x42] sm:$0xff]
        %v1387 = vld [vmem:[#allocation2 + $0x4a] sm:$0xff]
        %v1388 = vld [vmem:[#allocation2 + $0x52] sm:$0xff]
        %v1389 = vld [vmem:[#allocation2 + $0x5a] sm:$0xff]
        %v1390 = vld [vmem:[#allocation2 + $0x62] sm:$0xff]
        %v1391 = vld [vmem:[#allocation2 + $0x6a] sm:$0xff]
        %v1392 = vld [vmem:[#allocation2 + $0x72] sm:$0xff]
        %v1393 = vld [vmem:[#allocation2 + $0x7a] sm:$0xf]
        %v1394 = vstv %s1377
        %v1395 = vmul.f32 %v1394, %v1378
        %v1396 = vmul.f32 %v1394, %v1379
        %v1397 = vmul.f32 %v1394, %v1380
        %v1398 = vmul.f32 %v1394, %v1381
        %v1399 = vmul.f32 %v1394, %v1382
        %v1400 = vmul.f32 %v1394, %v1383
        %v1401 = vmul.f32 %v1394, %v1384
        %v1402 = vmul.f32 %v1394, %v1385
        %v1403 = vmul.f32 %v1394, %v1386
        %v1404 = vmul.f32 %v1394, %v1387
        %v1405 = vmul.f32 %v1394, %v1388
        %v1406 = vmul.f32 %v1394, %v1389
        %v1407 = vmul.f32 %v1394, %v1390
        %v1408 = vmul.f32 %v1394, %v1391
        %v1409 = vmul.f32 %v1394, %v1392
        %v1410 = vmul.f32 %v1394, %v1393
        %v1411 = vadd.f32 %v1361, %v1395
        %v1412 = vadd.f32 %v1362, %v1396
        %v1413 = vadd.f32 %v1363, %v1397
        %v1414 = vadd.f32 %v1364, %v1398
        %v1415 = vadd.f32 %v1365, %v1399
        %v1416 = vadd.f32 %v1366, %v1400
        %v1417 = vadd.f32 %v1367, %v1401
        %v1418 = vadd.f32 %v1368, %v1402
        %v1419 = vadd.f32 %v1369, %v1403
        %v1420 = vadd.f32 %v1370, %v1404
        %v1421 = vadd.f32 %v1371, %v1405
        %v1422 = vadd.f32 %v1372, %v1406
        %v1423 = vadd.f32 %v1373, %v1407
        %v1424 = vadd.f32 %v1374, %v1408
        %v1425 = vadd.f32 %v1375, %v1409
        %v1426 = vadd.f32 %v1376, %v1410
        %s1427 = sld [smem:[#allocation8 + $0x10]]
        %v1428 = vld [vmem:[%s421 + $0x2] sm:$0xff]
        %v1429 = vld [vmem:[%s421 + $0xa] sm:$0xff]
        %v1430 = vld [vmem:[%s421 + $0x12] sm:$0xff]
        %v1431 = vld [vmem:[%s421 + $0x1a] sm:$0xff]
        %v1432 = vld [vmem:[%s421 + $0x22] sm:$0xff]
        %v1433 = vld [vmem:[%s421 + $0x2a] sm:$0xff]
        %v1434 = vld [vmem:[%s421 + $0x32] sm:$0xff]
        %v1435 = vld [vmem:[%s421 + $0x3a] sm:$0xff]
        %v1436 = vld [vmem:[%s421 + $0x42] sm:$0xff]
        %v1437 = vld [vmem:[%s421 + $0x4a] sm:$0xff]
        %v1438 = vld [vmem:[%s421 + $0x52] sm:$0xff]
        %v1439 = vld [vmem:[%s421 + $0x5a] sm:$0xff]
        %v1440 = vld [vmem:[%s421 + $0x62] sm:$0xff]
        %v1441 = vld [vmem:[%s421 + $0x6a] sm:$0xff]
        %v1442 = vld [vmem:[%s421 + $0x72] sm:$0xff]
        %v1443 = vld [vmem:[%s421 + $0x7a] sm:$0xf]
        %v1444 = vstv %s1427
        %v1445 = vmul.f32 %v1444, %v1428
        %v1446 = vmul.f32 %v1444, %v1429
        %v1447 = vmul.f32 %v1444, %v1430
        %v1448 = vmul.f32 %v1444, %v1431
        %v1449 = vmul.f32 %v1444, %v1432
        %v1450 = vmul.f32 %v1444, %v1433
        %v1451 = vmul.f32 %v1444, %v1434
        %v1452 = vmul.f32 %v1444, %v1435
        %v1453 = vmul.f32 %v1444, %v1436
        %v1454 = vmul.f32 %v1444, %v1437
        %v1455 = vmul.f32 %v1444, %v1438
        %v1456 = vmul.f32 %v1444, %v1439
        %v1457 = vmul.f32 %v1444, %v1440
        %v1458 = vmul.f32 %v1444, %v1441
        %v1459 = vmul.f32 %v1444, %v1442
        %v1460 = vmul.f32 %v1444, %v1443
        %v1461 = vadd.f32 %v1411, %v1445
        %v1462 = vadd.f32 %v1412, %v1446
        %v1463 = vadd.f32 %v1413, %v1447
        %v1464 = vadd.f32 %v1414, %v1448
        %v1465 = vadd.f32 %v1415, %v1449
        %v1466 = vadd.f32 %v1416, %v1450
        %v1467 = vadd.f32 %v1417, %v1451
        %v1468 = vadd.f32 %v1418, %v1452
        %v1469 = vadd.f32 %v1419, %v1453
        %v1470 = vadd.f32 %v1420, %v1454
        %v1471 = vadd.f32 %v1421, %v1455
        %v1472 = vadd.f32 %v1422, %v1456
        %v1473 = vadd.f32 %v1423, %v1457
        %v1474 = vadd.f32 %v1424, %v1458
        %v1475 = vadd.f32 %v1425, %v1459
        %v1476 = vadd.f32 %v1426, %v1460
        %s1477 = sld [smem:[#allocation8 + $0x11]]
        %v1478 = vld [vmem:[%s486 + $0x2] sm:$0xff]
        %v1479 = vld [vmem:[%s486 + $0xa] sm:$0xff]
        %v1480 = vld [vmem:[%s486 + $0x12] sm:$0xff]
        %v1481 = vld [vmem:[%s486 + $0x1a] sm:$0xff]
        %v1482 = vld [vmem:[%s486 + $0x22] sm:$0xff]
        %v1483 = vld [vmem:[%s486 + $0x2a] sm:$0xff]
        %v1484 = vld [vmem:[%s486 + $0x32] sm:$0xff]
        %v1485 = vld [vmem:[%s486 + $0x3a] sm:$0xff]
        %v1486 = vld [vmem:[%s486 + $0x42] sm:$0xff]
        %v1487 = vld [vmem:[%s486 + $0x4a] sm:$0xff]
        %v1488 = vld [vmem:[%s486 + $0x52] sm:$0xff]
        %v1489 = vld [vmem:[%s486 + $0x5a] sm:$0xff]
        %v1490 = vld [vmem:[%s486 + $0x62] sm:$0xff]
        %v1491 = vld [vmem:[%s486 + $0x6a] sm:$0xff]
        %v1492 = vld [vmem:[%s486 + $0x72] sm:$0xff]
        %v1493 = vld [vmem:[%s486 + $0x7a] sm:$0xf]
        %v1494 = vstv %s1477
        %v1495 = vmul.f32 %v1494, %v1478
        %v1496 = vmul.f32 %v1494, %v1479
        %v1497 = vmul.f32 %v1494, %v1480
        %v1498 = vmul.f32 %v1494, %v1481
        %v1499 = vmul.f32 %v1494, %v1482
        %v1500 = vmul.f32 %v1494, %v1483
        %v1501 = vmul.f32 %v1494, %v1484
        %v1502 = vmul.f32 %v1494, %v1485
        %v1503 = vmul.f32 %v1494, %v1486
        %v1504 = vmul.f32 %v1494, %v1487
        %v1505 = vmul.f32 %v1494, %v1488
        %v1506 = vmul.f32 %v1494, %v1489
        %v1507 = vmul.f32 %v1494, %v1490
        %v1508 = vmul.f32 %v1494, %v1491
        %v1509 = vmul.f32 %v1494, %v1492
        %v1510 = vmul.f32 %v1494, %v1493
        %v1511 = vadd.f32 %v1461, %v1495
        %v1512 = vadd.f32 %v1462, %v1496
        %v1513 = vadd.f32 %v1463, %v1497
        %v1514 = vadd.f32 %v1464, %v1498
        %v1515 = vadd.f32 %v1465, %v1499
        %v1516 = vadd.f32 %v1466, %v1500
        %v1517 = vadd.f32 %v1467, %v1501
        %v1518 = vadd.f32 %v1468, %v1502
        %v1519 = vadd.f32 %v1469, %v1503
        %v1520 = vadd.f32 %v1470, %v1504
        %v1521 = vadd.f32 %v1471, %v1505
        %v1522 = vadd.f32 %v1472, %v1506
        %v1523 = vadd.f32 %v1473, %v1507
        %v1524 = vadd.f32 %v1474, %v1508
        %v1525 = vadd.f32 %v1475, %v1509
        %v1526 = vadd.f32 %v1476, %v1510
        %s1527 = sld [smem:[#allocation10 + $0x1]]
        %v1528 = vstv %s1527
        %v1529 = vadd.f32 %v1511, %v1528
        %v1530 = vadd.f32 %v1512, %v1528
        %v1531 = vadd.f32 %v1513, %v1528
        %v1532 = vadd.f32 %v1514, %v1528
        %v1533 = vadd.f32 %v1515, %v1528
        %v1534 = vadd.f32 %v1516, %v1528
        %v1535 = vadd.f32 %v1517, %v1528
        %v1536 = vadd.f32 %v1518, %v1528
        %v1537 = vadd.f32 %v1519, %v1528
        %v1538 = vadd.f32 %v1520, %v1528
        %v1539 = vadd.f32 %v1521, %v1528
        %v1540 = vadd.f32 %v1522, %v1528
        %v1541 = vadd.f32 %v1523, %v1528
        %v1542 = vadd.f32 %v1524, %v1528
        %v1543 = vadd.f32 %v1525, %v1528
        %v1544 = vadd.f32 %v1526, %v1528
        %1545 = vst.msk [vmem:[#allocation3] sm:$0xff] %vm339, %v1529
        %1546 = vst.msk [vmem:[#allocation3 + $0x8] sm:$0xff] %vm339, %v1530
        %1547 = vst.msk [vmem:[#allocation3 + $0x10] sm:$0xff] %vm339, %v1531
        %1548 = vst.msk [vmem:[#allocation3 + $0x18] sm:$0xff] %vm339, %v1532
        %1549 = vst.msk [vmem:[#allocation3 + $0x20] sm:$0xff] %vm339, %v1533
        %1550 = vst.msk [vmem:[#allocation3 + $0x28] sm:$0xff] %vm339, %v1534
        %1551 = vst.msk [vmem:[#allocation3 + $0x30] sm:$0xff] %vm339, %v1535
        %1552 = vst.msk [vmem:[#allocation3 + $0x38] sm:$0xff] %vm339, %v1536
        %1553 = vst.msk [vmem:[#allocation3 + $0x40] sm:$0xff] %vm339, %v1537
        %1554 = vst.msk [vmem:[#allocation3 + $0x48] sm:$0xff] %vm339, %v1538
        %1555 = vst.msk [vmem:[#allocation3 + $0x50] sm:$0xff] %vm339, %v1539
        %1556 = vst.msk [vmem:[#allocation3 + $0x58] sm:$0xff] %vm339, %v1540
        %1557 = vst.msk [vmem:[#allocation3 + $0x60] sm:$0xff] %vm339, %v1541
        %1558 = vst.msk [vmem:[#allocation3 + $0x68] sm:$0xff] %vm339, %v1542
        %1559 = vst.msk [vmem:[#allocation3 + $0x70] sm:$0xff] %vm339, %v1543
        %1560 = vst.msk [vmem:[#allocation3 + $0x78] sm:$0xf] %vm986, %v1544
        %v1561 = vld [vmem:[#allocation3] ss:$2 sm:$0xff]
        %v1562 = vld [vmem:[%s989] ss:$2 sm:$0xff]
        %v1563 = vld [vmem:[%s991] ss:$2 sm:$0xff]
        %v1564 = vld [vmem:[%s993] ss:$2 sm:$0xff]
        %v1565 = vld [vmem:[%s995] ss:$2 sm:$0xff]
        %v1566 = vld [vmem:[%s997] ss:$2 sm:$0xff]
        %v1567 = vld [vmem:[%s999] ss:$2 sm:$0xff]
        %v1568 = vld [vmem:[%s1001] ss:$2 sm:$0x3f]
        %v1569 = vld [vmem:[%s1003] ss:$2 sm:$0xff]
        %v1570 = vld [vmem:[%s1005] ss:$2 sm:$0xff]
        %v1571 = vld [vmem:[%s1007] ss:$2 sm:$0xff]
        %v1572 = vld [vmem:[%s1009] ss:$2 sm:$0xff]
        %v1573 = vld [vmem:[%s1011] ss:$2 sm:$0xff]
        %v1574 = vld [vmem:[%s1013] ss:$2 sm:$0xff]
        %v1575 = vld [vmem:[%s1015] ss:$2 sm:$0xff]
        %v1576 = vld [vmem:[%s1017] ss:$2 sm:$0x3f]
        %v1577 = vmax.f32 %v1561, %v1569
        %v1578 = vmax.f32 %v1562, %v1570
        %v1579 = vmax.f32 %v1563, %v1571
        %v1580 = vmax.f32 %v1564, %v1572
        %v1581 = vmax.f32 %v1565, %v1573
        %v1582 = vmax.f32 %v1566, %v1574
        %v1583 = vmax.f32 %v1567, %v1575
        %v1584 = vmax.f32 %v1568, %v1576
        %1593 = vrot.lane.b32.xlu0 %v1577, 127
        %v1594 = vpop.permute.xlu0 %1593
        %1595 = vrot.lane.b32.xlu0 %v1578, 127
        %v1596 = vpop.permute.xlu0 %1595
        %1597 = vrot.lane.b32.xlu0 %v1579, 127
        %v1598 = vpop.permute.xlu0 %1597
        %1599 = vrot.lane.b32.xlu0 %v1580, 127
        %v1600 = vpop.permute.xlu0 %1599
        %1601 = vrot.lane.b32.xlu0 %v1581, 127
        %v1602 = vpop.permute.xlu0 %1601
        %1603 = vrot.lane.b32.xlu0 %v1582, 127
        %v1604 = vpop.permute.xlu0 %1603
        %1605 = vrot.lane.b32.xlu0 %v1583, 127
        %v1606 = vpop.permute.xlu0 %1605
        %1607 = vrot.lane.b32.xlu0 %v1584, 127
        %v1608 = vpop.permute.xlu0 %1607
        %v1617 = vmax.f32 %v1577, %v1594
        %v1618 = vmax.f32 %v1578, %v1596
        %v1619 = vmax.f32 %v1579, %v1598
        %v1620 = vmax.f32 %v1580, %v1600
        %v1621 = vmax.f32 %v1581, %v1602
        %v1622 = vmax.f32 %v1582, %v1604
        %v1623 = vmax.f32 %v1583, %v1606
        %v1624 = vmax.f32 %v1584, %v1608
        %1625 = vst.msk [vmem:[#allocation4 + $0x3e] sm:$0xff] %vm1067, %v1617
        %1626 = vst.msk [vmem:[#allocation4 + $0x46] sm:$0xff] %vm1067, %v1618
        %1627 = vst.msk [vmem:[#allocation4 + $0x4e] sm:$0xff] %vm1067, %v1619
        %1628 = vst.msk [vmem:[#allocation4 + $0x56] sm:$0xff] %vm1067, %v1620
        %1629 = vst.msk [vmem:[#allocation4 + $0x5e] sm:$0xff] %vm1067, %v1621
        %1630 = vst.msk [vmem:[#allocation4 + $0x66] sm:$0xff] %vm1067, %v1622
        %1631 = vst.msk [vmem:[#allocation4 + $0x6e] sm:$0xff] %vm1067, %v1623
        %1632 = vst.msk [vmem:[#allocation4 + $0x76] sm:$0x3f] %vm1075, %v1624
        %s1633 = sld [smem:[#allocation8 + $0x12]]
        %v1634 = vld [vmem:[#allocation2] sm:$0xff]
        %v1635 = vld [vmem:[#allocation2 + $0x8] sm:$0xff]
        %v1636 = vld [vmem:[#allocation2 + $0x10] sm:$0xff]
        %v1637 = vld [vmem:[#allocation2 + $0x18] sm:$0xff]
        %v1638 = vld [vmem:[#allocation2 + $0x20] sm:$0xff]
        %v1639 = vld [vmem:[#allocation2 + $0x28] sm:$0xff]
        %v1640 = vld [vmem:[#allocation2 + $0x30] sm:$0xff]
        %v1641 = vld [vmem:[#allocation2 + $0x38] sm:$0xff]
        %v1642 = vld [vmem:[#allocation2 + $0x40] sm:$0xff]
        %v1643 = vld [vmem:[#allocation2 + $0x48] sm:$0xff]
        %v1644 = vld [vmem:[#allocation2 + $0x50] sm:$0xff]
        %v1645 = vld [vmem:[#allocation2 + $0x58] sm:$0xff]
        %v1646 = vld [vmem:[#allocation2 + $0x60] sm:$0xff]
        %v1647 = vld [vmem:[#allocation2 + $0x68] sm:$0xff]
        %v1648 = vld [vmem:[#allocation2 + $0x70] sm:$0xff]
        %v1649 = vld [vmem:[#allocation2 + $0x78] sm:$0xf]
        %v1650 = vstv %s1633
        %v1651 = vmul.f32 %v1650, %v1634
        %v1652 = vmul.f32 %v1650, %v1635
        %v1653 = vmul.f32 %v1650, %v1636
        %v1654 = vmul.f32 %v1650, %v1637
        %v1655 = vmul.f32 %v1650, %v1638
        %v1656 = vmul.f32 %v1650, %v1639
        %v1657 = vmul.f32 %v1650, %v1640
        %v1658 = vmul.f32 %v1650, %v1641
        %v1659 = vmul.f32 %v1650, %v1642
        %v1660 = vmul.f32 %v1650, %v1643
        %v1661 = vmul.f32 %v1650, %v1644
        %v1662 = vmul.f32 %v1650, %v1645
        %v1663 = vmul.f32 %v1650, %v1646
        %v1664 = vmul.f32 %v1650, %v1647
        %v1665 = vmul.f32 %v1650, %v1648
        %v1666 = vmul.f32 %v1650, %v1649
        %v1667 = vadd.f32 %v1651, 0.0
        %v1668 = vadd.f32 %v1652, 0.0
        %v1669 = vadd.f32 %v1653, 0.0
        %v1670 = vadd.f32 %v1654, 0.0
        %v1671 = vadd.f32 %v1655, 0.0
        %v1672 = vadd.f32 %v1656, 0.0
        %v1673 = vadd.f32 %v1657, 0.0
        %v1674 = vadd.f32 %v1658, 0.0
        %v1675 = vadd.f32 %v1659, 0.0
        %v1676 = vadd.f32 %v1660, 0.0
        %v1677 = vadd.f32 %v1661, 0.0
        %v1678 = vadd.f32 %v1662, 0.0
        %v1679 = vadd.f32 %v1663, 0.0
        %v1680 = vadd.f32 %v1664, 0.0
        %v1681 = vadd.f32 %v1665, 0.0
        %v1682 = vadd.f32 %v1666, 0.0
        %s1683 = sld [smem:[#allocation8 + $0x13]]
        %v1684 = vld [vmem:[%s421] sm:$0xff]
        %v1685 = vld [vmem:[%s421 + $0x8] sm:$0xff]
        %v1686 = vld [vmem:[%s421 + $0x10] sm:$0xff]
        %v1687 = vld [vmem:[%s421 + $0x18] sm:$0xff]
        %v1688 = vld [vmem:[%s421 + $0x20] sm:$0xff]
        %v1689 = vld [vmem:[%s421 + $0x28] sm:$0xff]
        %v1690 = vld [vmem:[%s421 + $0x30] sm:$0xff]
        %v1691 = vld [vmem:[%s421 + $0x38] sm:$0xff]
        %v1692 = vld [vmem:[%s421 + $0x40] sm:$0xff]
        %v1693 = vld [vmem:[%s421 + $0x48] sm:$0xff]
        %v1694 = vld [vmem:[%s421 + $0x50] sm:$0xff]
        %v1695 = vld [vmem:[%s421 + $0x58] sm:$0xff]
        %v1696 = vld [vmem:[%s421 + $0x60] sm:$0xff]
        %v1697 = vld [vmem:[%s421 + $0x68] sm:$0xff]
        %v1698 = vld [vmem:[%s421 + $0x70] sm:$0xff]
        %v1699 = vld [vmem:[%s421 + $0x78] sm:$0xf]
        %v1700 = vstv %s1683
        %v1701 = vmul.f32 %v1700, %v1684
        %v1702 = vmul.f32 %v1700, %v1685
        %v1703 = vmul.f32 %v1700, %v1686
        %v1704 = vmul.f32 %v1700, %v1687
        %v1705 = vmul.f32 %v1700, %v1688
        %v1706 = vmul.f32 %v1700, %v1689
        %v1707 = vmul.f32 %v1700, %v1690
        %v1708 = vmul.f32 %v1700, %v1691
        %v1709 = vmul.f32 %v1700, %v1692
        %v1710 = vmul.f32 %v1700, %v1693
        %v1711 = vmul.f32 %v1700, %v1694
        %v1712 = vmul.f32 %v1700, %v1695
        %v1713 = vmul.f32 %v1700, %v1696
        %v1714 = vmul.f32 %v1700, %v1697
        %v1715 = vmul.f32 %v1700, %v1698
        %v1716 = vmul.f32 %v1700, %v1699
        %v1717 = vadd.f32 %v1667, %v1701
        %v1718 = vadd.f32 %v1668, %v1702
        %v1719 = vadd.f32 %v1669, %v1703
        %v1720 = vadd.f32 %v1670, %v1704
        %v1721 = vadd.f32 %v1671, %v1705
        %v1722 = vadd.f32 %v1672, %v1706
        %v1723 = vadd.f32 %v1673, %v1707
        %v1724 = vadd.f32 %v1674, %v1708
        %v1725 = vadd.f32 %v1675, %v1709
        %v1726 = vadd.f32 %v1676, %v1710
        %v1727 = vadd.f32 %v1677, %v1711
        %v1728 = vadd.f32 %v1678, %v1712
        %v1729 = vadd.f32 %v1679, %v1713
        %v1730 = vadd.f32 %v1680, %v1714
        %v1731 = vadd.f32 %v1681, %v1715
        %v1732 = vadd.f32 %v1682, %v1716
        %s1733 = sld [smem:[#allocation8 + $0x14]]
        %v1734 = vld [vmem:[%s486] sm:$0xff]
        %v1735 = vld [vmem:[%s486 + $0x8] sm:$0xff]
        %v1736 = vld [vmem:[%s486 + $0x10] sm:$0xff]
        %v1737 = vld [vmem:[%s486 + $0x18] sm:$0xff]
        %v1738 = vld [vmem:[%s486 + $0x20] sm:$0xff]
        %v1739 = vld [vmem:[%s486 + $0x28] sm:$0xff]
        %v1740 = vld [vmem:[%s486 + $0x30] sm:$0xff]
        %v1741 = vld [vmem:[%s486 + $0x38] sm:$0xff]
        %v1742 = vld [vmem:[%s486 + $0x40] sm:$0xff]
        %v1743 = vld [vmem:[%s486 + $0x48] sm:$0xff]
        %v1744 = vld [vmem:[%s486 + $0x50] sm:$0xff]
        %v1745 = vld [vmem:[%s486 + $0x58] sm:$0xff]
        %v1746 = vld [vmem:[%s486 + $0x60] sm:$0xff]
        %v1747 = vld [vmem:[%s486 + $0x68] sm:$0xff]
        %v1748 = vld [vmem:[%s486 + $0x70] sm:$0xff]
        %v1749 = vld [vmem:[%s486 + $0x78] sm:$0xf]
        %v1750 = vstv %s1733
        %v1751 = vmul.f32 %v1750, %v1734
        %v1752 = vmul.f32 %v1750, %v1735
        %v1753 = vmul.f32 %v1750, %v1736
        %v1754 = vmul.f32 %v1750, %v1737
        %v1755 = vmul.f32 %v1750, %v1738
        %v1756 = vmul.f32 %v1750, %v1739
        %v1757 = vmul.f32 %v1750, %v1740
        %v1758 = vmul.f32 %v1750, %v1741
        %v1759 = vmul.f32 %v1750, %v1742
        %v1760 = vmul.f32 %v1750, %v1743
        %v1761 = vmul.f32 %v1750, %v1744
        %v1762 = vmul.f32 %v1750, %v1745
        %v1763 = vmul.f32 %v1750, %v1746
        %v1764 = vmul.f32 %v1750, %v1747
        %v1765 = vmul.f32 %v1750, %v1748
        %v1766 = vmul.f32 %v1750, %v1749
        %v1767 = vadd.f32 %v1717, %v1751
        %v1768 = vadd.f32 %v1718, %v1752
        %v1769 = vadd.f32 %v1719, %v1753
        %v1770 = vadd.f32 %v1720, %v1754
        %v1771 = vadd.f32 %v1721, %v1755
        %v1772 = vadd.f32 %v1722, %v1756
        %v1773 = vadd.f32 %v1723, %v1757
        %v1774 = vadd.f32 %v1724, %v1758
        %v1775 = vadd.f32 %v1725, %v1759
        %v1776 = vadd.f32 %v1726, %v1760
        %v1777 = vadd.f32 %v1727, %v1761
        %v1778 = vadd.f32 %v1728, %v1762
        %v1779 = vadd.f32 %v1729, %v1763
        %v1780 = vadd.f32 %v1730, %v1764
        %v1781 = vadd.f32 %v1731, %v1765
        %v1782 = vadd.f32 %v1732, %v1766
        %s1783 = sld [smem:[#allocation8 + $0x15]]
        %v1784 = vld [vmem:[#allocation2 + $0x1] sm:$0xff]
        %v1785 = vld [vmem:[#allocation2 + $0x9] sm:$0xff]
        %v1786 = vld [vmem:[#allocation2 + $0x11] sm:$0xff]
        %v1787 = vld [vmem:[#allocation2 + $0x19] sm:$0xff]
        %v1788 = vld [vmem:[#allocation2 + $0x21] sm:$0xff]
        %v1789 = vld [vmem:[#allocation2 + $0x29] sm:$0xff]
        %v1790 = vld [vmem:[#allocation2 + $0x31] sm:$0xff]
        %v1791 = vld [vmem:[#allocation2 + $0x39] sm:$0xff]
        %v1792 = vld [vmem:[#allocation2 + $0x41] sm:$0xff]
        %v1793 = vld [vmem:[#allocation2 + $0x49] sm:$0xff]
        %v1794 = vld [vmem:[#allocation2 + $0x51] sm:$0xff]
        %v1795 = vld [vmem:[#allocation2 + $0x59] sm:$0xff]
        %v1796 = vld [vmem:[#allocation2 + $0x61] sm:$0xff]
        %v1797 = vld [vmem:[#allocation2 + $0x69] sm:$0xff]
        %v1798 = vld [vmem:[#allocation2 + $0x71] sm:$0xff]
        %v1799 = vld [vmem:[#allocation2 + $0x79] sm:$0xf]
        %v1800 = vstv %s1783
        %v1801 = vmul.f32 %v1800, %v1784
        %v1802 = vmul.f32 %v1800, %v1785
        %v1803 = vmul.f32 %v1800, %v1786
        %v1804 = vmul.f32 %v1800, %v1787
        %v1805 = vmul.f32 %v1800, %v1788
        %v1806 = vmul.f32 %v1800, %v1789
        %v1807 = vmul.f32 %v1800, %v1790
        %v1808 = vmul.f32 %v1800, %v1791
        %v1809 = vmul.f32 %v1800, %v1792
        %v1810 = vmul.f32 %v1800, %v1793
        %v1811 = vmul.f32 %v1800, %v1794
        %v1812 = vmul.f32 %v1800, %v1795
        %v1813 = vmul.f32 %v1800, %v1796
        %v1814 = vmul.f32 %v1800, %v1797
        %v1815 = vmul.f32 %v1800, %v1798
        %v1816 = vmul.f32 %v1800, %v1799
        %v1817 = vadd.f32 %v1767, %v1801
        %v1818 = vadd.f32 %v1768, %v1802
        %v1819 = vadd.f32 %v1769, %v1803
        %v1820 = vadd.f32 %v1770, %v1804
        %v1821 = vadd.f32 %v1771, %v1805
        %v1822 = vadd.f32 %v1772, %v1806
        %v1823 = vadd.f32 %v1773, %v1807
        %v1824 = vadd.f32 %v1774, %v1808
        %v1825 = vadd.f32 %v1775, %v1809
        %v1826 = vadd.f32 %v1776, %v1810
        %v1827 = vadd.f32 %v1777, %v1811
        %v1828 = vadd.f32 %v1778, %v1812
        %v1829 = vadd.f32 %v1779, %v1813
        %v1830 = vadd.f32 %v1780, %v1814
        %v1831 = vadd.f32 %v1781, %v1815
        %v1832 = vadd.f32 %v1782, %v1816
        %s1833 = sld [smem:[#allocation8 + $0x16]]
        %v1834 = vld [vmem:[%s421 + $0x1] sm:$0xff]
        %v1835 = vld [vmem:[%s421 + $0x9] sm:$0xff]
        %v1836 = vld [vmem:[%s421 + $0x11] sm:$0xff]
        %v1837 = vld [vmem:[%s421 + $0x19] sm:$0xff]
        %v1838 = vld [vmem:[%s421 + $0x21] sm:$0xff]
        %v1839 = vld [vmem:[%s421 + $0x29] sm:$0xff]
        %v1840 = vld [vmem:[%s421 + $0x31] sm:$0xff]
        %v1841 = vld [vmem:[%s421 + $0x39] sm:$0xff]
        %v1842 = vld [vmem:[%s421 + $0x41] sm:$0xff]
        %v1843 = vld [vmem:[%s421 + $0x49] sm:$0xff]
        %v1844 = vld [vmem:[%s421 + $0x51] sm:$0xff]
        %v1845 = vld [vmem:[%s421 + $0x59] sm:$0xff]
        %v1846 = vld [vmem:[%s421 + $0x61] sm:$0xff]
        %v1847 = vld [vmem:[%s421 + $0x69] sm:$0xff]
        %v1848 = vld [vmem:[%s421 + $0x71] sm:$0xff]
        %v1849 = vld [vmem:[%s421 + $0x79] sm:$0xf]
        %v1850 = vstv %s1833
        %v1851 = vmul.f32 %v1850, %v1834
        %v1852 = vmul.f32 %v1850, %v1835
        %v1853 = vmul.f32 %v1850, %v1836
        %v1854 = vmul.f32 %v1850, %v1837
        %v1855 = vmul.f32 %v1850, %v1838
        %v1856 = vmul.f32 %v1850, %v1839
        %v1857 = vmul.f32 %v1850, %v1840
        %v1858 = vmul.f32 %v1850, %v1841
        %v1859 = vmul.f32 %v1850, %v1842
        %v1860 = vmul.f32 %v1850, %v1843
        %v1861 = vmul.f32 %v1850, %v1844
        %v1862 = vmul.f32 %v1850, %v1845
        %v1863 = vmul.f32 %v1850, %v1846
        %v1864 = vmul.f32 %v1850, %v1847
        %v1865 = vmul.f32 %v1850, %v1848
        %v1866 = vmul.f32 %v1850, %v1849
        %v1867 = vadd.f32 %v1817, %v1851
        %v1868 = vadd.f32 %v1818, %v1852
        %v1869 = vadd.f32 %v1819, %v1853
        %v1870 = vadd.f32 %v1820, %v1854
        %v1871 = vadd.f32 %v1821, %v1855
        %v1872 = vadd.f32 %v1822, %v1856
        %v1873 = vadd.f32 %v1823, %v1857
        %v1874 = vadd.f32 %v1824, %v1858
        %v1875 = vadd.f32 %v1825, %v1859
        %v1876 = vadd.f32 %v1826, %v1860
        %v1877 = vadd.f32 %v1827, %v1861
        %v1878 = vadd.f32 %v1828, %v1862
        %v1879 = vadd.f32 %v1829, %v1863
        %v1880 = vadd.f32 %v1830, %v1864
        %v1881 = vadd.f32 %v1831, %v1865
        %v1882 = vadd.f32 %v1832, %v1866
        %s1883 = sld [smem:[#allocation8 + $0x17]]
        %v1884 = vld [vmem:[%s486 + $0x1] sm:$0xff]
        %v1885 = vld [vmem:[%s486 + $0x9] sm:$0xff]
        %v1886 = vld [vmem:[%s486 + $0x11] sm:$0xff]
        %v1887 = vld [vmem:[%s486 + $0x19] sm:$0xff]
        %v1888 = vld [vmem:[%s486 + $0x21] sm:$0xff]
        %v1889 = vld [vmem:[%s486 + $0x29] sm:$0xff]
        %v1890 = vld [vmem:[%s486 + $0x31] sm:$0xff]
        %v1891 = vld [vmem:[%s486 + $0x39] sm:$0xff]
        %v1892 = vld [vmem:[%s486 + $0x41] sm:$0xff]
        %v1893 = vld [vmem:[%s486 + $0x49] sm:$0xff]
        %v1894 = vld [vmem:[%s486 + $0x51] sm:$0xff]
        %v1895 = vld [vmem:[%s486 + $0x59] sm:$0xff]
        %v1896 = vld [vmem:[%s486 + $0x61] sm:$0xff]
        %v1897 = vld [vmem:[%s486 + $0x69] sm:$0xff]
        %v1898 = vld [vmem:[%s486 + $0x71] sm:$0xff]
        %v1899 = vld [vmem:[%s486 + $0x79] sm:$0xf]
        %v1900 = vstv %s1883
        %v1901 = vmul.f32 %v1900, %v1884
        %v1902 = vmul.f32 %v1900, %v1885
        %v1903 = vmul.f32 %v1900, %v1886
        %v1904 = vmul.f32 %v1900, %v1887
        %v1905 = vmul.f32 %v1900, %v1888
        %v1906 = vmul.f32 %v1900, %v1889
        %v1907 = vmul.f32 %v1900, %v1890
        %v1908 = vmul.f32 %v1900, %v1891
        %v1909 = vmul.f32 %v1900, %v1892
        %v1910 = vmul.f32 %v1900, %v1893
        %v1911 = vmul.f32 %v1900, %v1894
        %v1912 = vmul.f32 %v1900, %v1895
        %v1913 = vmul.f32 %v1900, %v1896
        %v1914 = vmul.f32 %v1900, %v1897
        %v1915 = vmul.f32 %v1900, %v1898
        %v1916 = vmul.f32 %v1900, %v1899
        %v1917 = vadd.f32 %v1867, %v1901
        %v1918 = vadd.f32 %v1868, %v1902
        %v1919 = vadd.f32 %v1869, %v1903
        %v1920 = vadd.f32 %v1870, %v1904
        %v1921 = vadd.f32 %v1871, %v1905
        %v1922 = vadd.f32 %v1872, %v1906
        %v1923 = vadd.f32 %v1873, %v1907
        %v1924 = vadd.f32 %v1874, %v1908
        %v1925 = vadd.f32 %v1875, %v1909
        %v1926 = vadd.f32 %v1876, %v1910
        %v1927 = vadd.f32 %v1877, %v1911
        %v1928 = vadd.f32 %v1878, %v1912
        %v1929 = vadd.f32 %v1879, %v1913
        %v1930 = vadd.f32 %v1880, %v1914
        %v1931 = vadd.f32 %v1881, %v1915
        %v1932 = vadd.f32 %v1882, %v1916
        %s1933 = sld [smem:[#allocation8 + $0x18]]
        %v1934 = vld [vmem:[#allocation2 + $0x2] sm:$0xff]
        %v1935 = vld [vmem:[#allocation2 + $0xa] sm:$0xff]
        %v1936 = vld [vmem:[#allocation2 + $0x12] sm:$0xff]
        %v1937 = vld [vmem:[#allocation2 + $0x1a] sm:$0xff]
        %v1938 = vld [vmem:[#allocation2 + $0x22] sm:$0xff]
        %v1939 = vld [vmem:[#allocation2 + $0x2a] sm:$0xff]
        %v1940 = vld [vmem:[#allocation2 + $0x32] sm:$0xff]
        %v1941 = vld [vmem:[#allocation2 + $0x3a] sm:$0xff]
        %v1942 = vld [vmem:[#allocation2 + $0x42] sm:$0xff]
        %v1943 = vld [vmem:[#allocation2 + $0x4a] sm:$0xff]
        %v1944 = vld [vmem:[#allocation2 + $0x52] sm:$0xff]
        %v1945 = vld [vmem:[#allocation2 + $0x5a] sm:$0xff]
        %v1946 = vld [vmem:[#allocation2 + $0x62] sm:$0xff]
        %v1947 = vld [vmem:[#allocation2 + $0x6a] sm:$0xff]
        %v1948 = vld [vmem:[#allocation2 + $0x72] sm:$0xff]
        %v1949 = vld [vmem:[#allocation2 + $0x7a] sm:$0xf]
        %v1950 = vstv %s1933
        %v1951 = vmul.f32 %v1950, %v1934
        %v1952 = vmul.f32 %v1950, %v1935
        %v1953 = vmul.f32 %v1950, %v1936
        %v1954 = vmul.f32 %v1950, %v1937
        %v1955 = vmul.f32 %v1950, %v1938
        %v1956 = vmul.f32 %v1950, %v1939
        %v1957 = vmul.f32 %v1950, %v1940
        %v1958 = vmul.f32 %v1950, %v1941
        %v1959 = vmul.f32 %v1950, %v1942
        %v1960 = vmul.f32 %v1950, %v1943
        %v1961 = vmul.f32 %v1950, %v1944
        %v1962 = vmul.f32 %v1950, %v1945
        %v1963 = vmul.f32 %v1950, %v1946
        %v1964 = vmul.f32 %v1950, %v1947
        %v1965 = vmul.f32 %v1950, %v1948
        %v1966 = vmul.f32 %v1950, %v1949
        %v1967 = vadd.f32 %v1917, %v1951
        %v1968 = vadd.f32 %v1918, %v1952
        %v1969 = vadd.f32 %v1919, %v1953
        %v1970 = vadd.f32 %v1920, %v1954
        %v1971 = vadd.f32 %v1921, %v1955
        %v1972 = vadd.f32 %v1922, %v1956
        %v1973 = vadd.f32 %v1923, %v1957
        %v1974 = vadd.f32 %v1924, %v1958
        %v1975 = vadd.f32 %v1925, %v1959
        %v1976 = vadd.f32 %v1926, %v1960
        %v1977 = vadd.f32 %v1927, %v1961
        %v1978 = vadd.f32 %v1928, %v1962
        %v1979 = vadd.f32 %v1929, %v1963
        %v1980 = vadd.f32 %v1930, %v1964
        %v1981 = vadd.f32 %v1931, %v1965
        %v1982 = vadd.f32 %v1932, %v1966
        %s1983 = sld [smem:[#allocation8 + $0x19]]
        %v1984 = vld [vmem:[%s421 + $0x2] sm:$0xff]
        %v1985 = vld [vmem:[%s421 + $0xa] sm:$0xff]
        %v1986 = vld [vmem:[%s421 + $0x12] sm:$0xff]
        %v1987 = vld [vmem:[%s421 + $0x1a] sm:$0xff]
        %v1988 = vld [vmem:[%s421 + $0x22] sm:$0xff]
        %v1989 = vld [vmem:[%s421 + $0x2a] sm:$0xff]
        %v1990 = vld [vmem:[%s421 + $0x32] sm:$0xff]
        %v1991 = vld [vmem:[%s421 + $0x3a] sm:$0xff]
        %v1992 = vld [vmem:[%s421 + $0x42] sm:$0xff]
        %v1993 = vld [vmem:[%s421 + $0x4a] sm:$0xff]
        %v1994 = vld [vmem:[%s421 + $0x52] sm:$0xff]
        %v1995 = vld [vmem:[%s421 + $0x5a] sm:$0xff]
        %v1996 = vld [vmem:[%s421 + $0x62] sm:$0xff]
        %v1997 = vld [vmem:[%s421 + $0x6a] sm:$0xff]
        %v1998 = vld [vmem:[%s421 + $0x72] sm:$0xff]
        %v1999 = vld [vmem:[%s421 + $0x7a] sm:$0xf]
        %v2000 = vstv %s1983
        %v2001 = vmul.f32 %v2000, %v1984
        %v2002 = vmul.f32 %v2000, %v1985
        %v2003 = vmul.f32 %v2000, %v1986
        %v2004 = vmul.f32 %v2000, %v1987
        %v2005 = vmul.f32 %v2000, %v1988
        %v2006 = vmul.f32 %v2000, %v1989
        %v2007 = vmul.f32 %v2000, %v1990
        %v2008 = vmul.f32 %v2000, %v1991
        %v2009 = vmul.f32 %v2000, %v1992
        %v2010 = vmul.f32 %v2000, %v1993
        %v2011 = vmul.f32 %v2000, %v1994
        %v2012 = vmul.f32 %v2000, %v1995
        %v2013 = vmul.f32 %v2000, %v1996
        %v2014 = vmul.f32 %v2000, %v1997
        %v2015 = vmul.f32 %v2000, %v1998
        %v2016 = vmul.f32 %v2000, %v1999
        %v2017 = vadd.f32 %v1967, %v2001
        %v2018 = vadd.f32 %v1968, %v2002
        %v2019 = vadd.f32 %v1969, %v2003
        %v2020 = vadd.f32 %v1970, %v2004
        %v2021 = vadd.f32 %v1971, %v2005
        %v2022 = vadd.f32 %v1972, %v2006
        %v2023 = vadd.f32 %v1973, %v2007
        %v2024 = vadd.f32 %v1974, %v2008
        %v2025 = vadd.f32 %v1975, %v2009
        %v2026 = vadd.f32 %v1976, %v2010
        %v2027 = vadd.f32 %v1977, %v2011
        %v2028 = vadd.f32 %v1978, %v2012
        %v2029 = vadd.f32 %v1979, %v2013
        %v2030 = vadd.f32 %v1980, %v2014
        %v2031 = vadd.f32 %v1981, %v2015
        %v2032 = vadd.f32 %v1982, %v2016
        %s2033 = sld [smem:[#allocation8 + $0x1a]]
        %v2034 = vld [vmem:[%s486 + $0x2] sm:$0xff]
        %v2035 = vld [vmem:[%s486 + $0xa] sm:$0xff]
        %v2036 = vld [vmem:[%s486 + $0x12] sm:$0xff]
        %v2037 = vld [vmem:[%s486 + $0x1a] sm:$0xff]
        %v2038 = vld [vmem:[%s486 + $0x22] sm:$0xff]
        %v2039 = vld [vmem:[%s486 + $0x2a] sm:$0xff]
        %v2040 = vld [vmem:[%s486 + $0x32] sm:$0xff]
        %v2041 = vld [vmem:[%s486 + $0x3a] sm:$0xff]
        %v2042 = vld [vmem:[%s486 + $0x42] sm:$0xff]
        %v2043 = vld [vmem:[%s486 + $0x4a] sm:$0xff]
        %v2044 = vld [vmem:[%s486 + $0x52] sm:$0xff]
        %v2045 = vld [vmem:[%s486 + $0x5a] sm:$0xff]
        %v2046 = vld [vmem:[%s486 + $0x62] sm:$0xff]
        %v2047 = vld [vmem:[%s486 + $0x6a] sm:$0xff]
        %v2048 = vld [vmem:[%s486 + $0x72] sm:$0xff]
        %v2049 = vld [vmem:[%s486 + $0x7a] sm:$0xf]
        %v2050 = vstv %s2033
        %v2051 = vmul.f32 %v2050, %v2034
        %v2052 = vmul.f32 %v2050, %v2035
        %v2053 = vmul.f32 %v2050, %v2036
        %v2054 = vmul.f32 %v2050, %v2037
        %v2055 = vmul.f32 %v2050, %v2038
        %v2056 = vmul.f32 %v2050, %v2039
        %v2057 = vmul.f32 %v2050, %v2040
        %v2058 = vmul.f32 %v2050, %v2041
        %v2059 = vmul.f32 %v2050, %v2042
        %v2060 = vmul.f32 %v2050, %v2043
        %v2061 = vmul.f32 %v2050, %v2044
        %v2062 = vmul.f32 %v2050, %v2045
        %v2063 = vmul.f32 %v2050, %v2046
        %v2064 = vmul.f32 %v2050, %v2047
        %v2065 = vmul.f32 %v2050, %v2048
        %v2066 = vmul.f32 %v2050, %v2049
        %v2067 = vadd.f32 %v2017, %v2051
        %v2068 = vadd.f32 %v2018, %v2052
        %v2069 = vadd.f32 %v2019, %v2053
        %v2070 = vadd.f32 %v2020, %v2054
        %v2071 = vadd.f32 %v2021, %v2055
        %v2072 = vadd.f32 %v2022, %v2056
        %v2073 = vadd.f32 %v2023, %v2057
        %v2074 = vadd.f32 %v2024, %v2058
        %v2075 = vadd.f32 %v2025, %v2059
        %v2076 = vadd.f32 %v2026, %v2060
        %v2077 = vadd.f32 %v2027, %v2061
        %v2078 = vadd.f32 %v2028, %v2062
        %v2079 = vadd.f32 %v2029, %v2063
        %v2080 = vadd.f32 %v2030, %v2064
        %v2081 = vadd.f32 %v2031, %v2065
        %v2082 = vadd.f32 %v2032, %v2066
        %s2083 = sld [smem:[#allocation10 + $0x2]]
        %v2084 = vstv %s2083
        %v2085 = vadd.f32 %v2067, %v2084
        %v2086 = vadd.f32 %v2068, %v2084
        %v2087 = vadd.f32 %v2069, %v2084
        %v2088 = vadd.f32 %v2070, %v2084
        %v2089 = vadd.f32 %v2071, %v2084
        %v2090 = vadd.f32 %v2072, %v2084
        %v2091 = vadd.f32 %v2073, %v2084
        %v2092 = vadd.f32 %v2074, %v2084
        %v2093 = vadd.f32 %v2075, %v2084
        %v2094 = vadd.f32 %v2076, %v2084
        %v2095 = vadd.f32 %v2077, %v2084
        %v2096 = vadd.f32 %v2078, %v2084
        %v2097 = vadd.f32 %v2079, %v2084
        %v2098 = vadd.f32 %v2080, %v2084
        %v2099 = vadd.f32 %v2081, %v2084
        %v2100 = vadd.f32 %v2082, %v2084
        %2101 = vst.msk [vmem:[#allocation3] sm:$0xff] %vm339, %v2085
        %2102 = vst.msk [vmem:[#allocation3 + $0x8] sm:$0xff] %vm339, %v2086
        %2103 = vst.msk [vmem:[#allocation3 + $0x10] sm:$0xff] %vm339, %v2087
        %2104 = vst.msk [vmem:[#allocation3 + $0x18] sm:$0xff] %vm339, %v2088
        %2105 = vst.msk [vmem:[#allocation3 + $0x20] sm:$0xff] %vm339, %v2089
        %2106 = vst.msk [vmem:[#allocation3 + $0x28] sm:$0xff] %vm339, %v2090
        %2107 = vst.msk [vmem:[#allocation3 + $0x30] sm:$0xff] %vm339, %v2091
        %2108 = vst.msk [vmem:[#allocation3 + $0x38] sm:$0xff] %vm339, %v2092
        %2109 = vst.msk [vmem:[#allocation3 + $0x40] sm:$0xff] %vm339, %v2093
        %2110 = vst.msk [vmem:[#allocation3 + $0x48] sm:$0xff] %vm339, %v2094
        %2111 = vst.msk [vmem:[#allocation3 + $0x50] sm:$0xff] %vm339, %v2095
        %2112 = vst.msk [vmem:[#allocation3 + $0x58] sm:$0xff] %vm339, %v2096
        %2113 = vst.msk [vmem:[#allocation3 + $0x60] sm:$0xff] %vm339, %v2097
        %2114 = vst.msk [vmem:[#allocation3 + $0x68] sm:$0xff] %vm339, %v2098
        %2115 = vst.msk [vmem:[#allocation3 + $0x70] sm:$0xff] %vm339, %v2099
        %2116 = vst.msk [vmem:[#allocation3 + $0x78] sm:$0xf] %vm986, %v2100
        %v2117 = vld [vmem:[#allocation3] ss:$2 sm:$0xff]
        %v2118 = vld [vmem:[%s989] ss:$2 sm:$0xff]
        %v2119 = vld [vmem:[%s991] ss:$2 sm:$0xff]
        %v2120 = vld [vmem:[%s993] ss:$2 sm:$0xff]
        %v2121 = vld [vmem:[%s995] ss:$2 sm:$0xff]
        %v2122 = vld [vmem:[%s997] ss:$2 sm:$0xff]
        %v2123 = vld [vmem:[%s999] ss:$2 sm:$0xff]
        %v2124 = vld [vmem:[%s1001] ss:$2 sm:$0x3f]
        %v2125 = vld [vmem:[%s1003] ss:$2 sm:$0xff]
        %v2126 = vld [vmem:[%s1005] ss:$2 sm:$0xff]
        %v2127 = vld [vmem:[%s1007] ss:$2 sm:$0xff]
        %v2128 = vld [vmem:[%s1009] ss:$2 sm:$0xff]
        %v2129 = vld [vmem:[%s1011] ss:$2 sm:$0xff]
        %v2130 = vld [vmem:[%s1013] ss:$2 sm:$0xff]
        %v2131 = vld [vmem:[%s1015] ss:$2 sm:$0xff]
        %v2132 = vld [vmem:[%s1017] ss:$2 sm:$0x3f]
        %v2133 = vmax.f32 %v2117, %v2125
        %v2134 = vmax.f32 %v2118, %v2126
        %v2135 = vmax.f32 %v2119, %v2127
        %v2136 = vmax.f32 %v2120, %v2128
        %v2137 = vmax.f32 %v2121, %v2129
        %v2138 = vmax.f32 %v2122, %v2130
        %v2139 = vmax.f32 %v2123, %v2131
        %v2140 = vmax.f32 %v2124, %v2132
        %2149 = vrot.lane.b32.xlu0 %v2133, 127
        %v2150 = vpop.permute.xlu0 %2149
        %2151 = vrot.lane.b32.xlu0 %v2134, 127
        %v2152 = vpop.permute.xlu0 %2151
        %2153 = vrot.lane.b32.xlu0 %v2135, 127
        %v2154 = vpop.permute.xlu0 %2153
        %2155 = vrot.lane.b32.xlu0 %v2136, 127
        %v2156 = vpop.permute.xlu0 %2155
        %2157 = vrot.lane.b32.xlu0 %v2137, 127
        %v2158 = vpop.permute.xlu0 %2157
        %2159 = vrot.lane.b32.xlu0 %v2138, 127
        %v2160 = vpop.permute.xlu0 %2159
        %2161 = vrot.lane.b32.xlu0 %v2139, 127
        %v2162 = vpop.permute.xlu0 %2161
        %2163 = vrot.lane.b32.xlu0 %v2140, 127
        %v2164 = vpop.permute.xlu0 %2163
        %v2173 = vmax.f32 %v2133, %v2150
        %v2174 = vmax.f32 %v2134, %v2152
        %v2175 = vmax.f32 %v2135, %v2154
        %v2176 = vmax.f32 %v2136, %v2156
        %v2177 = vmax.f32 %v2137, %v2158
        %v2178 = vmax.f32 %v2138, %v2160
        %v2179 = vmax.f32 %v2139, %v2162
        %v2180 = vmax.f32 %v2140, %v2164
        %2181 = vst.msk [vmem:[#allocation4 + $0x7c] sm:$0xff] %vm1067, %v2173
        %2182 = vst.msk [vmem:[#allocation4 + $0x84] sm:$0xff] %vm1067, %v2174
        %2183 = vst.msk [vmem:[#allocation4 + $0x8c] sm:$0xff] %vm1067, %v2175
        %2184 = vst.msk [vmem:[#allocation4 + $0x94] sm:$0xff] %vm1067, %v2176
        %2185 = vst.msk [vmem:[#allocation4 + $0x9c] sm:$0xff] %vm1067, %v2177
        %2186 = vst.msk [vmem:[#allocation4 + $0xa4] sm:$0xff] %vm1067, %v2178
        %2187 = vst.msk [vmem:[#allocation4 + $0xac] sm:$0xff] %vm1067, %v2179
        %2188 = vst.msk [vmem:[#allocation4 + $0xb4] sm:$0x3f] %vm1075, %v2180
        %s2189 = sld [smem:[#allocation8 + $0x1b]]
        %v2190 = vld [vmem:[#allocation2] sm:$0xff]
        %v2191 = vld [vmem:[#allocation2 + $0x8] sm:$0xff]
        %v2192 = vld [vmem:[#allocation2 + $0x10] sm:$0xff]
        %v2193 = vld [vmem:[#allocation2 + $0x18] sm:$0xff]
        %v2194 = vld [vmem:[#allocation2 + $0x20] sm:$0xff]
        %v2195 = vld [vmem:[#allocation2 + $0x28] sm:$0xff]
        %v2196 = vld [vmem:[#allocation2 + $0x30] sm:$0xff]
        %v2197 = vld [vmem:[#allocation2 + $0x38] sm:$0xff]
        %v2198 = vld [vmem:[#allocation2 + $0x40] sm:$0xff]
        %v2199 = vld [vmem:[#allocation2 + $0x48] sm:$0xff]
        %v2200 = vld [vmem:[#allocation2 + $0x50] sm:$0xff]
        %v2201 = vld [vmem:[#allocation2 + $0x58] sm:$0xff]
        %v2202 = vld [vmem:[#allocation2 + $0x60] sm:$0xff]
        %v2203 = vld [vmem:[#allocation2 + $0x68] sm:$0xff]
        %v2204 = vld [vmem:[#allocation2 + $0x70] sm:$0xff]
        %v2205 = vld [vmem:[#allocation2 + $0x78] sm:$0xf]
        %v2206 = vstv %s2189
        %v2207 = vmul.f32 %v2206, %v2190
        %v2208 = vmul.f32 %v2206, %v2191
        %v2209 = vmul.f32 %v2206, %v2192
        %v2210 = vmul.f32 %v2206, %v2193
        %v2211 = vmul.f32 %v2206, %v2194
        %v2212 = vmul.f32 %v2206, %v2195
        %v2213 = vmul.f32 %v2206, %v2196
        %v2214 = vmul.f32 %v2206, %v2197
        %v2215 = vmul.f32 %v2206, %v2198
        %v2216 = vmul.f32 %v2206, %v2199
        %v2217 = vmul.f32 %v2206, %v2200
        %v2218 = vmul.f32 %v2206, %v2201
        %v2219 = vmul.f32 %v2206, %v2202
        %v2220 = vmul.f32 %v2206, %v2203
        %v2221 = vmul.f32 %v2206, %v2204
        %v2222 = vmul.f32 %v2206, %v2205
        %v2223 = vadd.f32 %v2207, 0.0
        %v2224 = vadd.f32 %v2208, 0.0
        %v2225 = vadd.f32 %v2209, 0.0
        %v2226 = vadd.f32 %v2210, 0.0
        %v2227 = vadd.f32 %v2211, 0.0
        %v2228 = vadd.f32 %v2212, 0.0
        %v2229 = vadd.f32 %v2213, 0.0
        %v2230 = vadd.f32 %v2214, 0.0
        %v2231 = vadd.f32 %v2215, 0.0
        %v2232 = vadd.f32 %v2216, 0.0
        %v2233 = vadd.f32 %v2217, 0.0
        %v2234 = vadd.f32 %v2218, 0.0
        %v2235 = vadd.f32 %v2219, 0.0
        %v2236 = vadd.f32 %v2220, 0.0
        %v2237 = vadd.f32 %v2221, 0.0
        %v2238 = vadd.f32 %v2222, 0.0
        %s2239 = sld [smem:[#allocation8 + $0x1c]]
        %v2240 = vld [vmem:[%s421] sm:$0xff]
        %v2241 = vld [vmem:[%s421 + $0x8] sm:$0xff]
        %v2242 = vld [vmem:[%s421 + $0x10] sm:$0xff]
        %v2243 = vld [vmem:[%s421 + $0x18] sm:$0xff]
        %v2244 = vld [vmem:[%s421 + $0x20] sm:$0xff]
        %v2245 = vld [vmem:[%s421 + $0x28] sm:$0xff]
        %v2246 = vld [vmem:[%s421 + $0x30] sm:$0xff]
        %v2247 = vld [vmem:[%s421 + $0x38] sm:$0xff]
        %v2248 = vld [vmem:[%s421 + $0x40] sm:$0xff]
        %v2249 = vld [vmem:[%s421 + $0x48] sm:$0xff]
        %v2250 = vld [vmem:[%s421 + $0x50] sm:$0xff]
        %v2251 = vld [vmem:[%s421 + $0x58] sm:$0xff]
        %v2252 = vld [vmem:[%s421 + $0x60] sm:$0xff]
        %v2253 = vld [vmem:[%s421 + $0x68] sm:$0xff]
        %v2254 = vld [vmem:[%s421 + $0x70] sm:$0xff]
        %v2255 = vld [vmem:[%s421 + $0x78] sm:$0xf]
        %v2256 = vstv %s2239
        %v2257 = vmul.f32 %v2256, %v2240
        %v2258 = vmul.f32 %v2256, %v2241
        %v2259 = vmul.f32 %v2256, %v2242
        %v2260 = vmul.f32 %v2256, %v2243
        %v2261 = vmul.f32 %v2256, %v2244
        %v2262 = vmul.f32 %v2256, %v2245
        %v2263 = vmul.f32 %v2256, %v2246
        %v2264 = vmul.f32 %v2256, %v2247
        %v2265 = vmul.f32 %v2256, %v2248
        %v2266 = vmul.f32 %v2256, %v2249
        %v2267 = vmul.f32 %v2256, %v2250
        %v2268 = vmul.f32 %v2256, %v2251
        %v2269 = vmul.f32 %v2256, %v2252
        %v2270 = vmul.f32 %v2256, %v2253
        %v2271 = vmul.f32 %v2256, %v2254
        %v2272 = vmul.f32 %v2256, %v2255
        %v2273 = vadd.f32 %v2223, %v2257
        %v2274 = vadd.f32 %v2224, %v2258
        %v2275 = vadd.f32 %v2225, %v2259
        %v2276 = vadd.f32 %v2226, %v2260
        %v2277 = vadd.f32 %v2227, %v2261
        %v2278 = vadd.f32 %v2228, %v2262
        %v2279 = vadd.f32 %v2229, %v2263
        %v2280 = vadd.f32 %v2230, %v2264
        %v2281 = vadd.f32 %v2231, %v2265
        %v2282 = vadd.f32 %v2232, %v2266
        %v2283 = vadd.f32 %v2233, %v2267
        %v2284 = vadd.f32 %v2234, %v2268
        %v2285 = vadd.f32 %v2235, %v2269
        %v2286 = vadd.f32 %v2236, %v2270
        %v2287 = vadd.f32 %v2237, %v2271
        %v2288 = vadd.f32 %v2238, %v2272
        %s2289 = sld [smem:[#allocation8 + $0x1d]]
        %v2290 = vld [vmem:[%s486] sm:$0xff]
        %v2291 = vld [vmem:[%s486 + $0x8] sm:$0xff]
        %v2292 = vld [vmem:[%s486 + $0x10] sm:$0xff]
        %v2293 = vld [vmem:[%s486 + $0x18] sm:$0xff]
        %v2294 = vld [vmem:[%s486 + $0x20] sm:$0xff]
        %v2295 = vld [vmem:[%s486 + $0x28] sm:$0xff]
        %v2296 = vld [vmem:[%s486 + $0x30] sm:$0xff]
        %v2297 = vld [vmem:[%s486 + $0x38] sm:$0xff]
        %v2298 = vld [vmem:[%s486 + $0x40] sm:$0xff]
        %v2299 = vld [vmem:[%s486 + $0x48] sm:$0xff]
        %v2300 = vld [vmem:[%s486 + $0x50] sm:$0xff]
        %v2301 = vld [vmem:[%s486 + $0x58] sm:$0xff]
        %v2302 = vld [vmem:[%s486 + $0x60] sm:$0xff]
        %v2303 = vld [vmem:[%s486 + $0x68] sm:$0xff]
        %v2304 = vld [vmem:[%s486 + $0x70] sm:$0xff]
        %v2305 = vld [vmem:[%s486 + $0x78] sm:$0xf]
        %v2306 = vstv %s2289
        %v2307 = vmul.f32 %v2306, %v2290
        %v2308 = vmul.f32 %v2306, %v2291
        %v2309 = vmul.f32 %v2306, %v2292
        %v2310 = vmul.f32 %v2306, %v2293
        %v2311 = vmul.f32 %v2306, %v2294
        %v2312 = vmul.f32 %v2306, %v2295
        %v2313 = vmul.f32 %v2306, %v2296
        %v2314 = vmul.f32 %v2306, %v2297
        %v2315 = vmul.f32 %v2306, %v2298
        %v2316 = vmul.f32 %v2306, %v2299
        %v2317 = vmul.f32 %v2306, %v2300
        %v2318 = vmul.f32 %v2306, %v2301
        %v2319 = vmul.f32 %v2306, %v2302
        %v2320 = vmul.f32 %v2306, %v2303
        %v2321 = vmul.f32 %v2306, %v2304
        %v2322 = vmul.f32 %v2306, %v2305
        %v2323 = vadd.f32 %v2273, %v2307
        %v2324 = vadd.f32 %v2274, %v2308
        %v2325 = vadd.f32 %v2275, %v2309
        %v2326 = vadd.f32 %v2276, %v2310
        %v2327 = vadd.f32 %v2277, %v2311
        %v2328 = vadd.f32 %v2278, %v2312
        %v2329 = vadd.f32 %v2279, %v2313
        %v2330 = vadd.f32 %v2280, %v2314
        %v2331 = vadd.f32 %v2281, %v2315
        %v2332 = vadd.f32 %v2282, %v2316
        %v2333 = vadd.f32 %v2283, %v2317
        %v2334 = vadd.f32 %v2284, %v2318
        %v2335 = vadd.f32 %v2285, %v2319
        %v2336 = vadd.f32 %v2286, %v2320
        %v2337 = vadd.f32 %v2287, %v2321
        %v2338 = vadd.f32 %v2288, %v2322
        %s2339 = sld [smem:[#allocation8 + $0x1e]]
        %v2340 = vld [vmem:[#allocation2 + $0x1] sm:$0xff]
        %v2341 = vld [vmem:[#allocation2 + $0x9] sm:$0xff]
        %v2342 = vld [vmem:[#allocation2 + $0x11] sm:$0xff]
        %v2343 = vld [vmem:[#allocation2 + $0x19] sm:$0xff]
        %v2344 = vld [vmem:[#allocation2 + $0x21] sm:$0xff]
        %v2345 = vld [vmem:[#allocation2 + $0x29] sm:$0xff]
        %v2346 = vld [vmem:[#allocation2 + $0x31] sm:$0xff]
        %v2347 = vld [vmem:[#allocation2 + $0x39] sm:$0xff]
        %v2348 = vld [vmem:[#allocation2 + $0x41] sm:$0xff]
        %v2349 = vld [vmem:[#allocation2 + $0x49] sm:$0xff]
        %v2350 = vld [vmem:[#allocation2 + $0x51] sm:$0xff]
        %v2351 = vld [vmem:[#allocation2 + $0x59] sm:$0xff]
        %v2352 = vld [vmem:[#allocation2 + $0x61] sm:$0xff]
        %v2353 = vld [vmem:[#allocation2 + $0x69] sm:$0xff]
        %v2354 = vld [vmem:[#allocation2 + $0x71] sm:$0xff]
        %v2355 = vld [vmem:[#allocation2 + $0x79] sm:$0xf]
        %v2356 = vstv %s2339
        %v2357 = vmul.f32 %v2356, %v2340
        %v2358 = vmul.f32 %v2356, %v2341
        %v2359 = vmul.f32 %v2356, %v2342
        %v2360 = vmul.f32 %v2356, %v2343
        %v2361 = vmul.f32 %v2356, %v2344
        %v2362 = vmul.f32 %v2356, %v2345
        %v2363 = vmul.f32 %v2356, %v2346
        %v2364 = vmul.f32 %v2356, %v2347
        %v2365 = vmul.f32 %v2356, %v2348
        %v2366 = vmul.f32 %v2356, %v2349
        %v2367 = vmul.f32 %v2356, %v2350
        %v2368 = vmul.f32 %v2356, %v2351
        %v2369 = vmul.f32 %v2356, %v2352
        %v2370 = vmul.f32 %v2356, %v2353
        %v2371 = vmul.f32 %v2356, %v2354
        %v2372 = vmul.f32 %v2356, %v2355
        %v2373 = vadd.f32 %v2323, %v2357
        %v2374 = vadd.f32 %v2324, %v2358
        %v2375 = vadd.f32 %v2325, %v2359
        %v2376 = vadd.f32 %v2326, %v2360
        %v2377 = vadd.f32 %v2327, %v2361
        %v2378 = vadd.f32 %v2328, %v2362
        %v2379 = vadd.f32 %v2329, %v2363
        %v2380 = vadd.f32 %v2330, %v2364
        %v2381 = vadd.f32 %v2331, %v2365
        %v2382 = vadd.f32 %v2332, %v2366
        %v2383 = vadd.f32 %v2333, %v2367
        %v2384 = vadd.f32 %v2334, %v2368
        %v2385 = vadd.f32 %v2335, %v2369
        %v2386 = vadd.f32 %v2336, %v2370
        %v2387 = vadd.f32 %v2337, %v2371
        %v2388 = vadd.f32 %v2338, %v2372
        %s2389 = sld [smem:[#allocation8 + $0x1f]]
        %v2390 = vld [vmem:[%s421 + $0x1] sm:$0xff]
        %v2391 = vld [vmem:[%s421 + $0x9] sm:$0xff]
        %v2392 = vld [vmem:[%s421 + $0x11] sm:$0xff]
        %v2393 = vld [vmem:[%s421 + $0x19] sm:$0xff]
        %v2394 = vld [vmem:[%s421 + $0x21] sm:$0xff]
        %v2395 = vld [vmem:[%s421 + $0x29] sm:$0xff]
        %v2396 = vld [vmem:[%s421 + $0x31] sm:$0xff]
        %v2397 = vld [vmem:[%s421 + $0x39] sm:$0xff]
        %v2398 = vld [vmem:[%s421 + $0x41] sm:$0xff]
        %v2399 = vld [vmem:[%s421 + $0x49] sm:$0xff]
        %v2400 = vld [vmem:[%s421 + $0x51] sm:$0xff]
        %v2401 = vld [vmem:[%s421 + $0x59] sm:$0xff]
        %v2402 = vld [vmem:[%s421 + $0x61] sm:$0xff]
        %v2403 = vld [vmem:[%s421 + $0x69] sm:$0xff]
        %v2404 = vld [vmem:[%s421 + $0x71] sm:$0xff]
        %v2405 = vld [vmem:[%s421 + $0x79] sm:$0xf]
        %v2406 = vstv %s2389
        %v2407 = vmul.f32 %v2406, %v2390
        %v2408 = vmul.f32 %v2406, %v2391
        %v2409 = vmul.f32 %v2406, %v2392
        %v2410 = vmul.f32 %v2406, %v2393
        %v2411 = vmul.f32 %v2406, %v2394
        %v2412 = vmul.f32 %v2406, %v2395
        %v2413 = vmul.f32 %v2406, %v2396
        %v2414 = vmul.f32 %v2406, %v2397
        %v2415 = vmul.f32 %v2406, %v2398
        %v2416 = vmul.f32 %v2406, %v2399
        %v2417 = vmul.f32 %v2406, %v2400
        %v2418 = vmul.f32 %v2406, %v2401
        %v2419 = vmul.f32 %v2406, %v2402
        %v2420 = vmul.f32 %v2406, %v2403
        %v2421 = vmul.f32 %v2406, %v2404
        %v2422 = vmul.f32 %v2406, %v2405
        %v2423 = vadd.f32 %v2373, %v2407
        %v2424 = vadd.f32 %v2374, %v2408
        %v2425 = vadd.f32 %v2375, %v2409
        %v2426 = vadd.f32 %v2376, %v2410
        %v2427 = vadd.f32 %v2377, %v2411
        %v2428 = vadd.f32 %v2378, %v2412
        %v2429 = vadd.f32 %v2379, %v2413
        %v2430 = vadd.f32 %v2380, %v2414
        %v2431 = vadd.f32 %v2381, %v2415
        %v2432 = vadd.f32 %v2382, %v2416
        %v2433 = vadd.f32 %v2383, %v2417
        %v2434 = vadd.f32 %v2384, %v2418
        %v2435 = vadd.f32 %v2385, %v2419
        %v2436 = vadd.f32 %v2386, %v2420
        %v2437 = vadd.f32 %v2387, %v2421
        %v2438 = vadd.f32 %v2388, %v2422
        %s2439 = sld [smem:[#allocation8 + $0x20]]
        %v2440 = vld [vmem:[%s486 + $0x1] sm:$0xff]
        %v2441 = vld [vmem:[%s486 + $0x9] sm:$0xff]
        %v2442 = vld [vmem:[%s486 + $0x11] sm:$0xff]
        %v2443 = vld [vmem:[%s486 + $0x19] sm:$0xff]
        %v2444 = vld [vmem:[%s486 + $0x21] sm:$0xff]
        %v2445 = vld [vmem:[%s486 + $0x29] sm:$0xff]
        %v2446 = vld [vmem:[%s486 + $0x31] sm:$0xff]
        %v2447 = vld [vmem:[%s486 + $0x39] sm:$0xff]
        %v2448 = vld [vmem:[%s486 + $0x41] sm:$0xff]
        %v2449 = vld [vmem:[%s486 + $0x49] sm:$0xff]
        %v2450 = vld [vmem:[%s486 + $0x51] sm:$0xff]
        %v2451 = vld [vmem:[%s486 + $0x59] sm:$0xff]
        %v2452 = vld [vmem:[%s486 + $0x61] sm:$0xff]
        %v2453 = vld [vmem:[%s486 + $0x69] sm:$0xff]
        %v2454 = vld [vmem:[%s486 + $0x71] sm:$0xff]
        %v2455 = vld [vmem:[%s486 + $0x79] sm:$0xf]
        %v2456 = vstv %s2439
        %v2457 = vmul.f32 %v2456, %v2440
        %v2458 = vmul.f32 %v2456, %v2441
        %v2459 = vmul.f32 %v2456, %v2442
        %v2460 = vmul.f32 %v2456, %v2443
        %v2461 = vmul.f32 %v2456, %v2444
        %v2462 = vmul.f32 %v2456, %v2445
        %v2463 = vmul.f32 %v2456, %v2446
        %v2464 = vmul.f32 %v2456, %v2447
        %v2465 = vmul.f32 %v2456, %v2448
        %v2466 = vmul.f32 %v2456, %v2449
        %v2467 = vmul.f32 %v2456, %v2450
        %v2468 = vmul.f32 %v2456, %v2451
        %v2469 = vmul.f32 %v2456, %v2452
        %v2470 = vmul.f32 %v2456, %v2453
        %v2471 = vmul.f32 %v2456, %v2454
        %v2472 = vmul.f32 %v2456, %v2455
        %v2473 = vadd.f32 %v2423, %v2457
        %v2474 = vadd.f32 %v2424, %v2458
        %v2475 = vadd.f32 %v2425, %v2459
        %v2476 = vadd.f32 %v2426, %v2460
        %v2477 = vadd.f32 %v2427, %v2461
        %v2478 = vadd.f32 %v2428, %v2462
        %v2479 = vadd.f32 %v2429, %v2463
        %v2480 = vadd.f32 %v2430, %v2464
        %v2481 = vadd.f32 %v2431, %v2465
        %v2482 = vadd.f32 %v2432, %v2466
        %v2483 = vadd.f32 %v2433, %v2467
        %v2484 = vadd.f32 %v2434, %v2468
        %v2485 = vadd.f32 %v2435, %v2469
        %v2486 = vadd.f32 %v2436, %v2470
        %v2487 = vadd.f32 %v2437, %v2471
        %v2488 = vadd.f32 %v2438, %v2472
        %s2489 = sld [smem:[#allocation8 + $0x21]]
        %v2490 = vld [vmem:[#allocation2 + $0x2] sm:$0xff]
        %v2491 = vld [vmem:[#allocation2 + $0xa] sm:$0xff]
        %v2492 = vld [vmem:[#allocation2 + $0x12] sm:$0xff]
        %v2493 = vld [vmem:[#allocation2 + $0x1a] sm:$0xff]
        %v2494 = vld [vmem:[#allocation2 + $0x22] sm:$0xff]
        %v2495 = vld [vmem:[#allocation2 + $0x2a] sm:$0xff]
        %v2496 = vld [vmem:[#allocation2 + $0x32] sm:$0xff]
        %v2497 = vld [vmem:[#allocation2 + $0x3a] sm:$0xff]
        %v2498 = vld [vmem:[#allocation2 + $0x42] sm:$0xff]
        %v2499 = vld [vmem:[#allocation2 + $0x4a] sm:$0xff]
        %v2500 = vld [vmem:[#allocation2 + $0x52] sm:$0xff]
        %v2501 = vld [vmem:[#allocation2 + $0x5a] sm:$0xff]
        %v2502 = vld [vmem:[#allocation2 + $0x62] sm:$0xff]
        %v2503 = vld [vmem:[#allocation2 + $0x6a] sm:$0xff]
        %v2504 = vld [vmem:[#allocation2 + $0x72] sm:$0xff]
        %v2505 = vld [vmem:[#allocation2 + $0x7a] sm:$0xf]
        %v2506 = vstv %s2489
        %v2507 = vmul.f32 %v2506, %v2490
        %v2508 = vmul.f32 %v2506, %v2491
        %v2509 = vmul.f32 %v2506, %v2492
        %v2510 = vmul.f32 %v2506, %v2493
        %v2511 = vmul.f32 %v2506, %v2494
        %v2512 = vmul.f32 %v2506, %v2495
        %v2513 = vmul.f32 %v2506, %v2496
        %v2514 = vmul.f32 %v2506, %v2497
        %v2515 = vmul.f32 %v2506, %v2498
        %v2516 = vmul.f32 %v2506, %v2499
        %v2517 = vmul.f32 %v2506, %v2500
        %v2518 = vmul.f32 %v2506, %v2501
        %v2519 = vmul.f32 %v2506, %v2502
        %v2520 = vmul.f32 %v2506, %v2503
        %v2521 = vmul.f32 %v2506, %v2504
        %v2522 = vmul.f32 %v2506, %v2505
        %v2523 = vadd.f32 %v2473, %v2507
        %v2524 = vadd.f32 %v2474, %v2508
        %v2525 = vadd.f32 %v2475, %v2509
        %v2526 = vadd.f32 %v2476, %v2510
        %v2527 = vadd.f32 %v2477, %v2511
        %v2528 = vadd.f32 %v2478, %v2512
        %v2529 = vadd.f32 %v2479, %v2513
        %v2530 = vadd.f32 %v2480, %v2514
        %v2531 = vadd.f32 %v2481, %v2515
        %v2532 = vadd.f32 %v2482, %v2516
        %v2533 = vadd.f32 %v2483, %v2517
        %v2534 = vadd.f32 %v2484, %v2518
        %v2535 = vadd.f32 %v2485, %v2519
        %v2536 = vadd.f32 %v2486, %v2520
        %v2537 = vadd.f32 %v2487, %v2521
        %v2538 = vadd.f32 %v2488, %v2522
        %s2539 = sld [smem:[#allocation8 + $0x22]]
        %v2540 = vld [vmem:[%s421 + $0x2] sm:$0xff]
        %v2541 = vld [vmem:[%s421 + $0xa] sm:$0xff]
        %v2542 = vld [vmem:[%s421 + $0x12] sm:$0xff]
        %v2543 = vld [vmem:[%s421 + $0x1a] sm:$0xff]
        %v2544 = vld [vmem:[%s421 + $0x22] sm:$0xff]
        %v2545 = vld [vmem:[%s421 + $0x2a] sm:$0xff]
        %v2546 = vld [vmem:[%s421 + $0x32] sm:$0xff]
        %v2547 = vld [vmem:[%s421 + $0x3a] sm:$0xff]
        %v2548 = vld [vmem:[%s421 + $0x42] sm:$0xff]
        %v2549 = vld [vmem:[%s421 + $0x4a] sm:$0xff]
        %v2550 = vld [vmem:[%s421 + $0x52] sm:$0xff]
        %v2551 = vld [vmem:[%s421 + $0x5a] sm:$0xff]
        %v2552 = vld [vmem:[%s421 + $0x62] sm:$0xff]
        %v2553 = vld [vmem:[%s421 + $0x6a] sm:$0xff]
        %v2554 = vld [vmem:[%s421 + $0x72] sm:$0xff]
        %v2555 = vld [vmem:[%s421 + $0x7a] sm:$0xf]
        %v2556 = vstv %s2539
        %v2557 = vmul.f32 %v2556, %v2540
        %v2558 = vmul.f32 %v2556, %v2541
        %v2559 = vmul.f32 %v2556, %v2542
        %v2560 = vmul.f32 %v2556, %v2543
        %v2561 = vmul.f32 %v2556, %v2544
        %v2562 = vmul.f32 %v2556, %v2545
        %v2563 = vmul.f32 %v2556, %v2546
        %v2564 = vmul.f32 %v2556, %v2547
        %v2565 = vmul.f32 %v2556, %v2548
        %v2566 = vmul.f32 %v2556, %v2549
        %v2567 = vmul.f32 %v2556, %v2550
        %v2568 = vmul.f32 %v2556, %v2551
        %v2569 = vmul.f32 %v2556, %v2552
        %v2570 = vmul.f32 %v2556, %v2553
        %v2571 = vmul.f32 %v2556, %v2554
        %v2572 = vmul.f32 %v2556, %v2555
        %v2573 = vadd.f32 %v2523, %v2557
        %v2574 = vadd.f32 %v2524, %v2558
        %v2575 = vadd.f32 %v2525, %v2559
        %v2576 = vadd.f32 %v2526, %v2560
        %v2577 = vadd.f32 %v2527, %v2561
        %v2578 = vadd.f32 %v2528, %v2562
        %v2579 = vadd.f32 %v2529, %v2563
        %v2580 = vadd.f32 %v2530, %v2564
        %v2581 = vadd.f32 %v2531, %v2565
        %v2582 = vadd.f32 %v2532, %v2566
        %v2583 = vadd.f32 %v2533, %v2567
        %v2584 = vadd.f32 %v2534, %v2568
        %v2585 = vadd.f32 %v2535, %v2569
        %v2586 = vadd.f32 %v2536, %v2570
        %v2587 = vadd.f32 %v2537, %v2571
        %v2588 = vadd.f32 %v2538, %v2572
        %s2589 = sld [smem:[#allocation8 + $0x23]]
        %v2590 = vld [vmem:[%s486 + $0x2] sm:$0xff]
        %v2591 = vld [vmem:[%s486 + $0xa] sm:$0xff]
        %v2592 = vld [vmem:[%s486 + $0x12] sm:$0xff]
        %v2593 = vld [vmem:[%s486 + $0x1a] sm:$0xff]
        %v2594 = vld [vmem:[%s486 + $0x22] sm:$0xff]
        %v2595 = vld [vmem:[%s486 + $0x2a] sm:$0xff]
        %v2596 = vld [vmem:[%s486 + $0x32] sm:$0xff]
        %v2597 = vld [vmem:[%s486 + $0x3a] sm:$0xff]
        %v2598 = vld [vmem:[%s486 + $0x42] sm:$0xff]
        %v2599 = vld [vmem:[%s486 + $0x4a] sm:$0xff]
        %v2600 = vld [vmem:[%s486 + $0x52] sm:$0xff]
        %v2601 = vld [vmem:[%s486 + $0x5a] sm:$0xff]
        %v2602 = vld [vmem:[%s486 + $0x62] sm:$0xff]
        %v2603 = vld [vmem:[%s486 + $0x6a] sm:$0xff]
        %v2604 = vld [vmem:[%s486 + $0x72] sm:$0xff]
        %v2605 = vld [vmem:[%s486 + $0x7a] sm:$0xf]
        %v2606 = vstv %s2589
        %v2607 = vmul.f32 %v2606, %v2590
        %v2608 = vmul.f32 %v2606, %v2591
        %v2609 = vmul.f32 %v2606, %v2592
        %v2610 = vmul.f32 %v2606, %v2593
        %v2611 = vmul.f32 %v2606, %v2594
        %v2612 = vmul.f32 %v2606, %v2595
        %v2613 = vmul.f32 %v2606, %v2596
        %v2614 = vmul.f32 %v2606, %v2597
        %v2615 = vmul.f32 %v2606, %v2598
        %v2616 = vmul.f32 %v2606, %v2599
        %v2617 = vmul.f32 %v2606, %v2600
        %v2618 = vmul.f32 %v2606, %v2601
        %v2619 = vmul.f32 %v2606, %v2602
        %v2620 = vmul.f32 %v2606, %v2603
        %v2621 = vmul.f32 %v2606, %v2604
        %v2622 = vmul.f32 %v2606, %v2605
        %v2623 = vadd.f32 %v2573, %v2607
        %v2624 = vadd.f32 %v2574, %v2608
        %v2625 = vadd.f32 %v2575, %v2609
        %v2626 = vadd.f32 %v2576, %v2610
        %v2627 = vadd.f32 %v2577, %v2611
        %v2628 = vadd.f32 %v2578, %v2612
        %v2629 = vadd.f32 %v2579, %v2613
        %v2630 = vadd.f32 %v2580, %v2614
        %v2631 = vadd.f32 %v2581, %v2615
        %v2632 = vadd.f32 %v2582, %v2616
        %v2633 = vadd.f32 %v2583, %v2617
        %v2634 = vadd.f32 %v2584, %v2618
        %v2635 = vadd.f32 %v2585, %v2619
        %v2636 = vadd.f32 %v2586, %v2620
        %v2637 = vadd.f32 %v2587, %v2621
        %v2638 = vadd.f32 %v2588, %v2622
        %s2639 = sld [smem:[#allocation10 + $0x3]]
        %v2640 = vstv %s2639
        %v2641 = vadd.f32 %v2623, %v2640
        %v2642 = vadd.f32 %v2624, %v2640
        %v2643 = vadd.f32 %v2625, %v2640
        %v2644 = vadd.f32 %v2626, %v2640
        %v2645 = vadd.f32 %v2627, %v2640
        %v2646 = vadd.f32 %v2628, %v2640
        %v2647 = vadd.f32 %v2629, %v2640
        %v2648 = vadd.f32 %v2630, %v2640
        %v2649 = vadd.f32 %v2631, %v2640
        %v2650 = vadd.f32 %v2632, %v2640
        %v2651 = vadd.f32 %v2633, %v2640
        %v2652 = vadd.f32 %v2634, %v2640
        %v2653 = vadd.f32 %v2635, %v2640
        %v2654 = vadd.f32 %v2636, %v2640
        %v2655 = vadd.f32 %v2637, %v2640
        %v2656 = vadd.f32 %v2638, %v2640
        %2657 = vst.msk [vmem:[#allocation3] sm:$0xff] %vm339, %v2641
        %2658 = vst.msk [vmem:[#allocation3 + $0x8] sm:$0xff] %vm339, %v2642
        %2659 = vst.msk [vmem:[#allocation3 + $0x10] sm:$0xff] %vm339, %v2643
        %2660 = vst.msk [vmem:[#allocation3 + $0x18] sm:$0xff] %vm339, %v2644
        %2661 = vst.msk [vmem:[#allocation3 + $0x20] sm:$0xff] %vm339, %v2645
        %2662 = vst.msk [vmem:[#allocation3 + $0x28] sm:$0xff] %vm339, %v2646
        %2663 = vst.msk [vmem:[#allocation3 + $0x30] sm:$0xff] %vm339, %v2647
        %2664 = vst.msk [vmem:[#allocation3 + $0x38] sm:$0xff] %vm339, %v2648
        %2665 = vst.msk [vmem:[#allocation3 + $0x40] sm:$0xff] %vm339, %v2649
        %2666 = vst.msk [vmem:[#allocation3 + $0x48] sm:$0xff] %vm339, %v2650
        %2667 = vst.msk [vmem:[#allocation3 + $0x50] sm:$0xff] %vm339, %v2651
        %2668 = vst.msk [vmem:[#allocation3 + $0x58] sm:$0xff] %vm339, %v2652
        %2669 = vst.msk [vmem:[#allocation3 + $0x60] sm:$0xff] %vm339, %v2653
        %2670 = vst.msk [vmem:[#allocation3 + $0x68] sm:$0xff] %vm339, %v2654
        %2671 = vst.msk [vmem:[#allocation3 + $0x70] sm:$0xff] %vm339, %v2655
        %2672 = vst.msk [vmem:[#allocation3 + $0x78] sm:$0xf] %vm986, %v2656
        %v2673 = vld [vmem:[#allocation3] ss:$2 sm:$0xff]
        %v2674 = vld [vmem:[%s989] ss:$2 sm:$0xff]
        %v2675 = vld [vmem:[%s991] ss:$2 sm:$0xff]
        %v2676 = vld [vmem:[%s993] ss:$2 sm:$0xff]
        %v2677 = vld [vmem:[%s995] ss:$2 sm:$0xff]
        %v2678 = vld [vmem:[%s997] ss:$2 sm:$0xff]
        %v2679 = vld [vmem:[%s999] ss:$2 sm:$0xff]
        %v2680 = vld [vmem:[%s1001] ss:$2 sm:$0x3f]
        %v2681 = vld [vmem:[%s1003] ss:$2 sm:$0xff]
        %v2682 = vld [vmem:[%s1005] ss:$2 sm:$0xff]
        %v2683 = vld [vmem:[%s1007] ss:$2 sm:$0xff]
        %v2684 = vld [vmem:[%s1009] ss:$2 sm:$0xff]
        %v2685 = vld [vmem:[%s1011] ss:$2 sm:$0xff]
        %v2686 = vld [vmem:[%s1013] ss:$2 sm:$0xff]
        %v2687 = vld [vmem:[%s1015] ss:$2 sm:$0xff]
        %v2688 = vld [vmem:[%s1017] ss:$2 sm:$0x3f]
        %v2689 = vmax.f32 %v2673, %v2681
        %v2690 = vmax.f32 %v2674, %v2682
        %v2691 = vmax.f32 %v2675, %v2683
        %v2692 = vmax.f32 %v2676, %v2684
        %v2693 = vmax.f32 %v2677, %v2685
        %v2694 = vmax.f32 %v2678, %v2686
        %v2695 = vmax.f32 %v2679, %v2687
        %v2696 = vmax.f32 %v2680, %v2688
        %2705 = vrot.lane.b32.xlu0 %v2689, 127
        %v2706 = vpop.permute.xlu0 %2705
        %2707 = vrot.lane.b32.xlu0 %v2690, 127
        %v2708 = vpop.permute.xlu0 %2707
        %2709 = vrot.lane.b32.xlu0 %v2691, 127
        %v2710 = vpop.permute.xlu0 %2709
        %2711 = vrot.lane.b32.xlu0 %v2692, 127
        %v2712 = vpop.permute.xlu0 %2711
        %2713 = vrot.lane.b32.xlu0 %v2693, 127
        %v2714 = vpop.permute.xlu0 %2713
        %2715 = vrot.lane.b32.xlu0 %v2694, 127
        %v2716 = vpop.permute.xlu0 %2715
        %2717 = vrot.lane.b32.xlu0 %v2695, 127
        %v2718 = vpop.permute.xlu0 %2717
        %2719 = vrot.lane.b32.xlu0 %v2696, 127
        %v2720 = vpop.permute.xlu0 %2719
        %v2729 = vmax.f32 %v2689, %v2706
        %v2730 = vmax.f32 %v2690, %v2708
        %v2731 = vmax.f32 %v2691, %v2710
        %v2732 = vmax.f32 %v2692, %v2712
        %v2733 = vmax.f32 %v2693, %v2714
        %v2734 = vmax.f32 %v2694, %v2716
        %v2735 = vmax.f32 %v2695, %v2718
        %v2736 = vmax.f32 %v2696, %v2720
        %2737 = vst.msk [vmem:[#allocation4 + $0xba] sm:$0xff] %vm1067, %v2729
        %2738 = vst.msk [vmem:[#allocation4 + $0xc2] sm:$0xff] %vm1067, %v2730
        %2739 = vst.msk [vmem:[#allocation4 + $0xca] sm:$0xff] %vm1067, %v2731
        %2740 = vst.msk [vmem:[#allocation4 + $0xd2] sm:$0xff] %vm1067, %v2732
        %2741 = vst.msk [vmem:[#allocation4 + $0xda] sm:$0xff] %vm1067, %v2733
        %2742 = vst.msk [vmem:[#allocation4 + $0xe2] sm:$0xff] %vm1067, %v2734
        %2743 = vst.msk [vmem:[#allocation4 + $0xea] sm:$0xff] %vm1067, %v2735
        %2744 = vst.msk [vmem:[#allocation4 + $0xf2] sm:$0x3f] %vm1075, %v2736
        %v2745 = vld [vmem:[#allocation4] sm:$0xff]
        %v2746 = vld [vmem:[#allocation4 + $0x8] sm:$0xff]
        %v2747 = vld [vmem:[#allocation4 + $0x10] sm:$0xff]
        %v2748 = vld [vmem:[#allocation4 + $0x18] sm:$0xff]
        %v2749 = vld [vmem:[#allocation4 + $0x20] sm:$0xff]
        %v2750 = vld [vmem:[#allocation4 + $0x28] sm:$0xff]
        %v2751 = vld [vmem:[#allocation4 + $0x30] sm:$0xff]
        %v2752 = vld [vmem:[#allocation4 + $0x38] sm:$0xff]
        %v2753 = vld [vmem:[#allocation4 + $0x40] sm:$0xff]
        %v2754 = vld [vmem:[#allocation4 + $0x48] sm:$0xff]
        %v2755 = vld [vmem:[#allocation4 + $0x50] sm:$0xff]
        %v2756 = vld [vmem:[#allocation4 + $0x58] sm:$0xff]
        %v2757 = vld [vmem:[#allocation4 + $0x60] sm:$0xff]
        %v2758 = vld [vmem:[#allocation4 + $0x68] sm:$0xff]
        %v2759 = vld [vmem:[#allocation4 + $0x70] sm:$0xff]
        %v2760 = vld [vmem:[#allocation4 + $0x78] sm:$0xff]
        %v2761 = vld [vmem:[#allocation4 + $0x80] sm:$0xff]
        %v2762 = vld [vmem:[#allocation4 + $0x88] sm:$0xff]
        %v2763 = vld [vmem:[#allocation4 + $0x90] sm:$0xff]
        %v2764 = vld [vmem:[#allocation4 + $0x98] sm:$0xff]
        %v2765 = vld [vmem:[#allocation4 + $0xa0] sm:$0xff]
        %v2766 = vld [vmem:[#allocation4 + $0xa8] sm:$0xff]
        %v2767 = vld [vmem:[#allocation4 + $0xb0] sm:$0xff]
        %v2768 = vld [vmem:[#allocation4 + $0xb8] sm:$0xff]
        %v2769 = vld [vmem:[#allocation4 + $0xc0] sm:$0xff]
        %v2770 = vld [vmem:[#allocation4 + $0xc8] sm:$0xff]
        %v2771 = vld [vmem:[#allocation4 + $0xd0] sm:$0xff]
        %v2772 = vld [vmem:[#allocation4 + $0xd8] sm:$0xff]
        %v2773 = vld [vmem:[#allocation4 + $0xe0] sm:$0xff]
        %v2774 = vld [vmem:[#allocation4 + $0xe8] sm:$0xff]
        %v2775 = vld [vmem:[#allocation4 + $0xf0] sm:$0xff]
        %v2776 = vld [vmem:[%s5] sm:$0xff]
        %v2777 = vld [vmem:[%s5 + $0x8] sm:$0xff]
        %v2778 = vld [vmem:[%s5 + $0x10] sm:$0xff]
        %v2779 = vld [vmem:[%s5 + $0x18] sm:$0xff]
        %v2780 = vld [vmem:[%s5 + $0x20] sm:$0xff]
        %v2781 = vld [vmem:[%s5 + $0x28] sm:$0xff]
        %v2782 = vld [vmem:[%s5 + $0x30] sm:$0xff]
        %v2783 = vld [vmem:[%s5 + $0x38] sm:$0xff]
        %v2784 = vld [vmem:[%s5 + $0x40] sm:$0xff]
        %v2785 = vld [vmem:[%s5 + $0x48] sm:$0xff]
        %v2786 = vld [vmem:[%s5 + $0x50] sm:$0xff]
        %v2787 = vld [vmem:[%s5 + $0x58] sm:$0xff]
        %v2788 = vld [vmem:[%s5 + $0x60] sm:$0xff]
        %v2789 = vld [vmem:[%s5 + $0x68] sm:$0xff]
        %v2790 = vld [vmem:[%s5 + $0x70] sm:$0xff]
        %v2791 = vld [vmem:[%s5 + $0x78] sm:$0x7]
        %v2793 = vsel %vm1067, %v2745, 0
        %v2796 = vsel %vm1067, %v2746, 0
        %v2799 = vsel %vm1067, %v2747, 0
        %v2802 = vsel %vm1067, %v2748, 0
        %v2805 = vsel %vm1067, %v2749, 0
        %v2808 = vsel %vm1067, %v2750, 0
        %v2811 = vsel %vm1067, %v2751, 0
        %v2814 = vsel %vm1067, %v2752, 0
        %v2817 = vsel %vm1067, %v2753, 0
        %v2820 = vsel %vm1067, %v2754, 0
        %v2823 = vsel %vm1067, %v2755, 0
        %v2826 = vsel %vm1067, %v2756, 0
        %v2829 = vsel %vm1067, %v2757, 0
        %v2832 = vsel %vm1067, %v2758, 0
        %v2835 = vsel %vm1067, %v2759, 0
        %v2838 = vsel %vm1067, %v2760, 0
        %v2841 = vsel %vm1067, %v2761, 0
        %v2844 = vsel %vm1067, %v2762, 0
        %v2847 = vsel %vm1067, %v2763, 0
        %v2850 = vsel %vm1067, %v2764, 0
        %v2853 = vsel %vm1067, %v2765, 0
        %v2856 = vsel %vm1067, %v2766, 0
        %v2859 = vsel %vm1067, %v2767, 0
        %v2862 = vsel %vm1067, %v2768, 0
        %v2865 = vsel %vm1067, %v2769, 0
        %v2868 = vsel %vm1067, %v2770, 0
        %v2871 = vsel %vm1067, %v2771, 0
        %v2874 = vsel %vm1067, %v2772, 0
        %v2877 = vsel %vm1067, %v2773, 0
        %v2880 = vsel %vm1067, %v2774, 0
        %v2883 = vsel %vm1067, %v2775, 0
        %vm2885 = vcmask 1042432
        %v2887 = vsel %vm2885, %v2791, 0
        %2889 = vmatprep.subr.mxu0 0.0
        %2890 = vmatpush1.msra.mxu0 %v2776
        %2891 = vmatprep.subr.mxu0 0.0
        %2892 = vmatpush1.msra.mxu0 %v2777
        %2893 = vmatprep.subr.mxu0 0.0
        %2894 = vmatpush1.msra.mxu0 %v2778
        %2895 = vmatprep.subr.mxu0 0.0
        %2896 = vmatpush1.msra.mxu0 %v2779
        %2897 = vmatprep.subr.mxu0 0.0
        %2898 = vmatpush1.msra.mxu0 %v2780
        %2899 = vmatprep.subr.mxu0 0.0
        %2900 = vmatpush1.msra.mxu0 %v2781
        %2901 = vmatprep.subr.mxu0 0.0
        %2902 = vmatpush1.msra.mxu0 %v2782
        %2903 = vmatprep.subr.mxu0 0.0
        %2904 = vmatpush1.msra.mxu0 %v2783
        %2905 = vmatprep.subr.mxu0 0.0
        %2906 = vmatpush1.msra.mxu0 %v2784
        %2907 = vmatprep.subr.mxu0 0.0
        %2908 = vmatpush1.msra.mxu0 %v2785
        %2909 = vmatprep.subr.mxu0 0.0
        %2910 = vmatpush1.msra.mxu0 %v2786
        %2911 = vmatprep.subr.mxu0 0.0
        %2912 = vmatpush1.msra.mxu0 %v2787
        %2913 = vmatprep.subr.mxu0 0.0
        %2914 = vmatpush1.msra.mxu0 %v2788
        %2915 = vmatprep.subr.mxu0 0.0
        %2916 = vmatpush1.msra.mxu0 %v2789
        %2917 = vmatprep.subr.mxu0 0.0
        %2918 = vmatpush1.msra.mxu0 %v2790
        %2919 = vmatprep.subr.mxu0 0.0
        %2920 = vmatpush1.msra.mxu0 %v2887
        %2921 = vmatprep.subr.mxu0 0.0
        %2922 = vmatpush1.msra.mxu0 0.0
        %2923 = vmatprep.subr.mxu0 0.0
        %2924 = vmatpush1.msra.mxu0 0.0
        %2925 = vmatprep.subr.mxu0 0.0
        %2926 = vmatpush1.msra.mxu0 0.0
        %2927 = vmatprep.subr.mxu0 0.0
        %2928 = vmatpush1.msra.mxu0 0.0
        %2929 = vmatprep.subr.mxu0 0.0
        %2930 = vmatpush1.msra.mxu0 0.0
        %2931 = vmatprep.subr.mxu0 0.0
        %2932 = vmatpush1.msra.mxu0 0.0
        %2933 = vmatprep.subr.mxu0 0.0
        %2934 = vmatpush1.msra.mxu0 0.0
        %2935 = vmatprep.subr.mxu0 0.0
        %2936 = vmatpush1.msra.mxu0 0.0
        %2937 = vmatprep.subr.mxu0 0.0
        %2938 = vmatpush1.msra.mxu0 0.0
        %2939 = vmatprep.subr.mxu0 0.0
        %2940 = vmatpush1.msra.mxu0 0.0
        %2941 = vmatprep.subr.mxu0 0.0
        %2942 = vmatpush1.msra.mxu0 0.0
        %2943 = vmatprep.subr.mxu0 0.0
        %2944 = vmatpush1.msra.mxu0 0.0
        %2945 = vmatprep.subr.mxu0 0.0
        %2946 = vmatpush1.msra.mxu0 0.0
        %2947 = vmatprep.subr.mxu0 0.0
        %2948 = vmatpush1.msra.mxu0 0.0
        %2949 = vmatprep.subr.mxu0 0.0
        %2950 = vmatpush1.msra.mxu0 0.0
        %2951 = vmatprep.subr.mxu0 0.0
        %2952 = vmatpush1.msra.mxu0 0.0
        %2953 = vmatprep.mubr.f32.mxu0 0.0
        %2954 = vmatmul.mubr.f32.gmra.mrb[0].mxu0 %v2793
        %v2955 = vpop.f32.mrb[0].mxu0
        %v2956 = vadd.f32 0.0, %v2955
        %v2957 = vpop.f32.mrb[0].mxu0
        %2958 = vmatprep.mubr.f32.mxu0 0.0
        %2959 = vmatmul.mubr.f32.gmra.mrb[0].mxu0 %v2796
        %v2960 = vpop.f32.mrb[0].mxu0
        %v2961 = vadd.f32 0.0, %v2960
        %v2962 = vpop.f32.mrb[0].mxu0
        %2963 = vmatprep.mubr.f32.mxu0 0.0
        %2964 = vmatmul.mubr.f32.gmra.mrb[0].mxu0 %v2799
        %v2965 = vpop.f32.mrb[0].mxu0
        %v2966 = vadd.f32 0.0, %v2965
        %v2967 = vpop.f32.mrb[0].mxu0
        %2968 = vmatprep.mubr.f32.mxu0 0.0
        %2969 = vmatmul.mubr.f32.gmra.mrb[0].mxu0 %v2802
        %v2970 = vpop.f32.mrb[0].mxu0
        %v2971 = vadd.f32 0.0, %v2970
        %v2972 = vpop.f32.mrb[0].mxu0
        %2973 = vmatprep.mubr.f32.mxu0 0.0
        %2974 = vmatmul.mubr.f32.gmra.mrb[0].mxu0 %v2805
        %v2975 = vpop.f32.mrb[0].mxu0
        %v2976 = vadd.f32 0.0, %v2975
        %v2977 = vpop.f32.mrb[0].mxu0
        %2978 = vmatprep.mubr.f32.mxu0 0.0
        %2979 = vmatmul.mubr.f32.gmra.mrb[0].mxu0 %v2808
        %v2980 = vpop.f32.mrb[0].mxu0
        %v2981 = vadd.f32 0.0, %v2980
        %v2982 = vpop.f32.mrb[0].mxu0
        %2983 = vmatprep.mubr.f32.mxu0 0.0
        %2984 = vmatmul.mubr.f32.gmra.mrb[0].mxu0 %v2811
        %v2985 = vpop.f32.mrb[0].mxu0
        %v2986 = vadd.f32 0.0, %v2985
        %v2987 = vpop.f32.mrb[0].mxu0
        %2988 = vmatprep.mubr.f32.mxu0 0.0
        %2989 = vmatmul.mubr.f32.gmra.mrb[0].mxu0 %v2814
        %v2990 = vpop.f32.mrb[0].mxu0
        %v2991 = vadd.f32 0.0, %v2990
        %v2992 = vpop.f32.mrb[0].mxu0
        %2993 = vmatprep.mubr.f32.mxu0 0.0
        %2994 = vmatmul.mubr.f32.gmra.mrb[0].mxu0 %v2817
        %v2995 = vpop.f32.mrb[0].mxu0
        %v2996 = vadd.f32 0.0, %v2995
        %v2997 = vpop.f32.mrb[0].mxu0
        %2998 = vmatprep.mubr.f32.mxu0 0.0
        %2999 = vmatmul.mubr.f32.gmra.mrb[0].mxu0 %v2820
        %v3000 = vpop.f32.mrb[0].mxu0
        %v3001 = vadd.f32 0.0, %v3000
        %v3002 = vpop.f32.mrb[0].mxu0
        %3003 = vmatprep.mubr.f32.mxu0 0.0
        %3004 = vmatmul.mubr.f32.gmra.mrb[0].mxu0 %v2823
        %v3005 = vpop.f32.mrb[0].mxu0
        %v3006 = vadd.f32 0.0, %v3005
        %v3007 = vpop.f32.mrb[0].mxu0
        %3008 = vmatprep.mubr.f32.mxu0 0.0
        %3009 = vmatmul.mubr.f32.gmra.mrb[0].mxu0 %v2826
        %v3010 = vpop.f32.mrb[0].mxu0
        %v3011 = vadd.f32 0.0, %v3010
        %v3012 = vpop.f32.mrb[0].mxu0
        %3013 = vmatprep.mubr.f32.mxu0 0.0
        %3014 = vmatmul.mubr.f32.gmra.mrb[0].mxu0 %v2829
        %v3015 = vpop.f32.mrb[0].mxu0
        %v3016 = vadd.f32 0.0, %v3015
        %v3017 = vpop.f32.mrb[0].mxu0
        %3018 = vmatprep.mubr.f32.mxu0 0.0
        %3019 = vmatmul.mubr.f32.gmra.mrb[0].mxu0 %v2832
        %v3020 = vpop.f32.mrb[0].mxu0
        %v3021 = vadd.f32 0.0, %v3020
        %v3022 = vpop.f32.mrb[0].mxu0
        %3023 = vmatprep.mubr.f32.mxu0 0.0
        %3024 = vmatmul.mubr.f32.gmra.mrb[0].mxu0 %v2835
        %v3025 = vpop.f32.mrb[0].mxu0
        %v3026 = vadd.f32 0.0, %v3025
        %v3027 = vpop.f32.mrb[0].mxu0
        %3028 = vmatprep.mubr.f32.mxu0 0.0
        %3029 = vmatmul.mubr.f32.gmra.mrb[0].mxu0 %v2838
        %v3030 = vpop.f32.mrb[0].mxu0
        %v3031 = vadd.f32 0.0, %v3030
        %v3032 = vpop.f32.mrb[0].mxu0
        %3033 = vmatprep.mubr.f32.mxu0 0.0
        %3034 = vmatmul.mubr.f32.gmra.mrb[0].mxu0 %v2841
        %v3035 = vpop.f32.mrb[0].mxu0
        %v3036 = vadd.f32 0.0, %v3035
        %v3037 = vpop.f32.mrb[0].mxu0
        %3038 = vmatprep.mubr.f32.mxu0 0.0
        %3039 = vmatmul.mubr.f32.gmra.mrb[0].mxu0 %v2844
        %v3040 = vpop.f32.mrb[0].mxu0
        %v3041 = vadd.f32 0.0, %v3040
        %v3042 = vpop.f32.mrb[0].mxu0
        %3043 = vmatprep.mubr.f32.mxu0 0.0
        %3044 = vmatmul.mubr.f32.gmra.mrb[0].mxu0 %v2847
        %v3045 = vpop.f32.mrb[0].mxu0
        %v3046 = vadd.f32 0.0, %v3045
        %v3047 = vpop.f32.mrb[0].mxu0
        %3048 = vmatprep.mubr.f32.mxu0 0.0
        %3049 = vmatmul.mubr.f32.gmra.mrb[0].mxu0 %v2850
        %v3050 = vpop.f32.mrb[0].mxu0
        %v3051 = vadd.f32 0.0, %v3050
        %v3052 = vpop.f32.mrb[0].mxu0
        %3053 = vmatprep.mubr.f32.mxu0 0.0
        %3054 = vmatmul.mubr.f32.gmra.mrb[0].mxu0 %v2853
        %v3055 = vpop.f32.mrb[0].mxu0
        %v3056 = vadd.f32 0.0, %v3055
        %v3057 = vpop.f32.mrb[0].mxu0
        %3058 = vmatprep.mubr.f32.mxu0 0.0
        %3059 = vmatmul.mubr.f32.gmra.mrb[0].mxu0 %v2856
        %v3060 = vpop.f32.mrb[0].mxu0
        %v3061 = vadd.f32 0.0, %v3060
        %v3062 = vpop.f32.mrb[0].mxu0
        %3063 = vmatprep.mubr.f32.mxu0 0.0
        %3064 = vmatmul.mubr.f32.gmra.mrb[0].mxu0 %v2859
        %v3065 = vpop.f32.mrb[0].mxu0
        %v3066 = vadd.f32 0.0, %v3065
        %v3067 = vpop.f32.mrb[0].mxu0
        %3068 = vmatprep.mubr.f32.mxu0 0.0
        %3069 = vmatmul.mubr.f32.gmra.mrb[0].mxu0 %v2862
        %v3070 = vpop.f32.mrb[0].mxu0
        %v3071 = vadd.f32 0.0, %v3070
        %v3072 = vpop.f32.mrb[0].mxu0
        %3073 = vmatprep.mubr.f32.mxu0 0.0
        %3074 = vmatmul.mubr.f32.gmra.mrb[0].mxu0 %v2865
        %v3075 = vpop.f32.mrb[0].mxu0
        %v3076 = vadd.f32 0.0, %v3075
        %v3077 = vpop.f32.mrb[0].mxu0
        %3078 = vmatprep.mubr.f32.mxu0 0.0
        %3079 = vmatmul.mubr.f32.gmra.mrb[0].mxu0 %v2868
        %v3080 = vpop.f32.mrb[0].mxu0
        %v3081 = vadd.f32 0.0, %v3080
        %v3082 = vpop.f32.mrb[0].mxu0
        %3083 = vmatprep.mubr.f32.mxu0 0.0
        %3084 = vmatmul.mubr.f32.gmra.mrb[0].mxu0 %v2871
        %v3085 = vpop.f32.mrb[0].mxu0
        %v3086 = vadd.f32 0.0, %v3085
        %v3087 = vpop.f32.mrb[0].mxu0
        %3088 = vmatprep.mubr.f32.mxu0 0.0
        %3089 = vmatmul.mubr.f32.gmra.mrb[0].mxu0 %v2874
        %v3090 = vpop.f32.mrb[0].mxu0
        %v3091 = vadd.f32 0.0, %v3090
        %v3092 = vpop.f32.mrb[0].mxu0
        %3093 = vmatprep.mubr.f32.mxu0 0.0
        %3094 = vmatmul.mubr.f32.gmra.mrb[0].mxu0 %v2877
        %v3095 = vpop.f32.mrb[0].mxu0
        %v3096 = vadd.f32 0.0, %v3095
        %v3097 = vpop.f32.mrb[0].mxu0
        %3098 = vmatprep.mubr.f32.mxu0 0.0
        %3099 = vmatmul.mubr.f32.gmra.mrb[0].mxu0 %v2880
        %v3100 = vpop.f32.mrb[0].mxu0
        %v3101 = vadd.f32 0.0, %v3100
        %v3102 = vpop.f32.mrb[0].mxu0
        %3103 = vmatprep.mubr.f32.mxu0 0.0
        %3104 = vmatmul.mubr.f32.gmra.mrb[0].mxu0 %v2883
        %v3105 = vpop.f32.mrb[0].mxu0
        %v3106 = vadd.f32 0.0, %v3105
        %v3107 = vpop.f32.mrb[0].mxu0
        %3108 = vdwg.mxu0
        %vm3109 = vcmask 490496
        %3110 = vst.msk [vmem:[#allocation5] sm:$0xff] %vm3109, %v2956
        %3111 = vst.msk [vmem:[#allocation5 + $0x8] sm:$0xff] %vm3109, %v2961
        %3112 = vst.msk [vmem:[#allocation5 + $0x10] sm:$0xff] %vm3109, %v2966
        %3113 = vst.msk [vmem:[#allocation5 + $0x18] sm:$0xff] %vm3109, %v2971
        %3114 = vst.msk [vmem:[#allocation5 + $0x20] sm:$0xff] %vm3109, %v2976
        %3115 = vst.msk [vmem:[#allocation5 + $0x28] sm:$0xff] %vm3109, %v2981
        %3116 = vst.msk [vmem:[#allocation5 + $0x30] sm:$0xff] %vm3109, %v2986
        %3117 = vst.msk [vmem:[#allocation5 + $0x38] sm:$0xff] %vm3109, %v2991
        %3118 = vst.msk [vmem:[#allocation5 + $0x40] sm:$0xff] %vm3109, %v2996
        %3119 = vst.msk [vmem:[#allocation5 + $0x48] sm:$0xff] %vm3109, %v3001
        %3120 = vst.msk [vmem:[#allocation5 + $0x50] sm:$0xff] %vm3109, %v3006
        %3121 = vst.msk [vmem:[#allocation5 + $0x58] sm:$0xff] %vm3109, %v3011
        %3122 = vst.msk [vmem:[#allocation5 + $0x60] sm:$0xff] %vm3109, %v3016
        %3123 = vst.msk [vmem:[#allocation5 + $0x68] sm:$0xff] %vm3109, %v3021
        %3124 = vst.msk [vmem:[#allocation5 + $0x70] sm:$0xff] %vm3109, %v3026
        %3125 = vst.msk [vmem:[#allocation5 + $0x78] sm:$0xff] %vm3109, %v3031
        %3126 = vst.msk [vmem:[#allocation5 + $0x80] sm:$0xff] %vm3109, %v3036
        %3127 = vst.msk [vmem:[#allocation5 + $0x88] sm:$0xff] %vm3109, %v3041
        %3128 = vst.msk [vmem:[#allocation5 + $0x90] sm:$0xff] %vm3109, %v3046
        %3129 = vst.msk [vmem:[#allocation5 + $0x98] sm:$0xff] %vm3109, %v3051
        %3130 = vst.msk [vmem:[#allocation5 + $0xa0] sm:$0xff] %vm3109, %v3056
        %3131 = vst.msk [vmem:[#allocation5 + $0xa8] sm:$0xff] %vm3109, %v3061
        %3132 = vst.msk [vmem:[#allocation5 + $0xb0] sm:$0xff] %vm3109, %v3066
        %3133 = vst.msk [vmem:[#allocation5 + $0xb8] sm:$0xff] %vm3109, %v3071
        %3134 = vst.msk [vmem:[#allocation5 + $0xc0] sm:$0xff] %vm3109, %v3076
        %3135 = vst.msk [vmem:[#allocation5 + $0xc8] sm:$0xff] %vm3109, %v3081
        %3136 = vst.msk [vmem:[#allocation5 + $0xd0] sm:$0xff] %vm3109, %v3086
        %3137 = vst.msk [vmem:[#allocation5 + $0xd8] sm:$0xff] %vm3109, %v3091
        %3138 = vst.msk [vmem:[#allocation5 + $0xe0] sm:$0xff] %vm3109, %v3096
        %3139 = vst.msk [vmem:[#allocation5 + $0xe8] sm:$0xff] %vm3109, %v3101
        %3140 = vst.msk [vmem:[#allocation5 + $0xf0] sm:$0xff] %vm3109, %v3106
        %v3141 = vld [vmem:[#allocation4] sm:$0xff]
        %v3142 = vld [vmem:[#allocation4 + $0x8] sm:$0xff]
        %v3143 = vld [vmem:[#allocation4 + $0x10] sm:$0xff]
        %v3144 = vld [vmem:[#allocation4 + $0x18] sm:$0xff]
        %v3145 = vld [vmem:[#allocation4 + $0x20] sm:$0xff]
        %v3146 = vld [vmem:[#allocation4 + $0x28] sm:$0xff]
        %v3147 = vld [vmem:[#allocation4 + $0x30] sm:$0xff]
        %v3148 = vld [vmem:[#allocation4 + $0x38] sm:$0xff]
        %v3149 = vld [vmem:[#allocation4 + $0x40] sm:$0xff]
        %v3150 = vld [vmem:[#allocation4 + $0x48] sm:$0xff]
        %v3151 = vld [vmem:[#allocation4 + $0x50] sm:$0xff]
        %v3152 = vld [vmem:[#allocation4 + $0x58] sm:$0xff]
        %v3153 = vld [vmem:[#allocation4 + $0x60] sm:$0xff]
        %v3154 = vld [vmem:[#allocation4 + $0x68] sm:$0xff]
        %v3155 = vld [vmem:[#allocation4 + $0x70] sm:$0xff]
        %v3156 = vld [vmem:[#allocation4 + $0x78] sm:$0xff]
        %v3157 = vld [vmem:[#allocation4 + $0x80] sm:$0xff]
        %v3158 = vld [vmem:[#allocation4 + $0x88] sm:$0xff]
        %v3159 = vld [vmem:[#allocation4 + $0x90] sm:$0xff]
        %v3160 = vld [vmem:[#allocation4 + $0x98] sm:$0xff]
        %v3161 = vld [vmem:[#allocation4 + $0xa0] sm:$0xff]
        %v3162 = vld [vmem:[#allocation4 + $0xa8] sm:$0xff]
        %v3163 = vld [vmem:[#allocation4 + $0xb0] sm:$0xff]
        %v3164 = vld [vmem:[#allocation4 + $0xb8] sm:$0xff]
        %v3165 = vld [vmem:[#allocation4 + $0xc0] sm:$0xff]
        %v3166 = vld [vmem:[#allocation4 + $0xc8] sm:$0xff]
        %v3167 = vld [vmem:[#allocation4 + $0xd0] sm:$0xff]
        %v3168 = vld [vmem:[#allocation4 + $0xd8] sm:$0xff]
        %v3169 = vld [vmem:[#allocation4 + $0xe0] sm:$0xff]
        %v3170 = vld [vmem:[#allocation4 + $0xe8] sm:$0xff]
        %v3171 = vld [vmem:[#allocation4 + $0xf0] sm:$0xff]
        %s3172 = scalar_lea.vmem %s5, 128
        %v3173 = vld [vmem:[%s3172] sm:$0xff]
        %v3174 = vld [vmem:[%s3172 + $0x8] sm:$0xff]
        %v3175 = vld [vmem:[%s3172 + $0x10] sm:$0xff]
        %v3176 = vld [vmem:[%s3172 + $0x18] sm:$0xff]
        %v3177 = vld [vmem:[%s3172 + $0x20] sm:$0xff]
        %v3178 = vld [vmem:[%s3172 + $0x28] sm:$0xff]
        %v3179 = vld [vmem:[%s3172 + $0x30] sm:$0xff]
        %v3180 = vld [vmem:[%s3172 + $0x38] sm:$0xff]
        %v3181 = vld [vmem:[%s3172 + $0x40] sm:$0xff]
        %v3182 = vld [vmem:[%s3172 + $0x48] sm:$0xff]
        %v3183 = vld [vmem:[%s3172 + $0x50] sm:$0xff]
        %v3184 = vld [vmem:[%s3172 + $0x58] sm:$0xff]
        %v3185 = vld [vmem:[%s3172 + $0x60] sm:$0xff]
        %v3186 = vld [vmem:[%s3172 + $0x68] sm:$0xff]
        %v3187 = vld [vmem:[%s3172 + $0x70] sm:$0xff]
        %v3188 = vld [vmem:[%s3172 + $0x78] sm:$0x7]
        %v3190 = vsel %vm1067, %v3141, 0
        %v3193 = vsel %vm1067, %v3142, 0
        %v3196 = vsel %vm1067, %v3143, 0
        %v3199 = vsel %vm1067, %v3144, 0
        %v3202 = vsel %vm1067, %v3145, 0
        %v3205 = vsel %vm1067, %v3146, 0
        %v3208 = vsel %vm1067, %v3147, 0
        %v3211 = vsel %vm1067, %v3148, 0
        %v3214 = vsel %vm1067, %v3149, 0
        %v3217 = vsel %vm1067, %v3150, 0
        %v3220 = vsel %vm1067, %v3151, 0
        %v3223 = vsel %vm1067, %v3152, 0
        %v3226 = vsel %vm1067, %v3153, 0
        %v3229 = vsel %vm1067, %v3154, 0
        %v3232 = vsel %vm1067, %v3155, 0
        %v3235 = vsel %vm1067, %v3156, 0
        %v3238 = vsel %vm1067, %v3157, 0
        %v3241 = vsel %vm1067, %v3158, 0
        %v3244 = vsel %vm1067, %v3159, 0
        %v3247 = vsel %vm1067, %v3160, 0
        %v3250 = vsel %vm1067, %v3161, 0
        %v3253 = vsel %vm1067, %v3162, 0
        %v3256 = vsel %vm1067, %v3163, 0
        %v3259 = vsel %vm1067, %v3164, 0
        %v3262 = vsel %vm1067, %v3165, 0
        %v3265 = vsel %vm1067, %v3166, 0
        %v3268 = vsel %vm1067, %v3167, 0
        %v3271 = vsel %vm1067, %v3168, 0
        %v3274 = vsel %vm1067, %v3169, 0
        %v3277 = vsel %vm1067, %v3170, 0
        %v3280 = vsel %vm1067, %v3171, 0
        %v3283 = vsel %vm2885, %v3188, 0
        %3285 = vmatprep.subr.mxu0 0.0
        %3286 = vmatpush1.msra.mxu0 %v3173
        %3287 = vmatprep.subr.mxu0 0.0
        %3288 = vmatpush1.msra.mxu0 %v3174
        %3289 = vmatprep.subr.mxu0 0.0
        %3290 = vmatpush1.msra.mxu0 %v3175
        %3291 = vmatprep.subr.mxu0 0.0
        %3292 = vmatpush1.msra.mxu0 %v3176
        %3293 = vmatprep.subr.mxu0 0.0
        %3294 = vmatpush1.msra.mxu0 %v3177
        %3295 = vmatprep.subr.mxu0 0.0
        %3296 = vmatpush1.msra.mxu0 %v3178
        %3297 = vmatprep.subr.mxu0 0.0
        %3298 = vmatpush1.msra.mxu0 %v3179
        %3299 = vmatprep.subr.mxu0 0.0
        %3300 = vmatpush1.msra.mxu0 %v3180
        %3301 = vmatprep.subr.mxu0 0.0
        %3302 = vmatpush1.msra.mxu0 %v3181
        %3303 = vmatprep.subr.mxu0 0.0
        %3304 = vmatpush1.msra.mxu0 %v3182
        %3305 = vmatprep.subr.mxu0 0.0
        %3306 = vmatpush1.msra.mxu0 %v3183
        %3307 = vmatprep.subr.mxu0 0.0
        %3308 = vmatpush1.msra.mxu0 %v3184
        %3309 = vmatprep.subr.mxu0 0.0
        %3310 = vmatpush1.msra.mxu0 %v3185
        %3311 = vmatprep.subr.mxu0 0.0
        %3312 = vmatpush1.msra.mxu0 %v3186
        %3313 = vmatprep.subr.mxu0 0.0
        %3314 = vmatpush1.msra.mxu0 %v3187
        %3315 = vmatprep.subr.mxu0 0.0
        %3316 = vmatpush1.msra.mxu0 %v3283
        %3317 = vmatprep.subr.mxu0 0.0
        %3318 = vmatpush1.msra.mxu0 0.0
        %3319 = vmatprep.subr.mxu0 0.0
        %3320 = vmatpush1.msra.mxu0 0.0
        %3321 = vmatprep.subr.mxu0 0.0
        %3322 = vmatpush1.msra.mxu0 0.0
        %3323 = vmatprep.subr.mxu0 0.0
        %3324 = vmatpush1.msra.mxu0 0.0
        %3325 = vmatprep.subr.mxu0 0.0
        %3326 = vmatpush1.msra.mxu0 0.0
        %3327 = vmatprep.subr.mxu0 0.0
        %3328 = vmatpush1.msra.mxu0 0.0
        %3329 = vmatprep.subr.mxu0 0.0
        %3330 = vmatpush1.msra.mxu0 0.0
        %3331 = vmatprep.subr.mxu0 0.0
        %3332 = vmatpush1.msra.mxu0 0.0
        %3333 = vmatprep.subr.mxu0 0.0
        %3334 = vmatpush1.msra.mxu0 0.0
        %3335 = vmatprep.subr.mxu0 0.0
        %3336 = vmatpush1.msra.mxu0 0.0
        %3337 = vmatprep.subr.mxu0 0.0
        %3338 = vmatpush1.msra.mxu0 0.0
        %3339 = vmatprep.subr.mxu0 0.0
        %3340 = vmatpush1.msra.mxu0 0.0
        %3341 = vmatprep.subr.mxu0 0.0
        %3342 = vmatpush1.msra.mxu0 0.0
        %3343 = vmatprep.subr.mxu0 0.0
        %3344 = vmatpush1.msra.mxu0 0.0
        %3345 = vmatprep.subr.mxu0 0.0
        %3346 = vmatpush1.msra.mxu0 0.0
        %3347 = vmatprep.subr.mxu0 0.0
        %3348 = vmatpush1.msra.mxu0 0.0
        %3349 = vmatprep.mubr.f32.mxu0 0.0
        %3350 = vmatmul.mubr.f32.gmra.mrb[0].mxu0 %v3190
        %v3351 = vpop.f32.mrb[0].mxu0
        %v3352 = vadd.f32 0.0, %v3351
        %v3353 = vpop.f32.mrb[0].mxu0
        %3354 = vmatprep.mubr.f32.mxu0 0.0
        %3355 = vmatmul.mubr.f32.gmra.mrb[0].mxu0 %v3193
        %v3356 = vpop.f32.mrb[0].mxu0
        %v3357 = vadd.f32 0.0, %v3356
        %v3358 = vpop.f32.mrb[0].mxu0
        %3359 = vmatprep.mubr.f32.mxu0 0.0
        %3360 = vmatmul.mubr.f32.gmra.mrb[0].mxu0 %v3196
        %v3361 = vpop.f32.mrb[0].mxu0
        %v3362 = vadd.f32 0.0, %v3361
        %v3363 = vpop.f32.mrb[0].mxu0
        %3364 = vmatprep.mubr.f32.mxu0 0.0
        %3365 = vmatmul.mubr.f32.gmra.mrb[0].mxu0 %v3199
        %v3366 = vpop.f32.mrb[0].mxu0
        %v3367 = vadd.f32 0.0, %v3366
        %v3368 = vpop.f32.mrb[0].mxu0
        %3369 = vmatprep.mubr.f32.mxu0 0.0
        %3370 = vmatmul.mubr.f32.gmra.mrb[0].mxu0 %v3202
        %v3371 = vpop.f32.mrb[0].mxu0
        %v3372 = vadd.f32 0.0, %v3371
        %v3373 = vpop.f32.mrb[0].mxu0
        %3374 = vmatprep.mubr.f32.mxu0 0.0
        %3375 = vmatmul.mubr.f32.gmra.mrb[0].mxu0 %v3205
        %v3376 = vpop.f32.mrb[0].mxu0
        %v3377 = vadd.f32 0.0, %v3376
        %v3378 = vpop.f32.mrb[0].mxu0
        %3379 = vmatprep.mubr.f32.mxu0 0.0
        %3380 = vmatmul.mubr.f32.gmra.mrb[0].mxu0 %v3208
        %v3381 = vpop.f32.mrb[0].mxu0
        %v3382 = vadd.f32 0.0, %v3381
        %v3383 = vpop.f32.mrb[0].mxu0
        %3384 = vmatprep.mubr.f32.mxu0 0.0
        %3385 = vmatmul.mubr.f32.gmra.mrb[0].mxu0 %v3211
        %v3386 = vpop.f32.mrb[0].mxu0
        %v3387 = vadd.f32 0.0, %v3386
        %v3388 = vpop.f32.mrb[0].mxu0
        %3389 = vmatprep.mubr.f32.mxu0 0.0
        %3390 = vmatmul.mubr.f32.gmra.mrb[0].mxu0 %v3214
        %v3391 = vpop.f32.mrb[0].mxu0
        %v3392 = vadd.f32 0.0, %v3391
        %v3393 = vpop.f32.mrb[0].mxu0
        %3394 = vmatprep.mubr.f32.mxu0 0.0
        %3395 = vmatmul.mubr.f32.gmra.mrb[0].mxu0 %v3217
        %v3396 = vpop.f32.mrb[0].mxu0
        %v3397 = vadd.f32 0.0, %v3396
        %v3398 = vpop.f32.mrb[0].mxu0
        %3399 = vmatprep.mubr.f32.mxu0 0.0
        %3400 = vmatmul.mubr.f32.gmra.mrb[0].mxu0 %v3220
        %v3401 = vpop.f32.mrb[0].mxu0
        %v3402 = vadd.f32 0.0, %v3401
        %v3403 = vpop.f32.mrb[0].mxu0
        %3404 = vmatprep.mubr.f32.mxu0 0.0
        %3405 = vmatmul.mubr.f32.gmra.mrb[0].mxu0 %v3223
        %v3406 = vpop.f32.mrb[0].mxu0
        %v3407 = vadd.f32 0.0, %v3406
        %v3408 = vpop.f32.mrb[0].mxu0
        %3409 = vmatprep.mubr.f32.mxu0 0.0
        %3410 = vmatmul.mubr.f32.gmra.mrb[0].mxu0 %v3226
        %v3411 = vpop.f32.mrb[0].mxu0
        %v3412 = vadd.f32 0.0, %v3411
        %v3413 = vpop.f32.mrb[0].mxu0
        %3414 = vmatprep.mubr.f32.mxu0 0.0
        %3415 = vmatmul.mubr.f32.gmra.mrb[0].mxu0 %v3229
        %v3416 = vpop.f32.mrb[0].mxu0
        %v3417 = vadd.f32 0.0, %v3416
        %v3418 = vpop.f32.mrb[0].mxu0
        %3419 = vmatprep.mubr.f32.mxu0 0.0
        %3420 = vmatmul.mubr.f32.gmra.mrb[0].mxu0 %v3232
        %v3421 = vpop.f32.mrb[0].mxu0
        %v3422 = vadd.f32 0.0, %v3421
        %v3423 = vpop.f32.mrb[0].mxu0
        %3424 = vmatprep.mubr.f32.mxu0 0.0
        %3425 = vmatmul.mubr.f32.gmra.mrb[0].mxu0 %v3235
        %v3426 = vpop.f32.mrb[0].mxu0
        %v3427 = vadd.f32 0.0, %v3426
        %v3428 = vpop.f32.mrb[0].mxu0
        %3429 = vmatprep.mubr.f32.mxu0 0.0
        %3430 = vmatmul.mubr.f32.gmra.mrb[0].mxu0 %v3238
        %v3431 = vpop.f32.mrb[0].mxu0
        %v3432 = vadd.f32 0.0, %v3431
        %v3433 = vpop.f32.mrb[0].mxu0
        %3434 = vmatprep.mubr.f32.mxu0 0.0
        %3435 = vmatmul.mubr.f32.gmra.mrb[0].mxu0 %v3241
        %v3436 = vpop.f32.mrb[0].mxu0
        %v3437 = vadd.f32 0.0, %v3436
        %v3438 = vpop.f32.mrb[0].mxu0
        %3439 = vmatprep.mubr.f32.mxu0 0.0
        %3440 = vmatmul.mubr.f32.gmra.mrb[0].mxu0 %v3244
        %v3441 = vpop.f32.mrb[0].mxu0
        %v3442 = vadd.f32 0.0, %v3441
        %v3443 = vpop.f32.mrb[0].mxu0
        %3444 = vmatprep.mubr.f32.mxu0 0.0
        %3445 = vmatmul.mubr.f32.gmra.mrb[0].mxu0 %v3247
        %v3446 = vpop.f32.mrb[0].mxu0
        %v3447 = vadd.f32 0.0, %v3446
        %v3448 = vpop.f32.mrb[0].mxu0
        %3449 = vmatprep.mubr.f32.mxu0 0.0
        %3450 = vmatmul.mubr.f32.gmra.mrb[0].mxu0 %v3250
        %v3451 = vpop.f32.mrb[0].mxu0
        %v3452 = vadd.f32 0.0, %v3451
        %v3453 = vpop.f32.mrb[0].mxu0
        %3454 = vmatprep.mubr.f32.mxu0 0.0
        %3455 = vmatmul.mubr.f32.gmra.mrb[0].mxu0 %v3253
        %v3456 = vpop.f32.mrb[0].mxu0
        %v3457 = vadd.f32 0.0, %v3456
        %v3458 = vpop.f32.mrb[0].mxu0
        %3459 = vmatprep.mubr.f32.mxu0 0.0
        %3460 = vmatmul.mubr.f32.gmra.mrb[0].mxu0 %v3256
        %v3461 = vpop.f32.mrb[0].mxu0
        %v3462 = vadd.f32 0.0, %v3461
        %v3463 = vpop.f32.mrb[0].mxu0
        %3464 = vmatprep.mubr.f32.mxu0 0.0
        %3465 = vmatmul.mubr.f32.gmra.mrb[0].mxu0 %v3259
        %v3466 = vpop.f32.mrb[0].mxu0
        %v3467 = vadd.f32 0.0, %v3466
        %v3468 = vpop.f32.mrb[0].mxu0
        %3469 = vmatprep.mubr.f32.mxu0 0.0
        %3470 = vmatmul.mubr.f32.gmra.mrb[0].mxu0 %v3262
        %v3471 = vpop.f32.mrb[0].mxu0
        %v3472 = vadd.f32 0.0, %v3471
        %v3473 = vpop.f32.mrb[0].mxu0
        %3474 = vmatprep.mubr.f32.mxu0 0.0
        %3475 = vmatmul.mubr.f32.gmra.mrb[0].mxu0 %v3265
        %v3476 = vpop.f32.mrb[0].mxu0
        %v3477 = vadd.f32 0.0, %v3476
        %v3478 = vpop.f32.mrb[0].mxu0
        %3479 = vmatprep.mubr.f32.mxu0 0.0
        %3480 = vmatmul.mubr.f32.gmra.mrb[0].mxu0 %v3268
        %v3481 = vpop.f32.mrb[0].mxu0
        %v3482 = vadd.f32 0.0, %v3481
        %v3483 = vpop.f32.mrb[0].mxu0
        %3484 = vmatprep.mubr.f32.mxu0 0.0
        %3485 = vmatmul.mubr.f32.gmra.mrb[0].mxu0 %v3271
        %v3486 = vpop.f32.mrb[0].mxu0
        %v3487 = vadd.f32 0.0, %v3486
        %v3488 = vpop.f32.mrb[0].mxu0
        %3489 = vmatprep.mubr.f32.mxu0 0.0
        %3490 = vmatmul.mubr.f32.gmra.mrb[0].mxu0 %v3274
        %v3491 = vpop.f32.mrb[0].mxu0
        %v3492 = vadd.f32 0.0, %v3491
        %v3493 = vpop.f32.mrb[0].mxu0
        %3494 = vmatprep.mubr.f32.mxu0 0.0
        %3495 = vmatmul.mubr.f32.gmra.mrb[0].mxu0 %v3277
        %v3496 = vpop.f32.mrb[0].mxu0
        %v3497 = vadd.f32 0.0, %v3496
        %v3498 = vpop.f32.mrb[0].mxu0
        %3499 = vmatprep.mubr.f32.mxu0 0.0
        %3500 = vmatmul.mubr.f32.gmra.mrb[0].mxu0 %v3280
        %v3501 = vpop.f32.mrb[0].mxu0
        %v3502 = vadd.f32 0.0, %v3501
        %v3503 = vpop.f32.mrb[0].mxu0
        %3504 = vdwg.mxu0
        %s3505 = scalar_lea.vmem [#allocation5], 248
        %3506 = vst.msk [vmem:[%s3505] sm:$0xff] %vm3109, %v3352
        %3507 = vst.msk [vmem:[%s3505 + $0x8] sm:$0xff] %vm3109, %v3357
        %3508 = vst.msk [vmem:[%s3505 + $0x10] sm:$0xff] %vm3109, %v3362
        %3509 = vst.msk [vmem:[%s3505 + $0x18] sm:$0xff] %vm3109, %v3367
        %3510 = vst.msk [vmem:[%s3505 + $0x20] sm:$0xff] %vm3109, %v3372
        %3511 = vst.msk [vmem:[%s3505 + $0x28] sm:$0xff] %vm3109, %v3377
        %3512 = vst.msk [vmem:[%s3505 + $0x30] sm:$0xff] %vm3109, %v3382
        %3513 = vst.msk [vmem:[%s3505 + $0x38] sm:$0xff] %vm3109, %v3387
        %3514 = vst.msk [vmem:[%s3505 + $0x40] sm:$0xff] %vm3109, %v3392
        %3515 = vst.msk [vmem:[%s3505 + $0x48] sm:$0xff] %vm3109, %v3397
        %3516 = vst.msk [vmem:[%s3505 + $0x50] sm:$0xff] %vm3109, %v3402
        %3517 = vst.msk [vmem:[%s3505 + $0x58] sm:$0xff] %vm3109, %v3407
        %3518 = vst.msk [vmem:[%s3505 + $0x60] sm:$0xff] %vm3109, %v3412
        %3519 = vst.msk [vmem:[%s3505 + $0x68] sm:$0xff] %vm3109, %v3417
        %3520 = vst.msk [vmem:[%s3505 + $0x70] sm:$0xff] %vm3109, %v3422
        %3521 = vst.msk [vmem:[%s3505 + $0x78] sm:$0xff] %vm3109, %v3427
        %3522 = vst.msk [vmem:[%s3505 + $0x80] sm:$0xff] %vm3109, %v3432
        %3523 = vst.msk [vmem:[%s3505 + $0x88] sm:$0xff] %vm3109, %v3437
        %3524 = vst.msk [vmem:[%s3505 + $0x90] sm:$0xff] %vm3109, %v3442
        %3525 = vst.msk [vmem:[%s3505 + $0x98] sm:$0xff] %vm3109, %v3447
        %3526 = vst.msk [vmem:[%s3505 + $0xa0] sm:$0xff] %vm3109, %v3452
        %3527 = vst.msk [vmem:[%s3505 + $0xa8] sm:$0xff] %vm3109, %v3457
        %3528 = vst.msk [vmem:[%s3505 + $0xb0] sm:$0xff] %vm3109, %v3462
        %3529 = vst.msk [vmem:[%s3505 + $0xb8] sm:$0xff] %vm3109, %v3467
        %3530 = vst.msk [vmem:[%s3505 + $0xc0] sm:$0xff] %vm3109, %v3472
        %3531 = vst.msk [vmem:[%s3505 + $0xc8] sm:$0xff] %vm3109, %v3477
        %3532 = vst.msk [vmem:[%s3505 + $0xd0] sm:$0xff] %vm3109, %v3482
        %3533 = vst.msk [vmem:[%s3505 + $0xd8] sm:$0xff] %vm3109, %v3487
        %3534 = vst.msk [vmem:[%s3505 + $0xe0] sm:$0xff] %vm3109, %v3492
        %3535 = vst.msk [vmem:[%s3505 + $0xe8] sm:$0xff] %vm3109, %v3497
        %3536 = vst.msk [vmem:[%s3505 + $0xf0] sm:$0xff] %vm3109, %v3502
        %v3537 = vld [vmem:[#allocation4] sm:$0xff]
        %v3538 = vld [vmem:[#allocation4 + $0x8] sm:$0xff]
        %v3539 = vld [vmem:[#allocation4 + $0x10] sm:$0xff]
        %v3540 = vld [vmem:[#allocation4 + $0x18] sm:$0xff]
        %v3541 = vld [vmem:[#allocation4 + $0x20] sm:$0xff]
        %v3542 = vld [vmem:[#allocation4 + $0x28] sm:$0xff]
        %v3543 = vld [vmem:[#allocation4 + $0x30] sm:$0xff]
        %v3544 = vld [vmem:[#allocation4 + $0x38] sm:$0xff]
        %v3545 = vld [vmem:[#allocation4 + $0x40] sm:$0xff]
        %v3546 = vld [vmem:[#allocation4 + $0x48] sm:$0xff]
        %v3547 = vld [vmem:[#allocation4 + $0x50] sm:$0xff]
        %v3548 = vld [vmem:[#allocation4 + $0x58] sm:$0xff]
        %v3549 = vld [vmem:[#allocation4 + $0x60] sm:$0xff]
        %v3550 = vld [vmem:[#allocation4 + $0x68] sm:$0xff]
        %v3551 = vld [vmem:[#allocation4 + $0x70] sm:$0xff]
        %v3552 = vld [vmem:[#allocation4 + $0x78] sm:$0xff]
        %v3553 = vld [vmem:[#allocation4 + $0x80] sm:$0xff]
        %v3554 = vld [vmem:[#allocation4 + $0x88] sm:$0xff]
        %v3555 = vld [vmem:[#allocation4 + $0x90] sm:$0xff]
        %v3556 = vld [vmem:[#allocation4 + $0x98] sm:$0xff]
        %v3557 = vld [vmem:[#allocation4 + $0xa0] sm:$0xff]
        %v3558 = vld [vmem:[#allocation4 + $0xa8] sm:$0xff]
        %v3559 = vld [vmem:[#allocation4 + $0xb0] sm:$0xff]
        %v3560 = vld [vmem:[#allocation4 + $0xb8] sm:$0xff]
        %v3561 = vld [vmem:[#allocation4 + $0xc0] sm:$0xff]
        %v3562 = vld [vmem:[#allocation4 + $0xc8] sm:$0xff]
        %v3563 = vld [vmem:[#allocation4 + $0xd0] sm:$0xff]
        %v3564 = vld [vmem:[#allocation4 + $0xd8] sm:$0xff]
        %v3565 = vld [vmem:[#allocation4 + $0xe0] sm:$0xff]
        %v3566 = vld [vmem:[#allocation4 + $0xe8] sm:$0xff]
        %v3567 = vld [vmem:[#allocation4 + $0xf0] sm:$0xff]
        %s3568 = scalar_lea.vmem %s5, 256
        %v3569 = vld [vmem:[%s3568] sm:$0xff]
        %v3570 = vld [vmem:[%s3568 + $0x8] sm:$0xff]
        %v3571 = vld [vmem:[%s3568 + $0x10] sm:$0xff]
        %v3572 = vld [vmem:[%s3568 + $0x18] sm:$0xff]
        %v3573 = vld [vmem:[%s3568 + $0x20] sm:$0xff]
        %v3574 = vld [vmem:[%s3568 + $0x28] sm:$0xff]
        %v3575 = vld [vmem:[%s3568 + $0x30] sm:$0xff]
        %v3576 = vld [vmem:[%s3568 + $0x38] sm:$0xff]
        %v3577 = vld [vmem:[%s3568 + $0x40] sm:$0xff]
        %v3578 = vld [vmem:[%s3568 + $0x48] sm:$0xff]
        %v3579 = vld [vmem:[%s3568 + $0x50] sm:$0xff]
        %v3580 = vld [vmem:[%s3568 + $0x58] sm:$0xff]
        %v3581 = vld [vmem:[%s3568 + $0x60] sm:$0xff]
        %v3582 = vld [vmem:[%s3568 + $0x68] sm:$0xff]
        %v3583 = vld [vmem:[%s3568 + $0x70] sm:$0xff]
        %v3584 = vld [vmem:[%s3568 + $0x78] sm:$0x7]
        %v3586 = vsel %vm1067, %v3537, 0
        %v3589 = vsel %vm1067, %v3538, 0
        %v3592 = vsel %vm1067, %v3539, 0
        %v3595 = vsel %vm1067, %v3540, 0
        %v3598 = vsel %vm1067, %v3541, 0
        %v3601 = vsel %vm1067, %v3542, 0
        %v3604 = vsel %vm1067, %v3543, 0
        %v3607 = vsel %vm1067, %v3544, 0
        %v3610 = vsel %vm1067, %v3545, 0
        %v3613 = vsel %vm1067, %v3546, 0
        %v3616 = vsel %vm1067, %v3547, 0
        %v3619 = vsel %vm1067, %v3548, 0
        %v3622 = vsel %vm1067, %v3549, 0
        %v3625 = vsel %vm1067, %v3550, 0
        %v3628 = vsel %vm1067, %v3551, 0
        %v3631 = vsel %vm1067, %v3552, 0
        %v3634 = vsel %vm1067, %v3553, 0
        %v3637 = vsel %vm1067, %v3554, 0
        %v3640 = vsel %vm1067, %v3555, 0
        %v3643 = vsel %vm1067, %v3556, 0
        %v3646 = vsel %vm1067, %v3557, 0
        %v3649 = vsel %vm1067, %v3558, 0
        %v3652 = vsel %vm1067, %v3559, 0
        %v3655 = vsel %vm1067, %v3560, 0
        %v3658 = vsel %vm1067, %v3561, 0
        %v3661 = vsel %vm1067, %v3562, 0
        %v3664 = vsel %vm1067, %v3563, 0
        %v3667 = vsel %vm1067, %v3564, 0
        %v3670 = vsel %vm1067, %v3565, 0
        %v3673 = vsel %vm1067, %v3566, 0
        %v3676 = vsel %vm1067, %v3567, 0
        %v3679 = vsel %vm2885, %v3584, 0
        %3681 = vmatprep.subr.mxu0 0.0
        %3682 = vmatpush1.msra.mxu0 %v3569
        %3683 = vmatprep.subr.mxu0 0.0
        %3684 = vmatpush1.msra.mxu0 %v3570
        %3685 = vmatprep.subr.mxu0 0.0
        %3686 = vmatpush1.msra.mxu0 %v3571
        %3687 = vmatprep.subr.mxu0 0.0
        %3688 = vmatpush1.msra.mxu0 %v3572
        %3689 = vmatprep.subr.mxu0 0.0
        %3690 = vmatpush1.msra.mxu0 %v3573
        %3691 = vmatprep.subr.mxu0 0.0
        %3692 = vmatpush1.msra.mxu0 %v3574
        %3693 = vmatprep.subr.mxu0 0.0
        %3694 = vmatpush1.msra.mxu0 %v3575
        %3695 = vmatprep.subr.mxu0 0.0
        %3696 = vmatpush1.msra.mxu0 %v3576
        %3697 = vmatprep.subr.mxu0 0.0
        %3698 = vmatpush1.msra.mxu0 %v3577
        %3699 = vmatprep.subr.mxu0 0.0
        %3700 = vmatpush1.msra.mxu0 %v3578
        %3701 = vmatprep.subr.mxu0 0.0
        %3702 = vmatpush1.msra.mxu0 %v3579
        %3703 = vmatprep.subr.mxu0 0.0
        %3704 = vmatpush1.msra.mxu0 %v3580
        %3705 = vmatprep.subr.mxu0 0.0
        %3706 = vmatpush1.msra.mxu0 %v3581
        %3707 = vmatprep.subr.mxu0 0.0
        %3708 = vmatpush1.msra.mxu0 %v3582
        %3709 = vmatprep.subr.mxu0 0.0
        %3710 = vmatpush1.msra.mxu0 %v3583
        %3711 = vmatprep.subr.mxu0 0.0
        %3712 = vmatpush1.msra.mxu0 %v3679
        %3713 = vmatprep.subr.mxu0 0.0
        %3714 = vmatpush1.msra.mxu0 0.0
        %3715 = vmatprep.subr.mxu0 0.0
        %3716 = vmatpush1.msra.mxu0 0.0
        %3717 = vmatprep.subr.mxu0 0.0
        %3718 = vmatpush1.msra.mxu0 0.0
        %3719 = vmatprep.subr.mxu0 0.0
        %3720 = vmatpush1.msra.mxu0 0.0
        %3721 = vmatprep.subr.mxu0 0.0
        %3722 = vmatpush1.msra.mxu0 0.0
        %3723 = vmatprep.subr.mxu0 0.0
        %3724 = vmatpush1.msra.mxu0 0.0
        %3725 = vmatprep.subr.mxu0 0.0
        %3726 = vmatpush1.msra.mxu0 0.0
        %3727 = vmatprep.subr.mxu0 0.0
        %3728 = vmatpush1.msra.mxu0 0.0
        %3729 = vmatprep.subr.mxu0 0.0
        %3730 = vmatpush1.msra.mxu0 0.0
        %3731 = vmatprep.subr.mxu0 0.0
        %3732 = vmatpush1.msra.mxu0 0.0
        %3733 = vmatprep.subr.mxu0 0.0
        %3734 = vmatpush1.msra.mxu0 0.0
        %3735 = vmatprep.subr.mxu0 0.0
        %3736 = vmatpush1.msra.mxu0 0.0
        %3737 = vmatprep.subr.mxu0 0.0
        %3738 = vmatpush1.msra.mxu0 0.0
        %3739 = vmatprep.subr.mxu0 0.0
        %3740 = vmatpush1.msra.mxu0 0.0
        %3741 = vmatprep.subr.mxu0 0.0
        %3742 = vmatpush1.msra.mxu0 0.0
        %3743 = vmatprep.subr.mxu0 0.0
        %3744 = vmatpush1.msra.mxu0 0.0
        %3745 = vmatprep.mubr.f32.mxu0 0.0
        %3746 = vmatmul.mubr.f32.gmra.mrb[0].mxu0 %v3586
        %v3747 = vpop.f32.mrb[0].mxu0
        %v3748 = vadd.f32 0.0, %v3747
        %v3749 = vpop.f32.mrb[0].mxu0
        %3750 = vmatprep.mubr.f32.mxu0 0.0
        %3751 = vmatmul.mubr.f32.gmra.mrb[0].mxu0 %v3589
        %v3752 = vpop.f32.mrb[0].mxu0
        %v3753 = vadd.f32 0.0, %v3752
        %v3754 = vpop.f32.mrb[0].mxu0
        %3755 = vmatprep.mubr.f32.mxu0 0.0
        %3756 = vmatmul.mubr.f32.gmra.mrb[0].mxu0 %v3592
        %v3757 = vpop.f32.mrb[0].mxu0
        %v3758 = vadd.f32 0.0, %v3757
        %v3759 = vpop.f32.mrb[0].mxu0
        %3760 = vmatprep.mubr.f32.mxu0 0.0
        %3761 = vmatmul.mubr.f32.gmra.mrb[0].mxu0 %v3595
        %v3762 = vpop.f32.mrb[0].mxu0
        %v3763 = vadd.f32 0.0, %v3762
        %v3764 = vpop.f32.mrb[0].mxu0
        %3765 = vmatprep.mubr.f32.mxu0 0.0
        %3766 = vmatmul.mubr.f32.gmra.mrb[0].mxu0 %v3598
        %v3767 = vpop.f32.mrb[0].mxu0
        %v3768 = vadd.f32 0.0, %v3767
        %v3769 = vpop.f32.mrb[0].mxu0
        %3770 = vmatprep.mubr.f32.mxu0 0.0
        %3771 = vmatmul.mubr.f32.gmra.mrb[0].mxu0 %v3601
        %v3772 = vpop.f32.mrb[0].mxu0
        %v3773 = vadd.f32 0.0, %v3772
        %v3774 = vpop.f32.mrb[0].mxu0
        %3775 = vmatprep.mubr.f32.mxu0 0.0
        %3776 = vmatmul.mubr.f32.gmra.mrb[0].mxu0 %v3604
        %v3777 = vpop.f32.mrb[0].mxu0
        %v3778 = vadd.f32 0.0, %v3777
        %v3779 = vpop.f32.mrb[0].mxu0
        %3780 = vmatprep.mubr.f32.mxu0 0.0
        %3781 = vmatmul.mubr.f32.gmra.mrb[0].mxu0 %v3607
        %v3782 = vpop.f32.mrb[0].mxu0
        %v3783 = vadd.f32 0.0, %v3782
        %v3784 = vpop.f32.mrb[0].mxu0
        %3785 = vmatprep.mubr.f32.mxu0 0.0
        %3786 = vmatmul.mubr.f32.gmra.mrb[0].mxu0 %v3610
        %v3787 = vpop.f32.mrb[0].mxu0
        %v3788 = vadd.f32 0.0, %v3787
        %v3789 = vpop.f32.mrb[0].mxu0
        %3790 = vmatprep.mubr.f32.mxu0 0.0
        %3791 = vmatmul.mubr.f32.gmra.mrb[0].mxu0 %v3613
        %v3792 = vpop.f32.mrb[0].mxu0
        %v3793 = vadd.f32 0.0, %v3792
        %v3794 = vpop.f32.mrb[0].mxu0
        %3795 = vmatprep.mubr.f32.mxu0 0.0
        %3796 = vmatmul.mubr.f32.gmra.mrb[0].mxu0 %v3616
        %v3797 = vpop.f32.mrb[0].mxu0
        %v3798 = vadd.f32 0.0, %v3797
        %v3799 = vpop.f32.mrb[0].mxu0
        %3800 = vmatprep.mubr.f32.mxu0 0.0
        %3801 = vmatmul.mubr.f32.gmra.mrb[0].mxu0 %v3619
        %v3802 = vpop.f32.mrb[0].mxu0
        %v3803 = vadd.f32 0.0, %v3802
        %v3804 = vpop.f32.mrb[0].mxu0
        %3805 = vmatprep.mubr.f32.mxu0 0.0
        %3806 = vmatmul.mubr.f32.gmra.mrb[0].mxu0 %v3622
        %v3807 = vpop.f32.mrb[0].mxu0
        %v3808 = vadd.f32 0.0, %v3807
        %v3809 = vpop.f32.mrb[0].mxu0
        %3810 = vmatprep.mubr.f32.mxu0 0.0
        %3811 = vmatmul.mubr.f32.gmra.mrb[0].mxu0 %v3625
        %v3812 = vpop.f32.mrb[0].mxu0
        %v3813 = vadd.f32 0.0, %v3812
        %v3814 = vpop.f32.mrb[0].mxu0
        %3815 = vmatprep.mubr.f32.mxu0 0.0
        %3816 = vmatmul.mubr.f32.gmra.mrb[0].mxu0 %v3628
        %v3817 = vpop.f32.mrb[0].mxu0
        %v3818 = vadd.f32 0.0, %v3817
        %v3819 = vpop.f32.mrb[0].mxu0
        %3820 = vmatprep.mubr.f32.mxu0 0.0
        %3821 = vmatmul.mubr.f32.gmra.mrb[0].mxu0 %v3631
        %v3822 = vpop.f32.mrb[0].mxu0
        %v3823 = vadd.f32 0.0, %v3822
        %v3824 = vpop.f32.mrb[0].mxu0
        %3825 = vmatprep.mubr.f32.mxu0 0.0
        %3826 = vmatmul.mubr.f32.gmra.mrb[0].mxu0 %v3634
        %v3827 = vpop.f32.mrb[0].mxu0
        %v3828 = vadd.f32 0.0, %v3827
        %v3829 = vpop.f32.mrb[0].mxu0
        %3830 = vmatprep.mubr.f32.mxu0 0.0
        %3831 = vmatmul.mubr.f32.gmra.mrb[0].mxu0 %v3637
        %v3832 = vpop.f32.mrb[0].mxu0
        %v3833 = vadd.f32 0.0, %v3832
        %v3834 = vpop.f32.mrb[0].mxu0
        %3835 = vmatprep.mubr.f32.mxu0 0.0
        %3836 = vmatmul.mubr.f32.gmra.mrb[0].mxu0 %v3640
        %v3837 = vpop.f32.mrb[0].mxu0
        %v3838 = vadd.f32 0.0, %v3837
        %v3839 = vpop.f32.mrb[0].mxu0
        %3840 = vmatprep.mubr.f32.mxu0 0.0
        %3841 = vmatmul.mubr.f32.gmra.mrb[0].mxu0 %v3643
        %v3842 = vpop.f32.mrb[0].mxu0
        %v3843 = vadd.f32 0.0, %v3842
        %v3844 = vpop.f32.mrb[0].mxu0
        %3845 = vmatprep.mubr.f32.mxu0 0.0
        %3846 = vmatmul.mubr.f32.gmra.mrb[0].mxu0 %v3646
        %v3847 = vpop.f32.mrb[0].mxu0
        %v3848 = vadd.f32 0.0, %v3847
        %v3849 = vpop.f32.mrb[0].mxu0
        %3850 = vmatprep.mubr.f32.mxu0 0.0
        %3851 = vmatmul.mubr.f32.gmra.mrb[0].mxu0 %v3649
        %v3852 = vpop.f32.mrb[0].mxu0
        %v3853 = vadd.f32 0.0, %v3852
        %v3854 = vpop.f32.mrb[0].mxu0
        %3855 = vmatprep.mubr.f32.mxu0 0.0
        %3856 = vmatmul.mubr.f32.gmra.mrb[0].mxu0 %v3652
        %v3857 = vpop.f32.mrb[0].mxu0
        %v3858 = vadd.f32 0.0, %v3857
        %v3859 = vpop.f32.mrb[0].mxu0
        %3860 = vmatprep.mubr.f32.mxu0 0.0
        %3861 = vmatmul.mubr.f32.gmra.mrb[0].mxu0 %v3655
        %v3862 = vpop.f32.mrb[0].mxu0
        %v3863 = vadd.f32 0.0, %v3862
        %v3864 = vpop.f32.mrb[0].mxu0
        %3865 = vmatprep.mubr.f32.mxu0 0.0
        %3866 = vmatmul.mubr.f32.gmra.mrb[0].mxu0 %v3658
        %v3867 = vpop.f32.mrb[0].mxu0
        %v3868 = vadd.f32 0.0, %v3867
        %v3869 = vpop.f32.mrb[0].mxu0
        %3870 = vmatprep.mubr.f32.mxu0 0.0
        %3871 = vmatmul.mubr.f32.gmra.mrb[0].mxu0 %v3661
        %v3872 = vpop.f32.mrb[0].mxu0
        %v3873 = vadd.f32 0.0, %v3872
        %v3874 = vpop.f32.mrb[0].mxu0
        %3875 = vmatprep.mubr.f32.mxu0 0.0
        %3876 = vmatmul.mubr.f32.gmra.mrb[0].mxu0 %v3664
        %v3877 = vpop.f32.mrb[0].mxu0
        %v3878 = vadd.f32 0.0, %v3877
        %v3879 = vpop.f32.mrb[0].mxu0
        %3880 = vmatprep.mubr.f32.mxu0 0.0
        %3881 = vmatmul.mubr.f32.gmra.mrb[0].mxu0 %v3667
        %v3882 = vpop.f32.mrb[0].mxu0
        %v3883 = vadd.f32 0.0, %v3882
        %v3884 = vpop.f32.mrb[0].mxu0
        %3885 = vmatprep.mubr.f32.mxu0 0.0
        %3886 = vmatmul.mubr.f32.gmra.mrb[0].mxu0 %v3670
        %v3887 = vpop.f32.mrb[0].mxu0
        %v3888 = vadd.f32 0.0, %v3887
        %v3889 = vpop.f32.mrb[0].mxu0
        %3890 = vmatprep.mubr.f32.mxu0 0.0
        %3891 = vmatmul.mubr.f32.gmra.mrb[0].mxu0 %v3673
        %v3892 = vpop.f32.mrb[0].mxu0
        %v3893 = vadd.f32 0.0, %v3892
        %v3894 = vpop.f32.mrb[0].mxu0
        %3895 = vmatprep.mubr.f32.mxu0 0.0
        %3896 = vmatmul.mubr.f32.gmra.mrb[0].mxu0 %v3676
        %v3897 = vpop.f32.mrb[0].mxu0
        %v3898 = vadd.f32 0.0, %v3897
        %v3899 = vpop.f32.mrb[0].mxu0
        %3900 = vdwg.mxu0
        %s3901 = scalar_lea.vmem [#allocation5], 496
        %3902 = vst.msk [vmem:[%s3901] sm:$0xff] %vm3109, %v3748
        %3903 = vst.msk [vmem:[%s3901 + $0x8] sm:$0xff] %vm3109, %v3753
        %3904 = vst.msk [vmem:[%s3901 + $0x10] sm:$0xff] %vm3109, %v3758
        %3905 = vst.msk [vmem:[%s3901 + $0x18] sm:$0xff] %vm3109, %v3763
        %3906 = vst.msk [vmem:[%s3901 + $0x20] sm:$0xff] %vm3109, %v3768
        %3907 = vst.msk [vmem:[%s3901 + $0x28] sm:$0xff] %vm3109, %v3773
        %3908 = vst.msk [vmem:[%s3901 + $0x30] sm:$0xff] %vm3109, %v3778
        %3909 = vst.msk [vmem:[%s3901 + $0x38] sm:$0xff] %vm3109, %v3783
        %3910 = vst.msk [vmem:[%s3901 + $0x40] sm:$0xff] %vm3109, %v3788
        %3911 = vst.msk [vmem:[%s3901 + $0x48] sm:$0xff] %vm3109, %v3793
        %3912 = vst.msk [vmem:[%s3901 + $0x50] sm:$0xff] %vm3109, %v3798
        %3913 = vst.msk [vmem:[%s3901 + $0x58] sm:$0xff] %vm3109, %v3803
        %3914 = vst.msk [vmem:[%s3901 + $0x60] sm:$0xff] %vm3109, %v3808
        %3915 = vst.msk [vmem:[%s3901 + $0x68] sm:$0xff] %vm3109, %v3813
        %3916 = vst.msk [vmem:[%s3901 + $0x70] sm:$0xff] %vm3109, %v3818
        %3917 = vst.msk [vmem:[%s3901 + $0x78] sm:$0xff] %vm3109, %v3823
        %3918 = vst.msk [vmem:[%s3901 + $0x80] sm:$0xff] %vm3109, %v3828
        %3919 = vst.msk [vmem:[%s3901 + $0x88] sm:$0xff] %vm3109, %v3833
        %3920 = vst.msk [vmem:[%s3901 + $0x90] sm:$0xff] %vm3109, %v3838
        %3921 = vst.msk [vmem:[%s3901 + $0x98] sm:$0xff] %vm3109, %v3843
        %3922 = vst.msk [vmem:[%s3901 + $0xa0] sm:$0xff] %vm3109, %v3848
        %3923 = vst.msk [vmem:[%s3901 + $0xa8] sm:$0xff] %vm3109, %v3853
        %3924 = vst.msk [vmem:[%s3901 + $0xb0] sm:$0xff] %vm3109, %v3858
        %3925 = vst.msk [vmem:[%s3901 + $0xb8] sm:$0xff] %vm3109, %v3863
        %3926 = vst.msk [vmem:[%s3901 + $0xc0] sm:$0xff] %vm3109, %v3868
        %3927 = vst.msk [vmem:[%s3901 + $0xc8] sm:$0xff] %vm3109, %v3873
        %3928 = vst.msk [vmem:[%s3901 + $0xd0] sm:$0xff] %vm3109, %v3878
        %3929 = vst.msk [vmem:[%s3901 + $0xd8] sm:$0xff] %vm3109, %v3883
        %3930 = vst.msk [vmem:[%s3901 + $0xe0] sm:$0xff] %vm3109, %v3888
        %3931 = vst.msk [vmem:[%s3901 + $0xe8] sm:$0xff] %vm3109, %v3893
        %3932 = vst.msk [vmem:[%s3901 + $0xf0] sm:$0xff] %vm3109, %v3898
        %vm3933 = vcmask 482304
        %3934 = vst.msk [vmem:[#allocation7 + $0x1e0] sm:$0xff] %vm3933, 0.0
        %3935 = vst.msk [vmem:[#allocation7 + $0x1e8] sm:$0xff] %vm3933, 0.0
        %3936 = vst.msk [vmem:[#allocation7 + $0x1f0] sm:$0xff] %vm3933, 0.0
        %3937 = vst.msk [vmem:[#allocation7 + $0x1f8] sm:$0xff] %vm3933, 0.0
        loop: start=0, step=1, limit=16
        $region65: #{cnn_forward.2} parent=47 // loop_pre_header
          _
        $region66: #{cnn_forward.2} parent=47 // loop_header
          %s3939 = sphi 0, %s3943
          %p3940 = scmp.ge.s32.totalorder %s3939, 16
        $region67: #{cnn_forward.2} parent=47 // loop_header_branch
          %3942 = sbr.rel (%p3940) target = $region71
        $region68: #{cnn_forward.2} parent=47 // loop_body
          %s3944 = smul.u32 %s3939, 36
          %s3945 = sld [smem:[#allocation12 + %s3944]]
          %v3946 = vld [vmem:[#allocation5] sm:$0xff]
          %v3947 = vld [vmem:[#allocation5 + $0x8] sm:$0xff]
          %v3948 = vld [vmem:[#allocation5 + $0x10] sm:$0xff]
          %v3949 = vld [vmem:[#allocation5 + $0x18] sm:$0xff]
          %v3950 = vld [vmem:[#allocation5 + $0x20] sm:$0xff]
          %v3951 = vld [vmem:[#allocation5 + $0x28] sm:$0xff]
          %v3952 = vld [vmem:[#allocation5 + $0x30] sm:$0xff]
          %v3953 = vld [vmem:[#allocation5 + $0x38] sm:$0xf]
          %v3954 = vstv %s3945
          %v3955 = vmul.f32 %v3954, %v3946
          %v3956 = vmul.f32 %v3954, %v3947
          %v3957 = vmul.f32 %v3954, %v3948
          %v3958 = vmul.f32 %v3954, %v3949
          %v3959 = vmul.f32 %v3954, %v3950
          %v3960 = vmul.f32 %v3954, %v3951
          %v3961 = vmul.f32 %v3954, %v3952
          %v3962 = vmul.f32 %v3954, %v3953
          %v3963 = vadd.f32 %v3955, 0.0
          %v3964 = vadd.f32 %v3956, 0.0
          %v3965 = vadd.f32 %v3957, 0.0
          %v3966 = vadd.f32 %v3958, 0.0
          %v3967 = vadd.f32 %v3959, 0.0
          %v3968 = vadd.f32 %v3960, 0.0
          %v3969 = vadd.f32 %v3961, 0.0
          %v3970 = vadd.f32 %v3962, 0.0
          %s3971 = sadd.s32 %s3944, 1
          %s3972 = sld [smem:[#allocation12 + %s3971]]
          %v3973 = vld [vmem:[%s3505] sm:$0xff]
          %v3974 = vld [vmem:[%s3505 + $0x8] sm:$0xff]
          %v3975 = vld [vmem:[%s3505 + $0x10] sm:$0xff]
          %v3976 = vld [vmem:[%s3505 + $0x18] sm:$0xff]
          %v3977 = vld [vmem:[%s3505 + $0x20] sm:$0xff]
          %v3978 = vld [vmem:[%s3505 + $0x28] sm:$0xff]
          %v3979 = vld [vmem:[%s3505 + $0x30] sm:$0xff]
          %v3980 = vld [vmem:[%s3505 + $0x38] sm:$0xf]
          %v3981 = vstv %s3972
          %v3982 = vmul.f32 %v3981, %v3973
          %v3983 = vmul.f32 %v3981, %v3974
          %v3984 = vmul.f32 %v3981, %v3975
          %v3985 = vmul.f32 %v3981, %v3976
          %v3986 = vmul.f32 %v3981, %v3977
          %v3987 = vmul.f32 %v3981, %v3978
          %v3988 = vmul.f32 %v3981, %v3979
          %v3989 = vmul.f32 %v3981, %v3980
          %v3990 = vadd.f32 %v3963, %v3982
          %v3991 = vadd.f32 %v3964, %v3983
          %v3992 = vadd.f32 %v3965, %v3984
          %v3993 = vadd.f32 %v3966, %v3985
          %v3994 = vadd.f32 %v3967, %v3986
          %v3995 = vadd.f32 %v3968, %v3987
          %v3996 = vadd.f32 %v3969, %v3988
          %v3997 = vadd.f32 %v3970, %v3989
          %s3998 = sadd.s32 %s3944, 2
          %s3999 = sld [smem:[#allocation12 + %s3998]]
          %v4000 = vld [vmem:[%s3901] sm:$0xff]
          %v4001 = vld [vmem:[%s3901 + $0x8] sm:$0xff]
          %v4002 = vld [vmem:[%s3901 + $0x10] sm:$0xff]
          %v4003 = vld [vmem:[%s3901 + $0x18] sm:$0xff]
          %v4004 = vld [vmem:[%s3901 + $0x20] sm:$0xff]
          %v4005 = vld [vmem:[%s3901 + $0x28] sm:$0xff]
          %v4006 = vld [vmem:[%s3901 + $0x30] sm:$0xff]
          %v4007 = vld [vmem:[%s3901 + $0x38] sm:$0xf]
          %v4008 = vstv %s3999
          %v4009 = vmul.f32 %v4008, %v4000
          %v4010 = vmul.f32 %v4008, %v4001
          %v4011 = vmul.f32 %v4008, %v4002
          %v4012 = vmul.f32 %v4008, %v4003
          %v4013 = vmul.f32 %v4008, %v4004
          %v4014 = vmul.f32 %v4008, %v4005
          %v4015 = vmul.f32 %v4008, %v4006
          %v4016 = vmul.f32 %v4008, %v4007
          %v4017 = vadd.f32 %v3990, %v4009
          %v4018 = vadd.f32 %v3991, %v4010
          %v4019 = vadd.f32 %v3992, %v4011
          %v4020 = vadd.f32 %v3993, %v4012
          %v4021 = vadd.f32 %v3994, %v4013
          %v4022 = vadd.f32 %v3995, %v4014
          %v4023 = vadd.f32 %v3996, %v4015
          %v4024 = vadd.f32 %v3997, %v4016
          %s4025 = sadd.s32 %s3944, 3
          %s4026 = sld [smem:[#allocation12 + %s4025]]
          %v4027 = vld [vmem:[#allocation5 + $0x1] sm:$0xff]
          %v4028 = vld [vmem:[#allocation5 + $0x9] sm:$0xff]
          %v4029 = vld [vmem:[#allocation5 + $0x11] sm:$0xff]
          %v4030 = vld [vmem:[#allocation5 + $0x19] sm:$0xff]
          %v4031 = vld [vmem:[#allocation5 + $0x21] sm:$0xff]
          %v4032 = vld [vmem:[#allocation5 + $0x29] sm:$0xff]
          %v4033 = vld [vmem:[#allocation5 + $0x31] sm:$0xff]
          %v4034 = vld [vmem:[#allocation5 + $0x39] sm:$0xf]
          %v4035 = vstv %s4026
          %v4036 = vmul.f32 %v4035, %v4027
          %v4037 = vmul.f32 %v4035, %v4028
          %v4038 = vmul.f32 %v4035, %v4029
          %v4039 = vmul.f32 %v4035, %v4030
          %v4040 = vmul.f32 %v4035, %v4031
          %v4041 = vmul.f32 %v4035, %v4032
          %v4042 = vmul.f32 %v4035, %v4033
          %v4043 = vmul.f32 %v4035, %v4034
          %v4044 = vadd.f32 %v4017, %v4036
          %v4045 = vadd.f32 %v4018, %v4037
          %v4046 = vadd.f32 %v4019, %v4038
          %v4047 = vadd.f32 %v4020, %v4039
          %v4048 = vadd.f32 %v4021, %v4040
          %v4049 = vadd.f32 %v4022, %v4041
          %v4050 = vadd.f32 %v4023, %v4042
          %v4051 = vadd.f32 %v4024, %v4043
          %s4052 = sadd.s32 %s3944, 4
          %s4053 = sld [smem:[#allocation12 + %s4052]]
          %v4054 = vld [vmem:[%s3505 + $0x1] sm:$0xff]
          %v4055 = vld [vmem:[%s3505 + $0x9] sm:$0xff]
          %v4056 = vld [vmem:[%s3505 + $0x11] sm:$0xff]
          %v4057 = vld [vmem:[%s3505 + $0x19] sm:$0xff]
          %v4058 = vld [vmem:[%s3505 + $0x21] sm:$0xff]
          %v4059 = vld [vmem:[%s3505 + $0x29] sm:$0xff]
          %v4060 = vld [vmem:[%s3505 + $0x31] sm:$0xff]
          %v4061 = vld [vmem:[%s3505 + $0x39] sm:$0xf]
          %v4062 = vstv %s4053
          %v4063 = vmul.f32 %v4062, %v4054
          %v4064 = vmul.f32 %v4062, %v4055
          %v4065 = vmul.f32 %v4062, %v4056
          %v4066 = vmul.f32 %v4062, %v4057
          %v4067 = vmul.f32 %v4062, %v4058
          %v4068 = vmul.f32 %v4062, %v4059
          %v4069 = vmul.f32 %v4062, %v4060
          %v4070 = vmul.f32 %v4062, %v4061
          %v4071 = vadd.f32 %v4044, %v4063
          %v4072 = vadd.f32 %v4045, %v4064
          %v4073 = vadd.f32 %v4046, %v4065
          %v4074 = vadd.f32 %v4047, %v4066
          %v4075 = vadd.f32 %v4048, %v4067
          %v4076 = vadd.f32 %v4049, %v4068
          %v4077 = vadd.f32 %v4050, %v4069
          %v4078 = vadd.f32 %v4051, %v4070
          %s4079 = sadd.s32 %s3944, 5
          %s4080 = sld [smem:[#allocation12 + %s4079]]
          %v4081 = vld [vmem:[%s3901 + $0x1] sm:$0xff]
          %v4082 = vld [vmem:[%s3901 + $0x9] sm:$0xff]
          %v4083 = vld [vmem:[%s3901 + $0x11] sm:$0xff]
          %v4084 = vld [vmem:[%s3901 + $0x19] sm:$0xff]
          %v4085 = vld [vmem:[%s3901 + $0x21] sm:$0xff]
          %v4086 = vld [vmem:[%s3901 + $0x29] sm:$0xff]
          %v4087 = vld [vmem:[%s3901 + $0x31] sm:$0xff]
          %v4088 = vld [vmem:[%s3901 + $0x39] sm:$0xf]
          %v4089 = vstv %s4080
          %v4090 = vmul.f32 %v4089, %v4081
          %v4091 = vmul.f32 %v4089, %v4082
          %v4092 = vmul.f32 %v4089, %v4083
          %v4093 = vmul.f32 %v4089, %v4084
          %v4094 = vmul.f32 %v4089, %v4085
          %v4095 = vmul.f32 %v4089, %v4086
          %v4096 = vmul.f32 %v4089, %v4087
          %v4097 = vmul.f32 %v4089, %v4088
          %v4098 = vadd.f32 %v4071, %v4090
          %v4099 = vadd.f32 %v4072, %v4091
          %v4100 = vadd.f32 %v4073, %v4092
          %v4101 = vadd.f32 %v4074, %v4093
          %v4102 = vadd.f32 %v4075, %v4094
          %v4103 = vadd.f32 %v4076, %v4095
          %v4104 = vadd.f32 %v4077, %v4096
          %v4105 = vadd.f32 %v4078, %v4097
          %s4106 = sadd.s32 %s3944, 6
          %s4107 = sld [smem:[#allocation12 + %s4106]]
          %v4108 = vld [vmem:[#allocation5 + $0x2] sm:$0xff]
          %v4109 = vld [vmem:[#allocation5 + $0xa] sm:$0xff]
          %v4110 = vld [vmem:[#allocation5 + $0x12] sm:$0xff]
          %v4111 = vld [vmem:[#allocation5 + $0x1a] sm:$0xff]
          %v4112 = vld [vmem:[#allocation5 + $0x22] sm:$0xff]
          %v4113 = vld [vmem:[#allocation5 + $0x2a] sm:$0xff]
          %v4114 = vld [vmem:[#allocation5 + $0x32] sm:$0xff]
          %v4115 = vld [vmem:[#allocation5 + $0x3a] sm:$0xf]
          %v4116 = vstv %s4107
          %v4117 = vmul.f32 %v4116, %v4108
          %v4118 = vmul.f32 %v4116, %v4109
          %v4119 = vmul.f32 %v4116, %v4110
          %v4120 = vmul.f32 %v4116, %v4111
          %v4121 = vmul.f32 %v4116, %v4112
          %v4122 = vmul.f32 %v4116, %v4113
          %v4123 = vmul.f32 %v4116, %v4114
          %v4124 = vmul.f32 %v4116, %v4115
          %v4125 = vadd.f32 %v4098, %v4117
          %v4126 = vadd.f32 %v4099, %v4118
          %v4127 = vadd.f32 %v4100, %v4119
          %v4128 = vadd.f32 %v4101, %v4120
          %v4129 = vadd.f32 %v4102, %v4121
          %v4130 = vadd.f32 %v4103, %v4122
          %v4131 = vadd.f32 %v4104, %v4123
          %v4132 = vadd.f32 %v4105, %v4124
          %s4133 = sadd.s32 %s3944, 7
          %s4134 = sld [smem:[#allocation12 + %s4133]]
          %v4135 = vld [vmem:[%s3505 + $0x2] sm:$0xff]
          %v4136 = vld [vmem:[%s3505 + $0xa] sm:$0xff]
          %v4137 = vld [vmem:[%s3505 + $0x12] sm:$0xff]
          %v4138 = vld [vmem:[%s3505 + $0x1a] sm:$0xff]
          %v4139 = vld [vmem:[%s3505 + $0x22] sm:$0xff]
          %v4140 = vld [vmem:[%s3505 + $0x2a] sm:$0xff]
          %v4141 = vld [vmem:[%s3505 + $0x32] sm:$0xff]
          %v4142 = vld [vmem:[%s3505 + $0x3a] sm:$0xf]
          %v4143 = vstv %s4134
          %v4144 = vmul.f32 %v4143, %v4135
          %v4145 = vmul.f32 %v4143, %v4136
          %v4146 = vmul.f32 %v4143, %v4137
          %v4147 = vmul.f32 %v4143, %v4138
          %v4148 = vmul.f32 %v4143, %v4139
          %v4149 = vmul.f32 %v4143, %v4140
          %v4150 = vmul.f32 %v4143, %v4141
          %v4151 = vmul.f32 %v4143, %v4142
          %v4152 = vadd.f32 %v4125, %v4144
          %v4153 = vadd.f32 %v4126, %v4145
          %v4154 = vadd.f32 %v4127, %v4146
          %v4155 = vadd.f32 %v4128, %v4147
          %v4156 = vadd.f32 %v4129, %v4148
          %v4157 = vadd.f32 %v4130, %v4149
          %v4158 = vadd.f32 %v4131, %v4150
          %v4159 = vadd.f32 %v4132, %v4151
          %s4160 = sadd.s32 %s3944, 8
          %s4161 = sld [smem:[#allocation12 + %s4160]]
          %v4162 = vld [vmem:[%s3901 + $0x2] sm:$0xff]
          %v4163 = vld [vmem:[%s3901 + $0xa] sm:$0xff]
          %v4164 = vld [vmem:[%s3901 + $0x12] sm:$0xff]
          %v4165 = vld [vmem:[%s3901 + $0x1a] sm:$0xff]
          %v4166 = vld [vmem:[%s3901 + $0x22] sm:$0xff]
          %v4167 = vld [vmem:[%s3901 + $0x2a] sm:$0xff]
          %v4168 = vld [vmem:[%s3901 + $0x32] sm:$0xff]
          %v4169 = vld [vmem:[%s3901 + $0x3a] sm:$0xf]
          %v4170 = vstv %s4161
          %v4171 = vmul.f32 %v4170, %v4162
          %v4172 = vmul.f32 %v4170, %v4163
          %v4173 = vmul.f32 %v4170, %v4164
          %v4174 = vmul.f32 %v4170, %v4165
          %v4175 = vmul.f32 %v4170, %v4166
          %v4176 = vmul.f32 %v4170, %v4167
          %v4177 = vmul.f32 %v4170, %v4168
          %v4178 = vmul.f32 %v4170, %v4169
          %v4179 = vadd.f32 %v4152, %v4171
          %v4180 = vadd.f32 %v4153, %v4172
          %v4181 = vadd.f32 %v4154, %v4173
          %v4182 = vadd.f32 %v4155, %v4174
          %v4183 = vadd.f32 %v4156, %v4175
          %v4184 = vadd.f32 %v4157, %v4176
          %v4185 = vadd.f32 %v4158, %v4177
          %v4186 = vadd.f32 %v4159, %v4178
          %s4187 = sadd.s32 %s3944, 9
          %s4188 = sld [smem:[#allocation12 + %s4187]]
          %v4189 = vld [vmem:[#allocation5 + $0x3e] sm:$0xff]
          %v4190 = vld [vmem:[#allocation5 + $0x46] sm:$0xff]
          %v4191 = vld [vmem:[#allocation5 + $0x4e] sm:$0xff]
          %v4192 = vld [vmem:[#allocation5 + $0x56] sm:$0xff]
          %v4193 = vld [vmem:[#allocation5 + $0x5e] sm:$0xff]
          %v4194 = vld [vmem:[#allocation5 + $0x66] sm:$0xff]
          %v4195 = vld [vmem:[#allocation5 + $0x6e] sm:$0xff]
          %v4196 = vld [vmem:[#allocation5 + $0x76] sm:$0xf]
          %v4197 = vstv %s4188
          %v4198 = vmul.f32 %v4197, %v4189
          %v4199 = vmul.f32 %v4197, %v4190
          %v4200 = vmul.f32 %v4197, %v4191
          %v4201 = vmul.f32 %v4197, %v4192
          %v4202 = vmul.f32 %v4197, %v4193
          %v4203 = vmul.f32 %v4197, %v4194
          %v4204 = vmul.f32 %v4197, %v4195
          %v4205 = vmul.f32 %v4197, %v4196
          %v4206 = vadd.f32 %v4179, %v4198
          %v4207 = vadd.f32 %v4180, %v4199
          %v4208 = vadd.f32 %v4181, %v4200
          %v4209 = vadd.f32 %v4182, %v4201
          %v4210 = vadd.f32 %v4183, %v4202
          %v4211 = vadd.f32 %v4184, %v4203
          %v4212 = vadd.f32 %v4185, %v4204
          %v4213 = vadd.f32 %v4186, %v4205
          %s4214 = sadd.s32 %s3944, 10
          %s4215 = sld [smem:[#allocation12 + %s4214]]
          %v4216 = vld [vmem:[%s3505 + $0x3e] sm:$0xff]
          %v4217 = vld [vmem:[%s3505 + $0x46] sm:$0xff]
          %v4218 = vld [vmem:[%s3505 + $0x4e] sm:$0xff]
          %v4219 = vld [vmem:[%s3505 + $0x56] sm:$0xff]
          %v4220 = vld [vmem:[%s3505 + $0x5e] sm:$0xff]
          %v4221 = vld [vmem:[%s3505 + $0x66] sm:$0xff]
          %v4222 = vld [vmem:[%s3505 + $0x6e] sm:$0xff]
          %v4223 = vld [vmem:[%s3505 + $0x76] sm:$0xf]
          %v4224 = vstv %s4215
          %v4225 = vmul.f32 %v4224, %v4216
          %v4226 = vmul.f32 %v4224, %v4217
          %v4227 = vmul.f32 %v4224, %v4218
          %v4228 = vmul.f32 %v4224, %v4219
          %v4229 = vmul.f32 %v4224, %v4220
          %v4230 = vmul.f32 %v4224, %v4221
          %v4231 = vmul.f32 %v4224, %v4222
          %v4232 = vmul.f32 %v4224, %v4223
          %v4233 = vadd.f32 %v4206, %v4225
          %v4234 = vadd.f32 %v4207, %v4226
          %v4235 = vadd.f32 %v4208, %v4227
          %v4236 = vadd.f32 %v4209, %v4228
          %v4237 = vadd.f32 %v4210, %v4229
          %v4238 = vadd.f32 %v4211, %v4230
          %v4239 = vadd.f32 %v4212, %v4231
          %v4240 = vadd.f32 %v4213, %v4232
          %s4241 = sadd.s32 %s3944, 11
          %s4242 = sld [smem:[#allocation12 + %s4241]]
          %v4243 = vld [vmem:[%s3901 + $0x3e] sm:$0xff]
          %v4244 = vld [vmem:[%s3901 + $0x46] sm:$0xff]
          %v4245 = vld [vmem:[%s3901 + $0x4e] sm:$0xff]
          %v4246 = vld [vmem:[%s3901 + $0x56] sm:$0xff]
          %v4247 = vld [vmem:[%s3901 + $0x5e] sm:$0xff]
          %v4248 = vld [vmem:[%s3901 + $0x66] sm:$0xff]
          %v4249 = vld [vmem:[%s3901 + $0x6e] sm:$0xff]
          %v4250 = vld [vmem:[%s3901 + $0x76] sm:$0xf]
          %v4251 = vstv %s4242
          %v4252 = vmul.f32 %v4251, %v4243
          %v4253 = vmul.f32 %v4251, %v4244
          %v4254 = vmul.f32 %v4251, %v4245
          %v4255 = vmul.f32 %v4251, %v4246
          %v4256 = vmul.f32 %v4251, %v4247
          %v4257 = vmul.f32 %v4251, %v4248
          %v4258 = vmul.f32 %v4251, %v4249
          %v4259 = vmul.f32 %v4251, %v4250
          %v4260 = vadd.f32 %v4233, %v4252
          %v4261 = vadd.f32 %v4234, %v4253
          %v4262 = vadd.f32 %v4235, %v4254
          %v4263 = vadd.f32 %v4236, %v4255
          %v4264 = vadd.f32 %v4237, %v4256
          %v4265 = vadd.f32 %v4238, %v4257
          %v4266 = vadd.f32 %v4239, %v4258
          %v4267 = vadd.f32 %v4240, %v4259
          %s4268 = sadd.s32 %s3944, 12
          %s4269 = sld [smem:[#allocation12 + %s4268]]
          %v4270 = vld [vmem:[#allocation5 + $0x3f] sm:$0xff]
          %v4271 = vld [vmem:[#allocation5 + $0x47] sm:$0xff]
          %v4272 = vld [vmem:[#allocation5 + $0x4f] sm:$0xff]
          %v4273 = vld [vmem:[#allocation5 + $0x57] sm:$0xff]
          %v4274 = vld [vmem:[#allocation5 + $0x5f] sm:$0xff]
          %v4275 = vld [vmem:[#allocation5 + $0x67] sm:$0xff]
          %v4276 = vld [vmem:[#allocation5 + $0x6f] sm:$0xff]
          %v4277 = vld [vmem:[#allocation5 + $0x77] sm:$0xf]
          %v4278 = vstv %s4269
          %v4279 = vmul.f32 %v4278, %v4270
          %v4280 = vmul.f32 %v4278, %v4271
          %v4281 = vmul.f32 %v4278, %v4272
          %v4282 = vmul.f32 %v4278, %v4273
          %v4283 = vmul.f32 %v4278, %v4274
          %v4284 = vmul.f32 %v4278, %v4275
          %v4285 = vmul.f32 %v4278, %v4276
          %v4286 = vmul.f32 %v4278, %v4277
          %v4287 = vadd.f32 %v4260, %v4279
          %v4288 = vadd.f32 %v4261, %v4280
          %v4289 = vadd.f32 %v4262, %v4281
          %v4290 = vadd.f32 %v4263, %v4282
          %v4291 = vadd.f32 %v4264, %v4283
          %v4292 = vadd.f32 %v4265, %v4284
          %v4293 = vadd.f32 %v4266, %v4285
          %v4294 = vadd.f32 %v4267, %v4286
          %s4295 = sadd.s32 %s3944, 13
          %s4296 = sld [smem:[#allocation12 + %s4295]]
          %v4297 = vld [vmem:[%s3505 + $0x3f] sm:$0xff]
          %v4298 = vld [vmem:[%s3505 + $0x47] sm:$0xff]
          %v4299 = vld [vmem:[%s3505 + $0x4f] sm:$0xff]
          %v4300 = vld [vmem:[%s3505 + $0x57] sm:$0xff]
          %v4301 = vld [vmem:[%s3505 + $0x5f] sm:$0xff]
          %v4302 = vld [vmem:[%s3505 + $0x67] sm:$0xff]
          %v4303 = vld [vmem:[%s3505 + $0x6f] sm:$0xff]
          %v4304 = vld [vmem:[%s3505 + $0x77] sm:$0xf]
          %v4305 = vstv %s4296
          %v4306 = vmul.f32 %v4305, %v4297
          %v4307 = vmul.f32 %v4305, %v4298
          %v4308 = vmul.f32 %v4305, %v4299
          %v4309 = vmul.f32 %v4305, %v4300
          %v4310 = vmul.f32 %v4305, %v4301
          %v4311 = vmul.f32 %v4305, %v4302
          %v4312 = vmul.f32 %v4305, %v4303
          %v4313 = vmul.f32 %v4305, %v4304
          %v4314 = vadd.f32 %v4287, %v4306
          %v4315 = vadd.f32 %v4288, %v4307
          %v4316 = vadd.f32 %v4289, %v4308
          %v4317 = vadd.f32 %v4290, %v4309
          %v4318 = vadd.f32 %v4291, %v4310
          %v4319 = vadd.f32 %v4292, %v4311
          %v4320 = vadd.f32 %v4293, %v4312
          %v4321 = vadd.f32 %v4294, %v4313
          %s4322 = sadd.s32 %s3944, 14
          %s4323 = sld [smem:[#allocation12 + %s4322]]
          %v4324 = vld [vmem:[%s3901 + $0x3f] sm:$0xff]
          %v4325 = vld [vmem:[%s3901 + $0x47] sm:$0xff]
          %v4326 = vld [vmem:[%s3901 + $0x4f] sm:$0xff]
          %v4327 = vld [vmem:[%s3901 + $0x57] sm:$0xff]
          %v4328 = vld [vmem:[%s3901 + $0x5f] sm:$0xff]
          %v4329 = vld [vmem:[%s3901 + $0x67] sm:$0xff]
          %v4330 = vld [vmem:[%s3901 + $0x6f] sm:$0xff]
          %v4331 = vld [vmem:[%s3901 + $0x77] sm:$0xf]
          %v4332 = vstv %s4323
          %v4333 = vmul.f32 %v4332, %v4324
          %v4334 = vmul.f32 %v4332, %v4325
          %v4335 = vmul.f32 %v4332, %v4326
          %v4336 = vmul.f32 %v4332, %v4327
          %v4337 = vmul.f32 %v4332, %v4328
          %v4338 = vmul.f32 %v4332, %v4329
          %v4339 = vmul.f32 %v4332, %v4330
          %v4340 = vmul.f32 %v4332, %v4331
          %v4341 = vadd.f32 %v4314, %v4333
          %v4342 = vadd.f32 %v4315, %v4334
          %v4343 = vadd.f32 %v4316, %v4335
          %v4344 = vadd.f32 %v4317, %v4336
          %v4345 = vadd.f32 %v4318, %v4337
          %v4346 = vadd.f32 %v4319, %v4338
          %v4347 = vadd.f32 %v4320, %v4339
          %v4348 = vadd.f32 %v4321, %v4340
          %s4349 = sadd.s32 %s3944, 15
          %s4350 = sld [smem:[#allocation12 + %s4349]]
          %v4351 = vld [vmem:[#allocation5 + $0x40] sm:$0xff]
          %v4352 = vld [vmem:[#allocation5 + $0x48] sm:$0xff]
          %v4353 = vld [vmem:[#allocation5 + $0x50] sm:$0xff]
          %v4354 = vld [vmem:[#allocation5 + $0x58] sm:$0xff]
          %v4355 = vld [vmem:[#allocation5 + $0x60] sm:$0xff]
          %v4356 = vld [vmem:[#allocation5 + $0x68] sm:$0xff]
          %v4357 = vld [vmem:[#allocation5 + $0x70] sm:$0xff]
          %v4358 = vld [vmem:[#allocation5 + $0x78] sm:$0xf]
          %v4359 = vstv %s4350
          %v4360 = vmul.f32 %v4359, %v4351
          %v4361 = vmul.f32 %v4359, %v4352
          %v4362 = vmul.f32 %v4359, %v4353
          %v4363 = vmul.f32 %v4359, %v4354
          %v4364 = vmul.f32 %v4359, %v4355
          %v4365 = vmul.f32 %v4359, %v4356
          %v4366 = vmul.f32 %v4359, %v4357
          %v4367 = vmul.f32 %v4359, %v4358
          %v4368 = vadd.f32 %v4341, %v4360
          %v4369 = vadd.f32 %v4342, %v4361
          %v4370 = vadd.f32 %v4343, %v4362
          %v4371 = vadd.f32 %v4344, %v4363
          %v4372 = vadd.f32 %v4345, %v4364
          %v4373 = vadd.f32 %v4346, %v4365
          %v4374 = vadd.f32 %v4347, %v4366
          %v4375 = vadd.f32 %v4348, %v4367
          %s4376 = sadd.s32 %s3944, 16
          %s4377 = sld [smem:[#allocation12 + %s4376]]
          %v4378 = vld [vmem:[%s3505 + $0x40] sm:$0xff]
          %v4379 = vld [vmem:[%s3505 + $0x48] sm:$0xff]
          %v4380 = vld [vmem:[%s3505 + $0x50] sm:$0xff]
          %v4381 = vld [vmem:[%s3505 + $0x58] sm:$0xff]
          %v4382 = vld [vmem:[%s3505 + $0x60] sm:$0xff]
          %v4383 = vld [vmem:[%s3505 + $0x68] sm:$0xff]
          %v4384 = vld [vmem:[%s3505 + $0x70] sm:$0xff]
          %v4385 = vld [vmem:[%s3505 + $0x78] sm:$0xf]
          %v4386 = vstv %s4377
          %v4387 = vmul.f32 %v4386, %v4378
          %v4388 = vmul.f32 %v4386, %v4379
          %v4389 = vmul.f32 %v4386, %v4380
          %v4390 = vmul.f32 %v4386, %v4381
          %v4391 = vmul.f32 %v4386, %v4382
          %v4392 = vmul.f32 %v4386, %v4383
          %v4393 = vmul.f32 %v4386, %v4384
          %v4394 = vmul.f32 %v4386, %v4385
          %v4395 = vadd.f32 %v4368, %v4387
          %v4396 = vadd.f32 %v4369, %v4388
          %v4397 = vadd.f32 %v4370, %v4389
          %v4398 = vadd.f32 %v4371, %v4390
          %v4399 = vadd.f32 %v4372, %v4391
          %v4400 = vadd.f32 %v4373, %v4392
          %v4401 = vadd.f32 %v4374, %v4393
          %v4402 = vadd.f32 %v4375, %v4394
          %s4403 = sadd.s32 %s3944, 17
          %s4404 = sld [smem:[#allocation12 + %s4403]]
          %v4405 = vld [vmem:[%s3901 + $0x40] sm:$0xff]
          %v4406 = vld [vmem:[%s3901 + $0x48] sm:$0xff]
          %v4407 = vld [vmem:[%s3901 + $0x50] sm:$0xff]
          %v4408 = vld [vmem:[%s3901 + $0x58] sm:$0xff]
          %v4409 = vld [vmem:[%s3901 + $0x60] sm:$0xff]
          %v4410 = vld [vmem:[%s3901 + $0x68] sm:$0xff]
          %v4411 = vld [vmem:[%s3901 + $0x70] sm:$0xff]
          %v4412 = vld [vmem:[%s3901 + $0x78] sm:$0xf]
          %v4413 = vstv %s4404
          %v4414 = vmul.f32 %v4413, %v4405
          %v4415 = vmul.f32 %v4413, %v4406
          %v4416 = vmul.f32 %v4413, %v4407
          %v4417 = vmul.f32 %v4413, %v4408
          %v4418 = vmul.f32 %v4413, %v4409
          %v4419 = vmul.f32 %v4413, %v4410
          %v4420 = vmul.f32 %v4413, %v4411
          %v4421 = vmul.f32 %v4413, %v4412
          %v4422 = vadd.f32 %v4395, %v4414
          %v4423 = vadd.f32 %v4396, %v4415
          %v4424 = vadd.f32 %v4397, %v4416
          %v4425 = vadd.f32 %v4398, %v4417
          %v4426 = vadd.f32 %v4399, %v4418
          %v4427 = vadd.f32 %v4400, %v4419
          %v4428 = vadd.f32 %v4401, %v4420
          %v4429 = vadd.f32 %v4402, %v4421
          %s4430 = sadd.s32 %s3944, 18
          %s4431 = sld [smem:[#allocation12 + %s4430]]
          %v4432 = vld [vmem:[#allocation5 + $0x7c] sm:$0xff]
          %v4433 = vld [vmem:[#allocation5 + $0x84] sm:$0xff]
          %v4434 = vld [vmem:[#allocation5 + $0x8c] sm:$0xff]
          %v4435 = vld [vmem:[#allocation5 + $0x94] sm:$0xff]
          %v4436 = vld [vmem:[#allocation5 + $0x9c] sm:$0xff]
          %v4437 = vld [vmem:[#allocation5 + $0xa4] sm:$0xff]
          %v4438 = vld [vmem:[#allocation5 + $0xac] sm:$0xff]
          %v4439 = vld [vmem:[#allocation5 + $0xb4] sm:$0xf]
          %v4440 = vstv %s4431
          %v4441 = vmul.f32 %v4440, %v4432
          %v4442 = vmul.f32 %v4440, %v4433
          %v4443 = vmul.f32 %v4440, %v4434
          %v4444 = vmul.f32 %v4440, %v4435
          %v4445 = vmul.f32 %v4440, %v4436
          %v4446 = vmul.f32 %v4440, %v4437
          %v4447 = vmul.f32 %v4440, %v4438
          %v4448 = vmul.f32 %v4440, %v4439
          %v4449 = vadd.f32 %v4422, %v4441
          %v4450 = vadd.f32 %v4423, %v4442
          %v4451 = vadd.f32 %v4424, %v4443
          %v4452 = vadd.f32 %v4425, %v4444
          %v4453 = vadd.f32 %v4426, %v4445
          %v4454 = vadd.f32 %v4427, %v4446
          %v4455 = vadd.f32 %v4428, %v4447
          %v4456 = vadd.f32 %v4429, %v4448
          %s4457 = sadd.s32 %s3944, 19
          %s4458 = sld [smem:[#allocation12 + %s4457]]
          %v4459 = vld [vmem:[%s3505 + $0x7c] sm:$0xff]
          %v4460 = vld [vmem:[%s3505 + $0x84] sm:$0xff]
          %v4461 = vld [vmem:[%s3505 + $0x8c] sm:$0xff]
          %v4462 = vld [vmem:[%s3505 + $0x94] sm:$0xff]
          %v4463 = vld [vmem:[%s3505 + $0x9c] sm:$0xff]
          %v4464 = vld [vmem:[%s3505 + $0xa4] sm:$0xff]
          %v4465 = vld [vmem:[%s3505 + $0xac] sm:$0xff]
          %v4466 = vld [vmem:[%s3505 + $0xb4] sm:$0xf]
          %v4467 = vstv %s4458
          %v4468 = vmul.f32 %v4467, %v4459
          %v4469 = vmul.f32 %v4467, %v4460
          %v4470 = vmul.f32 %v4467, %v4461
          %v4471 = vmul.f32 %v4467, %v4462
          %v4472 = vmul.f32 %v4467, %v4463
          %v4473 = vmul.f32 %v4467, %v4464
          %v4474 = vmul.f32 %v4467, %v4465
          %v4475 = vmul.f32 %v4467, %v4466
          %v4476 = vadd.f32 %v4449, %v4468
          %v4477 = vadd.f32 %v4450, %v4469
          %v4478 = vadd.f32 %v4451, %v4470
          %v4479 = vadd.f32 %v4452, %v4471
          %v4480 = vadd.f32 %v4453, %v4472
          %v4481 = vadd.f32 %v4454, %v4473
          %v4482 = vadd.f32 %v4455, %v4474
          %v4483 = vadd.f32 %v4456, %v4475
          %s4484 = sadd.s32 %s3944, 20
          %s4485 = sld [smem:[#allocation12 + %s4484]]
          %v4486 = vld [vmem:[%s3901 + $0x7c] sm:$0xff]
          %v4487 = vld [vmem:[%s3901 + $0x84] sm:$0xff]
          %v4488 = vld [vmem:[%s3901 + $0x8c] sm:$0xff]
          %v4489 = vld [vmem:[%s3901 + $0x94] sm:$0xff]
          %v4490 = vld [vmem:[%s3901 + $0x9c] sm:$0xff]
          %v4491 = vld [vmem:[%s3901 + $0xa4] sm:$0xff]
          %v4492 = vld [vmem:[%s3901 + $0xac] sm:$0xff]
          %v4493 = vld [vmem:[%s3901 + $0xb4] sm:$0xf]
          %v4494 = vstv %s4485
          %v4495 = vmul.f32 %v4494, %v4486
          %v4496 = vmul.f32 %v4494, %v4487
          %v4497 = vmul.f32 %v4494, %v4488
          %v4498 = vmul.f32 %v4494, %v4489
          %v4499 = vmul.f32 %v4494, %v4490
          %v4500 = vmul.f32 %v4494, %v4491
          %v4501 = vmul.f32 %v4494, %v4492
          %v4502 = vmul.f32 %v4494, %v4493
          %v4503 = vadd.f32 %v4476, %v4495
          %v4504 = vadd.f32 %v4477, %v4496
          %v4505 = vadd.f32 %v4478, %v4497
          %v4506 = vadd.f32 %v4479, %v4498
          %v4507 = vadd.f32 %v4480, %v4499
          %v4508 = vadd.f32 %v4481, %v4500
          %v4509 = vadd.f32 %v4482, %v4501
          %v4510 = vadd.f32 %v4483, %v4502
          %s4511 = sadd.s32 %s3944, 21
          %s4512 = sld [smem:[#allocation12 + %s4511]]
          %v4513 = vld [vmem:[#allocation5 + $0x7d] sm:$0xff]
          %v4514 = vld [vmem:[#allocation5 + $0x85] sm:$0xff]
          %v4515 = vld [vmem:[#allocation5 + $0x8d] sm:$0xff]
          %v4516 = vld [vmem:[#allocation5 + $0x95] sm:$0xff]
          %v4517 = vld [vmem:[#allocation5 + $0x9d] sm:$0xff]
          %v4518 = vld [vmem:[#allocation5 + $0xa5] sm:$0xff]
          %v4519 = vld [vmem:[#allocation5 + $0xad] sm:$0xff]
          %v4520 = vld [vmem:[#allocation5 + $0xb5] sm:$0xf]
          %v4521 = vstv %s4512
          %v4522 = vmul.f32 %v4521, %v4513
          %v4523 = vmul.f32 %v4521, %v4514
          %v4524 = vmul.f32 %v4521, %v4515
          %v4525 = vmul.f32 %v4521, %v4516
          %v4526 = vmul.f32 %v4521, %v4517
          %v4527 = vmul.f32 %v4521, %v4518
          %v4528 = vmul.f32 %v4521, %v4519
          %v4529 = vmul.f32 %v4521, %v4520
          %v4530 = vadd.f32 %v4503, %v4522
          %v4531 = vadd.f32 %v4504, %v4523
          %v4532 = vadd.f32 %v4505, %v4524
          %v4533 = vadd.f32 %v4506, %v4525
          %v4534 = vadd.f32 %v4507, %v4526
          %v4535 = vadd.f32 %v4508, %v4527
          %v4536 = vadd.f32 %v4509, %v4528
          %v4537 = vadd.f32 %v4510, %v4529
          %s4538 = sadd.s32 %s3944, 22
          %s4539 = sld [smem:[#allocation12 + %s4538]]
          %v4540 = vld [vmem:[%s3505 + $0x7d] sm:$0xff]
          %v4541 = vld [vmem:[%s3505 + $0x85] sm:$0xff]
          %v4542 = vld [vmem:[%s3505 + $0x8d] sm:$0xff]
          %v4543 = vld [vmem:[%s3505 + $0x95] sm:$0xff]
          %v4544 = vld [vmem:[%s3505 + $0x9d] sm:$0xff]
          %v4545 = vld [vmem:[%s3505 + $0xa5] sm:$0xff]
          %v4546 = vld [vmem:[%s3505 + $0xad] sm:$0xff]
          %v4547 = vld [vmem:[%s3505 + $0xb5] sm:$0xf]
          %v4548 = vstv %s4539
          %v4549 = vmul.f32 %v4548, %v4540
          %v4550 = vmul.f32 %v4548, %v4541
          %v4551 = vmul.f32 %v4548, %v4542
          %v4552 = vmul.f32 %v4548, %v4543
          %v4553 = vmul.f32 %v4548, %v4544
          %v4554 = vmul.f32 %v4548, %v4545
          %v4555 = vmul.f32 %v4548, %v4546
          %v4556 = vmul.f32 %v4548, %v4547
          %v4557 = vadd.f32 %v4530, %v4549
          %v4558 = vadd.f32 %v4531, %v4550
          %v4559 = vadd.f32 %v4532, %v4551
          %v4560 = vadd.f32 %v4533, %v4552
          %v4561 = vadd.f32 %v4534, %v4553
          %v4562 = vadd.f32 %v4535, %v4554
          %v4563 = vadd.f32 %v4536, %v4555
          %v4564 = vadd.f32 %v4537, %v4556
          %s4565 = sadd.s32 %s3944, 23
          %s4566 = sld [smem:[#allocation12 + %s4565]]
          %v4567 = vld [vmem:[%s3901 + $0x7d] sm:$0xff]
          %v4568 = vld [vmem:[%s3901 + $0x85] sm:$0xff]
          %v4569 = vld [vmem:[%s3901 + $0x8d] sm:$0xff]
          %v4570 = vld [vmem:[%s3901 + $0x95] sm:$0xff]
          %v4571 = vld [vmem:[%s3901 + $0x9d] sm:$0xff]
          %v4572 = vld [vmem:[%s3901 + $0xa5] sm:$0xff]
          %v4573 = vld [vmem:[%s3901 + $0xad] sm:$0xff]
          %v4574 = vld [vmem:[%s3901 + $0xb5] sm:$0xf]
          %v4575 = vstv %s4566
          %v4576 = vmul.f32 %v4575, %v4567
          %v4577 = vmul.f32 %v4575, %v4568
          %v4578 = vmul.f32 %v4575, %v4569
          %v4579 = vmul.f32 %v4575, %v4570
          %v4580 = vmul.f32 %v4575, %v4571
          %v4581 = vmul.f32 %v4575, %v4572
          %v4582 = vmul.f32 %v4575, %v4573
          %v4583 = vmul.f32 %v4575, %v4574
          %v4584 = vadd.f32 %v4557, %v4576
          %v4585 = vadd.f32 %v4558, %v4577
          %v4586 = vadd.f32 %v4559, %v4578
          %v4587 = vadd.f32 %v4560, %v4579
          %v4588 = vadd.f32 %v4561, %v4580
          %v4589 = vadd.f32 %v4562, %v4581
          %v4590 = vadd.f32 %v4563, %v4582
          %v4591 = vadd.f32 %v4564, %v4583
          %s4592 = sadd.s32 %s3944, 24
          %s4593 = sld [smem:[#allocation12 + %s4592]]
          %v4594 = vld [vmem:[#allocation5 + $0x7e] sm:$0xff]
          %v4595 = vld [vmem:[#allocation5 + $0x86] sm:$0xff]
          %v4596 = vld [vmem:[#allocation5 + $0x8e] sm:$0xff]
          %v4597 = vld [vmem:[#allocation5 + $0x96] sm:$0xff]
          %v4598 = vld [vmem:[#allocation5 + $0x9e] sm:$0xff]
          %v4599 = vld [vmem:[#allocation5 + $0xa6] sm:$0xff]
          %v4600 = vld [vmem:[#allocation5 + $0xae] sm:$0xff]
          %v4601 = vld [vmem:[#allocation5 + $0xb6] sm:$0xf]
          %v4602 = vstv %s4593
          %v4603 = vmul.f32 %v4602, %v4594
          %v4604 = vmul.f32 %v4602, %v4595
          %v4605 = vmul.f32 %v4602, %v4596
          %v4606 = vmul.f32 %v4602, %v4597
          %v4607 = vmul.f32 %v4602, %v4598
          %v4608 = vmul.f32 %v4602, %v4599
          %v4609 = vmul.f32 %v4602, %v4600
          %v4610 = vmul.f32 %v4602, %v4601
          %v4611 = vadd.f32 %v4584, %v4603
          %v4612 = vadd.f32 %v4585, %v4604
          %v4613 = vadd.f32 %v4586, %v4605
          %v4614 = vadd.f32 %v4587, %v4606
          %v4615 = vadd.f32 %v4588, %v4607
          %v4616 = vadd.f32 %v4589, %v4608
          %v4617 = vadd.f32 %v4590, %v4609
          %v4618 = vadd.f32 %v4591, %v4610
          %s4619 = sadd.s32 %s3944, 25
          %s4620 = sld [smem:[#allocation12 + %s4619]]
          %v4621 = vld [vmem:[%s3505 + $0x7e] sm:$0xff]
          %v4622 = vld [vmem:[%s3505 + $0x86] sm:$0xff]
          %v4623 = vld [vmem:[%s3505 + $0x8e] sm:$0xff]
          %v4624 = vld [vmem:[%s3505 + $0x96] sm:$0xff]
          %v4625 = vld [vmem:[%s3505 + $0x9e] sm:$0xff]
          %v4626 = vld [vmem:[%s3505 + $0xa6] sm:$0xff]
          %v4627 = vld [vmem:[%s3505 + $0xae] sm:$0xff]
          %v4628 = vld [vmem:[%s3505 + $0xb6] sm:$0xf]
          %v4629 = vstv %s4620
          %v4630 = vmul.f32 %v4629, %v4621
          %v4631 = vmul.f32 %v4629, %v4622
          %v4632 = vmul.f32 %v4629, %v4623
          %v4633 = vmul.f32 %v4629, %v4624
          %v4634 = vmul.f32 %v4629, %v4625
          %v4635 = vmul.f32 %v4629, %v4626
          %v4636 = vmul.f32 %v4629, %v4627
          %v4637 = vmul.f32 %v4629, %v4628
          %v4638 = vadd.f32 %v4611, %v4630
          %v4639 = vadd.f32 %v4612, %v4631
          %v4640 = vadd.f32 %v4613, %v4632
          %v4641 = vadd.f32 %v4614, %v4633
          %v4642 = vadd.f32 %v4615, %v4634
          %v4643 = vadd.f32 %v4616, %v4635
          %v4644 = vadd.f32 %v4617, %v4636
          %v4645 = vadd.f32 %v4618, %v4637
          %s4646 = sadd.s32 %s3944, 26
          %s4647 = sld [smem:[#allocation12 + %s4646]]
          %v4648 = vld [vmem:[%s3901 + $0x7e] sm:$0xff]
          %v4649 = vld [vmem:[%s3901 + $0x86] sm:$0xff]
          %v4650 = vld [vmem:[%s3901 + $0x8e] sm:$0xff]
          %v4651 = vld [vmem:[%s3901 + $0x96] sm:$0xff]
          %v4652 = vld [vmem:[%s3901 + $0x9e] sm:$0xff]
          %v4653 = vld [vmem:[%s3901 + $0xa6] sm:$0xff]
          %v4654 = vld [vmem:[%s3901 + $0xae] sm:$0xff]
          %v4655 = vld [vmem:[%s3901 + $0xb6] sm:$0xf]
          %v4656 = vstv %s4647
          %v4657 = vmul.f32 %v4656, %v4648
          %v4658 = vmul.f32 %v4656, %v4649
          %v4659 = vmul.f32 %v4656, %v4650
          %v4660 = vmul.f32 %v4656, %v4651
          %v4661 = vmul.f32 %v4656, %v4652
          %v4662 = vmul.f32 %v4656, %v4653
          %v4663 = vmul.f32 %v4656, %v4654
          %v4664 = vmul.f32 %v4656, %v4655
          %v4665 = vadd.f32 %v4638, %v4657
          %v4666 = vadd.f32 %v4639, %v4658
          %v4667 = vadd.f32 %v4640, %v4659
          %v4668 = vadd.f32 %v4641, %v4660
          %v4669 = vadd.f32 %v4642, %v4661
          %v4670 = vadd.f32 %v4643, %v4662
          %v4671 = vadd.f32 %v4644, %v4663
          %v4672 = vadd.f32 %v4645, %v4664
          %s4673 = sadd.s32 %s3944, 27
          %s4674 = sld [smem:[#allocation12 + %s4673]]
          %v4675 = vld [vmem:[#allocation5 + $0xba] sm:$0xff]
          %v4676 = vld [vmem:[#allocation5 + $0xc2] sm:$0xff]
          %v4677 = vld [vmem:[#allocation5 + $0xca] sm:$0xff]
          %v4678 = vld [vmem:[#allocation5 + $0xd2] sm:$0xff]
          %v4679 = vld [vmem:[#allocation5 + $0xda] sm:$0xff]
          %v4680 = vld [vmem:[#allocation5 + $0xe2] sm:$0xff]
          %v4681 = vld [vmem:[#allocation5 + $0xea] sm:$0xff]
          %v4682 = vld [vmem:[#allocation5 + $0xf2] sm:$0xf]
          %v4683 = vstv %s4674
          %v4684 = vmul.f32 %v4683, %v4675
          %v4685 = vmul.f32 %v4683, %v4676
          %v4686 = vmul.f32 %v4683, %v4677
          %v4687 = vmul.f32 %v4683, %v4678
          %v4688 = vmul.f32 %v4683, %v4679
          %v4689 = vmul.f32 %v4683, %v4680
          %v4690 = vmul.f32 %v4683, %v4681
          %v4691 = vmul.f32 %v4683, %v4682
          %v4692 = vadd.f32 %v4665, %v4684
          %v4693 = vadd.f32 %v4666, %v4685
          %v4694 = vadd.f32 %v4667, %v4686
          %v4695 = vadd.f32 %v4668, %v4687
          %v4696 = vadd.f32 %v4669, %v4688
          %v4697 = vadd.f32 %v4670, %v4689
          %v4698 = vadd.f32 %v4671, %v4690
          %v4699 = vadd.f32 %v4672, %v4691
          %s4700 = sadd.s32 %s3944, 28
          %s4701 = sld [smem:[#allocation12 + %s4700]]
          %v4702 = vld [vmem:[%s3505 + $0xba] sm:$0xff]
          %v4703 = vld [vmem:[%s3505 + $0xc2] sm:$0xff]
          %v4704 = vld [vmem:[%s3505 + $0xca] sm:$0xff]
          %v4705 = vld [vmem:[%s3505 + $0xd2] sm:$0xff]
          %v4706 = vld [vmem:[%s3505 + $0xda] sm:$0xff]
          %v4707 = vld [vmem:[%s3505 + $0xe2] sm:$0xff]
          %v4708 = vld [vmem:[%s3505 + $0xea] sm:$0xff]
          %v4709 = vld [vmem:[%s3505 + $0xf2] sm:$0xf]
          %v4710 = vstv %s4701
          %v4711 = vmul.f32 %v4710, %v4702
          %v4712 = vmul.f32 %v4710, %v4703
          %v4713 = vmul.f32 %v4710, %v4704
          %v4714 = vmul.f32 %v4710, %v4705
          %v4715 = vmul.f32 %v4710, %v4706
          %v4716 = vmul.f32 %v4710, %v4707
          %v4717 = vmul.f32 %v4710, %v4708
          %v4718 = vmul.f32 %v4710, %v4709
          %v4719 = vadd.f32 %v4692, %v4711
          %v4720 = vadd.f32 %v4693, %v4712
          %v4721 = vadd.f32 %v4694, %v4713
          %v4722 = vadd.f32 %v4695, %v4714
          %v4723 = vadd.f32 %v4696, %v4715
          %v4724 = vadd.f32 %v4697, %v4716
          %v4725 = vadd.f32 %v4698, %v4717
          %v4726 = vadd.f32 %v4699, %v4718
          %s4727 = sadd.s32 %s3944, 29
          %s4728 = sld [smem:[#allocation12 + %s4727]]
          %v4729 = vld [vmem:[%s3901 + $0xba] sm:$0xff]
          %v4730 = vld [vmem:[%s3901 + $0xc2] sm:$0xff]
          %v4731 = vld [vmem:[%s3901 + $0xca] sm:$0xff]
          %v4732 = vld [vmem:[%s3901 + $0xd2] sm:$0xff]
          %v4733 = vld [vmem:[%s3901 + $0xda] sm:$0xff]
          %v4734 = vld [vmem:[%s3901 + $0xe2] sm:$0xff]
          %v4735 = vld [vmem:[%s3901 + $0xea] sm:$0xff]
          %v4736 = vld [vmem:[%s3901 + $0xf2] sm:$0xf]
          %v4737 = vstv %s4728
          %v4738 = vmul.f32 %v4737, %v4729
          %v4739 = vmul.f32 %v4737, %v4730
          %v4740 = vmul.f32 %v4737, %v4731
          %v4741 = vmul.f32 %v4737, %v4732
          %v4742 = vmul.f32 %v4737, %v4733
          %v4743 = vmul.f32 %v4737, %v4734
          %v4744 = vmul.f32 %v4737, %v4735
          %v4745 = vmul.f32 %v4737, %v4736
          %v4746 = vadd.f32 %v4719, %v4738
          %v4747 = vadd.f32 %v4720, %v4739
          %v4748 = vadd.f32 %v4721, %v4740
          %v4749 = vadd.f32 %v4722, %v4741
          %v4750 = vadd.f32 %v4723, %v4742
          %v4751 = vadd.f32 %v4724, %v4743
          %v4752 = vadd.f32 %v4725, %v4744
          %v4753 = vadd.f32 %v4726, %v4745
          %s4754 = sadd.s32 %s3944, 30
          %s4755 = sld [smem:[#allocation12 + %s4754]]
          %v4756 = vld [vmem:[#allocation5 + $0xbb] sm:$0xff]
          %v4757 = vld [vmem:[#allocation5 + $0xc3] sm:$0xff]
          %v4758 = vld [vmem:[#allocation5 + $0xcb] sm:$0xff]
          %v4759 = vld [vmem:[#allocation5 + $0xd3] sm:$0xff]
          %v4760 = vld [vmem:[#allocation5 + $0xdb] sm:$0xff]
          %v4761 = vld [vmem:[#allocation5 + $0xe3] sm:$0xff]
          %v4762 = vld [vmem:[#allocation5 + $0xeb] sm:$0xff]
          %v4763 = vld [vmem:[#allocation5 + $0xf3] sm:$0xf]
          %v4764 = vstv %s4755
          %v4765 = vmul.f32 %v4764, %v4756
          %v4766 = vmul.f32 %v4764, %v4757
          %v4767 = vmul.f32 %v4764, %v4758
          %v4768 = vmul.f32 %v4764, %v4759
          %v4769 = vmul.f32 %v4764, %v4760
          %v4770 = vmul.f32 %v4764, %v4761
          %v4771 = vmul.f32 %v4764, %v4762
          %v4772 = vmul.f32 %v4764, %v4763
          %v4773 = vadd.f32 %v4746, %v4765
          %v4774 = vadd.f32 %v4747, %v4766
          %v4775 = vadd.f32 %v4748, %v4767
          %v4776 = vadd.f32 %v4749, %v4768
          %v4777 = vadd.f32 %v4750, %v4769
          %v4778 = vadd.f32 %v4751, %v4770
          %v4779 = vadd.f32 %v4752, %v4771
          %v4780 = vadd.f32 %v4753, %v4772
          %s4781 = sadd.s32 %s3944, 31
          %s4782 = sld [smem:[#allocation12 + %s4781]]
          %v4783 = vld [vmem:[%s3505 + $0xbb] sm:$0xff]
          %v4784 = vld [vmem:[%s3505 + $0xc3] sm:$0xff]
          %v4785 = vld [vmem:[%s3505 + $0xcb] sm:$0xff]
          %v4786 = vld [vmem:[%s3505 + $0xd3] sm:$0xff]
          %v4787 = vld [vmem:[%s3505 + $0xdb] sm:$0xff]
          %v4788 = vld [vmem:[%s3505 + $0xe3] sm:$0xff]
          %v4789 = vld [vmem:[%s3505 + $0xeb] sm:$0xff]
          %v4790 = vld [vmem:[%s3505 + $0xf3] sm:$0xf]
          %v4791 = vstv %s4782
          %v4792 = vmul.f32 %v4791, %v4783
          %v4793 = vmul.f32 %v4791, %v4784
          %v4794 = vmul.f32 %v4791, %v4785
          %v4795 = vmul.f32 %v4791, %v4786
          %v4796 = vmul.f32 %v4791, %v4787
          %v4797 = vmul.f32 %v4791, %v4788
          %v4798 = vmul.f32 %v4791, %v4789
          %v4799 = vmul.f32 %v4791, %v4790
          %v4800 = vadd.f32 %v4773, %v4792
          %v4801 = vadd.f32 %v4774, %v4793
          %v4802 = vadd.f32 %v4775, %v4794
          %v4803 = vadd.f32 %v4776, %v4795
          %v4804 = vadd.f32 %v4777, %v4796
          %v4805 = vadd.f32 %v4778, %v4797
          %v4806 = vadd.f32 %v4779, %v4798
          %v4807 = vadd.f32 %v4780, %v4799
          %s4808 = sadd.s32 %s3944, 32
          %s4809 = sld [smem:[#allocation12 + %s4808]]
          %v4810 = vld [vmem:[%s3901 + $0xbb] sm:$0xff]
          %v4811 = vld [vmem:[%s3901 + $0xc3] sm:$0xff]
          %v4812 = vld [vmem:[%s3901 + $0xcb] sm:$0xff]
          %v4813 = vld [vmem:[%s3901 + $0xd3] sm:$0xff]
          %v4814 = vld [vmem:[%s3901 + $0xdb] sm:$0xff]
          %v4815 = vld [vmem:[%s3901 + $0xe3] sm:$0xff]
          %v4816 = vld [vmem:[%s3901 + $0xeb] sm:$0xff]
          %v4817 = vld [vmem:[%s3901 + $0xf3] sm:$0xf]
          %v4818 = vstv %s4809
          %v4819 = vmul.f32 %v4818, %v4810
          %v4820 = vmul.f32 %v4818, %v4811
          %v4821 = vmul.f32 %v4818, %v4812
          %v4822 = vmul.f32 %v4818, %v4813
          %v4823 = vmul.f32 %v4818, %v4814
          %v4824 = vmul.f32 %v4818, %v4815
          %v4825 = vmul.f32 %v4818, %v4816
          %v4826 = vmul.f32 %v4818, %v4817
          %v4827 = vadd.f32 %v4800, %v4819
          %v4828 = vadd.f32 %v4801, %v4820
          %v4829 = vadd.f32 %v4802, %v4821
          %v4830 = vadd.f32 %v4803, %v4822
          %v4831 = vadd.f32 %v4804, %v4823
          %v4832 = vadd.f32 %v4805, %v4824
          %v4833 = vadd.f32 %v4806, %v4825
          %v4834 = vadd.f32 %v4807, %v4826
          %s4835 = sadd.s32 %s3944, 33
          %s4836 = sld [smem:[#allocation12 + %s4835]]
          %v4837 = vld [vmem:[#allocation5 + $0xbc] sm:$0xff]
          %v4838 = vld [vmem:[#allocation5 + $0xc4] sm:$0xff]
          %v4839 = vld [vmem:[#allocation5 + $0xcc] sm:$0xff]
          %v4840 = vld [vmem:[#allocation5 + $0xd4] sm:$0xff]
          %v4841 = vld [vmem:[#allocation5 + $0xdc] sm:$0xff]
          %v4842 = vld [vmem:[#allocation5 + $0xe4] sm:$0xff]
          %v4843 = vld [vmem:[#allocation5 + $0xec] sm:$0xff]
          %v4844 = vld [vmem:[#allocation5 + $0xf4] sm:$0xf]
          %v4845 = vstv %s4836
          %v4846 = vmul.f32 %v4845, %v4837
          %v4847 = vmul.f32 %v4845, %v4838
          %v4848 = vmul.f32 %v4845, %v4839
          %v4849 = vmul.f32 %v4845, %v4840
          %v4850 = vmul.f32 %v4845, %v4841
          %v4851 = vmul.f32 %v4845, %v4842
          %v4852 = vmul.f32 %v4845, %v4843
          %v4853 = vmul.f32 %v4845, %v4844
          %v4854 = vadd.f32 %v4827, %v4846
          %v4855 = vadd.f32 %v4828, %v4847
          %v4856 = vadd.f32 %v4829, %v4848
          %v4857 = vadd.f32 %v4830, %v4849
          %v4858 = vadd.f32 %v4831, %v4850
          %v4859 = vadd.f32 %v4832, %v4851
          %v4860 = vadd.f32 %v4833, %v4852
          %v4861 = vadd.f32 %v4834, %v4853
          %s4862 = sadd.s32 %s3944, 34
          %s4863 = sld [smem:[#allocation12 + %s4862]]
          %v4864 = vld [vmem:[%s3505 + $0xbc] sm:$0xff]
          %v4865 = vld [vmem:[%s3505 + $0xc4] sm:$0xff]
          %v4866 = vld [vmem:[%s3505 + $0xcc] sm:$0xff]
          %v4867 = vld [vmem:[%s3505 + $0xd4] sm:$0xff]
          %v4868 = vld [vmem:[%s3505 + $0xdc] sm:$0xff]
          %v4869 = vld [vmem:[%s3505 + $0xe4] sm:$0xff]
          %v4870 = vld [vmem:[%s3505 + $0xec] sm:$0xff]
          %v4871 = vld [vmem:[%s3505 + $0xf4] sm:$0xf]
          %v4872 = vstv %s4863
          %v4873 = vmul.f32 %v4872, %v4864
          %v4874 = vmul.f32 %v4872, %v4865
          %v4875 = vmul.f32 %v4872, %v4866
          %v4876 = vmul.f32 %v4872, %v4867
          %v4877 = vmul.f32 %v4872, %v4868
          %v4878 = vmul.f32 %v4872, %v4869
          %v4879 = vmul.f32 %v4872, %v4870
          %v4880 = vmul.f32 %v4872, %v4871
          %v4881 = vadd.f32 %v4854, %v4873
          %v4882 = vadd.f32 %v4855, %v4874
          %v4883 = vadd.f32 %v4856, %v4875
          %v4884 = vadd.f32 %v4857, %v4876
          %v4885 = vadd.f32 %v4858, %v4877
          %v4886 = vadd.f32 %v4859, %v4878
          %v4887 = vadd.f32 %v4860, %v4879
          %v4888 = vadd.f32 %v4861, %v4880
          %s4889 = sadd.s32 %s3944, 35
          %s4890 = sld [smem:[#allocation12 + %s4889]]
          %v4891 = vld [vmem:[%s3901 + $0xbc] sm:$0xff]
          %v4892 = vld [vmem:[%s3901 + $0xc4] sm:$0xff]
          %v4893 = vld [vmem:[%s3901 + $0xcc] sm:$0xff]
          %v4894 = vld [vmem:[%s3901 + $0xd4] sm:$0xff]
          %v4895 = vld [vmem:[%s3901 + $0xdc] sm:$0xff]
          %v4896 = vld [vmem:[%s3901 + $0xe4] sm:$0xff]
          %v4897 = vld [vmem:[%s3901 + $0xec] sm:$0xff]
          %v4898 = vld [vmem:[%s3901 + $0xf4] sm:$0xf]
          %v4899 = vstv %s4890
          %v4900 = vmul.f32 %v4899, %v4891
          %v4901 = vmul.f32 %v4899, %v4892
          %v4902 = vmul.f32 %v4899, %v4893
          %v4903 = vmul.f32 %v4899, %v4894
          %v4904 = vmul.f32 %v4899, %v4895
          %v4905 = vmul.f32 %v4899, %v4896
          %v4906 = vmul.f32 %v4899, %v4897
          %v4907 = vmul.f32 %v4899, %v4898
          %v4908 = vadd.f32 %v4881, %v4900
          %v4909 = vadd.f32 %v4882, %v4901
          %v4910 = vadd.f32 %v4883, %v4902
          %v4911 = vadd.f32 %v4884, %v4903
          %v4912 = vadd.f32 %v4885, %v4904
          %v4913 = vadd.f32 %v4886, %v4905
          %v4914 = vadd.f32 %v4887, %v4906
          %v4915 = vadd.f32 %v4888, %v4907
          %s4916 = sld [smem:[#allocation13 + %s3939]]
          %v4917 = vstv %s4916
          %v4918 = vadd.f32 %v4908, %v4917
          %v4919 = vadd.f32 %v4909, %v4917
          %v4920 = vadd.f32 %v4910, %v4917
          %v4921 = vadd.f32 %v4911, %v4917
          %v4922 = vadd.f32 %v4912, %v4917
          %v4923 = vadd.f32 %v4913, %v4917
          %v4924 = vadd.f32 %v4914, %v4917
          %v4925 = vadd.f32 %v4915, %v4917
          %4926 = vst.msk [vmem:[#allocation6] sm:$0xff] %vm3109, %v4918
          %4927 = vst.msk [vmem:[#allocation6 + $0x8] sm:$0xff] %vm3109, %v4919
          %4928 = vst.msk [vmem:[#allocation6 + $0x10] sm:$0xff] %vm3109, %v4920
          %4929 = vst.msk [vmem:[#allocation6 + $0x18] sm:$0xff] %vm3109, %v4921
          %4930 = vst.msk [vmem:[#allocation6 + $0x20] sm:$0xff] %vm3109, %v4922
          %4931 = vst.msk [vmem:[#allocation6 + $0x28] sm:$0xff] %vm3109, %v4923
          %4932 = vst.msk [vmem:[#allocation6 + $0x30] sm:$0xff] %vm3109, %v4924
          %vm4933 = vcmask 486400
          %4934 = vst.msk [vmem:[#allocation6 + $0x38] sm:$0xf] %vm4933, %v4925
          %v4935 = vld [vmem:[#allocation6] ss:$2 sm:$0xff]
          %s4936 = scalar_lea.vmem [#allocation6], 16
          %v4937 = vld [vmem:[%s4936] ss:$2 sm:$0xff]
          %s4938 = scalar_lea.vmem [#allocation6], 32
          %v4939 = vld [vmem:[%s4938] ss:$2 sm:$0xff]
          %s4940 = scalar_lea.vmem [#allocation6], 48
          %v4941 = vld [vmem:[%s4940] ss:$2 sm:$0x3f]
          %s4942 = scalar_lea.vmem [#allocation6], 1
          %v4943 = vld [vmem:[%s4942] ss:$2 sm:$0xff]
          %s4944 = scalar_lea.vmem [#allocation6], 17
          %v4945 = vld [vmem:[%s4944] ss:$2 sm:$0xff]
          %s4946 = scalar_lea.vmem [#allocation6], 33
          %v4947 = vld [vmem:[%s4946] ss:$2 sm:$0xff]
          %s4948 = scalar_lea.vmem [#allocation6], 49
          %v4949 = vld [vmem:[%s4948] ss:$2 sm:$0x3f]
          %v4950 = vmax.f32 %v4935, %v4943
          %v4951 = vmax.f32 %v4937, %v4945
          %v4952 = vmax.f32 %v4939, %v4947
          %v4953 = vmax.f32 %v4941, %v4949
          %4958 = vrot.lane.b32.xlu0 %v4950, 127
          %v4959 = vpop.permute.xlu0 %4958
          %4960 = vrot.lane.b32.xlu0 %v4951, 127
          %v4961 = vpop.permute.xlu0 %4960
          %4962 = vrot.lane.b32.xlu0 %v4952, 127
          %v4963 = vpop.permute.xlu0 %4962
          %4964 = vrot.lane.b32.xlu0 %v4953, 127
          %v4965 = vpop.permute.xlu0 %4964
          %v4970 = vmax.f32 %v4950, %v4959
          %v4971 = vmax.f32 %v4951, %v4961
          %v4972 = vmax.f32 %v4952, %v4963
          %v4973 = vmax.f32 %v4953, %v4965
          %s4974 = smul.u32 %s3939, 30
          %s4975 = scalar_lea.vmem [#allocation7], %s4974
          %4976 = vst.msk [vmem:[%s4975] sm:$0xff] %vm3933, %v4970
          %4977 = vst.msk [vmem:[%s4975 + $0x8] sm:$0xff] %vm3933, %v4971
          %4978 = vst.msk [vmem:[%s4975 + $0x10] sm:$0xff] %vm3933, %v4972
          %vm4979 = vcmask 480256
          %4980 = vst.msk [vmem:[%s4975 + $0x18] sm:$0x3f] %vm4979, %v4973
        $region69: #{cnn_forward.2} parent=47 // loop_footer
          %s3943 = sadd.s32 1, %s3939
        $region70: #{cnn_forward.2} parent=47 // loop_footer_branch
          %3938 = sbr.rel target = $region66
        $region71: #{cnn_forward.2} parent=47 // loop_exit
          _
        %v4981 = vld [vmem:[#allocation7] sm:$0xff]
        %v4982 = vld [vmem:[#allocation7 + $0x8] sm:$0xff]
        %v4983 = vld [vmem:[#allocation7 + $0x10] sm:$0xff]
        %v4984 = vld [vmem:[#allocation7 + $0x18] sm:$0xff]
        %v4985 = vld [vmem:[#allocation7 + $0x20] sm:$0xff]
        %v4986 = vld [vmem:[#allocation7 + $0x28] sm:$0xff]
        %v4987 = vld [vmem:[#allocation7 + $0x30] sm:$0xff]
        %v4988 = vld [vmem:[#allocation7 + $0x38] sm:$0xff]
        %v4989 = vld [vmem:[#allocation7 + $0x40] sm:$0xff]
        %v4990 = vld [vmem:[#allocation7 + $0x48] sm:$0xff]
        %v4991 = vld [vmem:[#allocation7 + $0x50] sm:$0xff]
        %v4992 = vld [vmem:[#allocation7 + $0x58] sm:$0xff]
        %v4993 = vld [vmem:[#allocation7 + $0x60] sm:$0xff]
        %v4994 = vld [vmem:[#allocation7 + $0x68] sm:$0xff]
        %v4995 = vld [vmem:[#allocation7 + $0x70] sm:$0xff]
        %v4996 = vld [vmem:[#allocation7 + $0x78] sm:$0xff]
        %v4997 = vld [vmem:[#allocation7 + $0x80] sm:$0xff]
        %v4998 = vld [vmem:[#allocation7 + $0x88] sm:$0xff]
        %v4999 = vld [vmem:[#allocation7 + $0x90] sm:$0xff]
        %v5000 = vld [vmem:[#allocation7 + $0x98] sm:$0xff]
        %v5001 = vld [vmem:[#allocation7 + $0xa0] sm:$0xff]
        %v5002 = vld [vmem:[#allocation7 + $0xa8] sm:$0xff]
        %v5003 = vld [vmem:[#allocation7 + $0xb0] sm:$0xff]
        %v5004 = vld [vmem:[#allocation7 + $0xb8] sm:$0xff]
        %v5005 = vld [vmem:[#allocation7 + $0xc0] sm:$0xff]
        %v5006 = vld [vmem:[#allocation7 + $0xc8] sm:$0xff]
        %v5007 = vld [vmem:[#allocation7 + $0xd0] sm:$0xff]
        %v5008 = vld [vmem:[#allocation7 + $0xd8] sm:$0xff]
        %v5009 = vld [vmem:[#allocation7 + $0xe0] sm:$0xff]
        %v5010 = vld [vmem:[#allocation7 + $0xe8] sm:$0xff]
        %v5011 = vld [vmem:[#allocation7 + $0xf0] sm:$0xff]
        %v5012 = vld [vmem:[#allocation7 + $0xf8] sm:$0xff]
        %v5013 = vld [vmem:[#allocation7 + $0x100] sm:$0xff]
        %v5014 = vld [vmem:[#allocation7 + $0x108] sm:$0xff]
        %v5015 = vld [vmem:[#allocation7 + $0x110] sm:$0xff]
        %v5016 = vld [vmem:[#allocation7 + $0x118] sm:$0xff]
        %v5017 = vld [vmem:[#allocation7 + $0x120] sm:$0xff]
        %v5018 = vld [vmem:[#allocation7 + $0x128] sm:$0xff]
        %v5019 = vld [vmem:[#allocation7 + $0x130] sm:$0xff]
        %v5020 = vld [vmem:[#allocation7 + $0x138] sm:$0xff]
        %v5021 = vld [vmem:[#allocation7 + $0x140] sm:$0xff]
        %v5022 = vld [vmem:[#allocation7 + $0x148] sm:$0xff]
        %v5023 = vld [vmem:[#allocation7 + $0x150] sm:$0xff]
        %v5024 = vld [vmem:[#allocation7 + $0x158] sm:$0xff]
        %v5025 = vld [vmem:[#allocation7 + $0x160] sm:$0xff]
        %v5026 = vld [vmem:[#allocation7 + $0x168] sm:$0xff]
        %v5027 = vld [vmem:[#allocation7 + $0x170] sm:$0xff]
        %v5028 = vld [vmem:[#allocation7 + $0x178] sm:$0xff]
        %v5029 = vld [vmem:[#allocation7 + $0x180] sm:$0xff]
        %v5030 = vld [vmem:[#allocation7 + $0x188] sm:$0xff]
        %v5031 = vld [vmem:[#allocation7 + $0x190] sm:$0xff]
        %v5032 = vld [vmem:[#allocation7 + $0x198] sm:$0xff]
        %v5033 = vld [vmem:[#allocation7 + $0x1a0] sm:$0xff]
        %v5034 = vld [vmem:[#allocation7 + $0x1a8] sm:$0xff]
        %v5035 = vld [vmem:[#allocation7 + $0x1b0] sm:$0xff]
        %v5036 = vld [vmem:[#allocation7 + $0x1b8] sm:$0xff]
        %v5037 = vld [vmem:[#allocation7 + $0x1c0] sm:$0xff]
        %v5038 = vld [vmem:[#allocation7 + $0x1c8] sm:$0xff]
        %v5039 = vld [vmem:[#allocation7 + $0x1d0] sm:$0xff]
        %v5040 = vld [vmem:[#allocation7 + $0x1d8] sm:$0xff]
        %v5041 = vld [vmem:[#allocation7 + $0x1e0] sm:$0xff]
        %v5042 = vld [vmem:[#allocation7 + $0x1e8] sm:$0xff]
        %v5043 = vld [vmem:[#allocation7 + $0x1f0] sm:$0xff]
        %v5044 = vld [vmem:[#allocation7 + $0x1f8] sm:$0xff]
        %v5045 = vld [vmem:[%s6] sm:$0xff]
        %v5046 = vld [vmem:[%s6 + $0x8] sm:$0xff]
        %v5047 = vld [vmem:[%s6 + $0x10] sm:$0xff]
        %v5048 = vld [vmem:[%s6 + $0x18] sm:$0xff]
        %v5049 = vld [vmem:[%s6 + $0x20] sm:$0xff]
        %v5050 = vld [vmem:[%s6 + $0x28] sm:$0xff]
        %v5051 = vld [vmem:[%s6 + $0x30] sm:$0xff]
        %v5052 = vld [vmem:[%s6 + $0x38] sm:$0x7]
        %v5054 = vsel %vm3933, %v4981, 0
        %v5057 = vsel %vm3933, %v4982, 0
        %v5060 = vsel %vm3933, %v4983, 0
        %v5063 = vsel %vm3933, %v4984, 0
        %v5066 = vsel %vm3933, %v4985, 0
        %v5069 = vsel %vm3933, %v4986, 0
        %v5072 = vsel %vm3933, %v4987, 0
        %v5075 = vsel %vm3933, %v4988, 0
        %v5078 = vsel %vm3933, %v4989, 0
        %v5081 = vsel %vm3933, %v4990, 0
        %v5084 = vsel %vm3933, %v4991, 0
        %v5087 = vsel %vm3933, %v4992, 0
        %v5090 = vsel %vm3933, %v4993, 0
        %v5093 = vsel %vm3933, %v4994, 0
        %v5096 = vsel %vm3933, %v4995, 0
        %v5099 = vsel %vm3933, %v4996, 0
        %v5102 = vsel %vm3933, %v4997, 0
        %v5105 = vsel %vm3933, %v4998, 0
        %v5108 = vsel %vm3933, %v4999, 0
        %v5111 = vsel %vm3933, %v5000, 0
        %v5114 = vsel %vm3933, %v5001, 0
        %v5117 = vsel %vm3933, %v5002, 0
        %v5120 = vsel %vm3933, %v5003, 0
        %v5123 = vsel %vm3933, %v5004, 0
        %v5126 = vsel %vm3933, %v5005, 0
        %v5129 = vsel %vm3933, %v5006, 0
        %v5132 = vsel %vm3933, %v5007, 0
        %v5135 = vsel %vm3933, %v5008, 0
        %v5138 = vsel %vm3933, %v5009, 0
        %v5141 = vsel %vm3933, %v5010, 0
        %v5144 = vsel %vm3933, %v5011, 0
        %v5147 = vsel %vm3933, %v5012, 0
        %v5150 = vsel %vm3933, %v5013, 0
        %v5153 = vsel %vm3933, %v5014, 0
        %v5156 = vsel %vm3933, %v5015, 0
        %v5159 = vsel %vm3933, %v5016, 0
        %v5162 = vsel %vm3933, %v5017, 0
        %v5165 = vsel %vm3933, %v5018, 0
        %v5168 = vsel %vm3933, %v5019, 0
        %v5171 = vsel %vm3933, %v5020, 0
        %v5174 = vsel %vm3933, %v5021, 0
        %v5177 = vsel %vm3933, %v5022, 0
        %v5180 = vsel %vm3933, %v5023, 0
        %v5183 = vsel %vm3933, %v5024, 0
        %v5186 = vsel %vm3933, %v5025, 0
        %v5189 = vsel %vm3933, %v5026, 0
        %v5192 = vsel %vm3933, %v5027, 0
        %v5195 = vsel %vm3933, %v5028, 0
        %v5198 = vsel %vm3933, %v5029, 0
        %v5201 = vsel %vm3933, %v5030, 0
        %v5204 = vsel %vm3933, %v5031, 0
        %v5207 = vsel %vm3933, %v5032, 0
        %v5210 = vsel %vm3933, %v5033, 0
        %v5213 = vsel %vm3933, %v5034, 0
        %v5216 = vsel %vm3933, %v5035, 0
        %v5219 = vsel %vm3933, %v5036, 0
        %v5222 = vsel %vm3933, %v5037, 0
        %v5225 = vsel %vm3933, %v5038, 0
        %v5228 = vsel %vm3933, %v5039, 0
        %v5231 = vsel %vm3933, %v5040, 0
        %v5234 = vsel %vm3933, %v5041, 0
        %v5237 = vsel %vm3933, %v5042, 0
        %v5240 = vsel %vm3933, %v5043, 0
        %v5243 = vsel %vm3933, %v5044, 0
        %v5246 = vsel %vm2885, %v5052, 0
        %5248 = vmatprep.subr.mxu0 0.0
        %5249 = vmatpush1.msra.mxu0 %v5045
        %5250 = vmatprep.subr.mxu0 0.0
        %5251 = vmatpush1.msra.mxu0 %v5046
        %5252 = vmatprep.subr.mxu0 0.0
        %5253 = vmatpush1.msra.mxu0 %v5047
        %5254 = vmatprep.subr.mxu0 0.0
        %5255 = vmatpush1.msra.mxu0 %v5048
        %5256 = vmatprep.subr.mxu0 0.0
        %5257 = vmatpush1.msra.mxu0 %v5049
        %5258 = vmatprep.subr.mxu0 0.0
        %5259 = vmatpush1.msra.mxu0 %v5050
        %5260 = vmatprep.subr.mxu0 0.0
        %5261 = vmatpush1.msra.mxu0 %v5051
        %5262 = vmatprep.subr.mxu0 0.0
        %5263 = vmatpush1.msra.mxu0 %v5246
        %5264 = vmatprep.subr.mxu0 0.0
        %5265 = vmatpush1.msra.mxu0 0.0
        %5266 = vmatprep.subr.mxu0 0.0
        %5267 = vmatpush1.msra.mxu0 0.0
        %5268 = vmatprep.subr.mxu0 0.0
        %5269 = vmatpush1.msra.mxu0 0.0
        %5270 = vmatprep.subr.mxu0 0.0
        %5271 = vmatpush1.msra.mxu0 0.0
        %5272 = vmatprep.subr.mxu0 0.0
        %5273 = vmatpush1.msra.mxu0 0.0
        %5274 = vmatprep.subr.mxu0 0.0
        %5275 = vmatpush1.msra.mxu0 0.0
        %5276 = vmatprep.subr.mxu0 0.0
        %5277 = vmatpush1.msra.mxu0 0.0
        %5278 = vmatprep.subr.mxu0 0.0
        %5279 = vmatpush1.msra.mxu0 0.0
        %5280 = vmatprep.subr.mxu0 0.0
        %5281 = vmatpush1.msra.mxu0 0.0
        %5282 = vmatprep.subr.mxu0 0.0
        %5283 = vmatpush1.msra.mxu0 0.0
        %5284 = vmatprep.subr.mxu0 0.0
        %5285 = vmatpush1.msra.mxu0 0.0
        %5286 = vmatprep.subr.mxu0 0.0
        %5287 = vmatpush1.msra.mxu0 0.0
        %5288 = vmatprep.subr.mxu0 0.0
        %5289 = vmatpush1.msra.mxu0 0.0
        %5290 = vmatprep.subr.mxu0 0.0
        %5291 = vmatpush1.msra.mxu0 0.0
        %5292 = vmatprep.subr.mxu0 0.0
        %5293 = vmatpush1.msra.mxu0 0.0
        %5294 = vmatprep.subr.mxu0 0.0
        %5295 = vmatpush1.msra.mxu0 0.0
        %5296 = vmatprep.subr.mxu0 0.0
        %5297 = vmatpush1.msra.mxu0 0.0
        %5298 = vmatprep.subr.mxu0 0.0
        %5299 = vmatpush1.msra.mxu0 0.0
        %5300 = vmatprep.subr.mxu0 0.0
        %5301 = vmatpush1.msra.mxu0 0.0
        %5302 = vmatprep.subr.mxu0 0.0
        %5303 = vmatpush1.msra.mxu0 0.0
        %5304 = vmatprep.subr.mxu0 0.0
        %5305 = vmatpush1.msra.mxu0 0.0
        %5306 = vmatprep.subr.mxu0 0.0
        %5307 = vmatpush1.msra.mxu0 0.0
        %5308 = vmatprep.subr.mxu0 0.0
        %5309 = vmatpush1.msra.mxu0 0.0
        %5310 = vmatprep.subr.mxu0 0.0
        %5311 = vmatpush1.msra.mxu0 0.0
        %5312 = vmatprep.mubr.f32.mxu0 0.0
        %5313 = vmatmul.mubr.f32.gmra.mrb[0].mxu0 %v5054
        %v5314 = vpop.f32.mrb[0].mxu0
        %v5315 = vadd.f32 0.0, %v5314
        %v5316 = vpop.f32.mrb[0].mxu0
        %5317 = vmatprep.mubr.f32.mxu0 0.0
        %5318 = vmatmul.mubr.f32.gmra.mrb[0].mxu0 %v5057
        %v5319 = vpop.f32.mrb[0].mxu0
        %v5320 = vadd.f32 0.0, %v5319
        %v5321 = vpop.f32.mrb[0].mxu0
        %5322 = vmatprep.mubr.f32.mxu0 0.0
        %5323 = vmatmul.mubr.f32.gmra.mrb[0].mxu0 %v5060
        %v5324 = vpop.f32.mrb[0].mxu0
        %v5325 = vadd.f32 0.0, %v5324
        %v5326 = vpop.f32.mrb[0].mxu0
        %5327 = vmatprep.mubr.f32.mxu0 0.0
        %5328 = vmatmul.mubr.f32.gmra.mrb[0].mxu0 %v5063
        %v5329 = vpop.f32.mrb[0].mxu0
        %v5330 = vadd.f32 0.0, %v5329
        %v5331 = vpop.f32.mrb[0].mxu0
        %5332 = vmatprep.mubr.f32.mxu0 0.0
        %5333 = vmatmul.mubr.f32.gmra.mrb[0].mxu0 %v5066
        %v5334 = vpop.f32.mrb[0].mxu0
        %v5335 = vadd.f32 0.0, %v5334
        %v5336 = vpop.f32.mrb[0].mxu0
        %5337 = vmatprep.mubr.f32.mxu0 0.0
        %5338 = vmatmul.mubr.f32.gmra.mrb[0].mxu0 %v5069
        %v5339 = vpop.f32.mrb[0].mxu0
        %v5340 = vadd.f32 0.0, %v5339
        %v5341 = vpop.f32.mrb[0].mxu0
        %5342 = vmatprep.mubr.f32.mxu0 0.0
        %5343 = vmatmul.mubr.f32.gmra.mrb[0].mxu0 %v5072
        %v5344 = vpop.f32.mrb[0].mxu0
        %v5345 = vadd.f32 0.0, %v5344
        %v5346 = vpop.f32.mrb[0].mxu0
        %5347 = vmatprep.mubr.f32.mxu0 0.0
        %5348 = vmatmul.mubr.f32.gmra.mrb[0].mxu0 %v5075
        %v5349 = vpop.f32.mrb[0].mxu0
        %v5350 = vadd.f32 0.0, %v5349
        %v5351 = vpop.f32.mrb[0].mxu0
        %5352 = vmatprep.mubr.f32.mxu0 0.0
        %5353 = vmatmul.mubr.f32.gmra.mrb[0].mxu0 %v5078
        %v5354 = vpop.f32.mrb[0].mxu0
        %v5355 = vadd.f32 0.0, %v5354
        %v5356 = vpop.f32.mrb[0].mxu0
        %5357 = vmatprep.mubr.f32.mxu0 0.0
        %5358 = vmatmul.mubr.f32.gmra.mrb[0].mxu0 %v5081
        %v5359 = vpop.f32.mrb[0].mxu0
        %v5360 = vadd.f32 0.0, %v5359
        %v5361 = vpop.f32.mrb[0].mxu0
        %5362 = vmatprep.mubr.f32.mxu0 0.0
        %5363 = vmatmul.mubr.f32.gmra.mrb[0].mxu0 %v5084
        %v5364 = vpop.f32.mrb[0].mxu0
        %v5365 = vadd.f32 0.0, %v5364
        %v5366 = vpop.f32.mrb[0].mxu0
        %5367 = vmatprep.mubr.f32.mxu0 0.0
        %5368 = vmatmul.mubr.f32.gmra.mrb[0].mxu0 %v5087
        %v5369 = vpop.f32.mrb[0].mxu0
        %v5370 = vadd.f32 0.0, %v5369
        %v5371 = vpop.f32.mrb[0].mxu0
        %5372 = vmatprep.mubr.f32.mxu0 0.0
        %5373 = vmatmul.mubr.f32.gmra.mrb[0].mxu0 %v5090
        %v5374 = vpop.f32.mrb[0].mxu0
        %v5375 = vadd.f32 0.0, %v5374
        %v5376 = vpop.f32.mrb[0].mxu0
        %5377 = vmatprep.mubr.f32.mxu0 0.0
        %5378 = vmatmul.mubr.f32.gmra.mrb[0].mxu0 %v5093
        %v5379 = vpop.f32.mrb[0].mxu0
        %v5380 = vadd.f32 0.0, %v5379
        %v5381 = vpop.f32.mrb[0].mxu0
        %5382 = vmatprep.mubr.f32.mxu0 0.0
        %5383 = vmatmul.mubr.f32.gmra.mrb[0].mxu0 %v5096
        %v5384 = vpop.f32.mrb[0].mxu0
        %v5385 = vadd.f32 0.0, %v5384
        %v5386 = vpop.f32.mrb[0].mxu0
        %5387 = vmatprep.mubr.f32.mxu0 0.0
        %5388 = vmatmul.mubr.f32.gmra.mrb[0].mxu0 %v5099
        %v5389 = vpop.f32.mrb[0].mxu0
        %v5390 = vadd.f32 0.0, %v5389
        %v5391 = vpop.f32.mrb[0].mxu0
        %5392 = vmatprep.mubr.f32.mxu0 0.0
        %5393 = vmatmul.mubr.f32.gmra.mrb[0].mxu0 %v5102
        %v5394 = vpop.f32.mrb[0].mxu0
        %v5395 = vadd.f32 0.0, %v5394
        %v5396 = vpop.f32.mrb[0].mxu0
        %5397 = vmatprep.mubr.f32.mxu0 0.0
        %5398 = vmatmul.mubr.f32.gmra.mrb[0].mxu0 %v5105
        %v5399 = vpop.f32.mrb[0].mxu0
        %v5400 = vadd.f32 0.0, %v5399
        %v5401 = vpop.f32.mrb[0].mxu0
        %5402 = vmatprep.mubr.f32.mxu0 0.0
        %5403 = vmatmul.mubr.f32.gmra.mrb[0].mxu0 %v5108
        %v5404 = vpop.f32.mrb[0].mxu0
        %v5405 = vadd.f32 0.0, %v5404
        %v5406 = vpop.f32.mrb[0].mxu0
        %5407 = vmatprep.mubr.f32.mxu0 0.0
        %5408 = vmatmul.mubr.f32.gmra.mrb[0].mxu0 %v5111
        %v5409 = vpop.f32.mrb[0].mxu0
        %v5410 = vadd.f32 0.0, %v5409
        %v5411 = vpop.f32.mrb[0].mxu0
        %5412 = vmatprep.mubr.f32.mxu0 0.0
        %5413 = vmatmul.mubr.f32.gmra.mrb[0].mxu0 %v5114
        %v5414 = vpop.f32.mrb[0].mxu0
        %v5415 = vadd.f32 0.0, %v5414
        %v5416 = vpop.f32.mrb[0].mxu0
        %5417 = vmatprep.mubr.f32.mxu0 0.0
        %5418 = vmatmul.mubr.f32.gmra.mrb[0].mxu0 %v5117
        %v5419 = vpop.f32.mrb[0].mxu0
        %v5420 = vadd.f32 0.0, %v5419
        %v5421 = vpop.f32.mrb[0].mxu0
        %5422 = vmatprep.mubr.f32.mxu0 0.0
        %5423 = vmatmul.mubr.f32.gmra.mrb[0].mxu0 %v5120
        %v5424 = vpop.f32.mrb[0].mxu0
        %v5425 = vadd.f32 0.0, %v5424
        %v5426 = vpop.f32.mrb[0].mxu0
        %5427 = vmatprep.mubr.f32.mxu0 0.0
        %5428 = vmatmul.mubr.f32.gmra.mrb[0].mxu0 %v5123
        %v5429 = vpop.f32.mrb[0].mxu0
        %v5430 = vadd.f32 0.0, %v5429
        %v5431 = vpop.f32.mrb[0].mxu0
        %5432 = vmatprep.mubr.f32.mxu0 0.0
        %5433 = vmatmul.mubr.f32.gmra.mrb[0].mxu0 %v5126
        %v5434 = vpop.f32.mrb[0].mxu0
        %v5435 = vadd.f32 0.0, %v5434
        %v5436 = vpop.f32.mrb[0].mxu0
        %5437 = vmatprep.mubr.f32.mxu0 0.0
        %5438 = vmatmul.mubr.f32.gmra.mrb[0].mxu0 %v5129
        %v5439 = vpop.f32.mrb[0].mxu0
        %v5440 = vadd.f32 0.0, %v5439
        %v5441 = vpop.f32.mrb[0].mxu0
        %5442 = vmatprep.mubr.f32.mxu0 0.0
        %5443 = vmatmul.mubr.f32.gmra.mrb[0].mxu0 %v5132
        %v5444 = vpop.f32.mrb[0].mxu0
        %v5445 = vadd.f32 0.0, %v5444
        %v5446 = vpop.f32.mrb[0].mxu0
        %5447 = vmatprep.mubr.f32.mxu0 0.0
        %5448 = vmatmul.mubr.f32.gmra.mrb[0].mxu0 %v5135
        %v5449 = vpop.f32.mrb[0].mxu0
        %v5450 = vadd.f32 0.0, %v5449
        %v5451 = vpop.f32.mrb[0].mxu0
        %5452 = vmatprep.mubr.f32.mxu0 0.0
        %5453 = vmatmul.mubr.f32.gmra.mrb[0].mxu0 %v5138
        %v5454 = vpop.f32.mrb[0].mxu0
        %v5455 = vadd.f32 0.0, %v5454
        %v5456 = vpop.f32.mrb[0].mxu0
        %5457 = vmatprep.mubr.f32.mxu0 0.0
        %5458 = vmatmul.mubr.f32.gmra.mrb[0].mxu0 %v5141
        %v5459 = vpop.f32.mrb[0].mxu0
        %v5460 = vadd.f32 0.0, %v5459
        %v5461 = vpop.f32.mrb[0].mxu0
        %5462 = vmatprep.mubr.f32.mxu0 0.0
        %5463 = vmatmul.mubr.f32.gmra.mrb[0].mxu0 %v5144
        %v5464 = vpop.f32.mrb[0].mxu0
        %v5465 = vadd.f32 0.0, %v5464
        %v5466 = vpop.f32.mrb[0].mxu0
        %5467 = vmatprep.mubr.f32.mxu0 0.0
        %5468 = vmatmul.mubr.f32.gmra.mrb[0].mxu0 %v5147
        %v5469 = vpop.f32.mrb[0].mxu0
        %v5470 = vadd.f32 0.0, %v5469
        %v5471 = vpop.f32.mrb[0].mxu0
        %5472 = vmatprep.mubr.f32.mxu0 0.0
        %5473 = vmatmul.mubr.f32.gmra.mrb[0].mxu0 %v5150
        %v5474 = vpop.f32.mrb[0].mxu0
        %v5475 = vadd.f32 0.0, %v5474
        %v5476 = vpop.f32.mrb[0].mxu0
        %5477 = vmatprep.mubr.f32.mxu0 0.0
        %5478 = vmatmul.mubr.f32.gmra.mrb[0].mxu0 %v5153
        %v5479 = vpop.f32.mrb[0].mxu0
        %v5480 = vadd.f32 0.0, %v5479
        %v5481 = vpop.f32.mrb[0].mxu0
        %5482 = vmatprep.mubr.f32.mxu0 0.0
        %5483 = vmatmul.mubr.f32.gmra.mrb[0].mxu0 %v5156
        %v5484 = vpop.f32.mrb[0].mxu0
        %v5485 = vadd.f32 0.0, %v5484
        %v5486 = vpop.f32.mrb[0].mxu0
        %5487 = vmatprep.mubr.f32.mxu0 0.0
        %5488 = vmatmul.mubr.f32.gmra.mrb[0].mxu0 %v5159
        %v5489 = vpop.f32.mrb[0].mxu0
        %v5490 = vadd.f32 0.0, %v5489
        %v5491 = vpop.f32.mrb[0].mxu0
        %5492 = vmatprep.mubr.f32.mxu0 0.0
        %5493 = vmatmul.mubr.f32.gmra.mrb[0].mxu0 %v5162
        %v5494 = vpop.f32.mrb[0].mxu0
        %v5495 = vadd.f32 0.0, %v5494
        %v5496 = vpop.f32.mrb[0].mxu0
        %5497 = vmatprep.mubr.f32.mxu0 0.0
        %5498 = vmatmul.mubr.f32.gmra.mrb[0].mxu0 %v5165
        %v5499 = vpop.f32.mrb[0].mxu0
        %v5500 = vadd.f32 0.0, %v5499
        %v5501 = vpop.f32.mrb[0].mxu0
        %5502 = vmatprep.mubr.f32.mxu0 0.0
        %5503 = vmatmul.mubr.f32.gmra.mrb[0].mxu0 %v5168
        %v5504 = vpop.f32.mrb[0].mxu0
        %v5505 = vadd.f32 0.0, %v5504
        %v5506 = vpop.f32.mrb[0].mxu0
        %5507 = vmatprep.mubr.f32.mxu0 0.0
        %5508 = vmatmul.mubr.f32.gmra.mrb[0].mxu0 %v5171
        %v5509 = vpop.f32.mrb[0].mxu0
        %v5510 = vadd.f32 0.0, %v5509
        %v5511 = vpop.f32.mrb[0].mxu0
        %5512 = vmatprep.mubr.f32.mxu0 0.0
        %5513 = vmatmul.mubr.f32.gmra.mrb[0].mxu0 %v5174
        %v5514 = vpop.f32.mrb[0].mxu0
        %v5515 = vadd.f32 0.0, %v5514
        %v5516 = vpop.f32.mrb[0].mxu0
        %5517 = vmatprep.mubr.f32.mxu0 0.0
        %5518 = vmatmul.mubr.f32.gmra.mrb[0].mxu0 %v5177
        %v5519 = vpop.f32.mrb[0].mxu0
        %v5520 = vadd.f32 0.0, %v5519
        %v5521 = vpop.f32.mrb[0].mxu0
        %5522 = vmatprep.mubr.f32.mxu0 0.0
        %5523 = vmatmul.mubr.f32.gmra.mrb[0].mxu0 %v5180
        %v5524 = vpop.f32.mrb[0].mxu0
        %v5525 = vadd.f32 0.0, %v5524
        %v5526 = vpop.f32.mrb[0].mxu0
        %5527 = vmatprep.mubr.f32.mxu0 0.0
        %5528 = vmatmul.mubr.f32.gmra.mrb[0].mxu0 %v5183
        %v5529 = vpop.f32.mrb[0].mxu0
        %v5530 = vadd.f32 0.0, %v5529
        %v5531 = vpop.f32.mrb[0].mxu0
        %5532 = vmatprep.mubr.f32.mxu0 0.0
        %5533 = vmatmul.mubr.f32.gmra.mrb[0].mxu0 %v5186
        %v5534 = vpop.f32.mrb[0].mxu0
        %v5535 = vadd.f32 0.0, %v5534
        %v5536 = vpop.f32.mrb[0].mxu0
        %5537 = vmatprep.mubr.f32.mxu0 0.0
        %5538 = vmatmul.mubr.f32.gmra.mrb[0].mxu0 %v5189
        %v5539 = vpop.f32.mrb[0].mxu0
        %v5540 = vadd.f32 0.0, %v5539
        %v5541 = vpop.f32.mrb[0].mxu0
        %5542 = vmatprep.mubr.f32.mxu0 0.0
        %5543 = vmatmul.mubr.f32.gmra.mrb[0].mxu0 %v5192
        %v5544 = vpop.f32.mrb[0].mxu0
        %v5545 = vadd.f32 0.0, %v5544
        %v5546 = vpop.f32.mrb[0].mxu0
        %5547 = vmatprep.mubr.f32.mxu0 0.0
        %5548 = vmatmul.mubr.f32.gmra.mrb[0].mxu0 %v5195
        %v5549 = vpop.f32.mrb[0].mxu0
        %v5550 = vadd.f32 0.0, %v5549
        %v5551 = vpop.f32.mrb[0].mxu0
        %5552 = vmatprep.mubr.f32.mxu0 0.0
        %5553 = vmatmul.mubr.f32.gmra.mrb[0].mxu0 %v5198
        %v5554 = vpop.f32.mrb[0].mxu0
        %v5555 = vadd.f32 0.0, %v5554
        %v5556 = vpop.f32.mrb[0].mxu0
        %5557 = vmatprep.mubr.f32.mxu0 0.0
        %5558 = vmatmul.mubr.f32.gmra.mrb[0].mxu0 %v5201
        %v5559 = vpop.f32.mrb[0].mxu0
        %v5560 = vadd.f32 0.0, %v5559
        %v5561 = vpop.f32.mrb[0].mxu0
        %5562 = vmatprep.mubr.f32.mxu0 0.0
        %5563 = vmatmul.mubr.f32.gmra.mrb[0].mxu0 %v5204
        %v5564 = vpop.f32.mrb[0].mxu0
        %v5565 = vadd.f32 0.0, %v5564
        %v5566 = vpop.f32.mrb[0].mxu0
        %5567 = vmatprep.mubr.f32.mxu0 0.0
        %5568 = vmatmul.mubr.f32.gmra.mrb[0].mxu0 %v5207
        %v5569 = vpop.f32.mrb[0].mxu0
        %v5570 = vadd.f32 0.0, %v5569
        %v5571 = vpop.f32.mrb[0].mxu0
        %5572 = vmatprep.mubr.f32.mxu0 0.0
        %5573 = vmatmul.mubr.f32.gmra.mrb[0].mxu0 %v5210
        %v5574 = vpop.f32.mrb[0].mxu0
        %v5575 = vadd.f32 0.0, %v5574
        %v5576 = vpop.f32.mrb[0].mxu0
        %5577 = vmatprep.mubr.f32.mxu0 0.0
        %5578 = vmatmul.mubr.f32.gmra.mrb[0].mxu0 %v5213
        %v5579 = vpop.f32.mrb[0].mxu0
        %v5580 = vadd.f32 0.0, %v5579
        %v5581 = vpop.f32.mrb[0].mxu0
        %5582 = vmatprep.mubr.f32.mxu0 0.0
        %5583 = vmatmul.mubr.f32.gmra.mrb[0].mxu0 %v5216
        %v5584 = vpop.f32.mrb[0].mxu0
        %v5585 = vadd.f32 0.0, %v5584
        %v5586 = vpop.f32.mrb[0].mxu0
        %5587 = vmatprep.mubr.f32.mxu0 0.0
        %5588 = vmatmul.mubr.f32.gmra.mrb[0].mxu0 %v5219
        %v5589 = vpop.f32.mrb[0].mxu0
        %v5590 = vadd.f32 0.0, %v5589
        %v5591 = vpop.f32.mrb[0].mxu0
        %5592 = vmatprep.mubr.f32.mxu0 0.0
        %5593 = vmatmul.mubr.f32.gmra.mrb[0].mxu0 %v5222
        %v5594 = vpop.f32.mrb[0].mxu0
        %v5595 = vadd.f32 0.0, %v5594
        %v5596 = vpop.f32.mrb[0].mxu0
        %5597 = vmatprep.mubr.f32.mxu0 0.0
        %5598 = vmatmul.mubr.f32.gmra.mrb[0].mxu0 %v5225
        %v5599 = vpop.f32.mrb[0].mxu0
        %v5600 = vadd.f32 0.0, %v5599
        %v5601 = vpop.f32.mrb[0].mxu0
        %5602 = vmatprep.mubr.f32.mxu0 0.0
        %5603 = vmatmul.mubr.f32.gmra.mrb[0].mxu0 %v5228
        %v5604 = vpop.f32.mrb[0].mxu0
        %v5605 = vadd.f32 0.0, %v5604
        %v5606 = vpop.f32.mrb[0].mxu0
        %5607 = vmatprep.mubr.f32.mxu0 0.0
        %5608 = vmatmul.mubr.f32.gmra.mrb[0].mxu0 %v5231
        %v5609 = vpop.f32.mrb[0].mxu0
        %v5610 = vadd.f32 0.0, %v5609
        %v5611 = vpop.f32.mrb[0].mxu0
        %5612 = vmatprep.mubr.f32.mxu0 0.0
        %5613 = vmatmul.mubr.f32.gmra.mrb[0].mxu0 %v5234
        %v5614 = vpop.f32.mrb[0].mxu0
        %v5615 = vadd.f32 0.0, %v5614
        %v5616 = vpop.f32.mrb[0].mxu0
        %5617 = vmatprep.mubr.f32.mxu0 0.0
        %5618 = vmatmul.mubr.f32.gmra.mrb[0].mxu0 %v5237
        %v5619 = vpop.f32.mrb[0].mxu0
        %v5620 = vadd.f32 0.0, %v5619
        %v5621 = vpop.f32.mrb[0].mxu0
        %5622 = vmatprep.mubr.f32.mxu0 0.0
        %5623 = vmatmul.mubr.f32.gmra.mrb[0].mxu0 %v5240
        %v5624 = vpop.f32.mrb[0].mxu0
        %v5625 = vadd.f32 0.0, %v5624
        %v5626 = vpop.f32.mrb[0].mxu0
        %5627 = vmatprep.mubr.f32.mxu0 0.0
        %5628 = vmatmul.mubr.f32.gmra.mrb[0].mxu0 %v5243
        %v5629 = vpop.f32.mrb[0].mxu0
        %v5630 = vadd.f32 0.0, %v5629
        %v5631 = vpop.f32.mrb[0].mxu0
        %5632 = vdwg.mxu0
        %vm5633 = vcmask 244736
        %5634 = vst.msk [vmem:[%s322] sm:$0xff] %vm5633, %v5315
        %5635 = vst.msk [vmem:[%s322 + $0x8] sm:$0xff] %vm5633, %v5320
        %5636 = vst.msk [vmem:[%s322 + $0x10] sm:$0xff] %vm5633, %v5325
        %5637 = vst.msk [vmem:[%s322 + $0x18] sm:$0xff] %vm5633, %v5330
        %5638 = vst.msk [vmem:[%s322 + $0x20] sm:$0xff] %vm5633, %v5335
        %5639 = vst.msk [vmem:[%s322 + $0x28] sm:$0xff] %vm5633, %v5340
        %5640 = vst.msk [vmem:[%s322 + $0x30] sm:$0xff] %vm5633, %v5345
        %5641 = vst.msk [vmem:[%s322 + $0x38] sm:$0xff] %vm5633, %v5350
        %5642 = vst.msk [vmem:[%s322 + $0x40] sm:$0xff] %vm5633, %v5355
        %5643 = vst.msk [vmem:[%s322 + $0x48] sm:$0xff] %vm5633, %v5360
        %5644 = vst.msk [vmem:[%s322 + $0x50] sm:$0xff] %vm5633, %v5365
        %5645 = vst.msk [vmem:[%s322 + $0x58] sm:$0xff] %vm5633, %v5370
        %5646 = vst.msk [vmem:[%s322 + $0x60] sm:$0xff] %vm5633, %v5375
        %5647 = vst.msk [vmem:[%s322 + $0x68] sm:$0xff] %vm5633, %v5380
        %5648 = vst.msk [vmem:[%s322 + $0x70] sm:$0xff] %vm5633, %v5385
        %5649 = vst.msk [vmem:[%s322 + $0x78] sm:$0xff] %vm5633, %v5390
        %5650 = vst.msk [vmem:[%s322 + $0x80] sm:$0xff] %vm5633, %v5395
        %5651 = vst.msk [vmem:[%s322 + $0x88] sm:$0xff] %vm5633, %v5400
        %5652 = vst.msk [vmem:[%s322 + $0x90] sm:$0xff] %vm5633, %v5405
        %5653 = vst.msk [vmem:[%s322 + $0x98] sm:$0xff] %vm5633, %v5410
        %5654 = vst.msk [vmem:[%s322 + $0xa0] sm:$0xff] %vm5633, %v5415
        %5655 = vst.msk [vmem:[%s322 + $0xa8] sm:$0xff] %vm5633, %v5420
        %5656 = vst.msk [vmem:[%s322 + $0xb0] sm:$0xff] %vm5633, %v5425
        %5657 = vst.msk [vmem:[%s322 + $0xb8] sm:$0xff] %vm5633, %v5430
        %5658 = vst.msk [vmem:[%s322 + $0xc0] sm:$0xff] %vm5633, %v5435
        %5659 = vst.msk [vmem:[%s322 + $0xc8] sm:$0xff] %vm5633, %v5440
        %5660 = vst.msk [vmem:[%s322 + $0xd0] sm:$0xff] %vm5633, %v5445
        %5661 = vst.msk [vmem:[%s322 + $0xd8] sm:$0xff] %vm5633, %v5450
        %5662 = vst.msk [vmem:[%s322 + $0xe0] sm:$0xff] %vm5633, %v5455
        %5663 = vst.msk [vmem:[%s322 + $0xe8] sm:$0xff] %vm5633, %v5460
        %5664 = vst.msk [vmem:[%s322 + $0xf0] sm:$0xff] %vm5633, %v5465
        %5665 = vst.msk [vmem:[%s322 + $0xf8] sm:$0xff] %vm5633, %v5470
        %5666 = vst.msk [vmem:[%s322 + $0x100] sm:$0xff] %vm5633, %v5475
        %5667 = vst.msk [vmem:[%s322 + $0x108] sm:$0xff] %vm5633, %v5480
        %5668 = vst.msk [vmem:[%s322 + $0x110] sm:$0xff] %vm5633, %v5485
        %5669 = vst.msk [vmem:[%s322 + $0x118] sm:$0xff] %vm5633, %v5490
        %5670 = vst.msk [vmem:[%s322 + $0x120] sm:$0xff] %vm5633, %v5495
        %5671 = vst.msk [vmem:[%s322 + $0x128] sm:$0xff] %vm5633, %v5500
        %5672 = vst.msk [vmem:[%s322 + $0x130] sm:$0xff] %vm5633, %v5505
        %5673 = vst.msk [vmem:[%s322 + $0x138] sm:$0xff] %vm5633, %v5510
        %5674 = vst.msk [vmem:[%s322 + $0x140] sm:$0xff] %vm5633, %v5515
        %5675 = vst.msk [vmem:[%s322 + $0x148] sm:$0xff] %vm5633, %v5520
        %5676 = vst.msk [vmem:[%s322 + $0x150] sm:$0xff] %vm5633, %v5525
        %5677 = vst.msk [vmem:[%s322 + $0x158] sm:$0xff] %vm5633, %v5530
        %5678 = vst.msk [vmem:[%s322 + $0x160] sm:$0xff] %vm5633, %v5535
        %5679 = vst.msk [vmem:[%s322 + $0x168] sm:$0xff] %vm5633, %v5540
        %5680 = vst.msk [vmem:[%s322 + $0x170] sm:$0xff] %vm5633, %v5545
        %5681 = vst.msk [vmem:[%s322 + $0x178] sm:$0xff] %vm5633, %v5550
        %5682 = vst.msk [vmem:[%s322 + $0x180] sm:$0xff] %vm5633, %v5555
        %5683 = vst.msk [vmem:[%s322 + $0x188] sm:$0xff] %vm5633, %v5560
        %5684 = vst.msk [vmem:[%s322 + $0x190] sm:$0xff] %vm5633, %v5565
        %5685 = vst.msk [vmem:[%s322 + $0x198] sm:$0xff] %vm5633, %v5570
        %5686 = vst.msk [vmem:[%s322 + $0x1a0] sm:$0xff] %vm5633, %v5575
        %5687 = vst.msk [vmem:[%s322 + $0x1a8] sm:$0xff] %vm5633, %v5580
        %5688 = vst.msk [vmem:[%s322 + $0x1b0] sm:$0xff] %vm5633, %v5585
        %5689 = vst.msk [vmem:[%s322 + $0x1b8] sm:$0xff] %vm5633, %v5590
        %5690 = vst.msk [vmem:[%s322 + $0x1c0] sm:$0xff] %vm5633, %v5595
        %5691 = vst.msk [vmem:[%s322 + $0x1c8] sm:$0xff] %vm5633, %v5600
        %5692 = vst.msk [vmem:[%s322 + $0x1d0] sm:$0xff] %vm5633, %v5605
        %5693 = vst.msk [vmem:[%s322 + $0x1d8] sm:$0xff] %vm5633, %v5610
        %5694 = vst.msk [vmem:[%s322 + $0x1e0] sm:$0xff] %vm5633, %v5615
        %5695 = vst.msk [vmem:[%s322 + $0x1e8] sm:$0xff] %vm5633, %v5620
        %5696 = vst.msk [vmem:[%s322 + $0x1f0] sm:$0xff] %vm5633, %v5625
        %5697 = vst.msk [vmem:[%s322 + $0x1f8] sm:$0xff] %vm5633, %v5630
        %p5698 = scmp.lt.s32.totalorder %s21, 1
        %s5699 = scalar_select %p5698, %s21, 1
        %s5700 = smul.addr %s5699, 64
        %s5701 = smul.addr %s5700, 8
        %s5702 = scalar_lea.vmem %s7, %s5701
        // Predicated region
        $region72: #{cnn_forward.2} parent=47 // pred_check
          %p5703 = pneg %p191
        $region73: #{cnn_forward.2} parent=47 // pred_check_branch
          %5705 = sbr.rel (%p5703) target = $region75
        $region74: #{cnn_forward.2} parent=47 // pred_region
          _
        $region75: #{cnn_forward.2} parent=47 // pred_fallthru
          _
      $region48: #{cnn_forward.2} parent=5 // pred_fallthru
        _
      %p5706 = scmp.le.s32.totalorder 2, %s16
      // Predicated region
      $region76: #{cnn_forward.2} parent=5 // pred_check
        %p5707 = pneg %p5706
      $region77: #{cnn_forward.2} parent=5 // pred_check_branch
        %5709 = sbr.rel (%p5707) target = $region79
      $region78: #{cnn_forward.2} parent=5 // pred_region
        %s5710 = ssub.s32 %s16, 2
        // Predicated region
        $region80: #{cnn_forward.2} parent=78 // pred_check
          %p5711 = pneg %p197
        $region81: #{cnn_forward.2} parent=78 // pred_check_branch
          %5713 = sbr.rel (%p5711) target = $region83
        $region82: #{cnn_forward.2} parent=78 // pred_region
          %p5714 = scmp.lt.s32.totalorder %s22, 1
          %s5715 = scalar_select %p5714, %s22, 1
          %s5716 = smul.addr %s5715, 64
          %s5717 = smul.addr %s5716, 8
          %s5718 = scalar_lea.vmem %s7, %s5717
        $region83: #{cnn_forward.2} parent=78 // pred_fallthru
          _
      $region79: #{cnn_forward.2} parent=5 // pred_fallthru
        _
    $region6: #{cnn_forward.2} parent=1 // loop_footer
      %s20 = sadd.s32 1, %s16
    $region7: #{cnn_forward.2} parent=1 // loop_footer_branch
      %15 = sbr.rel target = $region3
    $region8: #{cnn_forward.2} parent=1 // loop_exit
      _
    %5719 = vsyncpa [#allocation9], 1
    %s5720 = scalar_lea.sflag [#allocation9], 1
    %5721 = vsyncpa %s5720, 1
    %5722 = vsyncpa [#allocation11], 1
    %5723 = vsyncpa [#allocation14], 1

</llo_original>
